<compile_context>
chip_gen: v5e
topology: v5e:2x2
jax: 0.10.0
libtpu: 0.0.40
codegen_flags: <defaults>
</compile_context>

<pallas_src>
import functools

import jax
import jax.numpy as jnp
import numpy as np
from jax.experimental import pallas as pl
from jax.experimental.pallas import tpu as pltpu

G_MIN, G_MAX, EPS_G = 0.8, 1.2, 1e-6
BN_EPS = 1e-5


def _round_up(v, m):
    return (v + m - 1) // m * m


def _fold_bn(gamma, beta, mean, var):
    s = gamma / jnp.sqrt(var + BN_EPS)
    return s, beta - mean * s


# --------------------------------------------------------------------------
# Pallas kernels
# --------------------------------------------------------------------------
def sagamma_kernel(x_ref, o_ref):
    """SAGamma dynamic gamma correction.  Block = [1, C, H*W] (lane-dense)."""
    xv = x_ref[0]                                                # [C, HW]
    gray = 0.299 * xv[0:1] + 0.587 * xv[1:2] + 0.114 * xv[2:3]   # [1, HW]
    n = gray.shape[1]
    mean = jnp.sum(gray, axis=1, keepdims=True) / n              # [1, 1]
    var = jnp.sum((gray - mean) ** 2, axis=1, keepdims=True) / (n - 1)
    std = jnp.maximum(jnp.sqrt(var), EPS_G)                      # clamp_min(eps)
    gamma = G_MIN + (G_MAX - G_MIN) * mean / (mean + std)
    gamma = jnp.clip(gamma, G_MIN, G_MAX)
    gamma = jnp.where(jnp.isnan(gamma), G_MIN, gamma)            # nan_to_num
    # TODO(synk): the PyTorch module prints gamma as a debug side effect; omitted.
    # x + eps > 0, so pow(base, gamma) == exp(gamma * log(base))
    o_ref[0] = jnp.exp(gamma * jnp.log(xv + EPS_G))


def comp_enc_kernel(x_ref, w1_ref, s1_ref, b1_ref, w2_ref, s2_ref, b2_ref,
                    o_ref, ypad_ref, *, c, c_mid, h, w, k_enc):
    """Fused CARAFE 'comp' (1x1 conv + BN + SiLU) and 'enc' (kxk conv + BN).

    comp's contraction depth is tiny (K = c), so it is done as c VPU
    broadcast-FMAs (f32).  enc is k_enc^2 shifted MXU matmuls (bf16 inputs,
    f32 accumulation) against a zero-padded ycomp kept entirely in VMEM
    (no HBM im2col, no HBM ycomp round trip).

    Blocks (per batch): x_ref [1, h*w, c]  ->  o_ref [1, h*w, n_pad].
    """
    hw = h * w
    x = x_ref[0]                                                 # [hw, c]

    # --- comp: 1x1 conv as broadcast-FMAs + folded BN + SiLU (all f32 VPU) ---
    y = jnp.zeros((hw, c_mid), jnp.float32)
    for ch in range(c):                                          # c is tiny
        y = y + x[:, ch:ch + 1] * w1_ref[ch:ch + 1, :]           # [hw,1]*[1,c_mid]
    y = y * s1_ref[...] + b1_ref[...]
    y = y * jax.nn.sigmoid(y)                                    # SiLU

    # --- zero-pad ycomp spatially in VMEM: [h+2p, w+2p, c_mid] ---
    p = k_enc // 2
    ypad_ref[...] = jnp.zeros_like(ypad_ref)
    ypad_ref[p:p + h, p:p + w, :] = y.reshape(h, w, c_mid)

    # --- enc: kxk conv as shifted matmuls, bf16 MXU inputs, f32 accumulate ---
    n_pad = o_ref.shape[-1]
    acc = jnp.zeros((hw, n_pad), jnp.float32)
    for ki in range(k_enc):
        for kj in range(k_enc):
            patch = ypad_ref[ki:ki + h, kj:kj + w, :].reshape(hw, c_mid)
            acc = acc + jnp.dot(patch.astype(jnp.bfloat16),
                                w2_ref[ki * k_enc + kj],
                                preferred_element_type=jnp.float32)
    o_ref[0] = acc * s2_ref[...] + b2_ref[...]                   # folded BN, no act


def carafe_reassemble_kernel(w_ref, x_ref, o_ref, xpad_ref,
                             *, k_up, scale, c, h, w):
    """CARAFE reassembly with upsample / unfold / pixel-shuffle folded in.

    Since the unfold padding (k_up//2*scale) and dilation (scale) are exact
    multiples of the nearest-upsample factor, the reassembly is equivalent to,
    for every sub-pixel position (di, dj):

      O[c, s*io+di, s*jo+dj] = sum_{ki,kj}
          softmax_k( wlog[k*s^2 + di*s + dj, io, jo] ) * xpad[c, io+ki, jo+kj]

    with xpad = x zero-padded by k_up//2 at the *original* resolution, so the
    4x upsampled tensor and the shuffled weight map are never materialized.

    Blocks (per batch): w_ref [1, k_up^2*s^2, h, w]; x_ref [1, c, h, w];
    o_ref [1, s^2, c, h, w] (sub-pixel major; interleaved to NCHW in the glue).
    """
    pad = k_up // 2
    ss = scale * scale
    ku2 = k_up * k_up

    xpad_ref[...] = jnp.zeros_like(xpad_ref)
    xpad_ref[:, pad:pad + h, pad:pad + w] = x_ref[0]

    # softmax over the k_up^2 kernel-position axis, per sub-pixel (di, dj)
    wv = w_ref[0].reshape(ku2, ss, h, w)                         # leading split: free
    m = jnp.max(wv, axis=0, keepdims=True)
    e = jnp.exp(wv - m)
    wsm = e * pl.reciprocal(jnp.sum(e, axis=0, keepdims=True), approx=True)

    acc = jnp.zeros((ss, c, h, w), jnp.float32)
    for ki in range(k_up):
        for kj in range(k_up):
            patch = xpad_ref[:, ki:ki + h, kj:kj + w]            # [c, h, w]
            acc = acc + wsm[ki * k_up + kj][:, None] * patch[None]
    o_ref[0] = acc


# --------------------------------------------------------------------------
# Pallas wrappers
# --------------------------------------------------------------------------
def sagamma_pallas(x):
    b, c, hw = x.shape
    return pl.pallas_call(
        sagamma_kernel,
        out_shape=jax.ShapeDtypeStruct((b, c, hw), jnp.float32),
        grid=(b,),
        in_specs=[pl.BlockSpec((1, c, hw), lambda i: (i, 0, 0))],
        out_specs=pl.BlockSpec((1, c, hw), lambda i: (i, 0, 0)),
        compiler_params=pltpu.CompilerParams(dimension_semantics=("parallel",)),
    )(x)


def comp_enc_pallas(x_nhwc, w1t, s1, b1, w2t, s2, b2, *, h, w, k_enc):
    b, hw, c = x_nhwc.shape
    c_mid = w1t.shape[1]
    n_pad = w2t.shape[2]
    p = k_enc // 2
    kern = functools.partial(comp_enc_kernel, c=c, c_mid=c_mid,
                             h=h, w=w, k_enc=k_enc)
    return pl.pallas_call(
        kern,
        out_shape=jax.ShapeDtypeStruct((b, hw, n_pad), jnp.float32),
        grid=(b,),
        in_specs=[
            pl.BlockSpec((1, hw, c), lambda i: (i, 0, 0)),
            pl.BlockSpec((c, c_mid), lambda i: (0, 0)),
            pl.BlockSpec((1, c_mid), lambda i: (0, 0)),
            pl.BlockSpec((1, c_mid), lambda i: (0, 0)),
            pl.BlockSpec((k_enc * k_enc, c_mid, n_pad), lambda i: (0, 0, 0)),
            pl.BlockSpec((1, n_pad), lambda i: (0, 0)),
            pl.BlockSpec((1, n_pad), lambda i: (0, 0)),
        ],
        out_specs=pl.BlockSpec((1, hw, n_pad), lambda i: (i, 0, 0)),
        scratch_shapes=[pltpu.VMEM((h + 2 * p, w + 2 * p, c_mid), jnp.float32)],
        compiler_params=pltpu.CompilerParams(dimension_semantics=("parallel",)),
    )(x_nhwc, w1t, s1, b1, w2t, s2, b2)


def carafe_reassemble_pallas(wlog, x_nchw, *, k_up, scale):
    b, n_w, h, w = wlog.shape
    c = x_nchw.shape[1]
    ss = scale * scale
    pad = k_up // 2
    kern = functools.partial(carafe_reassemble_kernel, k_up=k_up, scale=scale,
                             c=c, h=h, w=w)
    return pl.pallas_call(
        kern,
        out_shape=jax.ShapeDtypeStruct((b, ss, c, h, w), jnp.float32),
        grid=(b,),
        in_specs=[
            pl.BlockSpec((1, n_w, h, w), lambda i: (i, 0, 0, 0)),
            pl.BlockSpec((1, c, h, w), lambda i: (i, 0, 0, 0)),
        ],
        out_specs=pl.BlockSpec((1, ss, c, h, w), lambda i: (i, 0, 0, 0, 0)),
        scratch_shapes=[pltpu.VMEM((c, h + 2 * pad, w + 2 * pad), jnp.float32)],
        compiler_params=pltpu.CompilerParams(dimension_semantics=("parallel",)),
    )(wlog, x_nchw)


# --------------------------------------------------------------------------
# GCModule forward (glue in plain JAX, compute in Pallas)
# --------------------------------------------------------------------------
def gcmodule_forward_pallas(x, params, *, k_enc=3, k_up=5, c_mid=64, scale=2):
    b, c, h, w = x.shape
    h2, w2 = h * scale, w * scale
    n_w = (scale * k_up) ** 2
    n_pad = _round_up(n_w, 128)

    # --- SAGamma on a lane-dense [b, c, h*w] view ---
    xg = sagamma_pallas(x.reshape(b, c, h * w))                  # [b, c, hw]

    # --- weight prep (done once, in the glue) ---
    w1t = params["comp_w"].reshape(c_mid, c).T                   # [c, c_mid]
    s1, b1 = _fold_bn(params["comp_bn_g"], params["comp_bn_b"],
                      params["comp_bn_m"], params["comp_bn_v"])
    w2t = params["enc_w"].transpose(2, 3, 1, 0).reshape(k_enc * k_enc, c_mid, n_w)
    w2t = jnp.pad(w2t, ((0, 0), (0, 0), (0, n_pad - n_w))).astype(jnp.bfloat16)
    s2, b2 = _fold_bn(params["enc_bn_g"], params["enc_bn_b"],
                      params["enc_bn_m"], params["enc_bn_v"])
    s2 = jnp.pad(s2, (0, n_pad - n_w), constant_values=1.0)
    b2 = jnp.pad(b2, (0, n_pad - n_w))

    # --- fused comp(1x1)+BN+SiLU and enc(3x3)+BN, lane-dense [hw, 128] output ---
    x_nhwc = xg.transpose(0, 2, 1)                               # [b, hw, c]
    wlog = comp_enc_pallas(x_nhwc, w1t,
                           s1.reshape(1, c_mid), b1.reshape(1, c_mid),
                           w2t, s2.reshape(1, n_pad), b2.reshape(1, n_pad),
                           h=h, w=w, k_enc=k_enc)                # [b, hw, n_pad]

    # --- reassembly (pixel-shuffle / upsample / unfold folded into the kernel) ---
    wlog = wlog[:, :, :n_w].reshape(b, h, w, n_w).transpose(0, 3, 1, 2)
    out5 = carafe_reassemble_pallas(wlog, xg.reshape(b, c, h, w),
                                    k_up=k_up, scale=scale)      # [b, s*s, c, h, w]

    # interleave sub-pixel positions back to NCHW [b, c, h*s, w*s]
    out = (out5.reshape(b, scale, scale, c, h, w)
               .transpose(0, 3, 4, 1, 5, 2)
               .reshape(b, c, h2, w2))
    return out


# --------------------------------------------------------------------------
# Pure-JAX reference (mirrors the PyTorch dataflow; bf16 enc matmul to match
# the kernel's intended numerics)
# --------------------------------------------------------------------------
def gcmodule_forward_ref(x, params, *, k_enc=3, k_up=5, c_mid=64, scale=2):
    b, c, h, w = x.shape
    h2, w2 = h * scale, w * scale
    n_w = (scale * k_up) ** 2

    # SAGamma
    gray = 0.299 * x[:, 0] + 0.587 * x[:, 1] + 0.114 * x[:, 2]
    n = gray.shape[1] * gray.shape[2]
    mean = jnp.mean(gray, axis=(1, 2), keepdims=True)
    var = jnp.sum((gray - mean) ** 2, axis=(1, 2), keepdims=True) / (n - 1)
    std = jnp.maximum(jnp.sqrt(var), EPS_G)
    g = jnp.clip(G_MIN + (G_MAX - G_MIN) * mean / (mean + std), G_MIN, G_MAX)
    g = jnp.where(jnp.isnan(g), G_MIN, g)
    xg = jnp.exp(g[:, None] * jnp.log(x + EPS_G))

    # comp: 1x1 conv + BN + SiLU (true f32)
    w1 = params["comp_w"].reshape(c_mid, c).T
    s1, b1 = _fold_bn(params["comp_bn_g"], params["comp_bn_b"],
                      params["comp_bn_m"], params["comp_bn_v"])
    xm = xg.transpose(0, 2, 3, 1).reshape(b * h * w, c)
    y = jnp.dot(xm, w1, precision=jax.lax.Precision.HIGHEST) * s1 + b1
    y = y * jax.nn.sigmoid(y)
    ycomp = y.reshape(b, h, w, c_mid).transpose(0, 3, 1, 2)

    # enc: 3x3 conv (pad 1) + BN, no act; bf16 matmul inputs (matches the kernel)
    pad = k_enc // 2
    yp = jnp.pad(ycomp, ((0, 0), (0, 0), (pad, pad), (pad, pad)))
    patches = jnp.stack(
        [yp[:, :, ki:ki + h, kj:kj + w] for ki in range(k_enc) for kj in range(k_enc)],
        axis=2)                                                  # [b, c_mid, 9, h, w]
    pm = patches.transpose(0, 3, 4, 1, 2).reshape(b * h * w, c_mid * k_enc * k_enc)
    w2m = params["enc_w"].reshape(n_w, c_mid * k_enc * k_enc).T
    s2, b2 = _fold_bn(params["enc_bn_g"], params["enc_bn_b"],
                      params["enc_bn_m"], params["enc_bn_v"])
    wlog = jnp.dot(pm.astype(jnp.bfloat16), w2m.astype(jnp.bfloat16),
                   preferred_element_type=jnp.float32) * s2 + b2
    wlog = wlog.reshape(b, h, w, n_w).transpose(0, 3, 1, 2)      # [b, n_w, h, w]

    # pixel shuffle + softmax
    ku2 = k_up * k_up
    wps = wlog.reshape(b, ku2, scale, scale, h, w)
    wps = wps.transpose(0, 1, 4, 2, 5, 3).reshape(b, ku2, h2, w2)
    wps = jax.nn.softmax(wps, axis=1)

    # nearest upsample + dilated unfold + einsum reassembly
    xup = jnp.repeat(jnp.repeat(xg, scale, axis=2), scale, axis=3)
    upad = (k_up // 2) * scale
    xpad = jnp.pad(xup, ((0, 0), (0, 0), (upad, upad), (upad, upad)))
    cols = jnp.stack(
        [xpad[:, :, ki * scale:ki * scale + h2, kj * scale:kj * scale + w2]
         for ki in range(k_up) for kj in range(k_up)], axis=2)   # [b, c, k^2, h2, w2]
    return jnp.sum(wps[:, None] * cols, axis=2)


# --------------------------------------------------------------------------
# Deterministic synthetic parameters
# --------------------------------------------------------------------------
def init_params(key, c, c_mid, k_enc, k_up, scale):
    n_w = (scale * k_up) ** 2
    ks = jax.random.split(key, 10)
    return {
        "comp_w": 0.1 * jax.random.normal(ks[0], (c_mid, c, 1, 1), jnp.float32),
        "comp_bn_g": 1.0 + 0.1 * jax.random.normal(ks[1], (c_mid,), jnp.float32),
        "comp_bn_b": 0.1 * jax.random.normal(ks[2], (c_mid,), jnp.float32),
        "comp_bn_m": 0.1 * jax.random.normal(ks[3], (c_mid,), jnp.float32),
        "comp_bn_v": jnp.abs(1.0 + 0.1 * jax.random.normal(ks[4], (c_mid,), jnp.float32)),
        "enc_w": 0.05 * jax.random.normal(ks[5], (n_w, c_mid, k_enc, k_enc), jnp.float32),
        "enc_bn_g": 1.0 + 0.1 * jax.random.normal(ks[6], (n_w,), jnp.float32),
        "enc_bn_b": 0.1 * jax.random.normal(ks[7], (n_w,), jnp.float32),
        "enc_bn_m": 0.1 * jax.random.normal(ks[8], (n_w,), jnp.float32),
        "enc_bn_v": jnp.abs(1.0 + 0.1 * jax.random.normal(ks[9], (n_w,), jnp.float32)),
    }


if __name__ == "__main__":
    key = jax.random.PRNGKey(0)
    kx, kp = jax.random.split(key)

    b, c, h, w = 2, 4, 16, 16          # NCHW; gray path needs >= 3 channels
    scale, k_up, k_enc, c_mid = 2, 5, 3, 64

    # image-like non-negative input (pow with fractional exponent needs x >= 0)
    x = jax.random.uniform(kx, (b, c, h, w), jnp.float32)
    params = init_params(kp, c, c_mid, k_enc, k_up, scale)

    fwd = jax.jit(functools.partial(gcmodule_forward_pallas, k_enc=k_enc,
                                    k_up=k_up, c_mid=c_mid, scale=scale))
    out = jax.block_until_ready(fwd(x, params))
    assert out.shape == (b, c, h * scale, w * scale), out.shape

    ref = gcmodule_forward_ref(x, params, k_enc=k_enc, k_up=k_up,
                               c_mid=c_mid, scale=scale)
    # tolerance covers bf16 MXU inputs + approx-reciprocal softmax vs. the
    # matched bf16 reference (accumulation-order / EUP-approx level differences)
    np.testing.assert_allclose(np.asarray(out), np.asarray(ref),
                               rtol=5e-3, atol=2e-3)

    print("KERNEL_OK")
</pallas_src>

<mosaic_0001>
module attributes {stable_mosaic.version = 11 : i64} {
  func.func @sagamma_kernel(%arg0: i32, %arg1: memref<1x4x256xf32, #tpu.memory_space<vmem>>, %arg2: memref<1x4x256xf32, #tpu.memory_space<vmem>>) attributes {dimension_semantics = [#tpu.dimension_semantics<parallel>], iteration_bounds = array<i64: 2>, scalar_prefetch = 0 : i64, scratch_operands = 0 : i64, tpu.core_type = #tpu.core_type<tc>, window_params = [{transform_indices = @transform_0, window_bounds = array<i64: 1, 4, 256>}, {transform_indices = @transform_1, window_bounds = array<i64: 1, 4, 256>}]} {
    %c0 = arith.constant 0 : index
    %c0_0 = arith.constant 0 : index
    %c0_1 = arith.constant 0 : index
    %0 = vector.load %arg1[%c0, %c0_0, %c0_1] : memref<1x4x256xf32, #tpu.memory_space<vmem>>, vector<1x4x256xf32>
    %1 = vector.shape_cast %0 : vector<1x4x256xf32> to vector<4x256xf32>
    %2 = vector.extract_strided_slice %1 {offsets = [0, 0], sizes = [1, 256], strides = [1, 1]} : vector<4x256xf32> to vector<1x256xf32>
    %cst = arith.constant 2.990000e-01 : f32
    %3 = vector.broadcast %cst : f32 to vector<1x256xf32>
    %4 = arith.mulf %3, %2 : vector<1x256xf32>
    %5 = vector.extract_strided_slice %1 {offsets = [1, 0], sizes = [1, 256], strides = [1, 1]} : vector<4x256xf32> to vector<1x256xf32>
    %cst_2 = arith.constant 5.870000e-01 : f32
    %6 = vector.broadcast %cst_2 : f32 to vector<1x256xf32>
    %7 = arith.mulf %6, %5 : vector<1x256xf32>
    %8 = arith.addf %4, %7 : vector<1x256xf32>
    %9 = vector.extract_strided_slice %1 {offsets = [2, 0], sizes = [1, 256], strides = [1, 1]} : vector<4x256xf32> to vector<1x256xf32>
    %cst_3 = arith.constant 1.140000e-01 : f32
    %10 = vector.broadcast %cst_3 : f32 to vector<1x256xf32>
    %11 = arith.mulf %10, %9 : vector<1x256xf32>
    %12 = arith.addf %8, %11 : vector<1x256xf32>
    %cst_4 = arith.constant dense<0.000000e+00> : vector<1xf32>
    %13 = vector.multi_reduction <add>, %12, %cst_4 [1] : vector<1x256xf32> to vector<1xf32>
    %14 = vector.shape_cast %13 : vector<1xf32> to vector<1x1xf32>
    %cst_5 = arith.constant 2.560000e+02 : f32
    %15 = vector.broadcast %cst_5 : f32 to vector<1x1xf32>
    %16 = arith.divf %14, %15 : vector<1x1xf32>
    %17 = vector.broadcast %16 : vector<1x1xf32> to vector<1x256xf32>
    %18 = arith.subf %12, %17 : vector<1x256xf32>
    %19 = arith.mulf %18, %18 : vector<1x256xf32>
    %cst_6 = arith.constant dense<0.000000e+00> : vector<1xf32>
    %20 = vector.multi_reduction <add>, %19, %cst_6 [1] : vector<1x256xf32> to vector<1xf32>
    %21 = vector.shape_cast %20 : vector<1xf32> to vector<1x1xf32>
    %cst_7 = arith.constant 2.550000e+02 : f32
    %22 = vector.broadcast %cst_7 : f32 to vector<1x1xf32>
    %23 = arith.divf %21, %22 : vector<1x1xf32>
    %24 = math.sqrt %23 : vector<1x1xf32>
    %cst_8 = arith.constant 9.99999997E-7 : f32
    %25 = vector.broadcast %cst_8 : f32 to vector<1x1xf32>
    %26 = arith.maximumf %24, %25 : vector<1x1xf32>
    %cst_9 = arith.constant 4.000000e-01 : f32
    %27 = vector.broadcast %cst_9 : f32 to vector<1x1xf32>
    %28 = arith.mulf %27, %16 : vector<1x1xf32>
    %29 = arith.addf %16, %26 : vector<1x1xf32>
    %30 = arith.divf %28, %29 : vector<1x1xf32>
    %cst_10 = arith.constant 8.000000e-01 : f32
    %31 = vector.broadcast %cst_10 : f32 to vector<1x1xf32>
    %32 = arith.addf %31, %30 : vector<1x1xf32>
    %cst_11 = arith.constant 8.000000e-01 : f32
    %cst_12 = arith.constant 1.200000e+00 : f32
    %33 = vector.broadcast %cst_11 : f32 to vector<1x1xf32>
    %34 = arith.maximumf %33, %32 : vector<1x1xf32>
    %35 = vector.broadcast %cst_12 : f32 to vector<1x1xf32>
    %36 = arith.minimumf %35, %34 : vector<1x1xf32>
    %37 = arith.cmpf one, %36, %36 : vector<1x1xf32>
    %cst_13 = arith.constant 8.000000e-01 : f32
    %38 = vector.broadcast %cst_13 : f32 to vector<1x1xf32>
    %39 = arith.select %37, %38, %36 : vector<1x1xi1>, vector<1x1xf32>
    %cst_14 = arith.constant 9.99999997E-7 : f32
    %40 = vector.broadcast %cst_14 : f32 to vector<4x256xf32>
    %41 = arith.addf %1, %40 : vector<4x256xf32>
    %42 = math.log %41 : vector<4x256xf32>
    %43 = vector.broadcast %39 : vector<1x1xf32> to vector<4x256xf32>
    %44 = arith.mulf %43, %42 : vector<4x256xf32>
    %45 = math.exp %44 : vector<4x256xf32>
    %c0_15 = arith.constant 0 : index
    %c0_16 = arith.constant 0 : index
    %c0_17 = arith.constant 0 : index
    %46 = vector.load %arg2[%c0_15, %c0_16, %c0_17] : memref<1x4x256xf32, #tpu.memory_space<vmem>>, vector<1x4x256xf32>
    %47 = vector.shape_cast %46 : vector<1x4x256xf32> to vector<4x256xf32>
    %48 = vector.shape_cast %45 : vector<4x256xf32> to vector<1x4x256xf32>
    tpu.vector_store %arg2[%c0_15, %c0_16, %c0_17], %48 {strides = array<i32>} : memref<1x4x256xf32, #tpu.memory_space<vmem>>, vector<1x4x256xf32>,
    return
  }
  func.func @transform_0(%arg0: i32) -> (i32, i32, i32) {
    %c0_i32 = arith.constant 0 : i32
    %c0_i32_0 = arith.constant 0 : i32
    %c0_i32_1 = arith.constant 0 : i32
    return %arg0, %c0_i32, %c0_i32_0 : i32, i32, i32
  }
  func.func @transform_1(%arg0: i32) -> (i32, i32, i32) {
    %c0_i32 = arith.constant 0 : i32
    %c0_i32_0 = arith.constant 0 : i32
    %c0_i32_1 = arith.constant 0 : i32
    return %arg0, %c0_i32, %c0_i32_0 : i32, i32, i32
  }
}

module attributes {stable_mosaic.version = 11 : i64} {
  func.func @comp_enc_kernel(%arg0: i32, %arg1: memref<1x256x4xf32, #tpu.memory_space<vmem>>, %arg2: memref<4x64xf32, #tpu.memory_space<vmem>>, %arg3: memref<1x64xf32, #tpu.memory_space<vmem>>, %arg4: memref<1x64xf32, #tpu.memory_space<vmem>>, %arg5: memref<9x64x128xbf16, #tpu.memory_space<vmem>>, %arg6: memref<1x128xf32, #tpu.memory_space<vmem>>, %arg7: memref<1x128xf32, #tpu.memory_space<vmem>>, %arg8: memref<1x256x128xf32, #tpu.memory_space<vmem>>, %arg9: memref<18x18x64xf32, #tpu.memory_space<vmem>>) attributes {dimension_semantics = [#tpu.dimension_semantics<parallel>], iteration_bounds = array<i64: 2>, scalar_prefetch = 0 : i64, scratch_operands = 1 : i64, tpu.core_type = #tpu.core_type<tc>, window_params = [{transform_indices = @transform_0, window_bounds = array<i64: 1, 256, 4>}, {pipeline_mode = #tpu.pipeline_mode<synchronous>, transform_indices = @transform_1, window_bounds = array<i64: 4, 64>}, {pipeline_mode = #tpu.pipeline_mode<synchronous>, transform_indices = @transform_2, window_bounds = array<i64: 1, 64>}, {pipeline_mode = #tpu.pipeline_mode<synchronous>, transform_indices = @transform_3, window_bounds = array<i64: 1, 64>}, {pipeline_mode = #tpu.pipeline_mode<synchronous>, transform_indices = @transform_4, window_bounds = array<i64: 9, 64, 128>}, {pipeline_mode = #tpu.pipeline_mode<synchronous>, transform_indices = @transform_5, window_bounds = array<i64: 1, 128>}, {pipeline_mode = #tpu.pipeline_mode<synchronous>, transform_indices = @transform_6, window_bounds = array<i64: 1, 128>}, {transform_indices = @transform_7, window_bounds = array<i64: 1, 256, 128>}]} {
    %c0 = arith.constant 0 : index
    %c0_0 = arith.constant 0 : index
    %c0_1 = arith.constant 0 : index
    %0 = vector.load %arg1[%c0, %c0_0, %c0_1] : memref<1x256x4xf32, #tpu.memory_space<vmem>>, vector<1x256x4xf32>
    %1 = vector.shape_cast %0 : vector<1x256x4xf32> to vector<256x4xf32>
    %cst = arith.constant 0.000000e+00 : f32
    %2 = vector.broadcast %cst : f32 to vector<256x64xf32>
    %3 = vector.extract_strided_slice %1 {offsets = [0, 0], sizes = [256, 1], strides = [1, 1]} : vector<256x4xf32> to vector<256x1xf32>
    %c0_2 = arith.constant 0 : index
    %c0_3 = arith.constant 0 : index
    %4 = vector.load %arg2[%c0_2, %c0_3] : memref<4x64xf32, #tpu.memory_space<vmem>>, vector<1x64xf32>
    %5 = vector.broadcast %3 : vector<256x1xf32> to vector<256x64xf32>
    %6 = vector.broadcast %4 : vector<1x64xf32> to vector<256x64xf32>
    %7 = arith.mulf %5, %6 : vector<256x64xf32>
    %8 = arith.addf %2, %7 : vector<256x64xf32>
    %9 = vector.extract_strided_slice %1 {offsets = [0, 1], sizes = [256, 1], strides = [1, 1]} : vector<256x4xf32> to vector<256x1xf32>
    %c1 = arith.constant 1 : index
    %c0_4 = arith.constant 0 : index
    %10 = vector.load %arg2[%c1, %c0_4] : memref<4x64xf32, #tpu.memory_space<vmem>>, vector<1x64xf32>
    %11 = vector.broadcast %9 : vector<256x1xf32> to vector<256x64xf32>
    %12 = vector.broadcast %10 : vector<1x64xf32> to vector<256x64xf32>
    %13 = arith.mulf %11, %12 : vector<256x64xf32>
    %14 = arith.addf %8, %13 : vector<256x64xf32>
    %15 = vector.extract_strided_slice %1 {offsets = [0, 2], sizes = [256, 1], strides = [1, 1]} : vector<256x4xf32> to vector<256x1xf32>
    %c2 = arith.constant 2 : index
    %c0_5 = arith.constant 0 : index
    %16 = vector.load %arg2[%c2, %c0_5] : memref<4x64xf32, #tpu.memory_space<vmem>>, vector<1x64xf32>
    %17 = vector.broadcast %15 : vector<256x1xf32> to vector<256x64xf32>
    %18 = vector.broadcast %16 : vector<1x64xf32> to vector<256x64xf32>
    %19 = arith.mulf %17, %18 : vector<256x64xf32>
    %20 = arith.addf %14, %19 : vector<256x64xf32>
    %21 = vector.extract_strided_slice %1 {offsets = [0, 3], sizes = [256, 1], strides = [1, 1]} : vector<256x4xf32> to vector<256x1xf32>
    %c3 = arith.constant 3 : index
    %c0_6 = arith.constant 0 : index
    %22 = vector.load %arg2[%c3, %c0_6] : memref<4x64xf32, #tpu.memory_space<vmem>>, vector<1x64xf32>
    %23 = vector.broadcast %21 : vector<256x1xf32> to vector<256x64xf32>
    %24 = vector.broadcast %22 : vector<1x64xf32> to vector<256x64xf32>
    %25 = arith.mulf %23, %24 : vector<256x64xf32>
    %26 = arith.addf %20, %25 : vector<256x64xf32>
    %c0_7 = arith.constant 0 : index
    %c0_8 = arith.constant 0 : index
    %27 = vector.load %arg3[%c0_7, %c0_8] : memref<1x64xf32, #tpu.memory_space<vmem>>, vector<1x64xf32>
    %28 = vector.broadcast %27 : vector<1x64xf32> to vector<256x64xf32>
    %29 = arith.mulf %26, %28 : vector<256x64xf32>
    %c0_9 = arith.constant 0 : index
    %c0_10 = arith.constant 0 : index
    %30 = vector.load %arg4[%c0_9, %c0_10] : memref<1x64xf32, #tpu.memory_space<vmem>>, vector<1x64xf32>
    %31 = vector.broadcast %30 : vector<1x64xf32> to vector<256x64xf32>
    %32 = arith.addf %29, %31 : vector<256x64xf32>
    %33 = arith.negf %32 : vector<256x64xf32>
    %34 = math.exp %33 : vector<256x64xf32>
    %cst_11 = arith.constant 1.000000e+00 : f32
    %35 = vector.broadcast %cst_11 : f32 to vector<256x64xf32>
    %36 = arith.addf %35, %34 : vector<256x64xf32>
    %37 = arith.divf %35, %36 : vector<256x64xf32>
    %38 = arith.mulf %32, %37 : vector<256x64xf32>
    %cst_12 = arith.constant 0.000000e+00 : f32
    %39 = vector.broadcast %cst_12 : f32 to vector<18x18x64xf32>
    %c0_13 = arith.constant 0 : index
    %c0_14 = arith.constant 0 : index
    %c0_15 = arith.constant 0 : index
    %40 = vector.load %arg9[%c0_13, %c0_14, %c0_15] : memref<18x18x64xf32, #tpu.memory_space<vmem>>, vector<18x18x64xf32>
    tpu.vector_store %arg9[%c0_13, %c0_14, %c0_15], %39 {strides = array<i32>} : memref<18x18x64xf32, #tpu.memory_space<vmem>>, vector<18x18x64xf32>,
    %41 = vector.shape_cast %38 : vector<256x64xf32> to vector<16x16x64xf32>
    %c1_16 = arith.constant 1 : index
    %c1_17 = arith.constant 1 : index
    %c0_18 = arith.constant 0 : index
    %42 = vector.load %arg9[%c1_16, %c1_17, %c0_18] : memref<18x18x64xf32, #tpu.memory_space<vmem>>, vector<16x16x64xf32>
    tpu.vector_store %arg9[%c1_16, %c1_17, %c0_18], %41 {strides = array<i32>} : memref<18x18x64xf32, #tpu.memory_space<vmem>>, vector<16x16x64xf32>,
    %cst_19 = arith.constant 0.000000e+00 : f32
    %43 = vector.broadcast %cst_19 : f32 to vector<256x128xf32>
    %c0_20 = arith.constant 0 : index
    %c0_21 = arith.constant 0 : index
    %c0_22 = arith.constant 0 : index
    %44 = vector.load %arg9[%c0_20, %c0_21, %c0_22] : memref<18x18x64xf32, #tpu.memory_space<vmem>>, vector<16x16x64xf32>
    %45 = vector.shape_cast %44 : vector<16x16x64xf32> to vector<256x64xf32>
    %46 = arith.truncf %45 : vector<256x64xf32> to vector<256x64xbf16>
    %c0_23 = arith.constant 0 : index
    %c0_24 = arith.constant 0 : index
    %c0_25 = arith.constant 0 : index
    %47 = vector.load %arg5[%c0_23, %c0_24, %c0_25] : memref<9x64x128xbf16, #tpu.memory_space<vmem>>, vector<1x64x128xbf16>
    %48 = vector.shape_cast %47 : vector<1x64x128xbf16> to vector<64x128xbf16>
    %cst_26 = arith.constant dense<0.000000e+00> : vector<256x128xf32>
    %49 = tpu.matmul %46, %48, %cst_26 {dimension_numbers = #tpu.dot_dimension_numbers<[1], [0], [0], [1], [0, 0, 1, 1], [], []>} : vector<256x64xbf16>, vector<64x128xbf16>, vector<256x128xf32> -> vector<256x128xf32>
    %50 = arith.addf %43, %49 : vector<256x128xf32>
    %c0_27 = arith.constant 0 : index
    %c1_28 = arith.constant 1 : index
    %c0_29 = arith.constant 0 : index
    %51 = vector.load %arg9[%c0_27, %c1_28, %c0_29] : memref<18x18x64xf32, #tpu.memory_space<vmem>>, vector<16x16x64xf32>
    %52 = vector.shape_cast %51 : vector<16x16x64xf32> to vector<256x64xf32>
    %53 = arith.truncf %52 : vector<256x64xf32> to vector<256x64xbf16>
    %c1_30 = arith.constant 1 : index
    %c0_31 = arith.constant 0 : index
    %c0_32 = arith.constant 0 : index
    %54 = vector.load %arg5[%c1_30, %c0_31, %c0_32] : memref<9x64x128xbf16, #tpu.memory_space<vmem>>, vector<1x64x128xbf16>
    %55 = vector.shape_cast %54 : vector<1x64x128xbf16> to vector<64x128xbf16>
    %cst_33 = arith.constant dense<0.000000e+00> : vector<256x128xf32>
    %56 = tpu.matmul %53, %55, %cst_33 {dimension_numbers = #tpu.dot_dimension_numbers<[1], [0], [0], [1], [0, 0, 1, 1], [], []>} : vector<256x64xbf16>, vector<64x128xbf16>, vector<256x128xf32> -> vector<256x128xf32>
    %57 = arith.addf %50, %56 : vector<256x128xf32>
    %c0_34 = arith.constant 0 : index
    %c2_35 = arith.constant 2 : index
    %c0_36 = arith.constant 0 : index
    %58 = vector.load %arg9[%c0_34, %c2_35, %c0_36] : memref<18x18x64xf32, #tpu.memory_space<vmem>>, vector<16x16x64xf32>
    %59 = vector.shape_cast %58 : vector<16x16x64xf32> to vector<256x64xf32>
    %60 = arith.truncf %59 : vector<256x64xf32> to vector<256x64xbf16>
    %c2_37 = arith.constant 2 : index
    %c0_38 = arith.constant 0 : index
    %c0_39 = arith.constant 0 : index
    %61 = vector.load %arg5[%c2_37, %c0_38, %c0_39] : memref<9x64x128xbf16, #tpu.memory_space<vmem>>, vector<1x64x128xbf16>
    %62 = vector.shape_cast %61 : vector<1x64x128xbf16> to vector<64x128xbf16>
    %cst_40 = arith.constant dense<0.000000e+00> : vector<256x128xf32>
    %63 = tpu.matmul %60, %62, %cst_40 {dimension_numbers = #tpu.dot_dimension_numbers<[1], [0], [0], [1], [0, 0, 1, 1], [], []>} : vector<256x64xbf16>, vector<64x128xbf16>, vector<256x128xf32> -> vector<256x128xf32>
    %64 = arith.addf %57, %63 : vector<256x128xf32>
    %c1_41 = arith.constant 1 : index
    %c0_42 = arith.constant 0 : index
    %c0_43 = arith.constant 0 : index
    %65 = vector.load %arg9[%c1_41, %c0_42, %c0_43] : memref<18x18x64xf32, #tpu.memory_space<vmem>>, vector<16x16x64xf32>
    %66 = vector.shape_cast %65 : vector<16x16x64xf32> to vector<256x64xf32>
    %67 = arith.truncf %66 : vector<256x64xf32> to vector<256x64xbf16>
    %c3_44 = arith.constant 3 : index
    %c0_45 = arith.constant 0 : index
    %c0_46 = arith.constant 0 : index
    %68 = vector.load %arg5[%c3_44, %c0_45, %c0_46] : memref<9x64x128xbf16, #tpu.memory_space<vmem>>, vector<1x64x128xbf16>
    %69 = vector.shape_cast %68 : vector<1x64x128xbf16> to vector<64x128xbf16>
    %cst_47 = arith.constant dense<0.000000e+00> : vector<256x128xf32>
    %70 = tpu.matmul %67, %69, %cst_47 {dimension_numbers = #tpu.dot_dimension_numbers<[1], [0], [0], [1], [0, 0, 1, 1], [], []>} : vector<256x64xbf16>, vector<64x128xbf16>, vector<256x128xf32> -> vector<256x128xf32>
    %71 = arith.addf %64, %70 : vector<256x128xf32>
    %c1_48 = arith.constant 1 : index
    %c1_49 = arith.constant 1 : index
    %c0_50 = arith.constant 0 : index
    %72 = vector.load %arg9[%c1_48, %c1_49, %c0_50] : memref<18x18x64xf32, #tpu.memory_space<vmem>>, vector<16x16x64xf32>
    %73 = vector.shape_cast %72 : vector<16x16x64xf32> to vector<256x64xf32>
    %74 = arith.truncf %73 : vector<256x64xf32> to vector<256x64xbf16>
    %c4 = arith.constant 4 : index
    %c0_51 = arith.constant 0 : index
    %c0_52 = arith.constant 0 : index
    %75 = vector.load %arg5[%c4, %c0_51, %c0_52] : memref<9x64x128xbf16, #tpu.memory_space<vmem>>, vector<1x64x128xbf16>
    %76 = vector.shape_cast %75 : vector<1x64x128xbf16> to vector<64x128xbf16>
    %cst_53 = arith.constant dense<0.000000e+00> : vector<256x128xf32>
    %77 = tpu.matmul %74, %76, %cst_53 {dimension_numbers = #tpu.dot_dimension_numbers<[1], [0], [0], [1], [0, 0, 1, 1], [], []>} : vector<256x64xbf16>, vector<64x128xbf16>, vector<256x128xf32> -> vector<256x128xf32>
    %78 = arith.addf %71, %77 : vector<256x128xf32>
    %c1_54 = arith.constant 1 : index
    %c2_55 = arith.constant 2 : index
    %c0_56 = arith.constant 0 : index
    %79 = vector.load %arg9[%c1_54, %c2_55, %c0_56] : memref<18x18x64xf32, #tpu.memory_space<vmem>>, vector<16x16x64xf32>
    %80 = vector.shape_cast %79 : vector<16x16x64xf32> to vector<256x64xf32>
    %81 = arith.truncf %80 : vector<256x64xf32> to vector<256x64xbf16>
    %c5 = arith.constant 5 : index
    %c0_57 = arith.constant 0 : index
    %c0_58 = arith.constant 0 : index
    %82 = vector.load %arg5[%c5, %c0_57, %c0_58] : memref<9x64x128xbf16, #tpu.memory_space<vmem>>, vector<1x64x128xbf16>
    %83 = vector.shape_cast %82 : vector<1x64x128xbf16> to vector<64x128xbf16>
    %cst_59 = arith.constant dense<0.000000e+00> : vector<256x128xf32>
    %84 = tpu.matmul %81, %83, %cst_59 {dimension_numbers = #tpu.dot_dimension_numbers<[1], [0], [0], [1], [0, 0, 1, 1], [], []>} : vector<256x64xbf16>, vector<64x128xbf16>, vector<256x128xf32> -> vector<256x128xf32>
    %85 = arith.addf %78, %84 : vector<256x128xf32>
    %c2_60 = arith.constant 2 : index
    %c0_61 = arith.constant 0 : index
    %c0_62 = arith.constant 0 : index
    %86 = vector.load %arg9[%c2_60, %c0_61, %c0_62] : memref<18x18x64xf32, #tpu.memory_space<vmem>>, vector<16x16x64xf32>
    %87 = vector.shape_cast %86 : vector<16x16x64xf32> to vector<256x64xf32>
    %88 = arith.truncf %87 : vector<256x64xf32> to vector<256x64xbf16>
    %c6 = arith.constant 6 : index
    %c0_63 = arith.constant 0 : index
    %c0_64 = arith.constant 0 : index
    %89 = vector.load %arg5[%c6, %c0_63, %c0_64] : memref<9x64x128xbf16, #tpu.memory_space<vmem>>, vector<1x64x128xbf16>
    %90 = vector.shape_cast %89 : vector<1x64x128xbf16> to vector<64x128xbf16>
    %cst_65 = arith.constant dense<0.000000e+00> : vector<256x128xf32>
    %91 = tpu.matmul %88, %90, %cst_65 {dimension_numbers = #tpu.dot_dimension_numbers<[1], [0], [0], [1], [0, 0, 1, 1], [], []>} : vector<256x64xbf16>, vector<64x128xbf16>, vector<256x128xf32> -> vector<256x128xf32>
    %92 = arith.addf %85, %91 : vector<256x128xf32>
    %c2_66 = arith.constant 2 : index
    %c1_67 = arith.constant 1 : index
    %c0_68 = arith.constant 0 : index
    %93 = vector.load %arg9[%c2_66, %c1_67, %c0_68] : memref<18x18x64xf32, #tpu.memory_space<vmem>>, vector<16x16x64xf32>
    %94 = vector.shape_cast %93 : vector<16x16x64xf32> to vector<256x64xf32>
    %95 = arith.truncf %94 : vector<256x64xf32> to vector<256x64xbf16>
    %c7 = arith.constant 7 : index
    %c0_69 = arith.constant 0 : index
    %c0_70 = arith.constant 0 : index
    %96 = vector.load %arg5[%c7, %c0_69, %c0_70] : memref<9x64x128xbf16, #tpu.memory_space<vmem>>, vector<1x64x128xbf16>
    %97 = vector.shape_cast %96 : vector<1x64x128xbf16> to vector<64x128xbf16>
    %cst_71 = arith.constant dense<0.000000e+00> : vector<256x128xf32>
    %98 = tpu.matmul %95, %97, %cst_71 {dimension_numbers = #tpu.dot_dimension_numbers<[1], [0], [0], [1], [0, 0, 1, 1], [], []>} : vector<256x64xbf16>, vector<64x128xbf16>, vector<256x128xf32> -> vector<256x128xf32>
    %99 = arith.addf %92, %98 : vector<256x128xf32>
    %c2_72 = arith.constant 2 : index
    %c2_73 = arith.constant 2 : index
    %c0_74 = arith.constant 0 : index
    %100 = vector.load %arg9[%c2_72, %c2_73, %c0_74] : memref<18x18x64xf32, #tpu.memory_space<vmem>>, vector<16x16x64xf32>
    %101 = vector.shape_cast %100 : vector<16x16x64xf32> to vector<256x64xf32>
    %102 = arith.truncf %101 : vector<256x64xf32> to vector<256x64xbf16>
    %c8 = arith.constant 8 : index
    %c0_75 = arith.constant 0 : index
    %c0_76 = arith.constant 0 : index
    %103 = vector.load %arg5[%c8, %c0_75, %c0_76] : memref<9x64x128xbf16, #tpu.memory_space<vmem>>, vector<1x64x128xbf16>
    %104 = vector.shape_cast %103 : vector<1x64x128xbf16> to vector<64x128xbf16>
    %cst_77 = arith.constant dense<0.000000e+00> : vector<256x128xf32>
    %105 = tpu.matmul %102, %104, %cst_77 {dimension_numbers = #tpu.dot_dimension_numbers<[1], [0], [0], [1], [0, 0, 1, 1], [], []>} : vector<256x64xbf16>, vector<64x128xbf16>, vector<256x128xf32> -> vector<256x128xf32>
    %106 = arith.addf %99, %105 : vector<256x128xf32>
    %c0_78 = arith.constant 0 : index
    %c0_79 = arith.constant 0 : index
    %107 = vector.load %arg6[%c0_78, %c0_79] : memref<1x128xf32, #tpu.memory_space<vmem>>, vector<1x128xf32>
    %108 = vector.broadcast %107 : vector<1x128xf32> to vector<256x128xf32>
    %109 = arith.mulf %106, %108 : vector<256x128xf32>
    %c0_80 = arith.constant 0 : index
    %c0_81 = arith.constant 0 : index
    %110 = vector.load %arg7[%c0_80, %c0_81] : memref<1x128xf32, #tpu.memory_space<vmem>>, vector<1x128xf32>
    %111 = vector.broadcast %110 : vector<1x128xf32> to vector<256x128xf32>
    %112 = arith.addf %109, %111 : vector<256x128xf32>
    %c0_82 = arith.constant 0 : index
    %c0_83 = arith.constant 0 : index
    %c0_84 = arith.constant 0 : index
    %113 = vector.load %arg8[%c0_82, %c0_83, %c0_84] : memref<1x256x128xf32, #tpu.memory_space<vmem>>, vector<1x256x128xf32>
    %114 = vector.shape_cast %113 : vector<1x256x128xf32> to vector<256x128xf32>
    %115 = vector.shape_cast %112 : vector<256x128xf32> to vector<1x256x128xf32>
    tpu.vector_store %arg8[%c0_82, %c0_83, %c0_84], %115 {strides = array<i32>} : memref<1x256x128xf32, #tpu.memory_space<vmem>>, vector<1x256x128xf32>,
    return
  }
  func.func @transform_0(%arg0: i32) -> (i32, i32, i32) {
    %c0_i32 = arith.constant 0 : i32
    %c0_i32_0 = arith.constant 0 : i32
    %c0_i32_1 = arith.constant 0 : i32
    return %arg0, %c0_i32, %c0_i32_0 : i32, i32, i32
  }
  func.func @transform_1(%arg0: i32) -> (i32, i32) {
    %c0_i32 = arith.constant 0 : i32
    %c0_i32_0 = arith.constant 0 : i32
    %c0_i32_1 = arith.constant 0 : i32
    return %c0_i32, %c0_i32_0 : i32, i32
  }
  func.func @transform_2(%arg0: i32) -> (i32, i32) {
    %c0_i32 = arith.constant 0 : i32
    %c0_i32_0 = arith.constant 0 : i32
    %c0_i32_1 = arith.constant 0 : i32
    return %c0_i32, %c0_i32_0 : i32, i32
  }
  func.func @transform_3(%arg0: i32) -> (i32, i32) {
    %c0_i32 = arith.constant 0 : i32
    %c0_i32_0 = arith.constant 0 : i32
    %c0_i32_1 = arith.constant 0 : i32
    return %c0_i32, %c0_i32_0 : i32, i32
  }
  func.func @transform_4(%arg0: i32) -> (i32, i32, i32) {
    %c0_i32 = arith.constant 0 : i32
    %c0_i32_0 = arith.constant 0 : i32
    %c0_i32_1 = arith.constant 0 : i32
    %c0_i32_2 = arith.constant 0 : i32
    return %c0_i32, %c0_i32_0, %c0_i32_1 : i32, i32, i32
  }
  func.func @transform_5(%arg0: i32) -> (i32, i32) {
    %c0_i32 = arith.constant 0 : i32
    %c0_i32_0 = arith.constant 0 : i32
    %c0_i32_1 = arith.constant 0 : i32
    return %c0_i32, %c0_i32_0 : i32, i32
  }
  func.func @transform_6(%arg0: i32) -> (i32, i32) {
    %c0_i32 = arith.constant 0 : i32
    %c0_i32_0 = arith.constant 0 : i32
    %c0_i32_1 = arith.constant 0 : i32
    return %c0_i32, %c0_i32_0 : i32, i32
  }
  func.func @transform_7(%arg0: i32) -> (i32, i32, i32) {
    %c0_i32 = arith.constant 0 : i32
    %c0_i32_0 = arith.constant 0 : i32
    %c0_i32_1 = arith.constant 0 : i32
    return %arg0, %c0_i32, %c0_i32_0 : i32, i32, i32
  }
}

module attributes {stable_mosaic.version = 11 : i64} {
  func.func @carafe_reassemble_kernel(%arg0: i32, %arg1: memref<1x100x16x16xf32, #tpu.memory_space<vmem>>, %arg2: memref<1x4x16x16xf32, #tpu.memory_space<vmem>>, %arg3: memref<1x4x4x16x16xf32, #tpu.memory_space<vmem>>, %arg4: memref<4x20x20xf32, #tpu.memory_space<vmem>>) attributes {dimension_semantics = [#tpu.dimension_semantics<parallel>], iteration_bounds = array<i64: 2>, scalar_prefetch = 0 : i64, scratch_operands = 1 : i64, tpu.core_type = #tpu.core_type<tc>, window_params = [{transform_indices = @transform_0, window_bounds = array<i64: 1, 100, 16, 16>}, {transform_indices = @transform_1, window_bounds = array<i64: 1, 4, 16, 16>}, {transform_indices = @transform_2, window_bounds = array<i64: 1, 4, 4, 16, 16>}]} {
    %cst = arith.constant 0.000000e+00 : f32
    %0 = vector.broadcast %cst : f32 to vector<4x20x20xf32>
    %c0 = arith.constant 0 : index
    %c0_0 = arith.constant 0 : index
    %c0_1 = arith.constant 0 : index
    %1 = vector.load %arg4[%c0, %c0_0, %c0_1] : memref<4x20x20xf32, #tpu.memory_space<vmem>>, vector<4x20x20xf32>
    tpu.vector_store %arg4[%c0, %c0_0, %c0_1], %0 {strides = array<i32>} : memref<4x20x20xf32, #tpu.memory_space<vmem>>, vector<4x20x20xf32>,
    %c0_2 = arith.constant 0 : index
    %c0_3 = arith.constant 0 : index
    %c0_4 = arith.constant 0 : index
    %c0_5 = arith.constant 0 : index
    %2 = vector.load %arg2[%c0_2, %c0_3, %c0_4, %c0_5] : memref<1x4x16x16xf32, #tpu.memory_space<vmem>>, vector<1x4x16x16xf32>
    %3 = vector.shape_cast %2 : vector<1x4x16x16xf32> to vector<4x16x16xf32>
    %c0_6 = arith.constant 0 : index
    %c2 = arith.constant 2 : index
    %c2_7 = arith.constant 2 : index
    %4 = vector.load %arg4[%c0_6, %c2, %c2_7] : memref<4x20x20xf32, #tpu.memory_space<vmem>>, vector<4x16x16xf32>
    tpu.vector_store %arg4[%c0_6, %c2, %c2_7], %3 {strides = array<i32>} : memref<4x20x20xf32, #tpu.memory_space<vmem>>, vector<4x16x16xf32>,
    %c0_8 = arith.constant 0 : index
    %c0_9 = arith.constant 0 : index
    %c0_10 = arith.constant 0 : index
    %c0_11 = arith.constant 0 : index
    %5 = vector.load %arg1[%c0_8, %c0_9, %c0_10, %c0_11] : memref<1x100x16x16xf32, #tpu.memory_space<vmem>>, vector<1x100x16x16xf32>
    %6 = vector.shape_cast %5 : vector<1x100x16x16xf32> to vector<100x16x16xf32>
    %7 = vector.shape_cast %6 : vector<100x16x16xf32> to vector<25x4x16x16xf32>
    %cst_12 = arith.constant dense<0xFF800000> : vector<4x16x16xf32>
    %8 = vector.multi_reduction <maximumf>, %7, %cst_12 [0] : vector<25x4x16x16xf32> to vector<4x16x16xf32>
    %9 = vector.shape_cast %8 : vector<4x16x16xf32> to vector<1x4x16x16xf32>
    %10 = vector.broadcast %9 : vector<1x4x16x16xf32> to vector<25x4x16x16xf32>
    %11 = arith.subf %7, %10 : vector<25x4x16x16xf32>
    %12 = math.exp %11 : vector<25x4x16x16xf32>
    %cst_13 = arith.constant dense<0.000000e+00> : vector<4x16x16xf32>
    %13 = vector.multi_reduction <add>, %12, %cst_13 [0] : vector<25x4x16x16xf32> to vector<4x16x16xf32>
    %14 = vector.shape_cast %13 : vector<4x16x16xf32> to vector<1x4x16x16xf32>
    %15 = tpu.reciprocal %14 {approx = true} : vector<1x4x16x16xf32> -> vector<1x4x16x16xf32>
    %16 = vector.broadcast %15 : vector<1x4x16x16xf32> to vector<25x4x16x16xf32>
    %17 = arith.mulf %12, %16 : vector<25x4x16x16xf32>
    %cst_14 = arith.constant 0.000000e+00 : f32
    %18 = vector.broadcast %cst_14 : f32 to vector<4x4x16x16xf32>
    %c0_15 = arith.constant 0 : index
    %c0_16 = arith.constant 0 : index
    %c0_17 = arith.constant 0 : index
    %19 = vector.load %arg4[%c0_15, %c0_16, %c0_17] : memref<4x20x20xf32, #tpu.memory_space<vmem>>, vector<4x16x16xf32>
    %20 = vector.extract_strided_slice %17 {offsets = [0, 0, 0, 0], sizes = [1, 4, 16, 16], strides = [1, 1, 1, 1]} : vector<25x4x16x16xf32> to vector<1x4x16x16xf32>
    %21 = vector.shape_cast %20 : vector<1x4x16x16xf32> to vector<4x16x16xf32>
    %22 = vector.shape_cast %21 : vector<4x16x16xf32> to vector<4x1x16x16xf32>
    %23 = vector.shape_cast %19 : vector<4x16x16xf32> to vector<1x4x16x16xf32>
    %24 = vector.broadcast %22 : vector<4x1x16x16xf32> to vector<4x4x16x16xf32>
    %25 = vector.broadcast %23 : vector<1x4x16x16xf32> to vector<4x4x16x16xf32>
    %26 = arith.mulf %24, %25 : vector<4x4x16x16xf32>
    %27 = arith.addf %18, %26 : vector<4x4x16x16xf32>
    %c0_18 = arith.constant 0 : index
    %c0_19 = arith.constant 0 : index
    %c1 = arith.constant 1 : index
    %28 = vector.load %arg4[%c0_18, %c0_19, %c1] : memref<4x20x20xf32, #tpu.memory_space<vmem>>, vector<4x16x16xf32>
    %29 = vector.extract_strided_slice %17 {offsets = [1, 0, 0, 0], sizes = [1, 4, 16, 16], strides = [1, 1, 1, 1]} : vector<25x4x16x16xf32> to vector<1x4x16x16xf32>
    %30 = vector.shape_cast %29 : vector<1x4x16x16xf32> to vector<4x16x16xf32>
    %31 = vector.shape_cast %30 : vector<4x16x16xf32> to vector<4x1x16x16xf32>
    %32 = vector.shape_cast %28 : vector<4x16x16xf32> to vector<1x4x16x16xf32>
    %33 = vector.broadcast %31 : vector<4x1x16x16xf32> to vector<4x4x16x16xf32>
    %34 = vector.broadcast %32 : vector<1x4x16x16xf32> to vector<4x4x16x16xf32>
    %35 = arith.mulf %33, %34 : vector<4x4x16x16xf32>
    %36 = arith.addf %27, %35 : vector<4x4x16x16xf32>
    %c0_20 = arith.constant 0 : index
    %c0_21 = arith.constant 0 : index
    %c2_22 = arith.constant 2 : index
    %37 = vector.load %arg4[%c0_20, %c0_21, %c2_22] : memref<4x20x20xf32, #tpu.memory_space<vmem>>, vector<4x16x16xf32>
    %38 = vector.extract_strided_slice %17 {offsets = [2, 0, 0, 0], sizes = [1, 4, 16, 16], strides = [1, 1, 1, 1]} : vector<25x4x16x16xf32> to vector<1x4x16x16xf32>
    %39 = vector.shape_cast %38 : vector<1x4x16x16xf32> to vector<4x16x16xf32>
    %40 = vector.shape_cast %39 : vector<4x16x16xf32> to vector<4x1x16x16xf32>
    %41 = vector.shape_cast %37 : vector<4x16x16xf32> to vector<1x4x16x16xf32>
    %42 = vector.broadcast %40 : vector<4x1x16x16xf32> to vector<4x4x16x16xf32>
    %43 = vector.broadcast %41 : vector<1x4x16x16xf32> to vector<4x4x16x16xf32>
    %44 = arith.mulf %42, %43 : vector<4x4x16x16xf32>
    %45 = arith.addf %36, %44 : vector<4x4x16x16xf32>
    %c0_23 = arith.constant 0 : index
    %c0_24 = arith.constant 0 : index
    %c3 = arith.constant 3 : index
    %46 = vector.load %arg4[%c0_23, %c0_24, %c3] : memref<4x20x20xf32, #tpu.memory_space<vmem>>, vector<4x16x16xf32>
    %47 = vector.extract_strided_slice %17 {offsets = [3, 0, 0, 0], sizes = [1, 4, 16, 16], strides = [1, 1, 1, 1]} : vector<25x4x16x16xf32> to vector<1x4x16x16xf32>
    %48 = vector.shape_cast %47 : vector<1x4x16x16xf32> to vector<4x16x16xf32>
    %49 = vector.shape_cast %48 : vector<4x16x16xf32> to vector<4x1x16x16xf32>
    %50 = vector.shape_cast %46 : vector<4x16x16xf32> to vector<1x4x16x16xf32>
    %51 = vector.broadcast %49 : vector<4x1x16x16xf32> to vector<4x4x16x16xf32>
    %52 = vector.broadcast %50 : vector<1x4x16x16xf32> to vector<4x4x16x16xf32>
    %53 = arith.mulf %51, %52 : vector<4x4x16x16xf32>
    %54 = arith.addf %45, %53 : vector<4x4x16x16xf32>
    %c0_25 = arith.constant 0 : index
    %c0_26 = arith.constant 0 : index
    %c4 = arith.constant 4 : index
    %55 = vector.load %arg4[%c0_25, %c0_26, %c4] : memref<4x20x20xf32, #tpu.memory_space<vmem>>, vector<4x16x16xf32>
    %56 = vector.extract_strided_slice %17 {offsets = [4, 0, 0, 0], sizes = [1, 4, 16, 16], strides = [1, 1, 1, 1]} : vector<25x4x16x16xf32> to vector<1x4x16x16xf32>
    %57 = vector.shape_cast %56 : vector<1x4x16x16xf32> to vector<4x16x16xf32>
    %58 = vector.shape_cast %57 : vector<4x16x16xf32> to vector<4x1x16x16xf32>
    %59 = vector.shape_cast %55 : vector<4x16x16xf32> to vector<1x4x16x16xf32>
    %60 = vector.broadcast %58 : vector<4x1x16x16xf32> to vector<4x4x16x16xf32>
    %61 = vector.broadcast %59 : vector<1x4x16x16xf32> to vector<4x4x16x16xf32>
    %62 = arith.mulf %60, %61 : vector<4x4x16x16xf32>
    %63 = arith.addf %54, %62 : vector<4x4x16x16xf32>
    %c0_27 = arith.constant 0 : index
    %c1_28 = arith.constant 1 : index
    %c0_29 = arith.constant 0 : index
    %64 = vector.load %arg4[%c0_27, %c1_28, %c0_29] : memref<4x20x20xf32, #tpu.memory_space<vmem>>, vector<4x16x16xf32>
    %65 = vector.extract_strided_slice %17 {offsets = [5, 0, 0, 0], sizes = [1, 4, 16, 16], strides = [1, 1, 1, 1]} : vector<25x4x16x16xf32> to vector<1x4x16x16xf32>
    %66 = vector.shape_cast %65 : vector<1x4x16x16xf32> to vector<4x16x16xf32>
    %67 = vector.shape_cast %66 : vector<4x16x16xf32> to vector<4x1x16x16xf32>
    %68 = vector.shape_cast %64 : vector<4x16x16xf32> to vector<1x4x16x16xf32>
    %69 = vector.broadcast %67 : vector<4x1x16x16xf32> to vector<4x4x16x16xf32>
    %70 = vector.broadcast %68 : vector<1x4x16x16xf32> to vector<4x4x16x16xf32>
    %71 = arith.mulf %69, %70 : vector<4x4x16x16xf32>
    %72 = arith.addf %63, %71 : vector<4x4x16x16xf32>
    %c0_30 = arith.constant 0 : index
    %c1_31 = arith.constant 1 : index
    %c1_32 = arith.constant 1 : index
    %73 = vector.load %arg4[%c0_30, %c1_31, %c1_32] : memref<4x20x20xf32, #tpu.memory_space<vmem>>, vector<4x16x16xf32>
    %74 = vector.extract_strided_slice %17 {offsets = [6, 0, 0, 0], sizes = [1, 4, 16, 16], strides = [1, 1, 1, 1]} : vector<25x4x16x16xf32> to vector<1x4x16x16xf32>
    %75 = vector.shape_cast %74 : vector<1x4x16x16xf32> to vector<4x16x16xf32>
    %76 = vector.shape_cast %75 : vector<4x16x16xf32> to vector<4x1x16x16xf32>
    %77 = vector.shape_cast %73 : vector<4x16x16xf32> to vector<1x4x16x16xf32>
    %78 = vector.broadcast %76 : vector<4x1x16x16xf32> to vector<4x4x16x16xf32>
    %79 = vector.broadcast %77 : vector<1x4x16x16xf32> to vector<4x4x16x16xf32>
    %80 = arith.mulf %78, %79 : vector<4x4x16x16xf32>
    %81 = arith.addf %72, %80 : vector<4x4x16x16xf32>
    %c0_33 = arith.constant 0 : index
    %c1_34 = arith.constant 1 : index
    %c2_35 = arith.constant 2 : index
    %82 = vector.load %arg4[%c0_33, %c1_34, %c2_35] : memref<4x20x20xf32, #tpu.memory_space<vmem>>, vector<4x16x16xf32>
    %83 = vector.extract_strided_slice %17 {offsets = [7, 0, 0, 0], sizes = [1, 4, 16, 16], strides = [1, 1, 1, 1]} : vector<25x4x16x16xf32> to vector<1x4x16x16xf32>
    %84 = vector.shape_cast %83 : vector<1x4x16x16xf32> to vector<4x16x16xf32>
    %85 = vector.shape_cast %84 : vector<4x16x16xf32> to vector<4x1x16x16xf32>
    %86 = vector.shape_cast %82 : vector<4x16x16xf32> to vector<1x4x16x16xf32>
    %87 = vector.broadcast %85 : vector<4x1x16x16xf32> to vector<4x4x16x16xf32>
    %88 = vector.broadcast %86 : vector<1x4x16x16xf32> to vector<4x4x16x16xf32>
    %89 = arith.mulf %87, %88 : vector<4x4x16x16xf32>
    %90 = arith.addf %81, %89 : vector<4x4x16x16xf32>
    %c0_36 = arith.constant 0 : index
    %c1_37 = arith.constant 1 : index
    %c3_38 = arith.constant 3 : index
    %91 = vector.load %arg4[%c0_36, %c1_37, %c3_38] : memref<4x20x20xf32, #tpu.memory_space<vmem>>, vector<4x16x16xf32>
    %92 = vector.extract_strided_slice %17 {offsets = [8, 0, 0, 0], sizes = [1, 4, 16, 16], strides = [1, 1, 1, 1]} : vector<25x4x16x16xf32> to vector<1x4x16x16xf32>
    %93 = vector.shape_cast %92 : vector<1x4x16x16xf32> to vector<4x16x16xf32>
    %94 = vector.shape_cast %93 : vector<4x16x16xf32> to vector<4x1x16x16xf32>
    %95 = vector.shape_cast %91 : vector<4x16x16xf32> to vector<1x4x16x16xf32>
    %96 = vector.broadcast %94 : vector<4x1x16x16xf32> to vector<4x4x16x16xf32>
    %97 = vector.broadcast %95 : vector<1x4x16x16xf32> to vector<4x4x16x16xf32>
    %98 = arith.mulf %96, %97 : vector<4x4x16x16xf32>
    %99 = arith.addf %90, %98 : vector<4x4x16x16xf32>
    %c0_39 = arith.constant 0 : index
    %c1_40 = arith.constant 1 : index
    %c4_41 = arith.constant 4 : index
    %100 = vector.load %arg4[%c0_39, %c1_40, %c4_41] : memref<4x20x20xf32, #tpu.memory_space<vmem>>, vector<4x16x16xf32>
    %101 = vector.extract_strided_slice %17 {offsets = [9, 0, 0, 0], sizes = [1, 4, 16, 16], strides = [1, 1, 1, 1]} : vector<25x4x16x16xf32> to vector<1x4x16x16xf32>
    %102 = vector.shape_cast %101 : vector<1x4x16x16xf32> to vector<4x16x16xf32>
    %103 = vector.shape_cast %102 : vector<4x16x16xf32> to vector<4x1x16x16xf32>
    %104 = vector.shape_cast %100 : vector<4x16x16xf32> to vector<1x4x16x16xf32>
    %105 = vector.broadcast %103 : vector<4x1x16x16xf32> to vector<4x4x16x16xf32>
    %106 = vector.broadcast %104 : vector<1x4x16x16xf32> to vector<4x4x16x16xf32>
    %107 = arith.mulf %105, %106 : vector<4x4x16x16xf32>
    %108 = arith.addf %99, %107 : vector<4x4x16x16xf32>
    %c0_42 = arith.constant 0 : index
    %c2_43 = arith.constant 2 : index
    %c0_44 = arith.constant 0 : index
    %109 = vector.load %arg4[%c0_42, %c2_43, %c0_44] : memref<4x20x20xf32, #tpu.memory_space<vmem>>, vector<4x16x16xf32>
    %110 = vector.extract_strided_slice %17 {offsets = [10, 0, 0, 0], sizes = [1, 4, 16, 16], strides = [1, 1, 1, 1]} : vector<25x4x16x16xf32> to vector<1x4x16x16xf32>
    %111 = vector.shape_cast %110 : vector<1x4x16x16xf32> to vector<4x16x16xf32>
    %112 = vector.shape_cast %111 : vector<4x16x16xf32> to vector<4x1x16x16xf32>
    %113 = vector.shape_cast %109 : vector<4x16x16xf32> to vector<1x4x16x16xf32>
    %114 = vector.broadcast %112 : vector<4x1x16x16xf32> to vector<4x4x16x16xf32>
    %115 = vector.broadcast %113 : vector<1x4x16x16xf32> to vector<4x4x16x16xf32>
    %116 = arith.mulf %114, %115 : vector<4x4x16x16xf32>
    %117 = arith.addf %108, %116 : vector<4x4x16x16xf32>
    %c0_45 = arith.constant 0 : index
    %c2_46 = arith.constant 2 : index
    %c1_47 = arith.constant 1 : index
    %118 = vector.load %arg4[%c0_45, %c2_46, %c1_47] : memref<4x20x20xf32, #tpu.memory_space<vmem>>, vector<4x16x16xf32>
    %119 = vector.extract_strided_slice %17 {offsets = [11, 0, 0, 0], sizes = [1, 4, 16, 16], strides = [1, 1, 1, 1]} : vector<25x4x16x16xf32> to vector<1x4x16x16xf32>
    %120 = vector.shape_cast %119 : vector<1x4x16x16xf32> to vector<4x16x16xf32>
    %121 = vector.shape_cast %120 : vector<4x16x16xf32> to vector<4x1x16x16xf32>
    %122 = vector.shape_cast %118 : vector<4x16x16xf32> to vector<1x4x16x16xf32>
    %123 = vector.broadcast %121 : vector<4x1x16x16xf32> to vector<4x4x16x16xf32>
    %124 = vector.broadcast %122 : vector<1x4x16x16xf32> to vector<4x4x16x16xf32>
    %125 = arith.mulf %123, %124 : vector<4x4x16x16xf32>
    %126 = arith.addf %117, %125 : vector<4x4x16x16xf32>
    %c0_48 = arith.constant 0 : index
    %c2_49 = arith.constant 2 : index
    %c2_50 = arith.constant 2 : index
    %127 = vector.load %arg4[%c0_48, %c2_49, %c2_50] : memref<4x20x20xf32, #tpu.memory_space<vmem>>, vector<4x16x16xf32>
    %128 = vector.extract_strided_slice %17 {offsets = [12, 0, 0, 0], sizes = [1, 4, 16, 16], strides = [1, 1, 1, 1]} : vector<25x4x16x16xf32> to vector<1x4x16x16xf32>
    %129 = vector.shape_cast %128 : vector<1x4x16x16xf32> to vector<4x16x16xf32>
    %130 = vector.shape_cast %129 : vector<4x16x16xf32> to vector<4x1x16x16xf32>
    %131 = vector.shape_cast %127 : vector<4x16x16xf32> to vector<1x4x16x16xf32>
    %132 = vector.broadcast %130 : vector<4x1x16x16xf32> to vector<4x4x16x16xf32>
    %133 = vector.broadcast %131 : vector<1x4x16x16xf32> to vector<4x4x16x16xf32>
    %134 = arith.mulf %132, %133 : vector<4x4x16x16xf32>
    %135 = arith.addf %126, %134 : vector<4x4x16x16xf32>
    %c0_51 = arith.constant 0 : index
    %c2_52 = arith.constant 2 : index
    %c3_53 = arith.constant 3 : index
    %136 = vector.load %arg4[%c0_51, %c2_52, %c3_53] : memref<4x20x20xf32, #tpu.memory_space<vmem>>, vector<4x16x16xf32>
    %137 = vector.extract_strided_slice %17 {offsets = [13, 0, 0, 0], sizes = [1, 4, 16, 16], strides = [1, 1, 1, 1]} : vector<25x4x16x16xf32> to vector<1x4x16x16xf32>
    %138 = vector.shape_cast %137 : vector<1x4x16x16xf32> to vector<4x16x16xf32>
    %139 = vector.shape_cast %138 : vector<4x16x16xf32> to vector<4x1x16x16xf32>
    %140 = vector.shape_cast %136 : vector<4x16x16xf32> to vector<1x4x16x16xf32>
    %141 = vector.broadcast %139 : vector<4x1x16x16xf32> to vector<4x4x16x16xf32>
    %142 = vector.broadcast %140 : vector<1x4x16x16xf32> to vector<4x4x16x16xf32>
    %143 = arith.mulf %141, %142 : vector<4x4x16x16xf32>
    %144 = arith.addf %135, %143 : vector<4x4x16x16xf32>
    %c0_54 = arith.constant 0 : index
    %c2_55 = arith.constant 2 : index
    %c4_56 = arith.constant 4 : index
    %145 = vector.load %arg4[%c0_54, %c2_55, %c4_56] : memref<4x20x20xf32, #tpu.memory_space<vmem>>, vector<4x16x16xf32>
    %146 = vector.extract_strided_slice %17 {offsets = [14, 0, 0, 0], sizes = [1, 4, 16, 16], strides = [1, 1, 1, 1]} : vector<25x4x16x16xf32> to vector<1x4x16x16xf32>
    %147 = vector.shape_cast %146 : vector<1x4x16x16xf32> to vector<4x16x16xf32>
    %148 = vector.shape_cast %147 : vector<4x16x16xf32> to vector<4x1x16x16xf32>
    %149 = vector.shape_cast %145 : vector<4x16x16xf32> to vector<1x4x16x16xf32>
    %150 = vector.broadcast %148 : vector<4x1x16x16xf32> to vector<4x4x16x16xf32>
    %151 = vector.broadcast %149 : vector<1x4x16x16xf32> to vector<4x4x16x16xf32>
    %152 = arith.mulf %150, %151 : vector<4x4x16x16xf32>
    %153 = arith.addf %144, %152 : vector<4x4x16x16xf32>
    %c0_57 = arith.constant 0 : index
    %c3_58 = arith.constant 3 : index
    %c0_59 = arith.constant 0 : index
    %154 = vector.load %arg4[%c0_57, %c3_58, %c0_59] : memref<4x20x20xf32, #tpu.memory_space<vmem>>, vector<4x16x16xf32>
    %155 = vector.extract_strided_slice %17 {offsets = [15, 0, 0, 0], sizes = [1, 4, 16, 16], strides = [1, 1, 1, 1]} : vector<25x4x16x16xf32> to vector<1x4x16x16xf32>
    %156 = vector.shape_cast %155 : vector<1x4x16x16xf32> to vector<4x16x16xf32>
    %157 = vector.shape_cast %156 : vector<4x16x16xf32> to vector<4x1x16x16xf32>
    %158 = vector.shape_cast %154 : vector<4x16x16xf32> to vector<1x4x16x16xf32>
    %159 = vector.broadcast %157 : vector<4x1x16x16xf32> to vector<4x4x16x16xf32>
    %160 = vector.broadcast %158 : vector<1x4x16x16xf32> to vector<4x4x16x16xf32>
    %161 = arith.mulf %159, %160 : vector<4x4x16x16xf32>
    %162 = arith.addf %153, %161 : vector<4x4x16x16xf32>
    %c0_60 = arith.constant 0 : index
    %c3_61 = arith.constant 3 : index
    %c1_62 = arith.constant 1 : index
    %163 = vector.load %arg4[%c0_60, %c3_61, %c1_62] : memref<4x20x20xf32, #tpu.memory_space<vmem>>, vector<4x16x16xf32>
    %164 = vector.extract_strided_slice %17 {offsets = [16, 0, 0, 0], sizes = [1, 4, 16, 16], strides = [1, 1, 1, 1]} : vector<25x4x16x16xf32> to vector<1x4x16x16xf32>
    %165 = vector.shape_cast %164 : vector<1x4x16x16xf32> to vector<4x16x16xf32>
    %166 = vector.shape_cast %165 : vector<4x16x16xf32> to vector<4x1x16x16xf32>
    %167 = vector.shape_cast %163 : vector<4x16x16xf32> to vector<1x4x16x16xf32>
    %168 = vector.broadcast %166 : vector<4x1x16x16xf32> to vector<4x4x16x16xf32>
    %169 = vector.broadcast %167 : vector<1x4x16x16xf32> to vector<4x4x16x16xf32>
    %170 = arith.mulf %168, %169 : vector<4x4x16x16xf32>
    %171 = arith.addf %162, %170 : vector<4x4x16x16xf32>
    %c0_63 = arith.constant 0 : index
    %c3_64 = arith.constant 3 : index
    %c2_65 = arith.constant 2 : index
    %172 = vector.load %arg4[%c0_63, %c3_64, %c2_65] : memref<4x20x20xf32, #tpu.memory_space<vmem>>, vector<4x16x16xf32>
    %173 = vector.extract_strided_slice %17 {offsets = [17, 0, 0, 0], sizes = [1, 4, 16, 16], strides = [1, 1, 1, 1]} : vector<25x4x16x16xf32> to vector<1x4x16x16xf32>
    %174 = vector.shape_cast %173 : vector<1x4x16x16xf32> to vector<4x16x16xf32>
    %175 = vector.shape_cast %174 : vector<4x16x16xf32> to vector<4x1x16x16xf32>
    %176 = vector.shape_cast %172 : vector<4x16x16xf32> to vector<1x4x16x16xf32>
    %177 = vector.broadcast %175 : vector<4x1x16x16xf32> to vector<4x4x16x16xf32>
    %178 = vector.broadcast %176 : vector<1x4x16x16xf32> to vector<4x4x16x16xf32>
    %179 = arith.mulf %177, %178 : vector<4x4x16x16xf32>
    %180 = arith.addf %171, %179 : vector<4x4x16x16xf32>
    %c0_66 = arith.constant 0 : index
    %c3_67 = arith.constant 3 : index
    %c3_68 = arith.constant 3 : index
    %181 = vector.load %arg4[%c0_66, %c3_67, %c3_68] : memref<4x20x20xf32, #tpu.memory_space<vmem>>, vector<4x16x16xf32>
    %182 = vector.extract_strided_slice %17 {offsets = [18, 0, 0, 0], sizes = [1, 4, 16, 16], strides = [1, 1, 1, 1]} : vector<25x4x16x16xf32> to vector<1x4x16x16xf32>
    %183 = vector.shape_cast %182 : vector<1x4x16x16xf32> to vector<4x16x16xf32>
    %184 = vector.shape_cast %183 : vector<4x16x16xf32> to vector<4x1x16x16xf32>
    %185 = vector.shape_cast %181 : vector<4x16x16xf32> to vector<1x4x16x16xf32>
    %186 = vector.broadcast %184 : vector<4x1x16x16xf32> to vector<4x4x16x16xf32>
    %187 = vector.broadcast %185 : vector<1x4x16x16xf32> to vector<4x4x16x16xf32>
    %188 = arith.mulf %186, %187 : vector<4x4x16x16xf32>
    %189 = arith.addf %180, %188 : vector<4x4x16x16xf32>
    %c0_69 = arith.constant 0 : index
    %c3_70 = arith.constant 3 : index
    %c4_71 = arith.constant 4 : index
    %190 = vector.load %arg4[%c0_69, %c3_70, %c4_71] : memref<4x20x20xf32, #tpu.memory_space<vmem>>, vector<4x16x16xf32>
    %191 = vector.extract_strided_slice %17 {offsets = [19, 0, 0, 0], sizes = [1, 4, 16, 16], strides = [1, 1, 1, 1]} : vector<25x4x16x16xf32> to vector<1x4x16x16xf32>
    %192 = vector.shape_cast %191 : vector<1x4x16x16xf32> to vector<4x16x16xf32>
    %193 = vector.shape_cast %192 : vector<4x16x16xf32> to vector<4x1x16x16xf32>
    %194 = vector.shape_cast %190 : vector<4x16x16xf32> to vector<1x4x16x16xf32>
    %195 = vector.broadcast %193 : vector<4x1x16x16xf32> to vector<4x4x16x16xf32>
    %196 = vector.broadcast %194 : vector<1x4x16x16xf32> to vector<4x4x16x16xf32>
    %197 = arith.mulf %195, %196 : vector<4x4x16x16xf32>
    %198 = arith.addf %189, %197 : vector<4x4x16x16xf32>
    %c0_72 = arith.constant 0 : index
    %c4_73 = arith.constant 4 : index
    %c0_74 = arith.constant 0 : index
    %199 = vector.load %arg4[%c0_72, %c4_73, %c0_74] : memref<4x20x20xf32, #tpu.memory_space<vmem>>, vector<4x16x16xf32>
    %200 = vector.extract_strided_slice %17 {offsets = [20, 0, 0, 0], sizes = [1, 4, 16, 16], strides = [1, 1, 1, 1]} : vector<25x4x16x16xf32> to vector<1x4x16x16xf32>
    %201 = vector.shape_cast %200 : vector<1x4x16x16xf32> to vector<4x16x16xf32>
    %202 = vector.shape_cast %201 : vector<4x16x16xf32> to vector<4x1x16x16xf32>
    %203 = vector.shape_cast %199 : vector<4x16x16xf32> to vector<1x4x16x16xf32>
    %204 = vector.broadcast %202 : vector<4x1x16x16xf32> to vector<4x4x16x16xf32>
    %205 = vector.broadcast %203 : vector<1x4x16x16xf32> to vector<4x4x16x16xf32>
    %206 = arith.mulf %204, %205 : vector<4x4x16x16xf32>
    %207 = arith.addf %198, %206 : vector<4x4x16x16xf32>
    %c0_75 = arith.constant 0 : index
    %c4_76 = arith.constant 4 : index
    %c1_77 = arith.constant 1 : index
    %208 = vector.load %arg4[%c0_75, %c4_76, %c1_77] : memref<4x20x20xf32, #tpu.memory_space<vmem>>, vector<4x16x16xf32>
    %209 = vector.extract_strided_slice %17 {offsets = [21, 0, 0, 0], sizes = [1, 4, 16, 16], strides = [1, 1, 1, 1]} : vector<25x4x16x16xf32> to vector<1x4x16x16xf32>
    %210 = vector.shape_cast %209 : vector<1x4x16x16xf32> to vector<4x16x16xf32>
    %211 = vector.shape_cast %210 : vector<4x16x16xf32> to vector<4x1x16x16xf32>
    %212 = vector.shape_cast %208 : vector<4x16x16xf32> to vector<1x4x16x16xf32>
    %213 = vector.broadcast %211 : vector<4x1x16x16xf32> to vector<4x4x16x16xf32>
    %214 = vector.broadcast %212 : vector<1x4x16x16xf32> to vector<4x4x16x16xf32>
    %215 = arith.mulf %213, %214 : vector<4x4x16x16xf32>
    %216 = arith.addf %207, %215 : vector<4x4x16x16xf32>
    %c0_78 = arith.constant 0 : index
    %c4_79 = arith.constant 4 : index
    %c2_80 = arith.constant 2 : index
    %217 = vector.load %arg4[%c0_78, %c4_79, %c2_80] : memref<4x20x20xf32, #tpu.memory_space<vmem>>, vector<4x16x16xf32>
    %218 = vector.extract_strided_slice %17 {offsets = [22, 0, 0, 0], sizes = [1, 4, 16, 16], strides = [1, 1, 1, 1]} : vector<25x4x16x16xf32> to vector<1x4x16x16xf32>
    %219 = vector.shape_cast %218 : vector<1x4x16x16xf32> to vector<4x16x16xf32>
    %220 = vector.shape_cast %219 : vector<4x16x16xf32> to vector<4x1x16x16xf32>
    %221 = vector.shape_cast %217 : vector<4x16x16xf32> to vector<1x4x16x16xf32>
    %222 = vector.broadcast %220 : vector<4x1x16x16xf32> to vector<4x4x16x16xf32>
    %223 = vector.broadcast %221 : vector<1x4x16x16xf32> to vector<4x4x16x16xf32>
    %224 = arith.mulf %222, %223 : vector<4x4x16x16xf32>
    %225 = arith.addf %216, %224 : vector<4x4x16x16xf32>
    %c0_81 = arith.constant 0 : index
    %c4_82 = arith.constant 4 : index
    %c3_83 = arith.constant 3 : index
    %226 = vector.load %arg4[%c0_81, %c4_82, %c3_83] : memref<4x20x20xf32, #tpu.memory_space<vmem>>, vector<4x16x16xf32>
    %227 = vector.extract_strided_slice %17 {offsets = [23, 0, 0, 0], sizes = [1, 4, 16, 16], strides = [1, 1, 1, 1]} : vector<25x4x16x16xf32> to vector<1x4x16x16xf32>
    %228 = vector.shape_cast %227 : vector<1x4x16x16xf32> to vector<4x16x16xf32>
    %229 = vector.shape_cast %228 : vector<4x16x16xf32> to vector<4x1x16x16xf32>
    %230 = vector.shape_cast %226 : vector<4x16x16xf32> to vector<1x4x16x16xf32>
    %231 = vector.broadcast %229 : vector<4x1x16x16xf32> to vector<4x4x16x16xf32>
    %232 = vector.broadcast %230 : vector<1x4x16x16xf32> to vector<4x4x16x16xf32>
    %233 = arith.mulf %231, %232 : vector<4x4x16x16xf32>
    %234 = arith.addf %225, %233 : vector<4x4x16x16xf32>
    %c0_84 = arith.constant 0 : index
    %c4_85 = arith.constant 4 : index
    %c4_86 = arith.constant 4 : index
    %235 = vector.load %arg4[%c0_84, %c4_85, %c4_86] : memref<4x20x20xf32, #tpu.memory_space<vmem>>, vector<4x16x16xf32>
    %236 = vector.extract_strided_slice %17 {offsets = [24, 0, 0, 0], sizes = [1, 4, 16, 16], strides = [1, 1, 1, 1]} : vector<25x4x16x16xf32> to vector<1x4x16x16xf32>
    %237 = vector.shape_cast %236 : vector<1x4x16x16xf32> to vector<4x16x16xf32>
    %238 = vector.shape_cast %237 : vector<4x16x16xf32> to vector<4x1x16x16xf32>
    %239 = vector.shape_cast %235 : vector<4x16x16xf32> to vector<1x4x16x16xf32>
    %240 = vector.broadcast %238 : vector<4x1x16x16xf32> to vector<4x4x16x16xf32>
    %241 = vector.broadcast %239 : vector<1x4x16x16xf32> to vector<4x4x16x16xf32>
    %242 = arith.mulf %240, %241 : vector<4x4x16x16xf32>
    %243 = arith.addf %234, %242 : vector<4x4x16x16xf32>
    %c0_87 = arith.constant 0 : index
    %c0_88 = arith.constant 0 : index
    %c0_89 = arith.constant 0 : index
    %c0_90 = arith.constant 0 : index
    %c0_91 = arith.constant 0 : index
    %244 = vector.load %arg3[%c0_87, %c0_88, %c0_89, %c0_90, %c0_91] : memref<1x4x4x16x16xf32, #tpu.memory_space<vmem>>, vector<1x4x4x16x16xf32>
    %245 = vector.shape_cast %244 : vector<1x4x4x16x16xf32> to vector<4x4x16x16xf32>
    %246 = vector.shape_cast %243 : vector<4x4x16x16xf32> to vector<1x4x4x16x16xf32>
    tpu.vector_store %arg3[%c0_87, %c0_88, %c0_89, %c0_90, %c0_91], %246 {strides = array<i32>} : memref<1x4x4x16x16xf32, #tpu.memory_space<vmem>>, vector<1x4x4x16x16xf32>,
    return
  }
  func.func @transform_0(%arg0: i32) -> (i32, i32, i32, i32) {
    %c0_i32 = arith.constant 0 : i32
    %c0_i32_0 = arith.constant 0 : i32
    %c0_i32_1 = arith.constant 0 : i32
    %c0_i32_2 = arith.constant 0 : i32
    return %arg0, %c0_i32, %c0_i32_0, %c0_i32_1 : i32, i32, i32, i32
  }
  func.func @transform_1(%arg0: i32) -> (i32, i32, i32, i32) {
    %c0_i32 = arith.constant 0 : i32
    %c0_i32_0 = arith.constant 0 : i32
    %c0_i32_1 = arith.constant 0 : i32
    %c0_i32_2 = arith.constant 0 : i32
    return %arg0, %c0_i32, %c0_i32_0, %c0_i32_1 : i32, i32, i32, i32
  }
  func.func @transform_2(%arg0: i32) -> (i32, i32, i32, i32, i32) {
    %c0_i32 = arith.constant 0 : i32
    %c0_i32_0 = arith.constant 0 : i32
    %c0_i32_1 = arith.constant 0 : i32
    %c0_i32_2 = arith.constant 0 : i32
    %c0_i32_3 = arith.constant 0 : i32
    return %arg0, %c0_i32, %c0_i32_0, %c0_i32_1, %c0_i32_2 : i32, i32, i32, i32, i32
  }
}

</mosaic_0001>

<llo_original>
// kernel: gcmodule_forward_pallas.3
$region0: #{gcmodule_forward_pallas.3}
  #allocation0 [shape = 'u32[]', space=smem, size = 0x4, offset = 0x4, fixed_abs, tag = 'smem constant byte address 0x4 - core index']
  #allocation1 [shape = 'u32[72,128]{1,0:T(1,128)}', space=vmem, size = 0x9000, scoped, tag = 'internal scratch']
  %s0 = inlined_call_operand.vmem [shape: f32[2,4,256], index: 0, kind: input, shape index: {}]
  %s1 = inlined_call_operand.vmem [shape: f32[2,4,256], index: 1, kind: output, shape index: {}]
  %s2 = sld [smem:[#allocation0]]
  $region37: #{gcmodule_forward_pallas.3} parent=0
    _
  %s4 = ssub.s32 1, %s2
  %s5 = scalar_select 0, %s4, %s2
  loop: start=0, step=1, limit=4
  $region2: #{gcmodule_forward_pallas.3} parent=0 // loop_pre_header
    _
  $region3: #{gcmodule_forward_pallas.3} parent=0 // loop_header
    %s7 = sphi 0, %s11
    %p8 = scmp.ge.s32.totalorder %s7, 4
    %s17 = sphi 0, %s19
    %s20 = sphi 0, %s17
    %s21 = sphi 0, %s20
    %s37 = sphi 0, %s21
    %s43 = sphi 0, %s45
    %s46 = sphi 0, %s43
    %s47 = sphi 0, %s46
    %s63 = sphi 0, %s47
  $region4: #{gcmodule_forward_pallas.3} parent=0 // loop_header_branch
    %10 = sbr.rel (%p8) target = $region8
  $region5: #{gcmodule_forward_pallas.3} parent=0 // loop_body
    %s12 = ssub.s32 %s7, 1
    %s13 = ssub.s32 %s7, 2
    %s14 = sadd.s32 %s7, 1
    %s15 = ssub.s32 %s7, %s14
    %p16 = scmp.eq.s32.totalorder %s15, 0
    %s18 = sadd.s32 %s17, 1
    %s19 = scalar_select %p16, %s17, %s18
    %p22 = pneg %p16
    %p23 = scmp.eq.s32.totalorder %s7, 1
    %p24 = por %p22, %p23
    %p25 = scmp.ne.s32.totalorder %s17, %s20
    %p26 = scmp.eq.s32.totalorder %s7, 0
    %p27 = por %p25, %p26
    %p28 = scmp.ne.s32.totalorder %s17, %s20
    %p29 = scmp.eq.s32.totalorder %s12, 1
    %p30 = por %p28, %p29
    %p31 = scmp.ne.s32.totalorder %s20, %s21
    %p32 = scmp.eq.s32.totalorder %s12, 0
    %p33 = por %p31, %p32
    %p34 = scmp.ne.s32.totalorder %s20, %s21
    %p35 = scmp.eq.s32.totalorder %s13, 1
    %p36 = por %p34, %p35
    %p38 = scmp.ne.s32.totalorder %s21, %s37
    %p39 = scmp.eq.s32.totalorder %s13, 0
    %p40 = por %p38, %p39
    %s41 = ssub.s32 %s7, %s14
    %p42 = scmp.eq.s32.totalorder %s41, 0
    %s44 = sadd.s32 %s43, 1
    %s45 = scalar_select %p42, %s43, %s44
    %p48 = pneg %p42
    %p49 = scmp.eq.s32.totalorder %s7, 1
    %p50 = por %p48, %p49
    %p51 = scmp.ne.s32.totalorder %s43, %s46
    %p52 = scmp.eq.s32.totalorder %s7, 0
    %p53 = por %p51, %p52
    %p54 = scmp.ne.s32.totalorder %s43, %s46
    %p55 = scmp.eq.s32.totalorder %s12, 1
    %p56 = por %p54, %p55
    %p57 = scmp.ne.s32.totalorder %s46, %s47
    %p58 = scmp.eq.s32.totalorder %s12, 0
    %p59 = por %p57, %p58
    %p60 = scmp.ne.s32.totalorder %s46, %s47
    %p61 = scmp.eq.s32.totalorder %s13, 1
    %p62 = por %p60, %p61
    %p64 = scmp.ne.s32.totalorder %s47, %s63
    %p65 = scmp.eq.s32.totalorder %s13, 0
    %p66 = por %p64, %p65
    %p67 = scmp.le.s32.totalorder 1, %s7
    %p68 = scmp.lt.s32.totalorder %s7, 3
    %p69 = pnand %p67, %p68
    %p70 = pneg %p69
    // Predicated region
    $region9: #{gcmodule_forward_pallas.3} parent=5 // pred_check
      _
    $region10: #{gcmodule_forward_pallas.3} parent=5 // pred_check_branch
      %72 = sbr.rel (%p69) target = $region12
    $region11: #{gcmodule_forward_pallas.3} parent=5 // pred_region
      %s73 = ssub.s32 %s7, 1
    $region12: #{gcmodule_forward_pallas.3} parent=5 // pred_fallthru
      _
    %p74 = scmp.lt.s32.totalorder %s7, 2
    // Predicated region
    $region13: #{gcmodule_forward_pallas.3} parent=5 // pred_check
      %p75 = pneg %p74
    $region14: #{gcmodule_forward_pallas.3} parent=5 // pred_check_branch
      %77 = sbr.rel (%p75) target = $region16
    $region15: #{gcmodule_forward_pallas.3} parent=5 // pred_region
      // Predicated region
      $region17: #{gcmodule_forward_pallas.3} parent=15 // pred_check
        %p78 = pneg %p27
      $region18: #{gcmodule_forward_pallas.3} parent=15 // pred_check_branch
        %80 = sbr.rel (%p78) target = $region20
      $region19: #{gcmodule_forward_pallas.3} parent=15 // pred_region
        %p81 = scmp.lt.s32.totalorder %s7, 1
        %s82 = scalar_select %p81, %s7, 1
        %s83 = smul.addr %s82, 2
        %s84 = smul.addr %s83, 4
        %s85 = scalar_lea.vmem %s0, %s84
      $region20: #{gcmodule_forward_pallas.3} parent=15 // pred_fallthru
        _
    $region16: #{gcmodule_forward_pallas.3} parent=5 // pred_fallthru
      _
    %p86 = scmp.le.s32.totalorder 1, %s7
    %p87 = scmp.lt.s32.totalorder %s7, 3
    %p88 = pnand %p86, %p87
    %p89 = pneg %p88
    // Predicated region
    $region21: #{gcmodule_forward_pallas.3} parent=5 // pred_check
      _
    $region22: #{gcmodule_forward_pallas.3} parent=5 // pred_check_branch
      %91 = sbr.rel (%p88) target = $region24
    $region23: #{gcmodule_forward_pallas.3} parent=5 // pred_region
      %s92 = ssub.s32 %s7, 1
      %p93 = scmp.lt.s32.totalorder %s12, 1
      %s94 = scalar_select %p93, %s12, 1
      %s95 = smul.addr %s94, 2
      %s96 = smul.addr %s95, 4
      %s97 = scalar_lea.vmem %s0, %s96
      %p98 = pneg %p33
      %p99 = pneg %p30
      %p100 = pneg %p59
      %p101 = pneg %p56
      %p102 = scmp.lt.s32.totalorder %s12, 1
      %s103 = scalar_select %p102, %s12, 1
      %s104 = smul.addr %s103, 2
      %s105 = smul.addr %s104, 4
      %s106 = scalar_lea.vmem %s1, %s105
      %p107 = scmp.lt.s32.totalorder %s12, 1
      %s108 = scalar_select %p107, %s12, 1
      %s109 = smul.addr %s108, 2
      %s110 = smul.addr %s109, 4
      %s111 = scalar_lea.vmem %s0, %s110
      %p112 = scmp.lt.s32.totalorder %s12, 1
      %s113 = scalar_select %p112, %s12, 1
      %s114 = smul.addr %s113, 2
      %s115 = smul.addr %s114, 4
      %s116 = scalar_lea.vmem %s1, %s115
      %v117 = vld [vmem:[%s111] sm:$0xff]
      %v118 = vmul.f32 %v117, 0.299
      %v119 = vmul.f32 %v117, 0.587
      %v121 = vrot.slane %v119, 5
      %v122 = vrot.slane %v121, 4
      %v124 = vadd.f32 %v118, %v122
      %v125 = vmul.f32 %v117, 0.114
      %v127 = vrot.slane %v125, 6
      %v128 = vrot.slane %v127, 4
      %v130 = vadd.f32 %v124, %v128
      %v132 = vperm.slane %v130, 0
      %v133 = vperm.slane %v130, 4
      %vm136 = vcmask 1040384
      %v137 = vsel %vm136, %v132, 0.0
      %v138 = vsel %vm136, %v133, 0.0
      %v139 = vadd.f32 %v137, %v138
      %140 = vadd.xlane.f32.xlu0 %v139
      %v141 = vpop.xlane.xlu0 %140
      %v142 = vrcp.pop 256.0
      %v143 = vmul.f32 256.0, %v142
      %v144 = vsub.f32 1.0, %v143
      %v145 = vmul.f32 %v142, %v144
      %v146 = vadd.f32 %v142, %v145
      %vm147 = vweird.f32 %v142
      %v148 = vsel %vm147, %v142, %v146
      %v149 = vmul.f32 %v141, %v148
      %v152 = vunpack.c.l.s4 839922192
      %v153 = vunpack.c.0.s8 %v152
      %v154 = vperm.slane %v149, %v153
      %v156 = vsub.f32 %v130, %v154
      %v157 = vmul.f32 %v156, %v156
      %v159 = vperm.slane %v157, 0
      %v160 = vperm.slane %v157, 4
      %v163 = vsel %vm136, %v159, 0.0
      %v164 = vsel %vm136, %v160, 0.0
      %v165 = vadd.f32 %v163, %v164
      %166 = vadd.xlane.f32.xlu0 %v165
      %v167 = vpop.xlane.xlu0 %166
      %v168 = vrcp.pop 255.0
      %v169 = vmul.f32 255.0, %v168
      %v170 = vsub.f32 1.0, %v169
      %v171 = vmul.f32 %v168, %v170
      %v172 = vadd.f32 %v168, %v171
      %vm173 = vweird.f32 %v168
      %v174 = vsel %vm173, %v168, %v172
      %v175 = vmul.f32 %v167, %v174
      %v176 = vrsqrt.pop %v175
      %v177 = vmul.f32 %v176, %v175
      %v178 = vmul.f32 %v177, %v176
      %v179 = vmul.f32 0.5, %v178
      %v180 = vsub.f32 1.5, %v179
      %v181 = vmul.f32 %v176, %v180
      %v182 = vmul.f32 %v175, %v181
      %vm183 = vcmp.eq.f32.partialorder %v175, inf
      %v184 = vsel %vm183, %v175, %v182
      %vm185 = vcmp.eq.f32.partialorder %v175, 0.0
      %v186 = vand.u32 %v175, 2147483648
      %v187 = vsel %vm185, %v186, %v184
      %v188 = vmax.f32 %v187, 1e-06
      %v189 = vmul.f32 %v149, 0.4
      %v190 = vadd.f32 %v149, %v188
      %v191 = vrcp.pop %v190
      %v192 = vmul.f32 %v190, %v191
      %v193 = vsub.f32 1.0, %v192
      %v194 = vmul.f32 %v191, %v193
      %v195 = vadd.f32 %v191, %v194
      %vm196 = vweird.f32 %v190
      %vm197 = vweird.f32 %v191
      %vm198 = vmor %vm196, %vm197
      %v199 = vsel %vm198, %v191, %v195
      %v200 = vand.u32 2147483647, %v190
      %vm201 = vcmp.eq.f32.partialorder %v200, 8.507059e+37
      %v202 = vand.u32 %v190, 2147483648
      %v203 = vor.u32 1.1754944e-38, %v202
      %v204 = vsel %vm201, %v203, %v199
      %v205 = vmul.f32 %v189, %v204
      %v206 = vadd.f32 %v205, 0.8
      %v207 = vmax.f32 %v206, 0.8
      %v208 = vmin.f32 %v207, 1.2
      %vm209 = vcmp.ne.f32.partialorder %v208, %v208
      %v210 = vsel %vm209, 0.8, %v208
      %v211 = vadd.f32 %v117, 1e-06
      %v212 = vlog2.pop %v211
      %v213 = vmul.f32 %v212, 0.6931472
      %v214 = vperm.slane %v210, 0
      %v215 = vmul.f32 %v214, %v213
      %v216 = vmul.f32 %v215, 1.442695
      %v217 = vpow.pop %v216
      %218 = vst [vmem:[%s116] sm:$0xff] %v217
      %p219 = scmp.lt.s32.totalorder %s12, 1
      %s220 = scalar_select %p219, %s12, 1
      %s221 = smul.addr %s220, 2
      %s222 = smul.addr %s221, 4
      %s223 = scalar_lea.vmem %s1, %s222
      // Predicated region
      $region25: #{gcmodule_forward_pallas.3} parent=23 // pred_check
        %p224 = pneg %p56
      $region26: #{gcmodule_forward_pallas.3} parent=23 // pred_check_branch
        %226 = sbr.rel (%p224) target = $region28
      $region27: #{gcmodule_forward_pallas.3} parent=23 // pred_region
        _
      $region28: #{gcmodule_forward_pallas.3} parent=23 // pred_fallthru
        _
    $region24: #{gcmodule_forward_pallas.3} parent=5 // pred_fallthru
      _
    %p227 = scmp.le.s32.totalorder 2, %s7
    // Predicated region
    $region29: #{gcmodule_forward_pallas.3} parent=5 // pred_check
      %p228 = pneg %p227
    $region30: #{gcmodule_forward_pallas.3} parent=5 // pred_check_branch
      %230 = sbr.rel (%p228) target = $region32
    $region31: #{gcmodule_forward_pallas.3} parent=5 // pred_region
      %s231 = ssub.s32 %s7, 2
      // Predicated region
      $region33: #{gcmodule_forward_pallas.3} parent=31 // pred_check
        %p232 = pneg %p62
      $region34: #{gcmodule_forward_pallas.3} parent=31 // pred_check_branch
        %234 = sbr.rel (%p232) target = $region36
      $region35: #{gcmodule_forward_pallas.3} parent=31 // pred_region
        %p235 = scmp.lt.s32.totalorder %s13, 1
        %s236 = scalar_select %p235, %s13, 1
        %s237 = smul.addr %s236, 2
        %s238 = smul.addr %s237, 4
        %s239 = scalar_lea.vmem %s1, %s238
      $region36: #{gcmodule_forward_pallas.3} parent=31 // pred_fallthru
        _
    $region32: #{gcmodule_forward_pallas.3} parent=5 // pred_fallthru
      _
  $region6: #{gcmodule_forward_pallas.3} parent=0 // loop_footer
    %s11 = sadd.s32 1, %s7
  $region7: #{gcmodule_forward_pallas.3} parent=0 // loop_footer_branch
    %6 = sbr.rel target = $region3
  $region8: #{gcmodule_forward_pallas.3} parent=0 // loop_exit
    _

// kernel: gcmodule_forward_pallas.4
$region0: #{gcmodule_forward_pallas.4}
  #allocation0 [shape = 'u32[]', space=smem, size = 0x4, offset = 0x4, fixed_abs, tag = 'smem constant byte address 0x4 - core index']
  #allocation1 [shape = 'u32[72,128]{1,0:T(1,128)}', space=vmem, size = 0x9000, scoped, tag = 'internal scratch']
  #allocation2 [shape = 'f32[18,18,64]{2,1,0:T(8,128)}', space=vmem, size = 0x36000, scoped, tag = 'scratch operand']
  %s0 = inlined_call_operand.vmem [shape: f32[2,256,4], index: 0, kind: input, shape index: {}]
  %s1 = inlined_call_operand.hbm [shape: f32[4,64], index: 1, kind: input, shape index: {}]
  %s2 = inlined_call_operand.vmem [shape: f32[1,64], index: 2, kind: input, shape index: {}]
  %s3 = inlined_call_operand.vmem [shape: f32[1,64], index: 3, kind: input, shape index: {}]
  %s4 = inlined_call_operand.vmem [shape: bf16[9,64,128], index: 4, kind: input, shape index: {}]
  %s5 = inlined_call_operand.vmem [shape: f32[1,128], index: 5, kind: input, shape index: {}]
  %s6 = inlined_call_operand.vmem [shape: f32[1,128], index: 6, kind: input, shape index: {}]
  %s7 = inlined_call_operand.vmem [shape: f32[2,256,128], index: 7, kind: output, shape index: {}]
  %s8 = sld [smem:[#allocation0]]
  $region65: #{gcmodule_forward_pallas.4} parent=0
    _
  %s10 = ssub.s32 1, %s8
  %s11 = scalar_select 0, %s10, %s8
  $region1: #{gcmodule_forward_pallas.4} parent=0
    #allocation3 [shape = 'u8[2048]{0}', space=vmem, size = 0x800, scoped, tag = 'input window, operand 1, single buffered']
    #allocation4 [shape = 's32[2]{0}', space=sflag, size = 0x8, scoped, tag = 'scoped memory for gcmodule_forward_pallas.4']
    %12 = vsyncpa [#allocation4], 0
    loop: start=0, step=1, limit=4
    $region2: #{gcmodule_forward_pallas.4} parent=1 // loop_pre_header
      _
    $region3: #{gcmodule_forward_pallas.4} parent=1 // loop_header
      %s14 = sphi 0, %s18
      %p15 = scmp.ge.s32.totalorder %s14, 4
      %s24 = sphi 0, %s26
      %s27 = sphi 0, %s24
      %s28 = sphi 0, %s27
      %s44 = sphi 0, %s28
      %s48 = sphi 0, %s48
      %s50 = sphi 0, %s48
      %s51 = sphi 0, %s50
      %s65 = sphi 0, %s51
      %s69 = sphi 0, %s69
      %s71 = sphi 0, %s69
      %s72 = sphi 0, %s71
      %s86 = sphi 0, %s72
      %s90 = sphi 0, %s90
      %s92 = sphi 0, %s90
      %s93 = sphi 0, %s92
      %s107 = sphi 0, %s93
      %s111 = sphi 0, %s111
      %s113 = sphi 0, %s111
      %s114 = sphi 0, %s113
      %s128 = sphi 0, %s114
      %s132 = sphi 0, %s132
      %s134 = sphi 0, %s132
      %s135 = sphi 0, %s134
      %s149 = sphi 0, %s135
      %s153 = sphi 0, %s153
      %s155 = sphi 0, %s153
      %s156 = sphi 0, %s155
      %s170 = sphi 0, %s156
      %s176 = sphi 0, %s178
      %s179 = sphi 0, %s176
      %s180 = sphi 0, %s179
      %s196 = sphi 0, %s180
    $region4: #{gcmodule_forward_pallas.4} parent=1 // loop_header_branch
      %17 = sbr.rel (%p15) target = $region8
    $region5: #{gcmodule_forward_pallas.4} parent=1 // loop_body
      %s19 = ssub.s32 %s14, 1
      %s20 = ssub.s32 %s14, 2
      %s21 = sadd.s32 %s14, 1
      %s22 = ssub.s32 %s14, %s21
      %p23 = scmp.eq.s32.totalorder %s22, 0
      %s25 = sadd.s32 %s24, 1
      %s26 = scalar_select %p23, %s24, %s25
      %p29 = pneg %p23
      %p30 = scmp.eq.s32.totalorder %s14, 1
      %p31 = por %p29, %p30
      %p32 = scmp.ne.s32.totalorder %s24, %s27
      %p33 = scmp.eq.s32.totalorder %s14, 0
      %p34 = por %p32, %p33
      %p35 = scmp.ne.s32.totalorder %s24, %s27
      %p36 = scmp.eq.s32.totalorder %s19, 1
      %p37 = por %p35, %p36
      %p38 = scmp.ne.s32.totalorder %s27, %s28
      %p39 = scmp.eq.s32.totalorder %s19, 0
      %p40 = por %p38, %p39
      %p41 = scmp.ne.s32.totalorder %s27, %s28
      %p42 = scmp.eq.s32.totalorder %s20, 1
      %p43 = por %p41, %p42
      %p45 = scmp.ne.s32.totalorder %s28, %s44
      %p46 = scmp.eq.s32.totalorder %s20, 0
      %p47 = por %p45, %p46
      %s49 = sadd.s32 %s48, 1
      %p52 = scmp.eq.s32.totalorder %s14, 1
      %p53 = scmp.ne.s32.totalorder %s48, %s50
      %p54 = scmp.eq.s32.totalorder %s14, 0
      %p55 = por %p53, %p54
      %p56 = scmp.ne.s32.totalorder %s48, %s50
      %p57 = scmp.eq.s32.totalorder %s19, 1
      %p58 = por %p56, %p57
      %p59 = scmp.ne.s32.totalorder %s50, %s51
      %p60 = scmp.eq.s32.totalorder %s19, 0
      %p61 = por %p59, %p60
      %p62 = scmp.ne.s32.totalorder %s50, %s51
      %p63 = scmp.eq.s32.totalorder %s20, 1
      %p64 = por %p62, %p63
      %p66 = scmp.ne.s32.totalorder %s51, %s65
      %p67 = scmp.eq.s32.totalorder %s20, 0
      %p68 = por %p66, %p67
      %s70 = sadd.s32 %s69, 1
      %p73 = scmp.eq.s32.totalorder %s14, 1
      %p74 = scmp.ne.s32.totalorder %s69, %s71
      %p75 = scmp.eq.s32.totalorder %s14, 0
      %p76 = por %p74, %p75
      %p77 = scmp.ne.s32.totalorder %s69, %s71
      %p78 = scmp.eq.s32.totalorder %s19, 1
      %p79 = por %p77, %p78
      %p80 = scmp.ne.s32.totalorder %s71, %s72
      %p81 = scmp.eq.s32.totalorder %s19, 0
      %p82 = por %p80, %p81
      %p83 = scmp.ne.s32.totalorder %s71, %s72
      %p84 = scmp.eq.s32.totalorder %s20, 1
      %p85 = por %p83, %p84
      %p87 = scmp.ne.s32.totalorder %s72, %s86
      %p88 = scmp.eq.s32.totalorder %s20, 0
      %p89 = por %p87, %p88
      %s91 = sadd.s32 %s90, 1
      %p94 = scmp.eq.s32.totalorder %s14, 1
      %p95 = scmp.ne.s32.totalorder %s90, %s92
      %p96 = scmp.eq.s32.totalorder %s14, 0
      %p97 = por %p95, %p96
      %p98 = scmp.ne.s32.totalorder %s90, %s92
      %p99 = scmp.eq.s32.totalorder %s19, 1
      %p100 = por %p98, %p99
      %p101 = scmp.ne.s32.totalorder %s92, %s93
      %p102 = scmp.eq.s32.totalorder %s19, 0
      %p103 = por %p101, %p102
      %p104 = scmp.ne.s32.totalorder %s92, %s93
      %p105 = scmp.eq.s32.totalorder %s20, 1
      %p106 = por %p104, %p105
      %p108 = scmp.ne.s32.totalorder %s93, %s107
      %p109 = scmp.eq.s32.totalorder %s20, 0
      %p110 = por %p108, %p109
      %s112 = sadd.s32 %s111, 1
      %p115 = scmp.eq.s32.totalorder %s14, 1
      %p116 = scmp.ne.s32.totalorder %s111, %s113
      %p117 = scmp.eq.s32.totalorder %s14, 0
      %p118 = por %p116, %p117
      %p119 = scmp.ne.s32.totalorder %s111, %s113
      %p120 = scmp.eq.s32.totalorder %s19, 1
      %p121 = por %p119, %p120
      %p122 = scmp.ne.s32.totalorder %s113, %s114
      %p123 = scmp.eq.s32.totalorder %s19, 0
      %p124 = por %p122, %p123
      %p125 = scmp.ne.s32.totalorder %s113, %s114
      %p126 = scmp.eq.s32.totalorder %s20, 1
      %p127 = por %p125, %p126
      %p129 = scmp.ne.s32.totalorder %s114, %s128
      %p130 = scmp.eq.s32.totalorder %s20, 0
      %p131 = por %p129, %p130
      %s133 = sadd.s32 %s132, 1
      %p136 = scmp.eq.s32.totalorder %s14, 1
      %p137 = scmp.ne.s32.totalorder %s132, %s134
      %p138 = scmp.eq.s32.totalorder %s14, 0
      %p139 = por %p137, %p138
      %p140 = scmp.ne.s32.totalorder %s132, %s134
      %p141 = scmp.eq.s32.totalorder %s19, 1
      %p142 = por %p140, %p141
      %p143 = scmp.ne.s32.totalorder %s134, %s135
      %p144 = scmp.eq.s32.totalorder %s19, 0
      %p145 = por %p143, %p144
      %p146 = scmp.ne.s32.totalorder %s134, %s135
      %p147 = scmp.eq.s32.totalorder %s20, 1
      %p148 = por %p146, %p147
      %p150 = scmp.ne.s32.totalorder %s135, %s149
      %p151 = scmp.eq.s32.totalorder %s20, 0
      %p152 = por %p150, %p151
      %s154 = sadd.s32 %s153, 1
      %p157 = scmp.eq.s32.totalorder %s14, 1
      %p158 = scmp.ne.s32.totalorder %s153, %s155
      %p159 = scmp.eq.s32.totalorder %s14, 0
      %p160 = por %p158, %p159
      %p161 = scmp.ne.s32.totalorder %s153, %s155
      %p162 = scmp.eq.s32.totalorder %s19, 1
      %p163 = por %p161, %p162
      %p164 = scmp.ne.s32.totalorder %s155, %s156
      %p165 = scmp.eq.s32.totalorder %s19, 0
      %p166 = por %p164, %p165
      %p167 = scmp.ne.s32.totalorder %s155, %s156
      %p168 = scmp.eq.s32.totalorder %s20, 1
      %p169 = por %p167, %p168
      %p171 = scmp.ne.s32.totalorder %s156, %s170
      %p172 = scmp.eq.s32.totalorder %s20, 0
      %p173 = por %p171, %p172
      %s174 = ssub.s32 %s14, %s21
      %p175 = scmp.eq.s32.totalorder %s174, 0
      %s177 = sadd.s32 %s176, 1
      %s178 = scalar_select %p175, %s176, %s177
      %p181 = pneg %p175
      %p182 = scmp.eq.s32.totalorder %s14, 1
      %p183 = por %p181, %p182
      %p184 = scmp.ne.s32.totalorder %s176, %s179
      %p185 = scmp.eq.s32.totalorder %s14, 0
      %p186 = por %p184, %p185
      %p187 = scmp.ne.s32.totalorder %s176, %s179
      %p188 = scmp.eq.s32.totalorder %s19, 1
      %p189 = por %p187, %p188
      %p190 = scmp.ne.s32.totalorder %s179, %s180
      %p191 = scmp.eq.s32.totalorder %s19, 0
      %p192 = por %p190, %p191
      %p193 = scmp.ne.s32.totalorder %s179, %s180
      %p194 = scmp.eq.s32.totalorder %s20, 1
      %p195 = por %p193, %p194
      %p197 = scmp.ne.s32.totalorder %s180, %s196
      %p198 = scmp.eq.s32.totalorder %s20, 0
      %p199 = por %p197, %p198
      %p200 = scmp.le.s32.totalorder 1, %s14
      %p201 = scmp.lt.s32.totalorder %s14, 3
      %p202 = pnand %p200, %p201
      %p203 = pneg %p202
      // Predicated region
      $region9: #{gcmodule_forward_pallas.4} parent=5 // pred_check
        _
      $region10: #{gcmodule_forward_pallas.4} parent=5 // pred_check_branch
        %205 = sbr.rel (%p202) target = $region12
      $region11: #{gcmodule_forward_pallas.4} parent=5 // pred_region
        %s206 = ssub.s32 %s14, 1
        // Predicated region
        $region13: #{gcmodule_forward_pallas.4} parent=11 // pred_check
          %p207 = pneg %p61
        $region14: #{gcmodule_forward_pallas.4} parent=11 // pred_check_branch
          %209 = sbr.rel (%p207) target = $region16
        $region15: #{gcmodule_forward_pallas.4} parent=11 // pred_region
          %211 = vsyncadd [#allocation4], 0
          %s213 = sshll.u32 %s1, 4
          %s214 = int_to_ptr.hbm [resolvable:$true] %s213
          %s215 = sshll.u32 [#allocation3], 4
          %s216 = int_to_ptr.vmem [resolvable:$true] %s215
          %218 = dma.hbm_to_vmem [thread:$0]  %s214, 64, %s216, [#allocation4]
        $region16: #{gcmodule_forward_pallas.4} parent=11 // pred_fallthru
          _
        // Predicated region
        $region17: #{gcmodule_forward_pallas.4} parent=11 // pred_check
          %p219 = pneg %p82
        $region18: #{gcmodule_forward_pallas.4} parent=11 // pred_check_branch
          %221 = sbr.rel (%p219) target = $region20
        $region19: #{gcmodule_forward_pallas.4} parent=11 // pred_region
          _
        $region20: #{gcmodule_forward_pallas.4} parent=11 // pred_fallthru
          _
        // Predicated region
        $region21: #{gcmodule_forward_pallas.4} parent=11 // pred_check
          %p222 = pneg %p103
        $region22: #{gcmodule_forward_pallas.4} parent=11 // pred_check_branch
          %224 = sbr.rel (%p222) target = $region24
        $region23: #{gcmodule_forward_pallas.4} parent=11 // pred_region
          _
        $region24: #{gcmodule_forward_pallas.4} parent=11 // pred_fallthru
          _
        // Predicated region
        $region25: #{gcmodule_forward_pallas.4} parent=11 // pred_check
          %p225 = pneg %p124
        $region26: #{gcmodule_forward_pallas.4} parent=11 // pred_check_branch
          %227 = sbr.rel (%p225) target = $region28
        $region27: #{gcmodule_forward_pallas.4} parent=11 // pred_region
          _
        $region28: #{gcmodule_forward_pallas.4} parent=11 // pred_fallthru
          _
        // Predicated region
        $region29: #{gcmodule_forward_pallas.4} parent=11 // pred_check
          %p228 = pneg %p145
        $region30: #{gcmodule_forward_pallas.4} parent=11 // pred_check_branch
          %230 = sbr.rel (%p228) target = $region32
        $region31: #{gcmodule_forward_pallas.4} parent=11 // pred_region
          _
        $region32: #{gcmodule_forward_pallas.4} parent=11 // pred_fallthru
          _
        // Predicated region
        $region33: #{gcmodule_forward_pallas.4} parent=11 // pred_check
          %p231 = pneg %p166
        $region34: #{gcmodule_forward_pallas.4} parent=11 // pred_check_branch
          %233 = sbr.rel (%p231) target = $region36
        $region35: #{gcmodule_forward_pallas.4} parent=11 // pred_region
          _
        $region36: #{gcmodule_forward_pallas.4} parent=11 // pred_fallthru
          _
      $region12: #{gcmodule_forward_pallas.4} parent=5 // pred_fallthru
        _
      %p234 = scmp.lt.s32.totalorder %s14, 2
      // Predicated region
      $region37: #{gcmodule_forward_pallas.4} parent=5 // pred_check
        %p235 = pneg %p234
      $region38: #{gcmodule_forward_pallas.4} parent=5 // pred_check_branch
        %237 = sbr.rel (%p235) target = $region40
      $region39: #{gcmodule_forward_pallas.4} parent=5 // pred_region
        // Predicated region
        $region41: #{gcmodule_forward_pallas.4} parent=39 // pred_check
          %p238 = pneg %p34
        $region42: #{gcmodule_forward_pallas.4} parent=39 // pred_check_branch
          %240 = sbr.rel (%p238) target = $region44
        $region43: #{gcmodule_forward_pallas.4} parent=39 // pred_region
          %p241 = scmp.lt.s32.totalorder %s14, 1
          %s242 = scalar_select %p241, %s14, 1
          %s243 = smul.addr %s242, 32
          %s244 = smul.addr %s243, 8
          %s245 = scalar_lea.vmem %s0, %s244
        $region44: #{gcmodule_forward_pallas.4} parent=39 // pred_fallthru
          _
      $region40: #{gcmodule_forward_pallas.4} parent=5 // pred_fallthru
        _
      %p246 = scmp.le.s32.totalorder 1, %s14
      %p247 = scmp.lt.s32.totalorder %s14, 3
      %p248 = pnand %p246, %p247
      %p249 = pneg %p248
      // Predicated region
      $region45: #{gcmodule_forward_pallas.4} parent=5 // pred_check
        _
      $region46: #{gcmodule_forward_pallas.4} parent=5 // pred_check_branch
        %251 = sbr.rel (%p248) target = $region48
      $region47: #{gcmodule_forward_pallas.4} parent=5 // pred_region
        %s252 = ssub.s32 %s14, 1
        // Predicated region
        $region49: #{gcmodule_forward_pallas.4} parent=47 // pred_check
          %p253 = pneg %p61
        $region50: #{gcmodule_forward_pallas.4} parent=47 // pred_check_branch
          %255 = sbr.rel (%p253) target = $region52
        $region51: #{gcmodule_forward_pallas.4} parent=47 // pred_region
          %257 = dma.done [#allocation4], 64
        $region52: #{gcmodule_forward_pallas.4} parent=47 // pred_fallthru
          _
        %p258 = scmp.lt.s32.totalorder %s19, 1
        %s259 = scalar_select %p258, %s19, 1
        %s260 = smul.addr %s259, 32
        %s261 = smul.addr %s260, 8
        %s262 = scalar_lea.vmem %s0, %s261
        %p263 = pneg %p40
        %p264 = pneg %p37
        %p265 = pneg %p61
        %p266 = pneg %p58
        %p267 = pneg %p82
        %p268 = pneg %p79
        %p269 = pneg %p103
        %p270 = pneg %p100
        %p271 = pneg %p124
        %p272 = pneg %p121
        %p273 = pneg %p145
        %p274 = pneg %p142
        %p275 = pneg %p166
        %p276 = pneg %p163
        %p277 = pneg %p192
        %p278 = pneg %p189
        %p279 = scmp.lt.s32.totalorder %s19, 1
        %s280 = scalar_select %p279, %s19, 1
        %s281 = smul.addr %s280, 32
        %s282 = smul.addr %s281, 8
        %s283 = scalar_lea.vmem %s7, %s282
        %p284 = scmp.lt.s32.totalorder %s19, 1
        %s285 = scalar_select %p284, %s19, 1
        %s286 = smul.addr %s285, 32
        %s287 = smul.addr %s286, 8
        %s288 = scalar_lea.vmem %s0, %s287
        %p289 = scmp.lt.s32.totalorder %s19, 1
        %s290 = scalar_select %p289, %s19, 1
        %s291 = smul.addr %s290, 32
        %s292 = smul.addr %s291, 8
        %s293 = scalar_lea.vmem %s7, %s292
        %v295 = vld [vmem:[%s288] sm:$0xff]
        %v296 = vld [vmem:[%s288 + $0x8] sm:$0xff]
        %v297 = vld [vmem:[%s288 + $0x10] sm:$0xff]
        %v298 = vld [vmem:[%s288 + $0x18] sm:$0xff]
        %v299 = vld [vmem:[%s288 + $0x20] sm:$0xff]
        %v300 = vld [vmem:[%s288 + $0x28] sm:$0xff]
        %v301 = vld [vmem:[%s288 + $0x30] sm:$0xff]
        %v302 = vld [vmem:[%s288 + $0x38] sm:$0xff]
        %v303 = vld [vmem:[%s288 + $0x40] sm:$0xff]
        %v304 = vld [vmem:[%s288 + $0x48] sm:$0xff]
        %v305 = vld [vmem:[%s288 + $0x50] sm:$0xff]
        %v306 = vld [vmem:[%s288 + $0x58] sm:$0xff]
        %v307 = vld [vmem:[%s288 + $0x60] sm:$0xff]
        %v308 = vld [vmem:[%s288 + $0x68] sm:$0xff]
        %v309 = vld [vmem:[%s288 + $0x70] sm:$0xff]
        %v310 = vld [vmem:[%s288 + $0x78] sm:$0xff]
        %v311 = vld [vmem:[%s288 + $0x80] sm:$0xff]
        %v312 = vld [vmem:[%s288 + $0x88] sm:$0xff]
        %v313 = vld [vmem:[%s288 + $0x90] sm:$0xff]
        %v314 = vld [vmem:[%s288 + $0x98] sm:$0xff]
        %v315 = vld [vmem:[%s288 + $0xa0] sm:$0xff]
        %v316 = vld [vmem:[%s288 + $0xa8] sm:$0xff]
        %v317 = vld [vmem:[%s288 + $0xb0] sm:$0xff]
        %v318 = vld [vmem:[%s288 + $0xb8] sm:$0xff]
        %v319 = vld [vmem:[%s288 + $0xc0] sm:$0xff]
        %v320 = vld [vmem:[%s288 + $0xc8] sm:$0xff]
        %v321 = vld [vmem:[%s288 + $0xd0] sm:$0xff]
        %v322 = vld [vmem:[%s288 + $0xd8] sm:$0xff]
        %v323 = vld [vmem:[%s288 + $0xe0] sm:$0xff]
        %v324 = vld [vmem:[%s288 + $0xe8] sm:$0xff]
        %v325 = vld [vmem:[%s288 + $0xf0] sm:$0xff]
        %v326 = vld [vmem:[%s288 + $0xf8] sm:$0xff]
        %v327 = vld [vmem:[#allocation3] sm:$0x1]
        %329 = vset.pattern.permute.xlu0 0
        %330 = vperm.xlu0 %329, %v295
        %v331 = vpop.permute.xlu0 %330
        %334 = vset.pattern.permute.xlu0 0
        %335 = vperm.xlu0 %334, %v296
        %v336 = vpop.permute.xlu0 %335
        %339 = vset.pattern.permute.xlu0 0
        %340 = vperm.xlu0 %339, %v297
        %v341 = vpop.permute.xlu0 %340
        %344 = vset.pattern.permute.xlu0 0
        %345 = vperm.xlu0 %344, %v298
        %v346 = vpop.permute.xlu0 %345
        %349 = vset.pattern.permute.xlu0 0
        %350 = vperm.xlu0 %349, %v299
        %v351 = vpop.permute.xlu0 %350
        %354 = vset.pattern.permute.xlu0 0
        %355 = vperm.xlu0 %354, %v300
        %v356 = vpop.permute.xlu0 %355
        %359 = vset.pattern.permute.xlu0 0
        %360 = vperm.xlu0 %359, %v301
        %v361 = vpop.permute.xlu0 %360
        %364 = vset.pattern.permute.xlu0 0
        %365 = vperm.xlu0 %364, %v302
        %v366 = vpop.permute.xlu0 %365
        %369 = vset.pattern.permute.xlu0 0
        %370 = vperm.xlu0 %369, %v303
        %v371 = vpop.permute.xlu0 %370
        %374 = vset.pattern.permute.xlu0 0
        %375 = vperm.xlu0 %374, %v304
        %v376 = vpop.permute.xlu0 %375
        %379 = vset.pattern.permute.xlu0 0
        %380 = vperm.xlu0 %379, %v305
        %v381 = vpop.permute.xlu0 %380
        %384 = vset.pattern.permute.xlu0 0
        %385 = vperm.xlu0 %384, %v306
        %v386 = vpop.permute.xlu0 %385
        %389 = vset.pattern.permute.xlu0 0
        %390 = vperm.xlu0 %389, %v307
        %v391 = vpop.permute.xlu0 %390
        %394 = vset.pattern.permute.xlu0 0
        %395 = vperm.xlu0 %394, %v308
        %v396 = vpop.permute.xlu0 %395
        %399 = vset.pattern.permute.xlu0 0
        %400 = vperm.xlu0 %399, %v309
        %v401 = vpop.permute.xlu0 %400
        %404 = vset.pattern.permute.xlu0 0
        %405 = vperm.xlu0 %404, %v310
        %v406 = vpop.permute.xlu0 %405
        %409 = vset.pattern.permute.xlu0 0
        %410 = vperm.xlu0 %409, %v311
        %v411 = vpop.permute.xlu0 %410
        %414 = vset.pattern.permute.xlu0 0
        %415 = vperm.xlu0 %414, %v312
        %v416 = vpop.permute.xlu0 %415
        %419 = vset.pattern.permute.xlu0 0
        %420 = vperm.xlu0 %419, %v313
        %v421 = vpop.permute.xlu0 %420
        %424 = vset.pattern.permute.xlu0 0
        %425 = vperm.xlu0 %424, %v314
        %v426 = vpop.permute.xlu0 %425
        %429 = vset.pattern.permute.xlu0 0
        %430 = vperm.xlu0 %429, %v315
        %v431 = vpop.permute.xlu0 %430
        %434 = vset.pattern.permute.xlu0 0
        %435 = vperm.xlu0 %434, %v316
        %v436 = vpop.permute.xlu0 %435
        %439 = vset.pattern.permute.xlu0 0
        %440 = vperm.xlu0 %439, %v317
        %v441 = vpop.permute.xlu0 %440
        %444 = vset.pattern.permute.xlu0 0
        %445 = vperm.xlu0 %444, %v318
        %v446 = vpop.permute.xlu0 %445
        %449 = vset.pattern.permute.xlu0 0
        %450 = vperm.xlu0 %449, %v319
        %v451 = vpop.permute.xlu0 %450
        %454 = vset.pattern.permute.xlu0 0
        %455 = vperm.xlu0 %454, %v320
        %v456 = vpop.permute.xlu0 %455
        %459 = vset.pattern.permute.xlu0 0
        %460 = vperm.xlu0 %459, %v321
        %v461 = vpop.permute.xlu0 %460
        %464 = vset.pattern.permute.xlu0 0
        %465 = vperm.xlu0 %464, %v322
        %v466 = vpop.permute.xlu0 %465
        %469 = vset.pattern.permute.xlu0 0
        %470 = vperm.xlu0 %469, %v323
        %v471 = vpop.permute.xlu0 %470
        %474 = vset.pattern.permute.xlu0 0
        %475 = vperm.xlu0 %474, %v324
        %v476 = vpop.permute.xlu0 %475
        %479 = vset.pattern.permute.xlu0 0
        %480 = vperm.xlu0 %479, %v325
        %v481 = vpop.permute.xlu0 %480
        %484 = vset.pattern.permute.xlu0 0
        %485 = vperm.xlu0 %484, %v326
        %v486 = vpop.permute.xlu0 %485
        %v488 = vperm.slane %v327, 0
        %v489 = vmul.f32 %v331, %v488
        %v490 = vmul.f32 %v336, %v488
        %v491 = vmul.f32 %v341, %v488
        %v492 = vmul.f32 %v346, %v488
        %v493 = vmul.f32 %v351, %v488
        %v494 = vmul.f32 %v356, %v488
        %v495 = vmul.f32 %v361, %v488
        %v496 = vmul.f32 %v366, %v488
        %v497 = vmul.f32 %v371, %v488
        %v498 = vmul.f32 %v376, %v488
        %v499 = vmul.f32 %v381, %v488
        %v500 = vmul.f32 %v386, %v488
        %v501 = vmul.f32 %v391, %v488
        %v502 = vmul.f32 %v396, %v488
        %v503 = vmul.f32 %v401, %v488
        %v504 = vmul.f32 %v406, %v488
        %v505 = vmul.f32 %v411, %v488
        %v506 = vmul.f32 %v416, %v488
        %v507 = vmul.f32 %v421, %v488
        %v508 = vmul.f32 %v426, %v488
        %v509 = vmul.f32 %v431, %v488
        %v510 = vmul.f32 %v436, %v488
        %v511 = vmul.f32 %v441, %v488
        %v512 = vmul.f32 %v446, %v488
        %v513 = vmul.f32 %v451, %v488
        %v514 = vmul.f32 %v456, %v488
        %v515 = vmul.f32 %v461, %v488
        %v516 = vmul.f32 %v466, %v488
        %v517 = vmul.f32 %v471, %v488
        %v518 = vmul.f32 %v476, %v488
        %v519 = vmul.f32 %v481, %v488
        %v520 = vmul.f32 %v486, %v488
        %v521 = vadd.f32 %v489, 0.0
        %v522 = vadd.f32 %v490, 0.0
        %v523 = vadd.f32 %v491, 0.0
        %v524 = vadd.f32 %v492, 0.0
        %v525 = vadd.f32 %v493, 0.0
        %v526 = vadd.f32 %v494, 0.0
        %v527 = vadd.f32 %v495, 0.0
        %v528 = vadd.f32 %v496, 0.0
        %v529 = vadd.f32 %v497, 0.0
        %v530 = vadd.f32 %v498, 0.0
        %v531 = vadd.f32 %v499, 0.0
        %v532 = vadd.f32 %v500, 0.0
        %v533 = vadd.f32 %v501, 0.0
        %v534 = vadd.f32 %v502, 0.0
        %v535 = vadd.f32 %v503, 0.0
        %v536 = vadd.f32 %v504, 0.0
        %v537 = vadd.f32 %v505, 0.0
        %v538 = vadd.f32 %v506, 0.0
        %v539 = vadd.f32 %v507, 0.0
        %v540 = vadd.f32 %v508, 0.0
        %v541 = vadd.f32 %v509, 0.0
        %v542 = vadd.f32 %v510, 0.0
        %v543 = vadd.f32 %v511, 0.0
        %v544 = vadd.f32 %v512, 0.0
        %v545 = vadd.f32 %v513, 0.0
        %v546 = vadd.f32 %v514, 0.0
        %v547 = vadd.f32 %v515, 0.0
        %v548 = vadd.f32 %v516, 0.0
        %v549 = vadd.f32 %v517, 0.0
        %v550 = vadd.f32 %v518, 0.0
        %v551 = vadd.f32 %v519, 0.0
        %v552 = vadd.f32 %v520, 0.0
        %v553 = vld [vmem:[#allocation3 + $0x1] sm:$0x1]
        %554 = vset.pattern.permute.xlu0 1
        %555 = vperm.xlu0 %554, %v295
        %v556 = vpop.permute.xlu0 %555
        %558 = vset.pattern.permute.xlu0 1
        %559 = vperm.xlu0 %558, %v296
        %v560 = vpop.permute.xlu0 %559
        %562 = vset.pattern.permute.xlu0 1
        %563 = vperm.xlu0 %562, %v297
        %v564 = vpop.permute.xlu0 %563
        %566 = vset.pattern.permute.xlu0 1
        %567 = vperm.xlu0 %566, %v298
        %v568 = vpop.permute.xlu0 %567
        %570 = vset.pattern.permute.xlu0 1
        %571 = vperm.xlu0 %570, %v299
        %v572 = vpop.permute.xlu0 %571
        %574 = vset.pattern.permute.xlu0 1
        %575 = vperm.xlu0 %574, %v300
        %v576 = vpop.permute.xlu0 %575
        %578 = vset.pattern.permute.xlu0 1
        %579 = vperm.xlu0 %578, %v301
        %v580 = vpop.permute.xlu0 %579
        %582 = vset.pattern.permute.xlu0 1
        %583 = vperm.xlu0 %582, %v302
        %v584 = vpop.permute.xlu0 %583
        %586 = vset.pattern.permute.xlu0 1
        %587 = vperm.xlu0 %586, %v303
        %v588 = vpop.permute.xlu0 %587
        %590 = vset.pattern.permute.xlu0 1
        %591 = vperm.xlu0 %590, %v304
        %v592 = vpop.permute.xlu0 %591
        %594 = vset.pattern.permute.xlu0 1
        %595 = vperm.xlu0 %594, %v305
        %v596 = vpop.permute.xlu0 %595
        %598 = vset.pattern.permute.xlu0 1
        %599 = vperm.xlu0 %598, %v306
        %v600 = vpop.permute.xlu0 %599
        %602 = vset.pattern.permute.xlu0 1
        %603 = vperm.xlu0 %602, %v307
        %v604 = vpop.permute.xlu0 %603
        %606 = vset.pattern.permute.xlu0 1
        %607 = vperm.xlu0 %606, %v308
        %v608 = vpop.permute.xlu0 %607
        %610 = vset.pattern.permute.xlu0 1
        %611 = vperm.xlu0 %610, %v309
        %v612 = vpop.permute.xlu0 %611
        %614 = vset.pattern.permute.xlu0 1
        %615 = vperm.xlu0 %614, %v310
        %v616 = vpop.permute.xlu0 %615
        %618 = vset.pattern.permute.xlu0 1
        %619 = vperm.xlu0 %618, %v311
        %v620 = vpop.permute.xlu0 %619
        %622 = vset.pattern.permute.xlu0 1
        %623 = vperm.xlu0 %622, %v312
        %v624 = vpop.permute.xlu0 %623
        %626 = vset.pattern.permute.xlu0 1
        %627 = vperm.xlu0 %626, %v313
        %v628 = vpop.permute.xlu0 %627
        %630 = vset.pattern.permute.xlu0 1
        %631 = vperm.xlu0 %630, %v314
        %v632 = vpop.permute.xlu0 %631
        %634 = vset.pattern.permute.xlu0 1
        %635 = vperm.xlu0 %634, %v315
        %v636 = vpop.permute.xlu0 %635
        %638 = vset.pattern.permute.xlu0 1
        %639 = vperm.xlu0 %638, %v316
        %v640 = vpop.permute.xlu0 %639
        %642 = vset.pattern.permute.xlu0 1
        %643 = vperm.xlu0 %642, %v317
        %v644 = vpop.permute.xlu0 %643
        %646 = vset.pattern.permute.xlu0 1
        %647 = vperm.xlu0 %646, %v318
        %v648 = vpop.permute.xlu0 %647
        %650 = vset.pattern.permute.xlu0 1
        %651 = vperm.xlu0 %650, %v319
        %v652 = vpop.permute.xlu0 %651
        %654 = vset.pattern.permute.xlu0 1
        %655 = vperm.xlu0 %654, %v320
        %v656 = vpop.permute.xlu0 %655
        %658 = vset.pattern.permute.xlu0 1
        %659 = vperm.xlu0 %658, %v321
        %v660 = vpop.permute.xlu0 %659
        %662 = vset.pattern.permute.xlu0 1
        %663 = vperm.xlu0 %662, %v322
        %v664 = vpop.permute.xlu0 %663
        %666 = vset.pattern.permute.xlu0 1
        %667 = vperm.xlu0 %666, %v323
        %v668 = vpop.permute.xlu0 %667
        %670 = vset.pattern.permute.xlu0 1
        %671 = vperm.xlu0 %670, %v324
        %v672 = vpop.permute.xlu0 %671
        %674 = vset.pattern.permute.xlu0 1
        %675 = vperm.xlu0 %674, %v325
        %v676 = vpop.permute.xlu0 %675
        %678 = vset.pattern.permute.xlu0 1
        %679 = vperm.xlu0 %678, %v326
        %v680 = vpop.permute.xlu0 %679
        %v682 = vperm.slane %v553, 0
        %v683 = vmul.f32 %v556, %v682
        %v684 = vmul.f32 %v560, %v682
        %v685 = vmul.f32 %v564, %v682
        %v686 = vmul.f32 %v568, %v682
        %v687 = vmul.f32 %v572, %v682
        %v688 = vmul.f32 %v576, %v682
        %v689 = vmul.f32 %v580, %v682
        %v690 = vmul.f32 %v584, %v682
        %v691 = vmul.f32 %v588, %v682
        %v692 = vmul.f32 %v592, %v682
        %v693 = vmul.f32 %v596, %v682
        %v694 = vmul.f32 %v600, %v682
        %v695 = vmul.f32 %v604, %v682
        %v696 = vmul.f32 %v608, %v682
        %v697 = vmul.f32 %v612, %v682
        %v698 = vmul.f32 %v616, %v682
        %v699 = vmul.f32 %v620, %v682
        %v700 = vmul.f32 %v624, %v682
        %v701 = vmul.f32 %v628, %v682
        %v702 = vmul.f32 %v632, %v682
        %v703 = vmul.f32 %v636, %v682
        %v704 = vmul.f32 %v640, %v682
        %v705 = vmul.f32 %v644, %v682
        %v706 = vmul.f32 %v648, %v682
        %v707 = vmul.f32 %v652, %v682
        %v708 = vmul.f32 %v656, %v682
        %v709 = vmul.f32 %v660, %v682
        %v710 = vmul.f32 %v664, %v682
        %v711 = vmul.f32 %v668, %v682
        %v712 = vmul.f32 %v672, %v682
        %v713 = vmul.f32 %v676, %v682
        %v714 = vmul.f32 %v680, %v682
        %v715 = vadd.f32 %v521, %v683
        %v716 = vadd.f32 %v522, %v684
        %v717 = vadd.f32 %v523, %v685
        %v718 = vadd.f32 %v524, %v686
        %v719 = vadd.f32 %v525, %v687
        %v720 = vadd.f32 %v526, %v688
        %v721 = vadd.f32 %v527, %v689
        %v722 = vadd.f32 %v528, %v690
        %v723 = vadd.f32 %v529, %v691
        %v724 = vadd.f32 %v530, %v692
        %v725 = vadd.f32 %v531, %v693
        %v726 = vadd.f32 %v532, %v694
        %v727 = vadd.f32 %v533, %v695
        %v728 = vadd.f32 %v534, %v696
        %v729 = vadd.f32 %v535, %v697
        %v730 = vadd.f32 %v536, %v698
        %v731 = vadd.f32 %v537, %v699
        %v732 = vadd.f32 %v538, %v700
        %v733 = vadd.f32 %v539, %v701
        %v734 = vadd.f32 %v540, %v702
        %v735 = vadd.f32 %v541, %v703
        %v736 = vadd.f32 %v542, %v704
        %v737 = vadd.f32 %v543, %v705
        %v738 = vadd.f32 %v544, %v706
        %v739 = vadd.f32 %v545, %v707
        %v740 = vadd.f32 %v546, %v708
        %v741 = vadd.f32 %v547, %v709
        %v742 = vadd.f32 %v548, %v710
        %v743 = vadd.f32 %v549, %v711
        %v744 = vadd.f32 %v550, %v712
        %v745 = vadd.f32 %v551, %v713
        %v746 = vadd.f32 %v552, %v714
        %v747 = vld [vmem:[#allocation3 + $0x2] sm:$0x1]
        %748 = vset.pattern.permute.xlu0 2
        %749 = vperm.xlu0 %748, %v295
        %v750 = vpop.permute.xlu0 %749
        %752 = vset.pattern.permute.xlu0 2
        %753 = vperm.xlu0 %752, %v296
        %v754 = vpop.permute.xlu0 %753
        %756 = vset.pattern.permute.xlu0 2
        %757 = vperm.xlu0 %756, %v297
        %v758 = vpop.permute.xlu0 %757
        %760 = vset.pattern.permute.xlu0 2
        %761 = vperm.xlu0 %760, %v298
        %v762 = vpop.permute.xlu0 %761
        %764 = vset.pattern.permute.xlu0 2
        %765 = vperm.xlu0 %764, %v299
        %v766 = vpop.permute.xlu0 %765
        %768 = vset.pattern.permute.xlu0 2
        %769 = vperm.xlu0 %768, %v300
        %v770 = vpop.permute.xlu0 %769
        %772 = vset.pattern.permute.xlu0 2
        %773 = vperm.xlu0 %772, %v301
        %v774 = vpop.permute.xlu0 %773
        %776 = vset.pattern.permute.xlu0 2
        %777 = vperm.xlu0 %776, %v302
        %v778 = vpop.permute.xlu0 %777
        %780 = vset.pattern.permute.xlu0 2
        %781 = vperm.xlu0 %780, %v303
        %v782 = vpop.permute.xlu0 %781
        %784 = vset.pattern.permute.xlu0 2
        %785 = vperm.xlu0 %784, %v304
        %v786 = vpop.permute.xlu0 %785
        %788 = vset.pattern.permute.xlu0 2
        %789 = vperm.xlu0 %788, %v305
        %v790 = vpop.permute.xlu0 %789
        %792 = vset.pattern.permute.xlu0 2
        %793 = vperm.xlu0 %792, %v306
        %v794 = vpop.permute.xlu0 %793
        %796 = vset.pattern.permute.xlu0 2
        %797 = vperm.xlu0 %796, %v307
        %v798 = vpop.permute.xlu0 %797
        %800 = vset.pattern.permute.xlu0 2
        %801 = vperm.xlu0 %800, %v308
        %v802 = vpop.permute.xlu0 %801
        %804 = vset.pattern.permute.xlu0 2
        %805 = vperm.xlu0 %804, %v309
        %v806 = vpop.permute.xlu0 %805
        %808 = vset.pattern.permute.xlu0 2
        %809 = vperm.xlu0 %808, %v310
        %v810 = vpop.permute.xlu0 %809
        %812 = vset.pattern.permute.xlu0 2
        %813 = vperm.xlu0 %812, %v311
        %v814 = vpop.permute.xlu0 %813
        %816 = vset.pattern.permute.xlu0 2
        %817 = vperm.xlu0 %816, %v312
        %v818 = vpop.permute.xlu0 %817
        %820 = vset.pattern.permute.xlu0 2
        %821 = vperm.xlu0 %820, %v313
        %v822 = vpop.permute.xlu0 %821
        %824 = vset.pattern.permute.xlu0 2
        %825 = vperm.xlu0 %824, %v314
        %v826 = vpop.permute.xlu0 %825
        %828 = vset.pattern.permute.xlu0 2
        %829 = vperm.xlu0 %828, %v315
        %v830 = vpop.permute.xlu0 %829
        %832 = vset.pattern.permute.xlu0 2
        %833 = vperm.xlu0 %832, %v316
        %v834 = vpop.permute.xlu0 %833
        %836 = vset.pattern.permute.xlu0 2
        %837 = vperm.xlu0 %836, %v317
        %v838 = vpop.permute.xlu0 %837
        %840 = vset.pattern.permute.xlu0 2
        %841 = vperm.xlu0 %840, %v318
        %v842 = vpop.permute.xlu0 %841
        %844 = vset.pattern.permute.xlu0 2
        %845 = vperm.xlu0 %844, %v319
        %v846 = vpop.permute.xlu0 %845
        %848 = vset.pattern.permute.xlu0 2
        %849 = vperm.xlu0 %848, %v320
        %v850 = vpop.permute.xlu0 %849
        %852 = vset.pattern.permute.xlu0 2
        %853 = vperm.xlu0 %852, %v321
        %v854 = vpop.permute.xlu0 %853
        %856 = vset.pattern.permute.xlu0 2
        %857 = vperm.xlu0 %856, %v322
        %v858 = vpop.permute.xlu0 %857
        %860 = vset.pattern.permute.xlu0 2
        %861 = vperm.xlu0 %860, %v323
        %v862 = vpop.permute.xlu0 %861
        %864 = vset.pattern.permute.xlu0 2
        %865 = vperm.xlu0 %864, %v324
        %v866 = vpop.permute.xlu0 %865
        %868 = vset.pattern.permute.xlu0 2
        %869 = vperm.xlu0 %868, %v325
        %v870 = vpop.permute.xlu0 %869
        %872 = vset.pattern.permute.xlu0 2
        %873 = vperm.xlu0 %872, %v326
        %v874 = vpop.permute.xlu0 %873
        %v876 = vperm.slane %v747, 0
        %v877 = vmul.f32 %v750, %v876
        %v878 = vmul.f32 %v754, %v876
        %v879 = vmul.f32 %v758, %v876
        %v880 = vmul.f32 %v762, %v876
        %v881 = vmul.f32 %v766, %v876
        %v882 = vmul.f32 %v770, %v876
        %v883 = vmul.f32 %v774, %v876
        %v884 = vmul.f32 %v778, %v876
        %v885 = vmul.f32 %v782, %v876
        %v886 = vmul.f32 %v786, %v876
        %v887 = vmul.f32 %v790, %v876
        %v888 = vmul.f32 %v794, %v876
        %v889 = vmul.f32 %v798, %v876
        %v890 = vmul.f32 %v802, %v876
        %v891 = vmul.f32 %v806, %v876
        %v892 = vmul.f32 %v810, %v876
        %v893 = vmul.f32 %v814, %v876
        %v894 = vmul.f32 %v818, %v876
        %v895 = vmul.f32 %v822, %v876
        %v896 = vmul.f32 %v826, %v876
        %v897 = vmul.f32 %v830, %v876
        %v898 = vmul.f32 %v834, %v876
        %v899 = vmul.f32 %v838, %v876
        %v900 = vmul.f32 %v842, %v876
        %v901 = vmul.f32 %v846, %v876
        %v902 = vmul.f32 %v850, %v876
        %v903 = vmul.f32 %v854, %v876
        %v904 = vmul.f32 %v858, %v876
        %v905 = vmul.f32 %v862, %v876
        %v906 = vmul.f32 %v866, %v876
        %v907 = vmul.f32 %v870, %v876
        %v908 = vmul.f32 %v874, %v876
        %v909 = vadd.f32 %v715, %v877
        %v910 = vadd.f32 %v716, %v878
        %v911 = vadd.f32 %v717, %v879
        %v912 = vadd.f32 %v718, %v880
        %v913 = vadd.f32 %v719, %v881
        %v914 = vadd.f32 %v720, %v882
        %v915 = vadd.f32 %v721, %v883
        %v916 = vadd.f32 %v722, %v884
        %v917 = vadd.f32 %v723, %v885
        %v918 = vadd.f32 %v724, %v886
        %v919 = vadd.f32 %v725, %v887
        %v920 = vadd.f32 %v726, %v888
        %v921 = vadd.f32 %v727, %v889
        %v922 = vadd.f32 %v728, %v890
        %v923 = vadd.f32 %v729, %v891
        %v924 = vadd.f32 %v730, %v892
        %v925 = vadd.f32 %v731, %v893
        %v926 = vadd.f32 %v732, %v894
        %v927 = vadd.f32 %v733, %v895
        %v928 = vadd.f32 %v734, %v896
        %v929 = vadd.f32 %v735, %v897
        %v930 = vadd.f32 %v736, %v898
        %v931 = vadd.f32 %v737, %v899
        %v932 = vadd.f32 %v738, %v900
        %v933 = vadd.f32 %v739, %v901
        %v934 = vadd.f32 %v740, %v902
        %v935 = vadd.f32 %v741, %v903
        %v936 = vadd.f32 %v742, %v904
        %v937 = vadd.f32 %v743, %v905
        %v938 = vadd.f32 %v744, %v906
        %v939 = vadd.f32 %v745, %v907
        %v940 = vadd.f32 %v746, %v908
        %v941 = vld [vmem:[#allocation3 + $0x3] sm:$0x1]
        %942 = vset.pattern.permute.xlu0 3
        %943 = vperm.xlu0 %942, %v295
        %v944 = vpop.permute.xlu0 %943
        %946 = vset.pattern.permute.xlu0 3
        %947 = vperm.xlu0 %946, %v296
        %v948 = vpop.permute.xlu0 %947
        %950 = vset.pattern.permute.xlu0 3
        %951 = vperm.xlu0 %950, %v297
        %v952 = vpop.permute.xlu0 %951
        %954 = vset.pattern.permute.xlu0 3
        %955 = vperm.xlu0 %954, %v298
        %v956 = vpop.permute.xlu0 %955
        %958 = vset.pattern.permute.xlu0 3
        %959 = vperm.xlu0 %958, %v299
        %v960 = vpop.permute.xlu0 %959
        %962 = vset.pattern.permute.xlu0 3
        %963 = vperm.xlu0 %962, %v300
        %v964 = vpop.permute.xlu0 %963
        %966 = vset.pattern.permute.xlu0 3
        %967 = vperm.xlu0 %966, %v301
        %v968 = vpop.permute.xlu0 %967
        %970 = vset.pattern.permute.xlu0 3
        %971 = vperm.xlu0 %970, %v302
        %v972 = vpop.permute.xlu0 %971
        %974 = vset.pattern.permute.xlu0 3
        %975 = vperm.xlu0 %974, %v303
        %v976 = vpop.permute.xlu0 %975
        %978 = vset.pattern.permute.xlu0 3
        %979 = vperm.xlu0 %978, %v304
        %v980 = vpop.permute.xlu0 %979
        %982 = vset.pattern.permute.xlu0 3
        %983 = vperm.xlu0 %982, %v305
        %v984 = vpop.permute.xlu0 %983
        %986 = vset.pattern.permute.xlu0 3
        %987 = vperm.xlu0 %986, %v306
        %v988 = vpop.permute.xlu0 %987
        %990 = vset.pattern.permute.xlu0 3
        %991 = vperm.xlu0 %990, %v307
        %v992 = vpop.permute.xlu0 %991
        %994 = vset.pattern.permute.xlu0 3
        %995 = vperm.xlu0 %994, %v308
        %v996 = vpop.permute.xlu0 %995
        %998 = vset.pattern.permute.xlu0 3
        %999 = vperm.xlu0 %998, %v309
        %v1000 = vpop.permute.xlu0 %999
        %1002 = vset.pattern.permute.xlu0 3
        %1003 = vperm.xlu0 %1002, %v310
        %v1004 = vpop.permute.xlu0 %1003
        %1006 = vset.pattern.permute.xlu0 3
        %1007 = vperm.xlu0 %1006, %v311
        %v1008 = vpop.permute.xlu0 %1007
        %1010 = vset.pattern.permute.xlu0 3
        %1011 = vperm.xlu0 %1010, %v312
        %v1012 = vpop.permute.xlu0 %1011
        %1014 = vset.pattern.permute.xlu0 3
        %1015 = vperm.xlu0 %1014, %v313
        %v1016 = vpop.permute.xlu0 %1015
        %1018 = vset.pattern.permute.xlu0 3
        %1019 = vperm.xlu0 %1018, %v314
        %v1020 = vpop.permute.xlu0 %1019
        %1022 = vset.pattern.permute.xlu0 3
        %1023 = vperm.xlu0 %1022, %v315
        %v1024 = vpop.permute.xlu0 %1023
        %1026 = vset.pattern.permute.xlu0 3
        %1027 = vperm.xlu0 %1026, %v316
        %v1028 = vpop.permute.xlu0 %1027
        %1030 = vset.pattern.permute.xlu0 3
        %1031 = vperm.xlu0 %1030, %v317
        %v1032 = vpop.permute.xlu0 %1031
        %1034 = vset.pattern.permute.xlu0 3
        %1035 = vperm.xlu0 %1034, %v318
        %v1036 = vpop.permute.xlu0 %1035
        %1038 = vset.pattern.permute.xlu0 3
        %1039 = vperm.xlu0 %1038, %v319
        %v1040 = vpop.permute.xlu0 %1039
        %1042 = vset.pattern.permute.xlu0 3
        %1043 = vperm.xlu0 %1042, %v320
        %v1044 = vpop.permute.xlu0 %1043
        %1046 = vset.pattern.permute.xlu0 3
        %1047 = vperm.xlu0 %1046, %v321
        %v1048 = vpop.permute.xlu0 %1047
        %1050 = vset.pattern.permute.xlu0 3
        %1051 = vperm.xlu0 %1050, %v322
        %v1052 = vpop.permute.xlu0 %1051
        %1054 = vset.pattern.permute.xlu0 3
        %1055 = vperm.xlu0 %1054, %v323
        %v1056 = vpop.permute.xlu0 %1055
        %1058 = vset.pattern.permute.xlu0 3
        %1059 = vperm.xlu0 %1058, %v324
        %v1060 = vpop.permute.xlu0 %1059
        %1062 = vset.pattern.permute.xlu0 3
        %1063 = vperm.xlu0 %1062, %v325
        %v1064 = vpop.permute.xlu0 %1063
        %1066 = vset.pattern.permute.xlu0 3
        %1067 = vperm.xlu0 %1066, %v326
        %v1068 = vpop.permute.xlu0 %1067
        %v1070 = vperm.slane %v941, 0
        %v1071 = vmul.f32 %v944, %v1070
        %v1072 = vmul.f32 %v948, %v1070
        %v1073 = vmul.f32 %v952, %v1070
        %v1074 = vmul.f32 %v956, %v1070
        %v1075 = vmul.f32 %v960, %v1070
        %v1076 = vmul.f32 %v964, %v1070
        %v1077 = vmul.f32 %v968, %v1070
        %v1078 = vmul.f32 %v972, %v1070
        %v1079 = vmul.f32 %v976, %v1070
        %v1080 = vmul.f32 %v980, %v1070
        %v1081 = vmul.f32 %v984, %v1070
        %v1082 = vmul.f32 %v988, %v1070
        %v1083 = vmul.f32 %v992, %v1070
        %v1084 = vmul.f32 %v996, %v1070
        %v1085 = vmul.f32 %v1000, %v1070
        %v1086 = vmul.f32 %v1004, %v1070
        %v1087 = vmul.f32 %v1008, %v1070
        %v1088 = vmul.f32 %v1012, %v1070
        %v1089 = vmul.f32 %v1016, %v1070
        %v1090 = vmul.f32 %v1020, %v1070
        %v1091 = vmul.f32 %v1024, %v1070
        %v1092 = vmul.f32 %v1028, %v1070
        %v1093 = vmul.f32 %v1032, %v1070
        %v1094 = vmul.f32 %v1036, %v1070
        %v1095 = vmul.f32 %v1040, %v1070
        %v1096 = vmul.f32 %v1044, %v1070
        %v1097 = vmul.f32 %v1048, %v1070
        %v1098 = vmul.f32 %v1052, %v1070
        %v1099 = vmul.f32 %v1056, %v1070
        %v1100 = vmul.f32 %v1060, %v1070
        %v1101 = vmul.f32 %v1064, %v1070
        %v1102 = vmul.f32 %v1068, %v1070
        %v1103 = vadd.f32 %v909, %v1071
        %v1104 = vadd.f32 %v910, %v1072
        %v1105 = vadd.f32 %v911, %v1073
        %v1106 = vadd.f32 %v912, %v1074
        %v1107 = vadd.f32 %v913, %v1075
        %v1108 = vadd.f32 %v914, %v1076
        %v1109 = vadd.f32 %v915, %v1077
        %v1110 = vadd.f32 %v916, %v1078
        %v1111 = vadd.f32 %v917, %v1079
        %v1112 = vadd.f32 %v918, %v1080
        %v1113 = vadd.f32 %v919, %v1081
        %v1114 = vadd.f32 %v920, %v1082
        %v1115 = vadd.f32 %v921, %v1083
        %v1116 = vadd.f32 %v922, %v1084
        %v1117 = vadd.f32 %v923, %v1085
        %v1118 = vadd.f32 %v924, %v1086
        %v1119 = vadd.f32 %v925, %v1087
        %v1120 = vadd.f32 %v926, %v1088
        %v1121 = vadd.f32 %v927, %v1089
        %v1122 = vadd.f32 %v928, %v1090
        %v1123 = vadd.f32 %v929, %v1091
        %v1124 = vadd.f32 %v930, %v1092
        %v1125 = vadd.f32 %v931, %v1093
        %v1126 = vadd.f32 %v932, %v1094
        %v1127 = vadd.f32 %v933, %v1095
        %v1128 = vadd.f32 %v934, %v1096
        %v1129 = vadd.f32 %v935, %v1097
        %v1130 = vadd.f32 %v936, %v1098
        %v1131 = vadd.f32 %v937, %v1099
        %v1132 = vadd.f32 %v938, %v1100
        %v1133 = vadd.f32 %v939, %v1101
        %v1134 = vadd.f32 %v940, %v1102
        %v1135 = vld [vmem:[%s2] sm:$0x1]
        %v1137 = vperm.slane %v1135, 0
        %v1139 = vmul.f32 %v1103, %v1137
        %v1140 = vmul.f32 %v1104, %v1137
        %v1141 = vmul.f32 %v1105, %v1137
        %v1142 = vmul.f32 %v1106, %v1137
        %v1143 = vmul.f32 %v1107, %v1137
        %v1144 = vmul.f32 %v1108, %v1137
        %v1145 = vmul.f32 %v1109, %v1137
        %v1146 = vmul.f32 %v1110, %v1137
        %v1147 = vmul.f32 %v1111, %v1137
        %v1148 = vmul.f32 %v1112, %v1137
        %v1149 = vmul.f32 %v1113, %v1137
        %v1150 = vmul.f32 %v1114, %v1137
        %v1151 = vmul.f32 %v1115, %v1137
        %v1152 = vmul.f32 %v1116, %v1137
        %v1153 = vmul.f32 %v1117, %v1137
        %v1154 = vmul.f32 %v1118, %v1137
        %v1155 = vmul.f32 %v1119, %v1137
        %v1156 = vmul.f32 %v1120, %v1137
        %v1157 = vmul.f32 %v1121, %v1137
        %v1158 = vmul.f32 %v1122, %v1137
        %v1159 = vmul.f32 %v1123, %v1137
        %v1160 = vmul.f32 %v1124, %v1137
        %v1161 = vmul.f32 %v1125, %v1137
        %v1162 = vmul.f32 %v1126, %v1137
        %v1163 = vmul.f32 %v1127, %v1137
        %v1164 = vmul.f32 %v1128, %v1137
        %v1165 = vmul.f32 %v1129, %v1137
        %v1166 = vmul.f32 %v1130, %v1137
        %v1167 = vmul.f32 %v1131, %v1137
        %v1168 = vmul.f32 %v1132, %v1137
        %v1169 = vmul.f32 %v1133, %v1137
        %v1170 = vmul.f32 %v1134, %v1137
        %v1171 = vld [vmem:[%s3] sm:$0x1]
        %v1173 = vperm.slane %v1171, 0
        %v1175 = vadd.f32 %v1139, %v1173
        %v1176 = vadd.f32 %v1140, %v1173
        %v1177 = vadd.f32 %v1141, %v1173
        %v1178 = vadd.f32 %v1142, %v1173
        %v1179 = vadd.f32 %v1143, %v1173
        %v1180 = vadd.f32 %v1144, %v1173
        %v1181 = vadd.f32 %v1145, %v1173
        %v1182 = vadd.f32 %v1146, %v1173
        %v1183 = vadd.f32 %v1147, %v1173
        %v1184 = vadd.f32 %v1148, %v1173
        %v1185 = vadd.f32 %v1149, %v1173
        %v1186 = vadd.f32 %v1150, %v1173
        %v1187 = vadd.f32 %v1151, %v1173
        %v1188 = vadd.f32 %v1152, %v1173
        %v1189 = vadd.f32 %v1153, %v1173
        %v1190 = vadd.f32 %v1154, %v1173
        %v1191 = vadd.f32 %v1155, %v1173
        %v1192 = vadd.f32 %v1156, %v1173
        %v1193 = vadd.f32 %v1157, %v1173
        %v1194 = vadd.f32 %v1158, %v1173
        %v1195 = vadd.f32 %v1159, %v1173
        %v1196 = vadd.f32 %v1160, %v1173
        %v1197 = vadd.f32 %v1161, %v1173
        %v1198 = vadd.f32 %v1162, %v1173
        %v1199 = vadd.f32 %v1163, %v1173
        %v1200 = vadd.f32 %v1164, %v1173
        %v1201 = vadd.f32 %v1165, %v1173
        %v1202 = vadd.f32 %v1166, %v1173
        %v1203 = vadd.f32 %v1167, %v1173
        %v1204 = vadd.f32 %v1168, %v1173
        %v1205 = vadd.f32 %v1169, %v1173
        %v1206 = vadd.f32 %v1170, %v1173
        %v1207 = vxor.u32 %v1175, 2147483648
        %v1208 = vxor.u32 %v1176, 2147483648
        %v1209 = vxor.u32 %v1177, 2147483648
        %v1210 = vxor.u32 %v1178, 2147483648
        %v1211 = vxor.u32 %v1179, 2147483648
        %v1212 = vxor.u32 %v1180, 2147483648
        %v1213 = vxor.u32 %v1181, 2147483648
        %v1214 = vxor.u32 %v1182, 2147483648
        %v1215 = vxor.u32 %v1183, 2147483648
        %v1216 = vxor.u32 %v1184, 2147483648
        %v1217 = vxor.u32 %v1185, 2147483648
        %v1218 = vxor.u32 %v1186, 2147483648
        %v1219 = vxor.u32 %v1187, 2147483648
        %v1220 = vxor.u32 %v1188, 2147483648
        %v1221 = vxor.u32 %v1189, 2147483648
        %v1222 = vxor.u32 %v1190, 2147483648
        %v1223 = vxor.u32 %v1191, 2147483648
        %v1224 = vxor.u32 %v1192, 2147483648
        %v1225 = vxor.u32 %v1193, 2147483648
        %v1226 = vxor.u32 %v1194, 2147483648
        %v1227 = vxor.u32 %v1195, 2147483648
        %v1228 = vxor.u32 %v1196, 2147483648
        %v1229 = vxor.u32 %v1197, 2147483648
        %v1230 = vxor.u32 %v1198, 2147483648
        %v1231 = vxor.u32 %v1199, 2147483648
        %v1232 = vxor.u32 %v1200, 2147483648
        %v1233 = vxor.u32 %v1201, 2147483648
        %v1234 = vxor.u32 %v1202, 2147483648
        %v1235 = vxor.u32 %v1203, 2147483648
        %v1236 = vxor.u32 %v1204, 2147483648
        %v1237 = vxor.u32 %v1205, 2147483648
        %v1238 = vxor.u32 %v1206, 2147483648
        %v1239 = vmul.f32 %v1207, 1.442695
        %v1240 = vpow.pop %v1239
        %v1241 = vmul.f32 %v1208, 1.442695
        %v1242 = vpow.pop %v1241
        %v1243 = vmul.f32 %v1209, 1.442695
        %v1244 = vpow.pop %v1243
        %v1245 = vmul.f32 %v1210, 1.442695
        %v1246 = vpow.pop %v1245
        %v1247 = vmul.f32 %v1211, 1.442695
        %v1248 = vpow.pop %v1247
        %v1249 = vmul.f32 %v1212, 1.442695
        %v1250 = vpow.pop %v1249
        %v1251 = vmul.f32 %v1213, 1.442695
        %v1252 = vpow.pop %v1251
        %v1253 = vmul.f32 %v1214, 1.442695
        %v1254 = vpow.pop %v1253
        %v1255 = vmul.f32 %v1215, 1.442695
        %v1256 = vpow.pop %v1255
        %v1257 = vmul.f32 %v1216, 1.442695
        %v1258 = vpow.pop %v1257
        %v1259 = vmul.f32 %v1217, 1.442695
        %v1260 = vpow.pop %v1259
        %v1261 = vmul.f32 %v1218, 1.442695
        %v1262 = vpow.pop %v1261
        %v1263 = vmul.f32 %v1219, 1.442695
        %v1264 = vpow.pop %v1263
        %v1265 = vmul.f32 %v1220, 1.442695
        %v1266 = vpow.pop %v1265
        %v1267 = vmul.f32 %v1221, 1.442695
        %v1268 = vpow.pop %v1267
        %v1269 = vmul.f32 %v1222, 1.442695
        %v1270 = vpow.pop %v1269
        %v1271 = vmul.f32 %v1223, 1.442695
        %v1272 = vpow.pop %v1271
        %v1273 = vmul.f32 %v1224, 1.442695
        %v1274 = vpow.pop %v1273
        %v1275 = vmul.f32 %v1225, 1.442695
        %v1276 = vpow.pop %v1275
        %v1277 = vmul.f32 %v1226, 1.442695
        %v1278 = vpow.pop %v1277
        %v1279 = vmul.f32 %v1227, 1.442695
        %v1280 = vpow.pop %v1279
        %v1281 = vmul.f32 %v1228, 1.442695
        %v1282 = vpow.pop %v1281
        %v1283 = vmul.f32 %v1229, 1.442695
        %v1284 = vpow.pop %v1283
        %v1285 = vmul.f32 %v1230, 1.442695
        %v1286 = vpow.pop %v1285
        %v1287 = vmul.f32 %v1231, 1.442695
        %v1288 = vpow.pop %v1287
        %v1289 = vmul.f32 %v1232, 1.442695
        %v1290 = vpow.pop %v1289
        %v1291 = vmul.f32 %v1233, 1.442695
        %v1292 = vpow.pop %v1291
        %v1293 = vmul.f32 %v1234, 1.442695
        %v1294 = vpow.pop %v1293
        %v1295 = vmul.f32 %v1235, 1.442695
        %v1296 = vpow.pop %v1295
        %v1297 = vmul.f32 %v1236, 1.442695
        %v1298 = vpow.pop %v1297
        %v1299 = vmul.f32 %v1237, 1.442695
        %v1300 = vpow.pop %v1299
        %v1301 = vmul.f32 %v1238, 1.442695
        %v1302 = vpow.pop %v1301
        %v1303 = vadd.f32 %v1240, 1.0
        %v1304 = vadd.f32 %v1242, 1.0
        %v1305 = vadd.f32 %v1244, 1.0
        %v1306 = vadd.f32 %v1246, 1.0
        %v1307 = vadd.f32 %v1248, 1.0
        %v1308 = vadd.f32 %v1250, 1.0
        %v1309 = vadd.f32 %v1252, 1.0
        %v1310 = vadd.f32 %v1254, 1.0
        %v1311 = vadd.f32 %v1256, 1.0
        %v1312 = vadd.f32 %v1258, 1.0
        %v1313 = vadd.f32 %v1260, 1.0
        %v1314 = vadd.f32 %v1262, 1.0
        %v1315 = vadd.f32 %v1264, 1.0
        %v1316 = vadd.f32 %v1266, 1.0
        %v1317 = vadd.f32 %v1268, 1.0
        %v1318 = vadd.f32 %v1270, 1.0
        %v1319 = vadd.f32 %v1272, 1.0
        %v1320 = vadd.f32 %v1274, 1.0
        %v1321 = vadd.f32 %v1276, 1.0
        %v1322 = vadd.f32 %v1278, 1.0
        %v1323 = vadd.f32 %v1280, 1.0
        %v1324 = vadd.f32 %v1282, 1.0
        %v1325 = vadd.f32 %v1284, 1.0
        %v1326 = vadd.f32 %v1286, 1.0
        %v1327 = vadd.f32 %v1288, 1.0
        %v1328 = vadd.f32 %v1290, 1.0
        %v1329 = vadd.f32 %v1292, 1.0
        %v1330 = vadd.f32 %v1294, 1.0
        %v1331 = vadd.f32 %v1296, 1.0
        %v1332 = vadd.f32 %v1298, 1.0
        %v1333 = vadd.f32 %v1300, 1.0
        %v1334 = vadd.f32 %v1302, 1.0
        %v1335 = vrcp.pop %v1303
        %v1336 = vmul.f32 %v1303, %v1335
        %v1337 = vsub.f32 1.0, %v1336
        %v1338 = vmul.f32 %v1335, %v1337
        %v1339 = vadd.f32 %v1335, %v1338
        %vm1340 = vweird.f32 %v1303
        %vm1341 = vweird.f32 %v1335
        %vm1342 = vmor %vm1340, %vm1341
        %v1343 = vsel %vm1342, %v1335, %v1339
        %v1344 = vand.u32 2147483647, %v1303
        %vm1345 = vcmp.eq.f32.partialorder %v1344, 8.507059e+37
        %v1346 = vand.u32 %v1303, 2147483648
        %v1347 = vor.u32 1.1754944e-38, %v1346
        %v1348 = vsel %vm1345, %v1347, %v1343
        %v1349 = vmul.f32 1.0, %v1348
        %v1350 = vrcp.pop %v1304
        %v1351 = vmul.f32 %v1304, %v1350
        %v1352 = vsub.f32 1.0, %v1351
        %v1353 = vmul.f32 %v1350, %v1352
        %v1354 = vadd.f32 %v1350, %v1353
        %vm1355 = vweird.f32 %v1304
        %vm1356 = vweird.f32 %v1350
        %vm1357 = vmor %vm1355, %vm1356
        %v1358 = vsel %vm1357, %v1350, %v1354
        %v1359 = vand.u32 2147483647, %v1304
        %vm1360 = vcmp.eq.f32.partialorder %v1359, 8.507059e+37
        %v1361 = vand.u32 %v1304, 2147483648
        %v1362 = vor.u32 1.1754944e-38, %v1361
        %v1363 = vsel %vm1360, %v1362, %v1358
        %v1364 = vmul.f32 1.0, %v1363
        %v1365 = vrcp.pop %v1305
        %v1366 = vmul.f32 %v1305, %v1365
        %v1367 = vsub.f32 1.0, %v1366
        %v1368 = vmul.f32 %v1365, %v1367
        %v1369 = vadd.f32 %v1365, %v1368
        %vm1370 = vweird.f32 %v1305
        %vm1371 = vweird.f32 %v1365
        %vm1372 = vmor %vm1370, %vm1371
        %v1373 = vsel %vm1372, %v1365, %v1369
        %v1374 = vand.u32 2147483647, %v1305
        %vm1375 = vcmp.eq.f32.partialorder %v1374, 8.507059e+37
        %v1376 = vand.u32 %v1305, 2147483648
        %v1377 = vor.u32 1.1754944e-38, %v1376
        %v1378 = vsel %vm1375, %v1377, %v1373
        %v1379 = vmul.f32 1.0, %v1378
        %v1380 = vrcp.pop %v1306
        %v1381 = vmul.f32 %v1306, %v1380
        %v1382 = vsub.f32 1.0, %v1381
        %v1383 = vmul.f32 %v1380, %v1382
        %v1384 = vadd.f32 %v1380, %v1383
        %vm1385 = vweird.f32 %v1306
        %vm1386 = vweird.f32 %v1380
        %vm1387 = vmor %vm1385, %vm1386
        %v1388 = vsel %vm1387, %v1380, %v1384
        %v1389 = vand.u32 2147483647, %v1306
        %vm1390 = vcmp.eq.f32.partialorder %v1389, 8.507059e+37
        %v1391 = vand.u32 %v1306, 2147483648
        %v1392 = vor.u32 1.1754944e-38, %v1391
        %v1393 = vsel %vm1390, %v1392, %v1388
        %v1394 = vmul.f32 1.0, %v1393
        %v1395 = vrcp.pop %v1307
        %v1396 = vmul.f32 %v1307, %v1395
        %v1397 = vsub.f32 1.0, %v1396
        %v1398 = vmul.f32 %v1395, %v1397
        %v1399 = vadd.f32 %v1395, %v1398
        %vm1400 = vweird.f32 %v1307
        %vm1401 = vweird.f32 %v1395
        %vm1402 = vmor %vm1400, %vm1401
        %v1403 = vsel %vm1402, %v1395, %v1399
        %v1404 = vand.u32 2147483647, %v1307
        %vm1405 = vcmp.eq.f32.partialorder %v1404, 8.507059e+37
        %v1406 = vand.u32 %v1307, 2147483648
        %v1407 = vor.u32 1.1754944e-38, %v1406
        %v1408 = vsel %vm1405, %v1407, %v1403
        %v1409 = vmul.f32 1.0, %v1408
        %v1410 = vrcp.pop %v1308
        %v1411 = vmul.f32 %v1308, %v1410
        %v1412 = vsub.f32 1.0, %v1411
        %v1413 = vmul.f32 %v1410, %v1412
        %v1414 = vadd.f32 %v1410, %v1413
        %vm1415 = vweird.f32 %v1308
        %vm1416 = vweird.f32 %v1410
        %vm1417 = vmor %vm1415, %vm1416
        %v1418 = vsel %vm1417, %v1410, %v1414
        %v1419 = vand.u32 2147483647, %v1308
        %vm1420 = vcmp.eq.f32.partialorder %v1419, 8.507059e+37
        %v1421 = vand.u32 %v1308, 2147483648
        %v1422 = vor.u32 1.1754944e-38, %v1421
        %v1423 = vsel %vm1420, %v1422, %v1418
        %v1424 = vmul.f32 1.0, %v1423
        %v1425 = vrcp.pop %v1309
        %v1426 = vmul.f32 %v1309, %v1425
        %v1427 = vsub.f32 1.0, %v1426
        %v1428 = vmul.f32 %v1425, %v1427
        %v1429 = vadd.f32 %v1425, %v1428
        %vm1430 = vweird.f32 %v1309
        %vm1431 = vweird.f32 %v1425
        %vm1432 = vmor %vm1430, %vm1431
        %v1433 = vsel %vm1432, %v1425, %v1429
        %v1434 = vand.u32 2147483647, %v1309
        %vm1435 = vcmp.eq.f32.partialorder %v1434, 8.507059e+37
        %v1436 = vand.u32 %v1309, 2147483648
        %v1437 = vor.u32 1.1754944e-38, %v1436
        %v1438 = vsel %vm1435, %v1437, %v1433
        %v1439 = vmul.f32 1.0, %v1438
        %v1440 = vrcp.pop %v1310
        %v1441 = vmul.f32 %v1310, %v1440
        %v1442 = vsub.f32 1.0, %v1441
        %v1443 = vmul.f32 %v1440, %v1442
        %v1444 = vadd.f32 %v1440, %v1443
        %vm1445 = vweird.f32 %v1310
        %vm1446 = vweird.f32 %v1440
        %vm1447 = vmor %vm1445, %vm1446
        %v1448 = vsel %vm1447, %v1440, %v1444
        %v1449 = vand.u32 2147483647, %v1310
        %vm1450 = vcmp.eq.f32.partialorder %v1449, 8.507059e+37
        %v1451 = vand.u32 %v1310, 2147483648
        %v1452 = vor.u32 1.1754944e-38, %v1451
        %v1453 = vsel %vm1450, %v1452, %v1448
        %v1454 = vmul.f32 1.0, %v1453
        %v1455 = vrcp.pop %v1311
        %v1456 = vmul.f32 %v1311, %v1455
        %v1457 = vsub.f32 1.0, %v1456
        %v1458 = vmul.f32 %v1455, %v1457
        %v1459 = vadd.f32 %v1455, %v1458
        %vm1460 = vweird.f32 %v1311
        %vm1461 = vweird.f32 %v1455
        %vm1462 = vmor %vm1460, %vm1461
        %v1463 = vsel %vm1462, %v1455, %v1459
        %v1464 = vand.u32 2147483647, %v1311
        %vm1465 = vcmp.eq.f32.partialorder %v1464, 8.507059e+37
        %v1466 = vand.u32 %v1311, 2147483648
        %v1467 = vor.u32 1.1754944e-38, %v1466
        %v1468 = vsel %vm1465, %v1467, %v1463
        %v1469 = vmul.f32 1.0, %v1468
        %v1470 = vrcp.pop %v1312
        %v1471 = vmul.f32 %v1312, %v1470
        %v1472 = vsub.f32 1.0, %v1471
        %v1473 = vmul.f32 %v1470, %v1472
        %v1474 = vadd.f32 %v1470, %v1473
        %vm1475 = vweird.f32 %v1312
        %vm1476 = vweird.f32 %v1470
        %vm1477 = vmor %vm1475, %vm1476
        %v1478 = vsel %vm1477, %v1470, %v1474
        %v1479 = vand.u32 2147483647, %v1312
        %vm1480 = vcmp.eq.f32.partialorder %v1479, 8.507059e+37
        %v1481 = vand.u32 %v1312, 2147483648
        %v1482 = vor.u32 1.1754944e-38, %v1481
        %v1483 = vsel %vm1480, %v1482, %v1478
        %v1484 = vmul.f32 1.0, %v1483
        %v1485 = vrcp.pop %v1313
        %v1486 = vmul.f32 %v1313, %v1485
        %v1487 = vsub.f32 1.0, %v1486
        %v1488 = vmul.f32 %v1485, %v1487
        %v1489 = vadd.f32 %v1485, %v1488
        %vm1490 = vweird.f32 %v1313
        %vm1491 = vweird.f32 %v1485
        %vm1492 = vmor %vm1490, %vm1491
        %v1493 = vsel %vm1492, %v1485, %v1489
        %v1494 = vand.u32 2147483647, %v1313
        %vm1495 = vcmp.eq.f32.partialorder %v1494, 8.507059e+37
        %v1496 = vand.u32 %v1313, 2147483648
        %v1497 = vor.u32 1.1754944e-38, %v1496
        %v1498 = vsel %vm1495, %v1497, %v1493
        %v1499 = vmul.f32 1.0, %v1498
        %v1500 = vrcp.pop %v1314
        %v1501 = vmul.f32 %v1314, %v1500
        %v1502 = vsub.f32 1.0, %v1501
        %v1503 = vmul.f32 %v1500, %v1502
        %v1504 = vadd.f32 %v1500, %v1503
        %vm1505 = vweird.f32 %v1314
        %vm1506 = vweird.f32 %v1500
        %vm1507 = vmor %vm1505, %vm1506
        %v1508 = vsel %vm1507, %v1500, %v1504
        %v1509 = vand.u32 2147483647, %v1314
        %vm1510 = vcmp.eq.f32.partialorder %v1509, 8.507059e+37
        %v1511 = vand.u32 %v1314, 2147483648
        %v1512 = vor.u32 1.1754944e-38, %v1511
        %v1513 = vsel %vm1510, %v1512, %v1508
        %v1514 = vmul.f32 1.0, %v1513
        %v1515 = vrcp.pop %v1315
        %v1516 = vmul.f32 %v1315, %v1515
        %v1517 = vsub.f32 1.0, %v1516
        %v1518 = vmul.f32 %v1515, %v1517
        %v1519 = vadd.f32 %v1515, %v1518
        %vm1520 = vweird.f32 %v1315
        %vm1521 = vweird.f32 %v1515
        %vm1522 = vmor %vm1520, %vm1521
        %v1523 = vsel %vm1522, %v1515, %v1519
        %v1524 = vand.u32 2147483647, %v1315
        %vm1525 = vcmp.eq.f32.partialorder %v1524, 8.507059e+37
        %v1526 = vand.u32 %v1315, 2147483648
        %v1527 = vor.u32 1.1754944e-38, %v1526
        %v1528 = vsel %vm1525, %v1527, %v1523
        %v1529 = vmul.f32 1.0, %v1528
        %v1530 = vrcp.pop %v1316
        %v1531 = vmul.f32 %v1316, %v1530
        %v1532 = vsub.f32 1.0, %v1531
        %v1533 = vmul.f32 %v1530, %v1532
        %v1534 = vadd.f32 %v1530, %v1533
        %vm1535 = vweird.f32 %v1316
        %vm1536 = vweird.f32 %v1530
        %vm1537 = vmor %vm1535, %vm1536
        %v1538 = vsel %vm1537, %v1530, %v1534
        %v1539 = vand.u32 2147483647, %v1316
        %vm1540 = vcmp.eq.f32.partialorder %v1539, 8.507059e+37
        %v1541 = vand.u32 %v1316, 2147483648
        %v1542 = vor.u32 1.1754944e-38, %v1541
        %v1543 = vsel %vm1540, %v1542, %v1538
        %v1544 = vmul.f32 1.0, %v1543
        %v1545 = vrcp.pop %v1317
        %v1546 = vmul.f32 %v1317, %v1545
        %v1547 = vsub.f32 1.0, %v1546
        %v1548 = vmul.f32 %v1545, %v1547
        %v1549 = vadd.f32 %v1545, %v1548
        %vm1550 = vweird.f32 %v1317
        %vm1551 = vweird.f32 %v1545
        %vm1552 = vmor %vm1550, %vm1551
        %v1553 = vsel %vm1552, %v1545, %v1549
        %v1554 = vand.u32 2147483647, %v1317
        %vm1555 = vcmp.eq.f32.partialorder %v1554, 8.507059e+37
        %v1556 = vand.u32 %v1317, 2147483648
        %v1557 = vor.u32 1.1754944e-38, %v1556
        %v1558 = vsel %vm1555, %v1557, %v1553
        %v1559 = vmul.f32 1.0, %v1558
        %v1560 = vrcp.pop %v1318
        %v1561 = vmul.f32 %v1318, %v1560
        %v1562 = vsub.f32 1.0, %v1561
        %v1563 = vmul.f32 %v1560, %v1562
        %v1564 = vadd.f32 %v1560, %v1563
        %vm1565 = vweird.f32 %v1318
        %vm1566 = vweird.f32 %v1560
        %vm1567 = vmor %vm1565, %vm1566
        %v1568 = vsel %vm1567, %v1560, %v1564
        %v1569 = vand.u32 2147483647, %v1318
        %vm1570 = vcmp.eq.f32.partialorder %v1569, 8.507059e+37
        %v1571 = vand.u32 %v1318, 2147483648
        %v1572 = vor.u32 1.1754944e-38, %v1571
        %v1573 = vsel %vm1570, %v1572, %v1568
        %v1574 = vmul.f32 1.0, %v1573
        %v1575 = vrcp.pop %v1319
        %v1576 = vmul.f32 %v1319, %v1575
        %v1577 = vsub.f32 1.0, %v1576
        %v1578 = vmul.f32 %v1575, %v1577
        %v1579 = vadd.f32 %v1575, %v1578
        %vm1580 = vweird.f32 %v1319
        %vm1581 = vweird.f32 %v1575
        %vm1582 = vmor %vm1580, %vm1581
        %v1583 = vsel %vm1582, %v1575, %v1579
        %v1584 = vand.u32 2147483647, %v1319
        %vm1585 = vcmp.eq.f32.partialorder %v1584, 8.507059e+37
        %v1586 = vand.u32 %v1319, 2147483648
        %v1587 = vor.u32 1.1754944e-38, %v1586
        %v1588 = vsel %vm1585, %v1587, %v1583
        %v1589 = vmul.f32 1.0, %v1588
        %v1590 = vrcp.pop %v1320
        %v1591 = vmul.f32 %v1320, %v1590
        %v1592 = vsub.f32 1.0, %v1591
        %v1593 = vmul.f32 %v1590, %v1592
        %v1594 = vadd.f32 %v1590, %v1593
        %vm1595 = vweird.f32 %v1320
        %vm1596 = vweird.f32 %v1590
        %vm1597 = vmor %vm1595, %vm1596
        %v1598 = vsel %vm1597, %v1590, %v1594
        %v1599 = vand.u32 2147483647, %v1320
        %vm1600 = vcmp.eq.f32.partialorder %v1599, 8.507059e+37
        %v1601 = vand.u32 %v1320, 2147483648
        %v1602 = vor.u32 1.1754944e-38, %v1601
        %v1603 = vsel %vm1600, %v1602, %v1598
        %v1604 = vmul.f32 1.0, %v1603
        %v1605 = vrcp.pop %v1321
        %v1606 = vmul.f32 %v1321, %v1605
        %v1607 = vsub.f32 1.0, %v1606
        %v1608 = vmul.f32 %v1605, %v1607
        %v1609 = vadd.f32 %v1605, %v1608
        %vm1610 = vweird.f32 %v1321
        %vm1611 = vweird.f32 %v1605
        %vm1612 = vmor %vm1610, %vm1611
        %v1613 = vsel %vm1612, %v1605, %v1609
        %v1614 = vand.u32 2147483647, %v1321
        %vm1615 = vcmp.eq.f32.partialorder %v1614, 8.507059e+37
        %v1616 = vand.u32 %v1321, 2147483648
        %v1617 = vor.u32 1.1754944e-38, %v1616
        %v1618 = vsel %vm1615, %v1617, %v1613
        %v1619 = vmul.f32 1.0, %v1618
        %v1620 = vrcp.pop %v1322
        %v1621 = vmul.f32 %v1322, %v1620
        %v1622 = vsub.f32 1.0, %v1621
        %v1623 = vmul.f32 %v1620, %v1622
        %v1624 = vadd.f32 %v1620, %v1623
        %vm1625 = vweird.f32 %v1322
        %vm1626 = vweird.f32 %v1620
        %vm1627 = vmor %vm1625, %vm1626
        %v1628 = vsel %vm1627, %v1620, %v1624
        %v1629 = vand.u32 2147483647, %v1322
        %vm1630 = vcmp.eq.f32.partialorder %v1629, 8.507059e+37
        %v1631 = vand.u32 %v1322, 2147483648
        %v1632 = vor.u32 1.1754944e-38, %v1631
        %v1633 = vsel %vm1630, %v1632, %v1628
        %v1634 = vmul.f32 1.0, %v1633
        %v1635 = vrcp.pop %v1323
        %v1636 = vmul.f32 %v1323, %v1635
        %v1637 = vsub.f32 1.0, %v1636
        %v1638 = vmul.f32 %v1635, %v1637
        %v1639 = vadd.f32 %v1635, %v1638
        %vm1640 = vweird.f32 %v1323
        %vm1641 = vweird.f32 %v1635
        %vm1642 = vmor %vm1640, %vm1641
        %v1643 = vsel %vm1642, %v1635, %v1639
        %v1644 = vand.u32 2147483647, %v1323
        %vm1645 = vcmp.eq.f32.partialorder %v1644, 8.507059e+37
        %v1646 = vand.u32 %v1323, 2147483648
        %v1647 = vor.u32 1.1754944e-38, %v1646
        %v1648 = vsel %vm1645, %v1647, %v1643
        %v1649 = vmul.f32 1.0, %v1648
        %v1650 = vrcp.pop %v1324
        %v1651 = vmul.f32 %v1324, %v1650
        %v1652 = vsub.f32 1.0, %v1651
        %v1653 = vmul.f32 %v1650, %v1652
        %v1654 = vadd.f32 %v1650, %v1653
        %vm1655 = vweird.f32 %v1324
        %vm1656 = vweird.f32 %v1650
        %vm1657 = vmor %vm1655, %vm1656
        %v1658 = vsel %vm1657, %v1650, %v1654
        %v1659 = vand.u32 2147483647, %v1324
        %vm1660 = vcmp.eq.f32.partialorder %v1659, 8.507059e+37
        %v1661 = vand.u32 %v1324, 2147483648
        %v1662 = vor.u32 1.1754944e-38, %v1661
        %v1663 = vsel %vm1660, %v1662, %v1658
        %v1664 = vmul.f32 1.0, %v1663
        %v1665 = vrcp.pop %v1325
        %v1666 = vmul.f32 %v1325, %v1665
        %v1667 = vsub.f32 1.0, %v1666
        %v1668 = vmul.f32 %v1665, %v1667
        %v1669 = vadd.f32 %v1665, %v1668
        %vm1670 = vweird.f32 %v1325
        %vm1671 = vweird.f32 %v1665
        %vm1672 = vmor %vm1670, %vm1671
        %v1673 = vsel %vm1672, %v1665, %v1669
        %v1674 = vand.u32 2147483647, %v1325
        %vm1675 = vcmp.eq.f32.partialorder %v1674, 8.507059e+37
        %v1676 = vand.u32 %v1325, 2147483648
        %v1677 = vor.u32 1.1754944e-38, %v1676
        %v1678 = vsel %vm1675, %v1677, %v1673
        %v1679 = vmul.f32 1.0, %v1678
        %v1680 = vrcp.pop %v1326
        %v1681 = vmul.f32 %v1326, %v1680
        %v1682 = vsub.f32 1.0, %v1681
        %v1683 = vmul.f32 %v1680, %v1682
        %v1684 = vadd.f32 %v1680, %v1683
        %vm1685 = vweird.f32 %v1326
        %vm1686 = vweird.f32 %v1680
        %vm1687 = vmor %vm1685, %vm1686
        %v1688 = vsel %vm1687, %v1680, %v1684
        %v1689 = vand.u32 2147483647, %v1326
        %vm1690 = vcmp.eq.f32.partialorder %v1689, 8.507059e+37
        %v1691 = vand.u32 %v1326, 2147483648
        %v1692 = vor.u32 1.1754944e-38, %v1691
        %v1693 = vsel %vm1690, %v1692, %v1688
        %v1694 = vmul.f32 1.0, %v1693
        %v1695 = vrcp.pop %v1327
        %v1696 = vmul.f32 %v1327, %v1695
        %v1697 = vsub.f32 1.0, %v1696
        %v1698 = vmul.f32 %v1695, %v1697
        %v1699 = vadd.f32 %v1695, %v1698
        %vm1700 = vweird.f32 %v1327
        %vm1701 = vweird.f32 %v1695
        %vm1702 = vmor %vm1700, %vm1701
        %v1703 = vsel %vm1702, %v1695, %v1699
        %v1704 = vand.u32 2147483647, %v1327
        %vm1705 = vcmp.eq.f32.partialorder %v1704, 8.507059e+37
        %v1706 = vand.u32 %v1327, 2147483648
        %v1707 = vor.u32 1.1754944e-38, %v1706
        %v1708 = vsel %vm1705, %v1707, %v1703
        %v1709 = vmul.f32 1.0, %v1708
        %v1710 = vrcp.pop %v1328
        %v1711 = vmul.f32 %v1328, %v1710
        %v1712 = vsub.f32 1.0, %v1711
        %v1713 = vmul.f32 %v1710, %v1712
        %v1714 = vadd.f32 %v1710, %v1713
        %vm1715 = vweird.f32 %v1328
        %vm1716 = vweird.f32 %v1710
        %vm1717 = vmor %vm1715, %vm1716
        %v1718 = vsel %vm1717, %v1710, %v1714
        %v1719 = vand.u32 2147483647, %v1328
        %vm1720 = vcmp.eq.f32.partialorder %v1719, 8.507059e+37
        %v1721 = vand.u32 %v1328, 2147483648
        %v1722 = vor.u32 1.1754944e-38, %v1721
        %v1723 = vsel %vm1720, %v1722, %v1718
        %v1724 = vmul.f32 1.0, %v1723
        %v1725 = vrcp.pop %v1329
        %v1726 = vmul.f32 %v1329, %v1725
        %v1727 = vsub.f32 1.0, %v1726
        %v1728 = vmul.f32 %v1725, %v1727
        %v1729 = vadd.f32 %v1725, %v1728
        %vm1730 = vweird.f32 %v1329
        %vm1731 = vweird.f32 %v1725
        %vm1732 = vmor %vm1730, %vm1731
        %v1733 = vsel %vm1732, %v1725, %v1729
        %v1734 = vand.u32 2147483647, %v1329
        %vm1735 = vcmp.eq.f32.partialorder %v1734, 8.507059e+37
        %v1736 = vand.u32 %v1329, 2147483648
        %v1737 = vor.u32 1.1754944e-38, %v1736
        %v1738 = vsel %vm1735, %v1737, %v1733
        %v1739 = vmul.f32 1.0, %v1738
        %v1740 = vrcp.pop %v1330
        %v1741 = vmul.f32 %v1330, %v1740
        %v1742 = vsub.f32 1.0, %v1741
        %v1743 = vmul.f32 %v1740, %v1742
        %v1744 = vadd.f32 %v1740, %v1743
        %vm1745 = vweird.f32 %v1330
        %vm1746 = vweird.f32 %v1740
        %vm1747 = vmor %vm1745, %vm1746
        %v1748 = vsel %vm1747, %v1740, %v1744
        %v1749 = vand.u32 2147483647, %v1330
        %vm1750 = vcmp.eq.f32.partialorder %v1749, 8.507059e+37
        %v1751 = vand.u32 %v1330, 2147483648
        %v1752 = vor.u32 1.1754944e-38, %v1751
        %v1753 = vsel %vm1750, %v1752, %v1748
        %v1754 = vmul.f32 1.0, %v1753
        %v1755 = vrcp.pop %v1331
        %v1756 = vmul.f32 %v1331, %v1755
        %v1757 = vsub.f32 1.0, %v1756
        %v1758 = vmul.f32 %v1755, %v1757
        %v1759 = vadd.f32 %v1755, %v1758
        %vm1760 = vweird.f32 %v1331
        %vm1761 = vweird.f32 %v1755
        %vm1762 = vmor %vm1760, %vm1761
        %v1763 = vsel %vm1762, %v1755, %v1759
        %v1764 = vand.u32 2147483647, %v1331
        %vm1765 = vcmp.eq.f32.partialorder %v1764, 8.507059e+37
        %v1766 = vand.u32 %v1331, 2147483648
        %v1767 = vor.u32 1.1754944e-38, %v1766
        %v1768 = vsel %vm1765, %v1767, %v1763
        %v1769 = vmul.f32 1.0, %v1768
        %v1770 = vrcp.pop %v1332
        %v1771 = vmul.f32 %v1332, %v1770
        %v1772 = vsub.f32 1.0, %v1771
        %v1773 = vmul.f32 %v1770, %v1772
        %v1774 = vadd.f32 %v1770, %v1773
        %vm1775 = vweird.f32 %v1332
        %vm1776 = vweird.f32 %v1770
        %vm1777 = vmor %vm1775, %vm1776
        %v1778 = vsel %vm1777, %v1770, %v1774
        %v1779 = vand.u32 2147483647, %v1332
        %vm1780 = vcmp.eq.f32.partialorder %v1779, 8.507059e+37
        %v1781 = vand.u32 %v1332, 2147483648
        %v1782 = vor.u32 1.1754944e-38, %v1781
        %v1783 = vsel %vm1780, %v1782, %v1778
        %v1784 = vmul.f32 1.0, %v1783
        %v1785 = vrcp.pop %v1333
        %v1786 = vmul.f32 %v1333, %v1785
        %v1787 = vsub.f32 1.0, %v1786
        %v1788 = vmul.f32 %v1785, %v1787
        %v1789 = vadd.f32 %v1785, %v1788
        %vm1790 = vweird.f32 %v1333
        %vm1791 = vweird.f32 %v1785
        %vm1792 = vmor %vm1790, %vm1791
        %v1793 = vsel %vm1792, %v1785, %v1789
        %v1794 = vand.u32 2147483647, %v1333
        %vm1795 = vcmp.eq.f32.partialorder %v1794, 8.507059e+37
        %v1796 = vand.u32 %v1333, 2147483648
        %v1797 = vor.u32 1.1754944e-38, %v1796
        %v1798 = vsel %vm1795, %v1797, %v1793
        %v1799 = vmul.f32 1.0, %v1798
        %v1800 = vrcp.pop %v1334
        %v1801 = vmul.f32 %v1334, %v1800
        %v1802 = vsub.f32 1.0, %v1801
        %v1803 = vmul.f32 %v1800, %v1802
        %v1804 = vadd.f32 %v1800, %v1803
        %vm1805 = vweird.f32 %v1334
        %vm1806 = vweird.f32 %v1800
        %vm1807 = vmor %vm1805, %vm1806
        %v1808 = vsel %vm1807, %v1800, %v1804
        %v1809 = vand.u32 2147483647, %v1334
        %vm1810 = vcmp.eq.f32.partialorder %v1809, 8.507059e+37
        %v1811 = vand.u32 %v1334, 2147483648
        %v1812 = vor.u32 1.1754944e-38, %v1811
        %v1813 = vsel %vm1810, %v1812, %v1808
        %v1814 = vmul.f32 1.0, %v1813
        %v1815 = vmul.f32 %v1175, %v1349
        %v1816 = vmul.f32 %v1176, %v1364
        %v1817 = vmul.f32 %v1177, %v1379
        %v1818 = vmul.f32 %v1178, %v1394
        %v1819 = vmul.f32 %v1179, %v1409
        %v1820 = vmul.f32 %v1180, %v1424
        %v1821 = vmul.f32 %v1181, %v1439
        %v1822 = vmul.f32 %v1182, %v1454
        %v1823 = vmul.f32 %v1183, %v1469
        %v1824 = vmul.f32 %v1184, %v1484
        %v1825 = vmul.f32 %v1185, %v1499
        %v1826 = vmul.f32 %v1186, %v1514
        %v1827 = vmul.f32 %v1187, %v1529
        %v1828 = vmul.f32 %v1188, %v1544
        %v1829 = vmul.f32 %v1189, %v1559
        %v1830 = vmul.f32 %v1190, %v1574
        %v1831 = vmul.f32 %v1191, %v1589
        %v1832 = vmul.f32 %v1192, %v1604
        %v1833 = vmul.f32 %v1193, %v1619
        %v1834 = vmul.f32 %v1194, %v1634
        %v1835 = vmul.f32 %v1195, %v1649
        %v1836 = vmul.f32 %v1196, %v1664
        %v1837 = vmul.f32 %v1197, %v1679
        %v1838 = vmul.f32 %v1198, %v1694
        %v1839 = vmul.f32 %v1199, %v1709
        %v1840 = vmul.f32 %v1200, %v1724
        %v1841 = vmul.f32 %v1201, %v1739
        %v1842 = vmul.f32 %v1202, %v1754
        %v1843 = vmul.f32 %v1203, %v1769
        %v1844 = vmul.f32 %v1204, %v1784
        %v1845 = vmul.f32 %v1205, %v1799
        %v1846 = vmul.f32 %v1206, %v1814
        %vm1847 = vcmask 523264
        %1848 = vst.msk [vmem:[#allocation2] sm:$0xff] %vm1847, 0.0
        %1849 = vst.msk [vmem:[#allocation2 + $0x8] sm:$0xff] %vm1847, 0.0
        %vm1850 = vcmask 517120
        %1851 = vst.msk [vmem:[#allocation2 + $0x10] sm:$0x3] %vm1850, 0.0
        %1852 = vst.msk [vmem:[#allocation2 + $0x18] sm:$0xff] %vm1847, 0.0
        %1853 = vst.msk [vmem:[#allocation2 + $0x20] sm:$0xff] %vm1847, 0.0
        %1854 = vst.msk [vmem:[#allocation2 + $0x28] sm:$0x3] %vm1850, 0.0
        %1855 = vst.msk [vmem:[#allocation2 + $0x30] sm:$0xff] %vm1847, 0.0
        %1856 = vst.msk [vmem:[#allocation2 + $0x38] sm:$0xff] %vm1847, 0.0
        %1857 = vst.msk [vmem:[#allocation2 + $0x40] sm:$0x3] %vm1850, 0.0
        %1858 = vst.msk [vmem:[#allocation2 + $0x48] sm:$0xff] %vm1847, 0.0
        %1859 = vst.msk [vmem:[#allocation2 + $0x50] sm:$0xff] %vm1847, 0.0
        %1860 = vst.msk [vmem:[#allocation2 + $0x58] sm:$0x3] %vm1850, 0.0
        %1861 = vst.msk [vmem:[#allocation2 + $0x60] sm:$0xff] %vm1847, 0.0
        %1862 = vst.msk [vmem:[#allocation2 + $0x68] sm:$0xff] %vm1847, 0.0
        %1863 = vst.msk [vmem:[#allocation2 + $0x70] sm:$0x3] %vm1850, 0.0
        %1864 = vst.msk [vmem:[#allocation2 + $0x78] sm:$0xff] %vm1847, 0.0
        %1865 = vst.msk [vmem:[#allocation2 + $0x80] sm:$0xff] %vm1847, 0.0
        %1866 = vst.msk [vmem:[#allocation2 + $0x88] sm:$0x3] %vm1850, 0.0
        %1867 = vst.msk [vmem:[#allocation2 + $0x90] sm:$0xff] %vm1847, 0.0
        %1868 = vst.msk [vmem:[#allocation2 + $0x98] sm:$0xff] %vm1847, 0.0
        %1869 = vst.msk [vmem:[#allocation2 + $0xa0] sm:$0x3] %vm1850, 0.0
        %1870 = vst.msk [vmem:[#allocation2 + $0xa8] sm:$0xff] %vm1847, 0.0
        %1871 = vst.msk [vmem:[#allocation2 + $0xb0] sm:$0xff] %vm1847, 0.0
        %1872 = vst.msk [vmem:[#allocation2 + $0xb8] sm:$0x3] %vm1850, 0.0
        %1873 = vst.msk [vmem:[#allocation2 + $0xc0] sm:$0xff] %vm1847, 0.0
        %1874 = vst.msk [vmem:[#allocation2 + $0xc8] sm:$0xff] %vm1847, 0.0
        %1875 = vst.msk [vmem:[#allocation2 + $0xd0] sm:$0x3] %vm1850, 0.0
        %1876 = vst.msk [vmem:[#allocation2 + $0xd8] sm:$0xff] %vm1847, 0.0
        %1877 = vst.msk [vmem:[#allocation2 + $0xe0] sm:$0xff] %vm1847, 0.0
        %1878 = vst.msk [vmem:[#allocation2 + $0xe8] sm:$0x3] %vm1850, 0.0
        %1879 = vst.msk [vmem:[#allocation2 + $0xf0] sm:$0xff] %vm1847, 0.0
        %1880 = vst.msk [vmem:[#allocation2 + $0xf8] sm:$0xff] %vm1847, 0.0
        %1881 = vst.msk [vmem:[#allocation2 + $0x100] sm:$0x3] %vm1850, 0.0
        %1882 = vst.msk [vmem:[#allocation2 + $0x108] sm:$0xff] %vm1847, 0.0
        %1883 = vst.msk [vmem:[#allocation2 + $0x110] sm:$0xff] %vm1847, 0.0
        %1884 = vst.msk [vmem:[#allocation2 + $0x118] sm:$0x3] %vm1850, 0.0
        %1885 = vst.msk [vmem:[#allocation2 + $0x120] sm:$0xff] %vm1847, 0.0
        %1886 = vst.msk [vmem:[#allocation2 + $0x128] sm:$0xff] %vm1847, 0.0
        %1887 = vst.msk [vmem:[#allocation2 + $0x130] sm:$0x3] %vm1850, 0.0
        %1888 = vst.msk [vmem:[#allocation2 + $0x138] sm:$0xff] %vm1847, 0.0
        %1889 = vst.msk [vmem:[#allocation2 + $0x140] sm:$0xff] %vm1847, 0.0
        %1890 = vst.msk [vmem:[#allocation2 + $0x148] sm:$0x3] %vm1850, 0.0
        %1891 = vst.msk [vmem:[#allocation2 + $0x150] sm:$0xff] %vm1847, 0.0
        %1892 = vst.msk [vmem:[#allocation2 + $0x158] sm:$0xff] %vm1847, 0.0
        %1893 = vst.msk [vmem:[#allocation2 + $0x160] sm:$0x3] %vm1850, 0.0
        %1894 = vst.msk [vmem:[#allocation2 + $0x168] sm:$0xff] %vm1847, 0.0
        %1895 = vst.msk [vmem:[#allocation2 + $0x170] sm:$0xff] %vm1847, 0.0
        %1896 = vst.msk [vmem:[#allocation2 + $0x178] sm:$0x3] %vm1850, 0.0
        %1897 = vst.msk [vmem:[#allocation2 + $0x180] sm:$0xff] %vm1847, 0.0
        %1898 = vst.msk [vmem:[#allocation2 + $0x188] sm:$0xff] %vm1847, 0.0
        %1899 = vst.msk [vmem:[#allocation2 + $0x190] sm:$0x3] %vm1850, 0.0
        %1900 = vst.msk [vmem:[#allocation2 + $0x198] sm:$0xff] %vm1847, 0.0
        %1901 = vst.msk [vmem:[#allocation2 + $0x1a0] sm:$0xff] %vm1847, 0.0
        %1902 = vst.msk [vmem:[#allocation2 + $0x1a8] sm:$0x3] %vm1850, 0.0
        %s1903 = scalar_lea.vmem [#allocation2], 24
        %1904 = vst.msk [vmem:[%s1903 + $0x1] sm:$0xff] %vm1847, %v1815
        %1905 = vst.msk [vmem:[%s1903 + $0x9] sm:$0xff] %vm1847, %v1816
        %1906 = vst.msk [vmem:[%s1903 + $0x19] sm:$0xff] %vm1847, %v1817
        %1907 = vst.msk [vmem:[%s1903 + $0x21] sm:$0xff] %vm1847, %v1818
        %1908 = vst.msk [vmem:[%s1903 + $0x31] sm:$0xff] %vm1847, %v1819
        %1909 = vst.msk [vmem:[%s1903 + $0x39] sm:$0xff] %vm1847, %v1820
        %1910 = vst.msk [vmem:[%s1903 + $0x49] sm:$0xff] %vm1847, %v1821
        %1911 = vst.msk [vmem:[%s1903 + $0x51] sm:$0xff] %vm1847, %v1822
        %1912 = vst.msk [vmem:[%s1903 + $0x61] sm:$0xff] %vm1847, %v1823
        %1913 = vst.msk [vmem:[%s1903 + $0x69] sm:$0xff] %vm1847, %v1824
        %1914 = vst.msk [vmem:[%s1903 + $0x79] sm:$0xff] %vm1847, %v1825
        %1915 = vst.msk [vmem:[%s1903 + $0x81] sm:$0xff] %vm1847, %v1826
        %1916 = vst.msk [vmem:[%s1903 + $0x91] sm:$0xff] %vm1847, %v1827
        %1917 = vst.msk [vmem:[%s1903 + $0x99] sm:$0xff] %vm1847, %v1828
        %1918 = vst.msk [vmem:[%s1903 + $0xa9] sm:$0xff] %vm1847, %v1829
        %1919 = vst.msk [vmem:[%s1903 + $0xb1] sm:$0xff] %vm1847, %v1830
        %1920 = vst.msk [vmem:[%s1903 + $0xc1] sm:$0xff] %vm1847, %v1831
        %1921 = vst.msk [vmem:[%s1903 + $0xc9] sm:$0xff] %vm1847, %v1832
        %1922 = vst.msk [vmem:[%s1903 + $0xd9] sm:$0xff] %vm1847, %v1833
        %1923 = vst.msk [vmem:[%s1903 + $0xe1] sm:$0xff] %vm1847, %v1834
        %1924 = vst.msk [vmem:[%s1903 + $0xf1] sm:$0xff] %vm1847, %v1835
        %1925 = vst.msk [vmem:[%s1903 + $0xf9] sm:$0xff] %vm1847, %v1836
        %1926 = vst.msk [vmem:[%s1903 + $0x109] sm:$0xff] %vm1847, %v1837
        %1927 = vst.msk [vmem:[%s1903 + $0x111] sm:$0xff] %vm1847, %v1838
        %1928 = vst.msk [vmem:[%s1903 + $0x121] sm:$0xff] %vm1847, %v1839
        %1929 = vst.msk [vmem:[%s1903 + $0x129] sm:$0xff] %vm1847, %v1840
        %1930 = vst.msk [vmem:[%s1903 + $0x139] sm:$0xff] %vm1847, %v1841
        %1931 = vst.msk [vmem:[%s1903 + $0x141] sm:$0xff] %vm1847, %v1842
        %1932 = vst.msk [vmem:[%s1903 + $0x151] sm:$0xff] %vm1847, %v1843
        %1933 = vst.msk [vmem:[%s1903 + $0x159] sm:$0xff] %vm1847, %v1844
        %1934 = vst.msk [vmem:[%s1903 + $0x169] sm:$0xff] %vm1847, %v1845
        %1935 = vst.msk [vmem:[%s1903 + $0x171] sm:$0xff] %vm1847, %v1846
        %v1936 = vld [vmem:[#allocation2] sm:$0xff]
        %v1937 = vld [vmem:[#allocation2 + $0x8] sm:$0xff]
        %v1938 = vld [vmem:[#allocation2 + $0x18] sm:$0xff]
        %v1939 = vld [vmem:[#allocation2 + $0x20] sm:$0xff]
        %v1940 = vld [vmem:[#allocation2 + $0x30] sm:$0xff]
        %v1941 = vld [vmem:[#allocation2 + $0x38] sm:$0xff]
        %v1942 = vld [vmem:[#allocation2 + $0x48] sm:$0xff]
        %v1943 = vld [vmem:[#allocation2 + $0x50] sm:$0xff]
        %v1944 = vld [vmem:[#allocation2 + $0x60] sm:$0xff]
        %v1945 = vld [vmem:[#allocation2 + $0x68] sm:$0xff]
        %v1946 = vld [vmem:[#allocation2 + $0x78] sm:$0xff]
        %v1947 = vld [vmem:[#allocation2 + $0x80] sm:$0xff]
        %v1948 = vld [vmem:[#allocation2 + $0x90] sm:$0xff]
        %v1949 = vld [vmem:[#allocation2 + $0x98] sm:$0xff]
        %v1950 = vld [vmem:[#allocation2 + $0xa8] sm:$0xff]
        %v1951 = vld [vmem:[#allocation2 + $0xb0] sm:$0xff]
        %v1952 = vld [vmem:[#allocation2 + $0xc0] sm:$0xff]
        %v1953 = vld [vmem:[#allocation2 + $0xc8] sm:$0xff]
        %v1954 = vld [vmem:[#allocation2 + $0xd8] sm:$0xff]
        %v1955 = vld [vmem:[#allocation2 + $0xe0] sm:$0xff]
        %v1956 = vld [vmem:[#allocation2 + $0xf0] sm:$0xff]
        %v1957 = vld [vmem:[#allocation2 + $0xf8] sm:$0xff]
        %v1958 = vld [vmem:[#allocation2 + $0x108] sm:$0xff]
        %v1959 = vld [vmem:[#allocation2 + $0x110] sm:$0xff]
        %v1960 = vld [vmem:[#allocation2 + $0x120] sm:$0xff]
        %v1961 = vld [vmem:[#allocation2 + $0x128] sm:$0xff]
        %v1962 = vld [vmem:[#allocation2 + $0x138] sm:$0xff]
        %v1963 = vld [vmem:[#allocation2 + $0x140] sm:$0xff]
        %v1964 = vld [vmem:[#allocation2 + $0x150] sm:$0xff]
        %v1965 = vld [vmem:[#allocation2 + $0x158] sm:$0xff]
        %v1966 = vld [vmem:[#allocation2 + $0x168] sm:$0xff]
        %v1967 = vld [vmem:[#allocation2 + $0x170] sm:$0xff]
        %v1968 = vpack.c.bf16 %v1937, %v1936
        %v1969 = vpack.c.bf16 %v1939, %v1938
        %v1970 = vpack.c.bf16 %v1941, %v1940
        %v1971 = vpack.c.bf16 %v1943, %v1942
        %v1972 = vpack.c.bf16 %v1945, %v1944
        %v1973 = vpack.c.bf16 %v1947, %v1946
        %v1974 = vpack.c.bf16 %v1949, %v1948
        %v1975 = vpack.c.bf16 %v1951, %v1950
        %v1976 = vpack.c.bf16 %v1953, %v1952
        %v1977 = vpack.c.bf16 %v1955, %v1954
        %v1978 = vpack.c.bf16 %v1957, %v1956
        %v1979 = vpack.c.bf16 %v1959, %v1958
        %v1980 = vpack.c.bf16 %v1961, %v1960
        %v1981 = vpack.c.bf16 %v1963, %v1962
        %v1982 = vpack.c.bf16 %v1965, %v1964
        %v1983 = vpack.c.bf16 %v1967, %v1966
        %v1984 = vld [vmem:[%s4] sm:$0xf]
        %v1985 = vld [vmem:[%s4 + $0x4] sm:$0xf]
        %v1986 = vld [vmem:[%s4 + $0x8] sm:$0xf]
        %v1987 = vld [vmem:[%s4 + $0xc] sm:$0xf]
        %v1988 = vld [vmem:[%s4 + $0x10] sm:$0xf]
        %v1989 = vld [vmem:[%s4 + $0x14] sm:$0xf]
        %v1990 = vld [vmem:[%s4 + $0x18] sm:$0xf]
        %v1991 = vld [vmem:[%s4 + $0x1c] sm:$0xf]
        %v1992 = vld [vmem:[#allocation2 + $0x1] sm:$0xff]
        %v1993 = vld [vmem:[#allocation2 + $0x9] sm:$0xff]
        %v1994 = vld [vmem:[#allocation2 + $0x19] sm:$0xff]
        %v1995 = vld [vmem:[#allocation2 + $0x21] sm:$0xff]
        %v1996 = vld [vmem:[#allocation2 + $0x31] sm:$0xff]
        %v1997 = vld [vmem:[#allocation2 + $0x39] sm:$0xff]
        %v1998 = vld [vmem:[#allocation2 + $0x49] sm:$0xff]
        %v1999 = vld [vmem:[#allocation2 + $0x51] sm:$0xff]
        %v2000 = vld [vmem:[#allocation2 + $0x61] sm:$0xff]
        %v2001 = vld [vmem:[#allocation2 + $0x69] sm:$0xff]
        %v2002 = vld [vmem:[#allocation2 + $0x79] sm:$0xff]
        %v2003 = vld [vmem:[#allocation2 + $0x81] sm:$0xff]
        %v2004 = vld [vmem:[#allocation2 + $0x91] sm:$0xff]
        %v2005 = vld [vmem:[#allocation2 + $0x99] sm:$0xff]
        %v2006 = vld [vmem:[#allocation2 + $0xa9] sm:$0xff]
        %v2007 = vld [vmem:[#allocation2 + $0xb1] sm:$0xff]
        %v2008 = vld [vmem:[#allocation2 + $0xc1] sm:$0xff]
        %v2009 = vld [vmem:[#allocation2 + $0xc9] sm:$0xff]
        %v2010 = vld [vmem:[#allocation2 + $0xd9] sm:$0xff]
        %v2011 = vld [vmem:[#allocation2 + $0xe1] sm:$0xff]
        %v2012 = vld [vmem:[#allocation2 + $0xf1] sm:$0xff]
        %v2013 = vld [vmem:[#allocation2 + $0xf9] sm:$0xff]
        %v2014 = vld [vmem:[#allocation2 + $0x109] sm:$0xff]
        %v2015 = vld [vmem:[#allocation2 + $0x111] sm:$0xff]
        %v2016 = vld [vmem:[#allocation2 + $0x121] sm:$0xff]
        %v2017 = vld [vmem:[#allocation2 + $0x129] sm:$0xff]
        %v2018 = vld [vmem:[#allocation2 + $0x139] sm:$0xff]
        %v2019 = vld [vmem:[#allocation2 + $0x141] sm:$0xff]
        %v2020 = vld [vmem:[#allocation2 + $0x151] sm:$0xff]
        %v2021 = vld [vmem:[#allocation2 + $0x159] sm:$0xff]
        %v2022 = vld [vmem:[#allocation2 + $0x169] sm:$0xff]
        %v2023 = vld [vmem:[#allocation2 + $0x171] sm:$0xff]
        %v2024 = vpack.c.bf16 %v1993, %v1992
        %v2025 = vpack.c.bf16 %v1995, %v1994
        %v2026 = vpack.c.bf16 %v1997, %v1996
        %v2027 = vpack.c.bf16 %v1999, %v1998
        %v2028 = vpack.c.bf16 %v2001, %v2000
        %v2029 = vpack.c.bf16 %v2003, %v2002
        %v2030 = vpack.c.bf16 %v2005, %v2004
        %v2031 = vpack.c.bf16 %v2007, %v2006
        %v2032 = vpack.c.bf16 %v2009, %v2008
        %v2033 = vpack.c.bf16 %v2011, %v2010
        %v2034 = vpack.c.bf16 %v2013, %v2012
        %v2035 = vpack.c.bf16 %v2015, %v2014
        %v2036 = vpack.c.bf16 %v2017, %v2016
        %v2037 = vpack.c.bf16 %v2019, %v2018
        %v2038 = vpack.c.bf16 %v2021, %v2020
        %v2039 = vpack.c.bf16 %v2023, %v2022
        %s2040 = scalar_lea.vmem %s4, 32
        %v2041 = vld [vmem:[%s2040] sm:$0xf]
        %v2042 = vld [vmem:[%s2040 + $0x4] sm:$0xf]
        %v2043 = vld [vmem:[%s2040 + $0x8] sm:$0xf]
        %v2044 = vld [vmem:[%s2040 + $0xc] sm:$0xf]
        %v2045 = vld [vmem:[%s2040 + $0x10] sm:$0xf]
        %v2046 = vld [vmem:[%s2040 + $0x14] sm:$0xf]
        %v2047 = vld [vmem:[%s2040 + $0x18] sm:$0xf]
        %v2048 = vld [vmem:[%s2040 + $0x1c] sm:$0xf]
        %v2057 = vunpack.c.l.b16 %v2041
        %v2058 = vunpack.c.l.b16 %v2042
        %v2059 = vunpack.c.l.b16 %v2043
        %v2060 = vunpack.c.l.b16 %v2044
        %v2061 = vunpack.c.l.b16 %v2045
        %v2062 = vunpack.c.l.b16 %v2046
        %v2063 = vunpack.c.l.b16 %v2047
        %v2064 = vunpack.c.l.b16 %v2048
        %v2065 = vpack.c.b16 %v2058, %v2057
        %v2066 = vpack.c.b16 %v2060, %v2059
        %v2067 = vpack.c.b16 %v2062, %v2061
        %v2068 = vpack.c.b16 %v2064, %v2063
        %v2074 = vsel %vm1847, %v2024, 0
        %v2077 = vsel %vm1847, %v2025, 0
        %v2080 = vsel %vm1847, %v2026, 0
        %v2083 = vsel %vm1847, %v2027, 0
        %v2086 = vsel %vm1847, %v2028, 0
        %v2089 = vsel %vm1847, %v2029, 0
        %v2092 = vsel %vm1847, %v2030, 0
        %v2095 = vsel %vm1847, %v2031, 0
        %v2098 = vsel %vm1847, %v2032, 0
        %v2101 = vsel %vm1847, %v2033, 0
        %v2104 = vsel %vm1847, %v2034, 0
        %v2107 = vsel %vm1847, %v2035, 0
        %v2110 = vsel %vm1847, %v2036, 0
        %v2113 = vsel %vm1847, %v2037, 0
        %v2116 = vsel %vm1847, %v2038, 0
        %v2119 = vsel %vm1847, %v2039, 0
        %2121 = vmatpush.bf16.msra.mxu0 0
        %2122 = vmatpush.bf16.msra.mxu0 0
        %2123 = vmatpush.bf16.msra.mxu0 0
        %2124 = vmatpush.bf16.msra.mxu0 0
        %2125 = vmatpush.bf16.msra.mxu0 %v2068
        %2126 = vmatpush.bf16.msra.mxu0 %v2067
        %2127 = vmatpush.bf16.msra.mxu0 %v2066
        %2128 = vmatpush.bf16.msra.mxu0 %v2065
        %2129 = vmatmul.bf16.gmra.mxu0 %v2074
        %v2130 = vpop.f32.mrf.mxu0
        %v2131 = vadd.f32 0.0, %v2130
        %v2132 = vpop.f32.mrf.mxu0
        %v2133 = vadd.f32 0.0, %v2132
        %2134 = vmatmul.bf16.gmra.mxu0 %v2077
        %v2135 = vpop.f32.mrf.mxu0
        %v2136 = vadd.f32 0.0, %v2135
        %v2137 = vpop.f32.mrf.mxu0
        %v2138 = vadd.f32 0.0, %v2137
        %2139 = vmatmul.bf16.gmra.mxu0 %v2080
        %v2140 = vpop.f32.mrf.mxu0
        %v2141 = vadd.f32 0.0, %v2140
        %v2142 = vpop.f32.mrf.mxu0
        %v2143 = vadd.f32 0.0, %v2142
        %2144 = vmatmul.bf16.gmra.mxu0 %v2083
        %v2145 = vpop.f32.mrf.mxu0
        %v2146 = vadd.f32 0.0, %v2145
        %v2147 = vpop.f32.mrf.mxu0
        %v2148 = vadd.f32 0.0, %v2147
        %2149 = vmatmul.bf16.gmra.mxu0 %v2086
        %v2150 = vpop.f32.mrf.mxu0
        %v2151 = vadd.f32 0.0, %v2150
        %v2152 = vpop.f32.mrf.mxu0
        %v2153 = vadd.f32 0.0, %v2152
        %2154 = vmatmul.bf16.gmra.mxu0 %v2089
        %v2155 = vpop.f32.mrf.mxu0
        %v2156 = vadd.f32 0.0, %v2155
        %v2157 = vpop.f32.mrf.mxu0
        %v2158 = vadd.f32 0.0, %v2157
        %2159 = vmatmul.bf16.gmra.mxu0 %v2092
        %v2160 = vpop.f32.mrf.mxu0
        %v2161 = vadd.f32 0.0, %v2160
        %v2162 = vpop.f32.mrf.mxu0
        %v2163 = vadd.f32 0.0, %v2162
        %2164 = vmatmul.bf16.gmra.mxu0 %v2095
        %v2165 = vpop.f32.mrf.mxu0
        %v2166 = vadd.f32 0.0, %v2165
        %v2167 = vpop.f32.mrf.mxu0
        %v2168 = vadd.f32 0.0, %v2167
        %2169 = vmatmul.bf16.gmra.mxu0 %v2098
        %v2170 = vpop.f32.mrf.mxu0
        %v2171 = vadd.f32 0.0, %v2170
        %v2172 = vpop.f32.mrf.mxu0
        %v2173 = vadd.f32 0.0, %v2172
        %2174 = vmatmul.bf16.gmra.mxu0 %v2101
        %v2175 = vpop.f32.mrf.mxu0
        %v2176 = vadd.f32 0.0, %v2175
        %v2177 = vpop.f32.mrf.mxu0
        %v2178 = vadd.f32 0.0, %v2177
        %2179 = vmatmul.bf16.gmra.mxu0 %v2104
        %v2180 = vpop.f32.mrf.mxu0
        %v2181 = vadd.f32 0.0, %v2180
        %v2182 = vpop.f32.mrf.mxu0
        %v2183 = vadd.f32 0.0, %v2182
        %2184 = vmatmul.bf16.gmra.mxu0 %v2107
        %v2185 = vpop.f32.mrf.mxu0
        %v2186 = vadd.f32 0.0, %v2185
        %v2187 = vpop.f32.mrf.mxu0
        %v2188 = vadd.f32 0.0, %v2187
        %2189 = vmatmul.bf16.gmra.mxu0 %v2110
        %v2190 = vpop.f32.mrf.mxu0
        %v2191 = vadd.f32 0.0, %v2190
        %v2192 = vpop.f32.mrf.mxu0
        %v2193 = vadd.f32 0.0, %v2192
        %2194 = vmatmul.bf16.gmra.mxu0 %v2113
        %v2195 = vpop.f32.mrf.mxu0
        %v2196 = vadd.f32 0.0, %v2195
        %v2197 = vpop.f32.mrf.mxu0
        %v2198 = vadd.f32 0.0, %v2197
        %2199 = vmatmul.bf16.gmra.mxu0 %v2116
        %v2200 = vpop.f32.mrf.mxu0
        %v2201 = vadd.f32 0.0, %v2200
        %v2202 = vpop.f32.mrf.mxu0
        %v2203 = vadd.f32 0.0, %v2202
        %2204 = vmatmul.bf16.gmra.mxu0 %v2119
        %v2205 = vpop.f32.mrf.mxu0
        %v2206 = vadd.f32 0.0, %v2205
        %v2207 = vpop.f32.mrf.mxu0
        %v2208 = vadd.f32 0.0, %v2207
        %2209 = vdwg.mxu0
        %v2218 = vunpack.c.l.b16 %v1984
        %v2219 = vunpack.c.l.b16 %v1985
        %v2220 = vunpack.c.l.b16 %v1986
        %v2221 = vunpack.c.l.b16 %v1987
        %v2222 = vunpack.c.l.b16 %v1988
        %v2223 = vunpack.c.l.b16 %v1989
        %v2224 = vunpack.c.l.b16 %v1990
        %v2225 = vunpack.c.l.b16 %v1991
        %v2226 = vpack.c.b16 %v2219, %v2218
        %v2227 = vpack.c.b16 %v2221, %v2220
        %v2228 = vpack.c.b16 %v2223, %v2222
        %v2229 = vpack.c.b16 %v2225, %v2224
        %v2235 = vsel %vm1847, %v1968, 0
        %v2238 = vsel %vm1847, %v1969, 0
        %v2241 = vsel %vm1847, %v1970, 0
        %v2244 = vsel %vm1847, %v1971, 0
        %v2247 = vsel %vm1847, %v1972, 0
        %v2250 = vsel %vm1847, %v1973, 0
        %v2253 = vsel %vm1847, %v1974, 0
        %v2256 = vsel %vm1847, %v1975, 0
        %v2259 = vsel %vm1847, %v1976, 0
        %v2262 = vsel %vm1847, %v1977, 0
        %v2265 = vsel %vm1847, %v1978, 0
        %v2268 = vsel %vm1847, %v1979, 0
        %v2271 = vsel %vm1847, %v1980, 0
        %v2274 = vsel %vm1847, %v1981, 0
        %v2277 = vsel %vm1847, %v1982, 0
        %v2280 = vsel %vm1847, %v1983, 0
        %2282 = vmatpush.bf16.msra.mxu0 0
        %2283 = vmatpush.bf16.msra.mxu0 0
        %2284 = vmatpush.bf16.msra.mxu0 0
        %2285 = vmatpush.bf16.msra.mxu0 0
        %2286 = vmatpush.bf16.msra.mxu0 %v2229
        %2287 = vmatpush.bf16.msra.mxu0 %v2228
        %2288 = vmatpush.bf16.msra.mxu0 %v2227
        %2289 = vmatpush.bf16.msra.mxu0 %v2226
        %2290 = vmatmul.bf16.gmra.mxu0 %v2235
        %v2291 = vpop.f32.mrf.mxu0
        %v2292 = vadd.f32 %v2131, %v2291
        %v2293 = vpop.f32.mrf.mxu0
        %v2294 = vadd.f32 %v2133, %v2293
        %2295 = vmatmul.bf16.gmra.mxu0 %v2238
        %v2296 = vpop.f32.mrf.mxu0
        %v2297 = vadd.f32 %v2136, %v2296
        %v2298 = vpop.f32.mrf.mxu0
        %v2299 = vadd.f32 %v2138, %v2298
        %2300 = vmatmul.bf16.gmra.mxu0 %v2241
        %v2301 = vpop.f32.mrf.mxu0
        %v2302 = vadd.f32 %v2141, %v2301
        %v2303 = vpop.f32.mrf.mxu0
        %v2304 = vadd.f32 %v2143, %v2303
        %2305 = vmatmul.bf16.gmra.mxu0 %v2244
        %v2306 = vpop.f32.mrf.mxu0
        %v2307 = vadd.f32 %v2146, %v2306
        %v2308 = vpop.f32.mrf.mxu0
        %v2309 = vadd.f32 %v2148, %v2308
        %2310 = vmatmul.bf16.gmra.mxu0 %v2247
        %v2311 = vpop.f32.mrf.mxu0
        %v2312 = vadd.f32 %v2151, %v2311
        %v2313 = vpop.f32.mrf.mxu0
        %v2314 = vadd.f32 %v2153, %v2313
        %2315 = vmatmul.bf16.gmra.mxu0 %v2250
        %v2316 = vpop.f32.mrf.mxu0
        %v2317 = vadd.f32 %v2156, %v2316
        %v2318 = vpop.f32.mrf.mxu0
        %v2319 = vadd.f32 %v2158, %v2318
        %2320 = vmatmul.bf16.gmra.mxu0 %v2253
        %v2321 = vpop.f32.mrf.mxu0
        %v2322 = vadd.f32 %v2161, %v2321
        %v2323 = vpop.f32.mrf.mxu0
        %v2324 = vadd.f32 %v2163, %v2323
        %2325 = vmatmul.bf16.gmra.mxu0 %v2256
        %v2326 = vpop.f32.mrf.mxu0
        %v2327 = vadd.f32 %v2166, %v2326
        %v2328 = vpop.f32.mrf.mxu0
        %v2329 = vadd.f32 %v2168, %v2328
        %2330 = vmatmul.bf16.gmra.mxu0 %v2259
        %v2331 = vpop.f32.mrf.mxu0
        %v2332 = vadd.f32 %v2171, %v2331
        %v2333 = vpop.f32.mrf.mxu0
        %v2334 = vadd.f32 %v2173, %v2333
        %2335 = vmatmul.bf16.gmra.mxu0 %v2262
        %v2336 = vpop.f32.mrf.mxu0
        %v2337 = vadd.f32 %v2176, %v2336
        %v2338 = vpop.f32.mrf.mxu0
        %v2339 = vadd.f32 %v2178, %v2338
        %2340 = vmatmul.bf16.gmra.mxu0 %v2265
        %v2341 = vpop.f32.mrf.mxu0
        %v2342 = vadd.f32 %v2181, %v2341
        %v2343 = vpop.f32.mrf.mxu0
        %v2344 = vadd.f32 %v2183, %v2343
        %2345 = vmatmul.bf16.gmra.mxu0 %v2268
        %v2346 = vpop.f32.mrf.mxu0
        %v2347 = vadd.f32 %v2186, %v2346
        %v2348 = vpop.f32.mrf.mxu0
        %v2349 = vadd.f32 %v2188, %v2348
        %2350 = vmatmul.bf16.gmra.mxu0 %v2271
        %v2351 = vpop.f32.mrf.mxu0
        %v2352 = vadd.f32 %v2191, %v2351
        %v2353 = vpop.f32.mrf.mxu0
        %v2354 = vadd.f32 %v2193, %v2353
        %2355 = vmatmul.bf16.gmra.mxu0 %v2274
        %v2356 = vpop.f32.mrf.mxu0
        %v2357 = vadd.f32 %v2196, %v2356
        %v2358 = vpop.f32.mrf.mxu0
        %v2359 = vadd.f32 %v2198, %v2358
        %2360 = vmatmul.bf16.gmra.mxu0 %v2277
        %v2361 = vpop.f32.mrf.mxu0
        %v2362 = vadd.f32 %v2201, %v2361
        %v2363 = vpop.f32.mrf.mxu0
        %v2364 = vadd.f32 %v2203, %v2363
        %2365 = vmatmul.bf16.gmra.mxu0 %v2280
        %v2366 = vpop.f32.mrf.mxu0
        %v2367 = vadd.f32 %v2206, %v2366
        %v2368 = vpop.f32.mrf.mxu0
        %v2369 = vadd.f32 %v2208, %v2368
        %2370 = vdwg.mxu0
        %v2371 = vld [vmem:[#allocation2 + $0x2] sm:$0xff]
        %v2372 = vld [vmem:[#allocation2 + $0xa] sm:$0xff]
        %v2373 = vld [vmem:[#allocation2 + $0x1a] sm:$0xff]
        %v2374 = vld [vmem:[#allocation2 + $0x22] sm:$0xff]
        %v2375 = vld [vmem:[#allocation2 + $0x32] sm:$0xff]
        %v2376 = vld [vmem:[#allocation2 + $0x3a] sm:$0xff]
        %v2377 = vld [vmem:[#allocation2 + $0x4a] sm:$0xff]
        %v2378 = vld [vmem:[#allocation2 + $0x52] sm:$0xff]
        %v2379 = vld [vmem:[#allocation2 + $0x62] sm:$0xff]
        %v2380 = vld [vmem:[#allocation2 + $0x6a] sm:$0xff]
        %v2381 = vld [vmem:[#allocation2 + $0x7a] sm:$0xff]
        %v2382 = vld [vmem:[#allocation2 + $0x82] sm:$0xff]
        %v2383 = vld [vmem:[#allocation2 + $0x92] sm:$0xff]
        %v2384 = vld [vmem:[#allocation2 + $0x9a] sm:$0xff]
        %v2385 = vld [vmem:[#allocation2 + $0xaa] sm:$0xff]
        %v2386 = vld [vmem:[#allocation2 + $0xb2] sm:$0xff]
        %v2387 = vld [vmem:[#allocation2 + $0xc2] sm:$0xff]
        %v2388 = vld [vmem:[#allocation2 + $0xca] sm:$0xff]
        %v2389 = vld [vmem:[#allocation2 + $0xda] sm:$0xff]
        %v2390 = vld [vmem:[#allocation2 + $0xe2] sm:$0xff]
        %v2391 = vld [vmem:[#allocation2 + $0xf2] sm:$0xff]
        %v2392 = vld [vmem:[#allocation2 + $0xfa] sm:$0xff]
        %v2393 = vld [vmem:[#allocation2 + $0x10a] sm:$0xff]
        %v2394 = vld [vmem:[#allocation2 + $0x112] sm:$0xff]
        %v2395 = vld [vmem:[#allocation2 + $0x122] sm:$0xff]
        %v2396 = vld [vmem:[#allocation2 + $0x12a] sm:$0xff]
        %v2397 = vld [vmem:[#allocation2 + $0x13a] sm:$0xff]
        %v2398 = vld [vmem:[#allocation2 + $0x142] sm:$0xff]
        %v2399 = vld [vmem:[#allocation2 + $0x152] sm:$0xff]
        %v2400 = vld [vmem:[#allocation2 + $0x15a] sm:$0xff]
        %v2401 = vld [vmem:[#allocation2 + $0x16a] sm:$0xff]
        %v2402 = vld [vmem:[#allocation2 + $0x172] sm:$0xff]
        %v2403 = vpack.c.bf16 %v2372, %v2371
        %v2404 = vpack.c.bf16 %v2374, %v2373
        %v2405 = vpack.c.bf16 %v2376, %v2375
        %v2406 = vpack.c.bf16 %v2378, %v2377
        %v2407 = vpack.c.bf16 %v2380, %v2379
        %v2408 = vpack.c.bf16 %v2382, %v2381
        %v2409 = vpack.c.bf16 %v2384, %v2383
        %v2410 = vpack.c.bf16 %v2386, %v2385
        %v2411 = vpack.c.bf16 %v2388, %v2387
        %v2412 = vpack.c.bf16 %v2390, %v2389
        %v2413 = vpack.c.bf16 %v2392, %v2391
        %v2414 = vpack.c.bf16 %v2394, %v2393
        %v2415 = vpack.c.bf16 %v2396, %v2395
        %v2416 = vpack.c.bf16 %v2398, %v2397
        %v2417 = vpack.c.bf16 %v2400, %v2399
        %v2418 = vpack.c.bf16 %v2402, %v2401
        %s2419 = scalar_lea.vmem %s4, 64
        %v2420 = vld [vmem:[%s2419] sm:$0xf]
        %v2421 = vld [vmem:[%s2419 + $0x4] sm:$0xf]
        %v2422 = vld [vmem:[%s2419 + $0x8] sm:$0xf]
        %v2423 = vld [vmem:[%s2419 + $0xc] sm:$0xf]
        %v2424 = vld [vmem:[%s2419 + $0x10] sm:$0xf]
        %v2425 = vld [vmem:[%s2419 + $0x14] sm:$0xf]
        %v2426 = vld [vmem:[%s2419 + $0x18] sm:$0xf]
        %v2427 = vld [vmem:[%s2419 + $0x1c] sm:$0xf]
        %v2436 = vunpack.c.l.b16 %v2420
        %v2437 = vunpack.c.l.b16 %v2421
        %v2438 = vunpack.c.l.b16 %v2422
        %v2439 = vunpack.c.l.b16 %v2423
        %v2440 = vunpack.c.l.b16 %v2424
        %v2441 = vunpack.c.l.b16 %v2425
        %v2442 = vunpack.c.l.b16 %v2426
        %v2443 = vunpack.c.l.b16 %v2427
        %v2444 = vpack.c.b16 %v2437, %v2436
        %v2445 = vpack.c.b16 %v2439, %v2438
        %v2446 = vpack.c.b16 %v2441, %v2440
        %v2447 = vpack.c.b16 %v2443, %v2442
        %v2453 = vsel %vm1847, %v2403, 0
        %v2456 = vsel %vm1847, %v2404, 0
        %v2459 = vsel %vm1847, %v2405, 0
        %v2462 = vsel %vm1847, %v2406, 0
        %v2465 = vsel %vm1847, %v2407, 0
        %v2468 = vsel %vm1847, %v2408, 0
        %v2471 = vsel %vm1847, %v2409, 0
        %v2474 = vsel %vm1847, %v2410, 0
        %v2477 = vsel %vm1847, %v2411, 0
        %v2480 = vsel %vm1847, %v2412, 0
        %v2483 = vsel %vm1847, %v2413, 0
        %v2486 = vsel %vm1847, %v2414, 0
        %v2489 = vsel %vm1847, %v2415, 0
        %v2492 = vsel %vm1847, %v2416, 0
        %v2495 = vsel %vm1847, %v2417, 0
        %v2498 = vsel %vm1847, %v2418, 0
        %2500 = vmatpush.bf16.msra.mxu0 0
        %2501 = vmatpush.bf16.msra.mxu0 0
        %2502 = vmatpush.bf16.msra.mxu0 0
        %2503 = vmatpush.bf16.msra.mxu0 0
        %2504 = vmatpush.bf16.msra.mxu0 %v2447
        %2505 = vmatpush.bf16.msra.mxu0 %v2446
        %2506 = vmatpush.bf16.msra.mxu0 %v2445
        %2507 = vmatpush.bf16.msra.mxu0 %v2444
        %2508 = vmatmul.bf16.gmra.mxu0 %v2453
        %v2509 = vpop.f32.mrf.mxu0
        %v2510 = vadd.f32 0.0, %v2509
        %v2511 = vpop.f32.mrf.mxu0
        %v2512 = vadd.f32 0.0, %v2511
        %2513 = vmatmul.bf16.gmra.mxu0 %v2456
        %v2514 = vpop.f32.mrf.mxu0
        %v2515 = vadd.f32 0.0, %v2514
        %v2516 = vpop.f32.mrf.mxu0
        %v2517 = vadd.f32 0.0, %v2516
        %2518 = vmatmul.bf16.gmra.mxu0 %v2459
        %v2519 = vpop.f32.mrf.mxu0
        %v2520 = vadd.f32 0.0, %v2519
        %v2521 = vpop.f32.mrf.mxu0
        %v2522 = vadd.f32 0.0, %v2521
        %2523 = vmatmul.bf16.gmra.mxu0 %v2462
        %v2524 = vpop.f32.mrf.mxu0
        %v2525 = vadd.f32 0.0, %v2524
        %v2526 = vpop.f32.mrf.mxu0
        %v2527 = vadd.f32 0.0, %v2526
        %2528 = vmatmul.bf16.gmra.mxu0 %v2465
        %v2529 = vpop.f32.mrf.mxu0
        %v2530 = vadd.f32 0.0, %v2529
        %v2531 = vpop.f32.mrf.mxu0
        %v2532 = vadd.f32 0.0, %v2531
        %2533 = vmatmul.bf16.gmra.mxu0 %v2468
        %v2534 = vpop.f32.mrf.mxu0
        %v2535 = vadd.f32 0.0, %v2534
        %v2536 = vpop.f32.mrf.mxu0
        %v2537 = vadd.f32 0.0, %v2536
        %2538 = vmatmul.bf16.gmra.mxu0 %v2471
        %v2539 = vpop.f32.mrf.mxu0
        %v2540 = vadd.f32 0.0, %v2539
        %v2541 = vpop.f32.mrf.mxu0
        %v2542 = vadd.f32 0.0, %v2541
        %2543 = vmatmul.bf16.gmra.mxu0 %v2474
        %v2544 = vpop.f32.mrf.mxu0
        %v2545 = vadd.f32 0.0, %v2544
        %v2546 = vpop.f32.mrf.mxu0
        %v2547 = vadd.f32 0.0, %v2546
        %2548 = vmatmul.bf16.gmra.mxu0 %v2477
        %v2549 = vpop.f32.mrf.mxu0
        %v2550 = vadd.f32 0.0, %v2549
        %v2551 = vpop.f32.mrf.mxu0
        %v2552 = vadd.f32 0.0, %v2551
        %2553 = vmatmul.bf16.gmra.mxu0 %v2480
        %v2554 = vpop.f32.mrf.mxu0
        %v2555 = vadd.f32 0.0, %v2554
        %v2556 = vpop.f32.mrf.mxu0
        %v2557 = vadd.f32 0.0, %v2556
        %2558 = vmatmul.bf16.gmra.mxu0 %v2483
        %v2559 = vpop.f32.mrf.mxu0
        %v2560 = vadd.f32 0.0, %v2559
        %v2561 = vpop.f32.mrf.mxu0
        %v2562 = vadd.f32 0.0, %v2561
        %2563 = vmatmul.bf16.gmra.mxu0 %v2486
        %v2564 = vpop.f32.mrf.mxu0
        %v2565 = vadd.f32 0.0, %v2564
        %v2566 = vpop.f32.mrf.mxu0
        %v2567 = vadd.f32 0.0, %v2566
        %2568 = vmatmul.bf16.gmra.mxu0 %v2489
        %v2569 = vpop.f32.mrf.mxu0
        %v2570 = vadd.f32 0.0, %v2569
        %v2571 = vpop.f32.mrf.mxu0
        %v2572 = vadd.f32 0.0, %v2571
        %2573 = vmatmul.bf16.gmra.mxu0 %v2492
        %v2574 = vpop.f32.mrf.mxu0
        %v2575 = vadd.f32 0.0, %v2574
        %v2576 = vpop.f32.mrf.mxu0
        %v2577 = vadd.f32 0.0, %v2576
        %2578 = vmatmul.bf16.gmra.mxu0 %v2495
        %v2579 = vpop.f32.mrf.mxu0
        %v2580 = vadd.f32 0.0, %v2579
        %v2581 = vpop.f32.mrf.mxu0
        %v2582 = vadd.f32 0.0, %v2581
        %2583 = vmatmul.bf16.gmra.mxu0 %v2498
        %v2584 = vpop.f32.mrf.mxu0
        %v2585 = vadd.f32 0.0, %v2584
        %v2586 = vpop.f32.mrf.mxu0
        %v2587 = vadd.f32 0.0, %v2586
        %2588 = vdwg.mxu0
        %v2589 = vadd.f32 %v2292, %v2510
        %v2590 = vadd.f32 %v2294, %v2512
        %v2591 = vadd.f32 %v2297, %v2515
        %v2592 = vadd.f32 %v2299, %v2517
        %v2593 = vadd.f32 %v2302, %v2520
        %v2594 = vadd.f32 %v2304, %v2522
        %v2595 = vadd.f32 %v2307, %v2525
        %v2596 = vadd.f32 %v2309, %v2527
        %v2597 = vadd.f32 %v2312, %v2530
        %v2598 = vadd.f32 %v2314, %v2532
        %v2599 = vadd.f32 %v2317, %v2535
        %v2600 = vadd.f32 %v2319, %v2537
        %v2601 = vadd.f32 %v2322, %v2540
        %v2602 = vadd.f32 %v2324, %v2542
        %v2603 = vadd.f32 %v2327, %v2545
        %v2604 = vadd.f32 %v2329, %v2547
        %v2605 = vadd.f32 %v2332, %v2550
        %v2606 = vadd.f32 %v2334, %v2552
        %v2607 = vadd.f32 %v2337, %v2555
        %v2608 = vadd.f32 %v2339, %v2557
        %v2609 = vadd.f32 %v2342, %v2560
        %v2610 = vadd.f32 %v2344, %v2562
        %v2611 = vadd.f32 %v2347, %v2565
        %v2612 = vadd.f32 %v2349, %v2567
        %v2613 = vadd.f32 %v2352, %v2570
        %v2614 = vadd.f32 %v2354, %v2572
        %v2615 = vadd.f32 %v2357, %v2575
        %v2616 = vadd.f32 %v2359, %v2577
        %v2617 = vadd.f32 %v2362, %v2580
        %v2618 = vadd.f32 %v2364, %v2582
        %v2619 = vadd.f32 %v2367, %v2585
        %v2620 = vadd.f32 %v2369, %v2587
        %v2621 = vld [vmem:[%s1903] sm:$0xff]
        %v2622 = vld [vmem:[%s1903 + $0x8] sm:$0xff]
        %v2623 = vld [vmem:[%s1903 + $0x18] sm:$0xff]
        %v2624 = vld [vmem:[%s1903 + $0x20] sm:$0xff]
        %v2625 = vld [vmem:[%s1903 + $0x30] sm:$0xff]
        %v2626 = vld [vmem:[%s1903 + $0x38] sm:$0xff]
        %v2627 = vld [vmem:[%s1903 + $0x48] sm:$0xff]
        %v2628 = vld [vmem:[%s1903 + $0x50] sm:$0xff]
        %v2629 = vld [vmem:[%s1903 + $0x60] sm:$0xff]
        %v2630 = vld [vmem:[%s1903 + $0x68] sm:$0xff]
        %v2631 = vld [vmem:[%s1903 + $0x78] sm:$0xff]
        %v2632 = vld [vmem:[%s1903 + $0x80] sm:$0xff]
        %v2633 = vld [vmem:[%s1903 + $0x90] sm:$0xff]
        %v2634 = vld [vmem:[%s1903 + $0x98] sm:$0xff]
        %v2635 = vld [vmem:[%s1903 + $0xa8] sm:$0xff]
        %v2636 = vld [vmem:[%s1903 + $0xb0] sm:$0xff]
        %v2637 = vld [vmem:[%s1903 + $0xc0] sm:$0xff]
        %v2638 = vld [vmem:[%s1903 + $0xc8] sm:$0xff]
        %v2639 = vld [vmem:[%s1903 + $0xd8] sm:$0xff]
        %v2640 = vld [vmem:[%s1903 + $0xe0] sm:$0xff]
        %v2641 = vld [vmem:[%s1903 + $0xf0] sm:$0xff]
        %v2642 = vld [vmem:[%s1903 + $0xf8] sm:$0xff]
        %v2643 = vld [vmem:[%s1903 + $0x108] sm:$0xff]
        %v2644 = vld [vmem:[%s1903 + $0x110] sm:$0xff]
        %v2645 = vld [vmem:[%s1903 + $0x120] sm:$0xff]
        %v2646 = vld [vmem:[%s1903 + $0x128] sm:$0xff]
        %v2647 = vld [vmem:[%s1903 + $0x138] sm:$0xff]
        %v2648 = vld [vmem:[%s1903 + $0x140] sm:$0xff]
        %v2649 = vld [vmem:[%s1903 + $0x150] sm:$0xff]
        %v2650 = vld [vmem:[%s1903 + $0x158] sm:$0xff]
        %v2651 = vld [vmem:[%s1903 + $0x168] sm:$0xff]
        %v2652 = vld [vmem:[%s1903 + $0x170] sm:$0xff]
        %v2653 = vpack.c.bf16 %v2622, %v2621
        %v2654 = vpack.c.bf16 %v2624, %v2623
        %v2655 = vpack.c.bf16 %v2626, %v2625
        %v2656 = vpack.c.bf16 %v2628, %v2627
        %v2657 = vpack.c.bf16 %v2630, %v2629
        %v2658 = vpack.c.bf16 %v2632, %v2631
        %v2659 = vpack.c.bf16 %v2634, %v2633
        %v2660 = vpack.c.bf16 %v2636, %v2635
        %v2661 = vpack.c.bf16 %v2638, %v2637
        %v2662 = vpack.c.bf16 %v2640, %v2639
        %v2663 = vpack.c.bf16 %v2642, %v2641
        %v2664 = vpack.c.bf16 %v2644, %v2643
        %v2665 = vpack.c.bf16 %v2646, %v2645
        %v2666 = vpack.c.bf16 %v2648, %v2647
        %v2667 = vpack.c.bf16 %v2650, %v2649
        %v2668 = vpack.c.bf16 %v2652, %v2651
        %s2669 = scalar_lea.vmem %s4, 96
        %v2670 = vld [vmem:[%s2669] sm:$0xf]
        %v2671 = vld [vmem:[%s2669 + $0x4] sm:$0xf]
        %v2672 = vld [vmem:[%s2669 + $0x8] sm:$0xf]
        %v2673 = vld [vmem:[%s2669 + $0xc] sm:$0xf]
        %v2674 = vld [vmem:[%s2669 + $0x10] sm:$0xf]
        %v2675 = vld [vmem:[%s2669 + $0x14] sm:$0xf]
        %v2676 = vld [vmem:[%s2669 + $0x18] sm:$0xf]
        %v2677 = vld [vmem:[%s2669 + $0x1c] sm:$0xf]
        %v2686 = vunpack.c.l.b16 %v2670
        %v2687 = vunpack.c.l.b16 %v2671
        %v2688 = vunpack.c.l.b16 %v2672
        %v2689 = vunpack.c.l.b16 %v2673
        %v2690 = vunpack.c.l.b16 %v2674
        %v2691 = vunpack.c.l.b16 %v2675
        %v2692 = vunpack.c.l.b16 %v2676
        %v2693 = vunpack.c.l.b16 %v2677
        %v2694 = vpack.c.b16 %v2687, %v2686
        %v2695 = vpack.c.b16 %v2689, %v2688
        %v2696 = vpack.c.b16 %v2691, %v2690
        %v2697 = vpack.c.b16 %v2693, %v2692
        %v2703 = vsel %vm1847, %v2653, 0
        %v2706 = vsel %vm1847, %v2654, 0
        %v2709 = vsel %vm1847, %v2655, 0
        %v2712 = vsel %vm1847, %v2656, 0
        %v2715 = vsel %vm1847, %v2657, 0
        %v2718 = vsel %vm1847, %v2658, 0
        %v2721 = vsel %vm1847, %v2659, 0
        %v2724 = vsel %vm1847, %v2660, 0
        %v2727 = vsel %vm1847, %v2661, 0
        %v2730 = vsel %vm1847, %v2662, 0
        %v2733 = vsel %vm1847, %v2663, 0
        %v2736 = vsel %vm1847, %v2664, 0
        %v2739 = vsel %vm1847, %v2665, 0
        %v2742 = vsel %vm1847, %v2666, 0
        %v2745 = vsel %vm1847, %v2667, 0
        %v2748 = vsel %vm1847, %v2668, 0
        %2750 = vmatpush.bf16.msra.mxu0 0
        %2751 = vmatpush.bf16.msra.mxu0 0
        %2752 = vmatpush.bf16.msra.mxu0 0
        %2753 = vmatpush.bf16.msra.mxu0 0
        %2754 = vmatpush.bf16.msra.mxu0 %v2697
        %2755 = vmatpush.bf16.msra.mxu0 %v2696
        %2756 = vmatpush.bf16.msra.mxu0 %v2695
        %2757 = vmatpush.bf16.msra.mxu0 %v2694
        %2758 = vmatmul.bf16.gmra.mxu0 %v2703
        %v2759 = vpop.f32.mrf.mxu0
        %v2760 = vadd.f32 0.0, %v2759
        %v2761 = vpop.f32.mrf.mxu0
        %v2762 = vadd.f32 0.0, %v2761
        %2763 = vmatmul.bf16.gmra.mxu0 %v2706
        %v2764 = vpop.f32.mrf.mxu0
        %v2765 = vadd.f32 0.0, %v2764
        %v2766 = vpop.f32.mrf.mxu0
        %v2767 = vadd.f32 0.0, %v2766
        %2768 = vmatmul.bf16.gmra.mxu0 %v2709
        %v2769 = vpop.f32.mrf.mxu0
        %v2770 = vadd.f32 0.0, %v2769
        %v2771 = vpop.f32.mrf.mxu0
        %v2772 = vadd.f32 0.0, %v2771
        %2773 = vmatmul.bf16.gmra.mxu0 %v2712
        %v2774 = vpop.f32.mrf.mxu0
        %v2775 = vadd.f32 0.0, %v2774
        %v2776 = vpop.f32.mrf.mxu0
        %v2777 = vadd.f32 0.0, %v2776
        %2778 = vmatmul.bf16.gmra.mxu0 %v2715
        %v2779 = vpop.f32.mrf.mxu0
        %v2780 = vadd.f32 0.0, %v2779
        %v2781 = vpop.f32.mrf.mxu0
        %v2782 = vadd.f32 0.0, %v2781
        %2783 = vmatmul.bf16.gmra.mxu0 %v2718
        %v2784 = vpop.f32.mrf.mxu0
        %v2785 = vadd.f32 0.0, %v2784
        %v2786 = vpop.f32.mrf.mxu0
        %v2787 = vadd.f32 0.0, %v2786
        %2788 = vmatmul.bf16.gmra.mxu0 %v2721
        %v2789 = vpop.f32.mrf.mxu0
        %v2790 = vadd.f32 0.0, %v2789
        %v2791 = vpop.f32.mrf.mxu0
        %v2792 = vadd.f32 0.0, %v2791
        %2793 = vmatmul.bf16.gmra.mxu0 %v2724
        %v2794 = vpop.f32.mrf.mxu0
        %v2795 = vadd.f32 0.0, %v2794
        %v2796 = vpop.f32.mrf.mxu0
        %v2797 = vadd.f32 0.0, %v2796
        %2798 = vmatmul.bf16.gmra.mxu0 %v2727
        %v2799 = vpop.f32.mrf.mxu0
        %v2800 = vadd.f32 0.0, %v2799
        %v2801 = vpop.f32.mrf.mxu0
        %v2802 = vadd.f32 0.0, %v2801
        %2803 = vmatmul.bf16.gmra.mxu0 %v2730
        %v2804 = vpop.f32.mrf.mxu0
        %v2805 = vadd.f32 0.0, %v2804
        %v2806 = vpop.f32.mrf.mxu0
        %v2807 = vadd.f32 0.0, %v2806
        %2808 = vmatmul.bf16.gmra.mxu0 %v2733
        %v2809 = vpop.f32.mrf.mxu0
        %v2810 = vadd.f32 0.0, %v2809
        %v2811 = vpop.f32.mrf.mxu0
        %v2812 = vadd.f32 0.0, %v2811
        %2813 = vmatmul.bf16.gmra.mxu0 %v2736
        %v2814 = vpop.f32.mrf.mxu0
        %v2815 = vadd.f32 0.0, %v2814
        %v2816 = vpop.f32.mrf.mxu0
        %v2817 = vadd.f32 0.0, %v2816
        %2818 = vmatmul.bf16.gmra.mxu0 %v2739
        %v2819 = vpop.f32.mrf.mxu0
        %v2820 = vadd.f32 0.0, %v2819
        %v2821 = vpop.f32.mrf.mxu0
        %v2822 = vadd.f32 0.0, %v2821
        %2823 = vmatmul.bf16.gmra.mxu0 %v2742
        %v2824 = vpop.f32.mrf.mxu0
        %v2825 = vadd.f32 0.0, %v2824
        %v2826 = vpop.f32.mrf.mxu0
        %v2827 = vadd.f32 0.0, %v2826
        %2828 = vmatmul.bf16.gmra.mxu0 %v2745
        %v2829 = vpop.f32.mrf.mxu0
        %v2830 = vadd.f32 0.0, %v2829
        %v2831 = vpop.f32.mrf.mxu0
        %v2832 = vadd.f32 0.0, %v2831
        %2833 = vmatmul.bf16.gmra.mxu0 %v2748
        %v2834 = vpop.f32.mrf.mxu0
        %v2835 = vadd.f32 0.0, %v2834
        %v2836 = vpop.f32.mrf.mxu0
        %v2837 = vadd.f32 0.0, %v2836
        %2838 = vdwg.mxu0
        %v2839 = vadd.f32 %v2589, %v2760
        %v2840 = vadd.f32 %v2590, %v2762
        %v2841 = vadd.f32 %v2591, %v2765
        %v2842 = vadd.f32 %v2592, %v2767
        %v2843 = vadd.f32 %v2593, %v2770
        %v2844 = vadd.f32 %v2594, %v2772
        %v2845 = vadd.f32 %v2595, %v2775
        %v2846 = vadd.f32 %v2596, %v2777
        %v2847 = vadd.f32 %v2597, %v2780
        %v2848 = vadd.f32 %v2598, %v2782
        %v2849 = vadd.f32 %v2599, %v2785
        %v2850 = vadd.f32 %v2600, %v2787
        %v2851 = vadd.f32 %v2601, %v2790
        %v2852 = vadd.f32 %v2602, %v2792
        %v2853 = vadd.f32 %v2603, %v2795
        %v2854 = vadd.f32 %v2604, %v2797
        %v2855 = vadd.f32 %v2605, %v2800
        %v2856 = vadd.f32 %v2606, %v2802
        %v2857 = vadd.f32 %v2607, %v2805
        %v2858 = vadd.f32 %v2608, %v2807
        %v2859 = vadd.f32 %v2609, %v2810
        %v2860 = vadd.f32 %v2610, %v2812
        %v2861 = vadd.f32 %v2611, %v2815
        %v2862 = vadd.f32 %v2612, %v2817
        %v2863 = vadd.f32 %v2613, %v2820
        %v2864 = vadd.f32 %v2614, %v2822
        %v2865 = vadd.f32 %v2615, %v2825
        %v2866 = vadd.f32 %v2616, %v2827
        %v2867 = vadd.f32 %v2617, %v2830
        %v2868 = vadd.f32 %v2618, %v2832
        %v2869 = vadd.f32 %v2619, %v2835
        %v2870 = vadd.f32 %v2620, %v2837
        %v2871 = vld [vmem:[%s1903 + $0x1] sm:$0xff]
        %v2872 = vld [vmem:[%s1903 + $0x9] sm:$0xff]
        %v2873 = vld [vmem:[%s1903 + $0x19] sm:$0xff]
        %v2874 = vld [vmem:[%s1903 + $0x21] sm:$0xff]
        %v2875 = vld [vmem:[%s1903 + $0x31] sm:$0xff]
        %v2876 = vld [vmem:[%s1903 + $0x39] sm:$0xff]
        %v2877 = vld [vmem:[%s1903 + $0x49] sm:$0xff]
        %v2878 = vld [vmem:[%s1903 + $0x51] sm:$0xff]
        %v2879 = vld [vmem:[%s1903 + $0x61] sm:$0xff]
        %v2880 = vld [vmem:[%s1903 + $0x69] sm:$0xff]
        %v2881 = vld [vmem:[%s1903 + $0x79] sm:$0xff]
        %v2882 = vld [vmem:[%s1903 + $0x81] sm:$0xff]
        %v2883 = vld [vmem:[%s1903 + $0x91] sm:$0xff]
        %v2884 = vld [vmem:[%s1903 + $0x99] sm:$0xff]
        %v2885 = vld [vmem:[%s1903 + $0xa9] sm:$0xff]
        %v2886 = vld [vmem:[%s1903 + $0xb1] sm:$0xff]
        %v2887 = vld [vmem:[%s1903 + $0xc1] sm:$0xff]
        %v2888 = vld [vmem:[%s1903 + $0xc9] sm:$0xff]
        %v2889 = vld [vmem:[%s1903 + $0xd9] sm:$0xff]
        %v2890 = vld [vmem:[%s1903 + $0xe1] sm:$0xff]
        %v2891 = vld [vmem:[%s1903 + $0xf1] sm:$0xff]
        %v2892 = vld [vmem:[%s1903 + $0xf9] sm:$0xff]
        %v2893 = vld [vmem:[%s1903 + $0x109] sm:$0xff]
        %v2894 = vld [vmem:[%s1903 + $0x111] sm:$0xff]
        %v2895 = vld [vmem:[%s1903 + $0x121] sm:$0xff]
        %v2896 = vld [vmem:[%s1903 + $0x129] sm:$0xff]
        %v2897 = vld [vmem:[%s1903 + $0x139] sm:$0xff]
        %v2898 = vld [vmem:[%s1903 + $0x141] sm:$0xff]
        %v2899 = vld [vmem:[%s1903 + $0x151] sm:$0xff]
        %v2900 = vld [vmem:[%s1903 + $0x159] sm:$0xff]
        %v2901 = vld [vmem:[%s1903 + $0x169] sm:$0xff]
        %v2902 = vld [vmem:[%s1903 + $0x171] sm:$0xff]
        %v2903 = vpack.c.bf16 %v2872, %v2871
        %v2904 = vpack.c.bf16 %v2874, %v2873
        %v2905 = vpack.c.bf16 %v2876, %v2875
        %v2906 = vpack.c.bf16 %v2878, %v2877
        %v2907 = vpack.c.bf16 %v2880, %v2879
        %v2908 = vpack.c.bf16 %v2882, %v2881
        %v2909 = vpack.c.bf16 %v2884, %v2883
        %v2910 = vpack.c.bf16 %v2886, %v2885
        %v2911 = vpack.c.bf16 %v2888, %v2887
        %v2912 = vpack.c.bf16 %v2890, %v2889
        %v2913 = vpack.c.bf16 %v2892, %v2891
        %v2914 = vpack.c.bf16 %v2894, %v2893
        %v2915 = vpack.c.bf16 %v2896, %v2895
        %v2916 = vpack.c.bf16 %v2898, %v2897
        %v2917 = vpack.c.bf16 %v2900, %v2899
        %v2918 = vpack.c.bf16 %v2902, %v2901
        %s2919 = scalar_lea.vmem %s4, 128
        %v2920 = vld [vmem:[%s2919] sm:$0xf]
        %v2921 = vld [vmem:[%s2919 + $0x4] sm:$0xf]
        %v2922 = vld [vmem:[%s2919 + $0x8] sm:$0xf]
        %v2923 = vld [vmem:[%s2919 + $0xc] sm:$0xf]
        %v2924 = vld [vmem:[%s2919 + $0x10] sm:$0xf]
        %v2925 = vld [vmem:[%s2919 + $0x14] sm:$0xf]
        %v2926 = vld [vmem:[%s2919 + $0x18] sm:$0xf]
        %v2927 = vld [vmem:[%s2919 + $0x1c] sm:$0xf]
        %v2936 = vunpack.c.l.b16 %v2920
        %v2937 = vunpack.c.l.b16 %v2921
        %v2938 = vunpack.c.l.b16 %v2922
        %v2939 = vunpack.c.l.b16 %v2923
        %v2940 = vunpack.c.l.b16 %v2924
        %v2941 = vunpack.c.l.b16 %v2925
        %v2942 = vunpack.c.l.b16 %v2926
        %v2943 = vunpack.c.l.b16 %v2927
        %v2944 = vpack.c.b16 %v2937, %v2936
        %v2945 = vpack.c.b16 %v2939, %v2938
        %v2946 = vpack.c.b16 %v2941, %v2940
        %v2947 = vpack.c.b16 %v2943, %v2942
        %v2953 = vsel %vm1847, %v2903, 0
        %v2956 = vsel %vm1847, %v2904, 0
        %v2959 = vsel %vm1847, %v2905, 0
        %v2962 = vsel %vm1847, %v2906, 0
        %v2965 = vsel %vm1847, %v2907, 0
        %v2968 = vsel %vm1847, %v2908, 0
        %v2971 = vsel %vm1847, %v2909, 0
        %v2974 = vsel %vm1847, %v2910, 0
        %v2977 = vsel %vm1847, %v2911, 0
        %v2980 = vsel %vm1847, %v2912, 0
        %v2983 = vsel %vm1847, %v2913, 0
        %v2986 = vsel %vm1847, %v2914, 0
        %v2989 = vsel %vm1847, %v2915, 0
        %v2992 = vsel %vm1847, %v2916, 0
        %v2995 = vsel %vm1847, %v2917, 0
        %v2998 = vsel %vm1847, %v2918, 0
        %3000 = vmatpush.bf16.msra.mxu0 0
        %3001 = vmatpush.bf16.msra.mxu0 0
        %3002 = vmatpush.bf16.msra.mxu0 0
        %3003 = vmatpush.bf16.msra.mxu0 0
        %3004 = vmatpush.bf16.msra.mxu0 %v2947
        %3005 = vmatpush.bf16.msra.mxu0 %v2946
        %3006 = vmatpush.bf16.msra.mxu0 %v2945
        %3007 = vmatpush.bf16.msra.mxu0 %v2944
        %3008 = vmatmul.bf16.gmra.mxu0 %v2953
        %v3009 = vpop.f32.mrf.mxu0
        %v3010 = vadd.f32 0.0, %v3009
        %v3011 = vpop.f32.mrf.mxu0
        %v3012 = vadd.f32 0.0, %v3011
        %3013 = vmatmul.bf16.gmra.mxu0 %v2956
        %v3014 = vpop.f32.mrf.mxu0
        %v3015 = vadd.f32 0.0, %v3014
        %v3016 = vpop.f32.mrf.mxu0
        %v3017 = vadd.f32 0.0, %v3016
        %3018 = vmatmul.bf16.gmra.mxu0 %v2959
        %v3019 = vpop.f32.mrf.mxu0
        %v3020 = vadd.f32 0.0, %v3019
        %v3021 = vpop.f32.mrf.mxu0
        %v3022 = vadd.f32 0.0, %v3021
        %3023 = vmatmul.bf16.gmra.mxu0 %v2962
        %v3024 = vpop.f32.mrf.mxu0
        %v3025 = vadd.f32 0.0, %v3024
        %v3026 = vpop.f32.mrf.mxu0
        %v3027 = vadd.f32 0.0, %v3026
        %3028 = vmatmul.bf16.gmra.mxu0 %v2965
        %v3029 = vpop.f32.mrf.mxu0
        %v3030 = vadd.f32 0.0, %v3029
        %v3031 = vpop.f32.mrf.mxu0
        %v3032 = vadd.f32 0.0, %v3031
        %3033 = vmatmul.bf16.gmra.mxu0 %v2968
        %v3034 = vpop.f32.mrf.mxu0
        %v3035 = vadd.f32 0.0, %v3034
        %v3036 = vpop.f32.mrf.mxu0
        %v3037 = vadd.f32 0.0, %v3036
        %3038 = vmatmul.bf16.gmra.mxu0 %v2971
        %v3039 = vpop.f32.mrf.mxu0
        %v3040 = vadd.f32 0.0, %v3039
        %v3041 = vpop.f32.mrf.mxu0
        %v3042 = vadd.f32 0.0, %v3041
        %3043 = vmatmul.bf16.gmra.mxu0 %v2974
        %v3044 = vpop.f32.mrf.mxu0
        %v3045 = vadd.f32 0.0, %v3044
        %v3046 = vpop.f32.mrf.mxu0
        %v3047 = vadd.f32 0.0, %v3046
        %3048 = vmatmul.bf16.gmra.mxu0 %v2977
        %v3049 = vpop.f32.mrf.mxu0
        %v3050 = vadd.f32 0.0, %v3049
        %v3051 = vpop.f32.mrf.mxu0
        %v3052 = vadd.f32 0.0, %v3051
        %3053 = vmatmul.bf16.gmra.mxu0 %v2980
        %v3054 = vpop.f32.mrf.mxu0
        %v3055 = vadd.f32 0.0, %v3054
        %v3056 = vpop.f32.mrf.mxu0
        %v3057 = vadd.f32 0.0, %v3056
        %3058 = vmatmul.bf16.gmra.mxu0 %v2983
        %v3059 = vpop.f32.mrf.mxu0
        %v3060 = vadd.f32 0.0, %v3059
        %v3061 = vpop.f32.mrf.mxu0
        %v3062 = vadd.f32 0.0, %v3061
        %3063 = vmatmul.bf16.gmra.mxu0 %v2986
        %v3064 = vpop.f32.mrf.mxu0
        %v3065 = vadd.f32 0.0, %v3064
        %v3066 = vpop.f32.mrf.mxu0
        %v3067 = vadd.f32 0.0, %v3066
        %3068 = vmatmul.bf16.gmra.mxu0 %v2989
        %v3069 = vpop.f32.mrf.mxu0
        %v3070 = vadd.f32 0.0, %v3069
        %v3071 = vpop.f32.mrf.mxu0
        %v3072 = vadd.f32 0.0, %v3071
        %3073 = vmatmul.bf16.gmra.mxu0 %v2992
        %v3074 = vpop.f32.mrf.mxu0
        %v3075 = vadd.f32 0.0, %v3074
        %v3076 = vpop.f32.mrf.mxu0
        %v3077 = vadd.f32 0.0, %v3076
        %3078 = vmatmul.bf16.gmra.mxu0 %v2995
        %v3079 = vpop.f32.mrf.mxu0
        %v3080 = vadd.f32 0.0, %v3079
        %v3081 = vpop.f32.mrf.mxu0
        %v3082 = vadd.f32 0.0, %v3081
        %3083 = vmatmul.bf16.gmra.mxu0 %v2998
        %v3084 = vpop.f32.mrf.mxu0
        %v3085 = vadd.f32 0.0, %v3084
        %v3086 = vpop.f32.mrf.mxu0
        %v3087 = vadd.f32 0.0, %v3086
        %3088 = vdwg.mxu0
        %v3089 = vadd.f32 %v2839, %v3010
        %v3090 = vadd.f32 %v2840, %v3012
        %v3091 = vadd.f32 %v2841, %v3015
        %v3092 = vadd.f32 %v2842, %v3017
        %v3093 = vadd.f32 %v2843, %v3020
        %v3094 = vadd.f32 %v2844, %v3022
        %v3095 = vadd.f32 %v2845, %v3025
        %v3096 = vadd.f32 %v2846, %v3027
        %v3097 = vadd.f32 %v2847, %v3030
        %v3098 = vadd.f32 %v2848, %v3032
        %v3099 = vadd.f32 %v2849, %v3035
        %v3100 = vadd.f32 %v2850, %v3037
        %v3101 = vadd.f32 %v2851, %v3040
        %v3102 = vadd.f32 %v2852, %v3042
        %v3103 = vadd.f32 %v2853, %v3045
        %v3104 = vadd.f32 %v2854, %v3047
        %v3105 = vadd.f32 %v2855, %v3050
        %v3106 = vadd.f32 %v2856, %v3052
        %v3107 = vadd.f32 %v2857, %v3055
        %v3108 = vadd.f32 %v2858, %v3057
        %v3109 = vadd.f32 %v2859, %v3060
        %v3110 = vadd.f32 %v2860, %v3062
        %v3111 = vadd.f32 %v2861, %v3065
        %v3112 = vadd.f32 %v2862, %v3067
        %v3113 = vadd.f32 %v2863, %v3070
        %v3114 = vadd.f32 %v2864, %v3072
        %v3115 = vadd.f32 %v2865, %v3075
        %v3116 = vadd.f32 %v2866, %v3077
        %v3117 = vadd.f32 %v2867, %v3080
        %v3118 = vadd.f32 %v2868, %v3082
        %v3119 = vadd.f32 %v2869, %v3085
        %v3120 = vadd.f32 %v2870, %v3087
        %v3121 = vld [vmem:[%s1903 + $0x2] sm:$0xff]
        %v3122 = vld [vmem:[%s1903 + $0xa] sm:$0xff]
        %v3123 = vld [vmem:[%s1903 + $0x1a] sm:$0xff]
        %v3124 = vld [vmem:[%s1903 + $0x22] sm:$0xff]
        %v3125 = vld [vmem:[%s1903 + $0x32] sm:$0xff]
        %v3126 = vld [vmem:[%s1903 + $0x3a] sm:$0xff]
        %v3127 = vld [vmem:[%s1903 + $0x4a] sm:$0xff]
        %v3128 = vld [vmem:[%s1903 + $0x52] sm:$0xff]
        %v3129 = vld [vmem:[%s1903 + $0x62] sm:$0xff]
        %v3130 = vld [vmem:[%s1903 + $0x6a] sm:$0xff]
        %v3131 = vld [vmem:[%s1903 + $0x7a] sm:$0xff]
        %v3132 = vld [vmem:[%s1903 + $0x82] sm:$0xff]
        %v3133 = vld [vmem:[%s1903 + $0x92] sm:$0xff]
        %v3134 = vld [vmem:[%s1903 + $0x9a] sm:$0xff]
        %v3135 = vld [vmem:[%s1903 + $0xaa] sm:$0xff]
        %v3136 = vld [vmem:[%s1903 + $0xb2] sm:$0xff]
        %v3137 = vld [vmem:[%s1903 + $0xc2] sm:$0xff]
        %v3138 = vld [vmem:[%s1903 + $0xca] sm:$0xff]
        %v3139 = vld [vmem:[%s1903 + $0xda] sm:$0xff]
        %v3140 = vld [vmem:[%s1903 + $0xe2] sm:$0xff]
        %v3141 = vld [vmem:[%s1903 + $0xf2] sm:$0xff]
        %v3142 = vld [vmem:[%s1903 + $0xfa] sm:$0xff]
        %v3143 = vld [vmem:[%s1903 + $0x10a] sm:$0xff]
        %v3144 = vld [vmem:[%s1903 + $0x112] sm:$0xff]
        %v3145 = vld [vmem:[%s1903 + $0x122] sm:$0xff]
        %v3146 = vld [vmem:[%s1903 + $0x12a] sm:$0xff]
        %v3147 = vld [vmem:[%s1903 + $0x13a] sm:$0xff]
        %v3148 = vld [vmem:[%s1903 + $0x142] sm:$0xff]
        %v3149 = vld [vmem:[%s1903 + $0x152] sm:$0xff]
        %v3150 = vld [vmem:[%s1903 + $0x15a] sm:$0xff]
        %v3151 = vld [vmem:[%s1903 + $0x16a] sm:$0xff]
        %v3152 = vld [vmem:[%s1903 + $0x172] sm:$0xff]
        %v3153 = vpack.c.bf16 %v3122, %v3121
        %v3154 = vpack.c.bf16 %v3124, %v3123
        %v3155 = vpack.c.bf16 %v3126, %v3125
        %v3156 = vpack.c.bf16 %v3128, %v3127
        %v3157 = vpack.c.bf16 %v3130, %v3129
        %v3158 = vpack.c.bf16 %v3132, %v3131
        %v3159 = vpack.c.bf16 %v3134, %v3133
        %v3160 = vpack.c.bf16 %v3136, %v3135
        %v3161 = vpack.c.bf16 %v3138, %v3137
        %v3162 = vpack.c.bf16 %v3140, %v3139
        %v3163 = vpack.c.bf16 %v3142, %v3141
        %v3164 = vpack.c.bf16 %v3144, %v3143
        %v3165 = vpack.c.bf16 %v3146, %v3145
        %v3166 = vpack.c.bf16 %v3148, %v3147
        %v3167 = vpack.c.bf16 %v3150, %v3149
        %v3168 = vpack.c.bf16 %v3152, %v3151
        %s3169 = scalar_lea.vmem %s4, 160
        %v3170 = vld [vmem:[%s3169] sm:$0xf]
        %v3171 = vld [vmem:[%s3169 + $0x4] sm:$0xf]
        %v3172 = vld [vmem:[%s3169 + $0x8] sm:$0xf]
        %v3173 = vld [vmem:[%s3169 + $0xc] sm:$0xf]
        %v3174 = vld [vmem:[%s3169 + $0x10] sm:$0xf]
        %v3175 = vld [vmem:[%s3169 + $0x14] sm:$0xf]
        %v3176 = vld [vmem:[%s3169 + $0x18] sm:$0xf]
        %v3177 = vld [vmem:[%s3169 + $0x1c] sm:$0xf]
        %v3186 = vunpack.c.l.b16 %v3170
        %v3187 = vunpack.c.l.b16 %v3171
        %v3188 = vunpack.c.l.b16 %v3172
        %v3189 = vunpack.c.l.b16 %v3173
        %v3190 = vunpack.c.l.b16 %v3174
        %v3191 = vunpack.c.l.b16 %v3175
        %v3192 = vunpack.c.l.b16 %v3176
        %v3193 = vunpack.c.l.b16 %v3177
        %v3194 = vpack.c.b16 %v3187, %v3186
        %v3195 = vpack.c.b16 %v3189, %v3188
        %v3196 = vpack.c.b16 %v3191, %v3190
        %v3197 = vpack.c.b16 %v3193, %v3192
        %v3203 = vsel %vm1847, %v3153, 0
        %v3206 = vsel %vm1847, %v3154, 0
        %v3209 = vsel %vm1847, %v3155, 0
        %v3212 = vsel %vm1847, %v3156, 0
        %v3215 = vsel %vm1847, %v3157, 0
        %v3218 = vsel %vm1847, %v3158, 0
        %v3221 = vsel %vm1847, %v3159, 0
        %v3224 = vsel %vm1847, %v3160, 0
        %v3227 = vsel %vm1847, %v3161, 0
        %v3230 = vsel %vm1847, %v3162, 0
        %v3233 = vsel %vm1847, %v3163, 0
        %v3236 = vsel %vm1847, %v3164, 0
        %v3239 = vsel %vm1847, %v3165, 0
        %v3242 = vsel %vm1847, %v3166, 0
        %v3245 = vsel %vm1847, %v3167, 0
        %v3248 = vsel %vm1847, %v3168, 0
        %3250 = vmatpush.bf16.msra.mxu0 0
        %3251 = vmatpush.bf16.msra.mxu0 0
        %3252 = vmatpush.bf16.msra.mxu0 0
        %3253 = vmatpush.bf16.msra.mxu0 0
        %3254 = vmatpush.bf16.msra.mxu0 %v3197
        %3255 = vmatpush.bf16.msra.mxu0 %v3196
        %3256 = vmatpush.bf16.msra.mxu0 %v3195
        %3257 = vmatpush.bf16.msra.mxu0 %v3194
        %3258 = vmatmul.bf16.gmra.mxu0 %v3203
        %v3259 = vpop.f32.mrf.mxu0
        %v3260 = vadd.f32 0.0, %v3259
        %v3261 = vpop.f32.mrf.mxu0
        %v3262 = vadd.f32 0.0, %v3261
        %3263 = vmatmul.bf16.gmra.mxu0 %v3206
        %v3264 = vpop.f32.mrf.mxu0
        %v3265 = vadd.f32 0.0, %v3264
        %v3266 = vpop.f32.mrf.mxu0
        %v3267 = vadd.f32 0.0, %v3266
        %3268 = vmatmul.bf16.gmra.mxu0 %v3209
        %v3269 = vpop.f32.mrf.mxu0
        %v3270 = vadd.f32 0.0, %v3269
        %v3271 = vpop.f32.mrf.mxu0
        %v3272 = vadd.f32 0.0, %v3271
        %3273 = vmatmul.bf16.gmra.mxu0 %v3212
        %v3274 = vpop.f32.mrf.mxu0
        %v3275 = vadd.f32 0.0, %v3274
        %v3276 = vpop.f32.mrf.mxu0
        %v3277 = vadd.f32 0.0, %v3276
        %3278 = vmatmul.bf16.gmra.mxu0 %v3215
        %v3279 = vpop.f32.mrf.mxu0
        %v3280 = vadd.f32 0.0, %v3279
        %v3281 = vpop.f32.mrf.mxu0
        %v3282 = vadd.f32 0.0, %v3281
        %3283 = vmatmul.bf16.gmra.mxu0 %v3218
        %v3284 = vpop.f32.mrf.mxu0
        %v3285 = vadd.f32 0.0, %v3284
        %v3286 = vpop.f32.mrf.mxu0
        %v3287 = vadd.f32 0.0, %v3286
        %3288 = vmatmul.bf16.gmra.mxu0 %v3221
        %v3289 = vpop.f32.mrf.mxu0
        %v3290 = vadd.f32 0.0, %v3289
        %v3291 = vpop.f32.mrf.mxu0
        %v3292 = vadd.f32 0.0, %v3291
        %3293 = vmatmul.bf16.gmra.mxu0 %v3224
        %v3294 = vpop.f32.mrf.mxu0
        %v3295 = vadd.f32 0.0, %v3294
        %v3296 = vpop.f32.mrf.mxu0
        %v3297 = vadd.f32 0.0, %v3296
        %3298 = vmatmul.bf16.gmra.mxu0 %v3227
        %v3299 = vpop.f32.mrf.mxu0
        %v3300 = vadd.f32 0.0, %v3299
        %v3301 = vpop.f32.mrf.mxu0
        %v3302 = vadd.f32 0.0, %v3301
        %3303 = vmatmul.bf16.gmra.mxu0 %v3230
        %v3304 = vpop.f32.mrf.mxu0
        %v3305 = vadd.f32 0.0, %v3304
        %v3306 = vpop.f32.mrf.mxu0
        %v3307 = vadd.f32 0.0, %v3306
        %3308 = vmatmul.bf16.gmra.mxu0 %v3233
        %v3309 = vpop.f32.mrf.mxu0
        %v3310 = vadd.f32 0.0, %v3309
        %v3311 = vpop.f32.mrf.mxu0
        %v3312 = vadd.f32 0.0, %v3311
        %3313 = vmatmul.bf16.gmra.mxu0 %v3236
        %v3314 = vpop.f32.mrf.mxu0
        %v3315 = vadd.f32 0.0, %v3314
        %v3316 = vpop.f32.mrf.mxu0
        %v3317 = vadd.f32 0.0, %v3316
        %3318 = vmatmul.bf16.gmra.mxu0 %v3239
        %v3319 = vpop.f32.mrf.mxu0
        %v3320 = vadd.f32 0.0, %v3319
        %v3321 = vpop.f32.mrf.mxu0
        %v3322 = vadd.f32 0.0, %v3321
        %3323 = vmatmul.bf16.gmra.mxu0 %v3242
        %v3324 = vpop.f32.mrf.mxu0
        %v3325 = vadd.f32 0.0, %v3324
        %v3326 = vpop.f32.mrf.mxu0
        %v3327 = vadd.f32 0.0, %v3326
        %3328 = vmatmul.bf16.gmra.mxu0 %v3245
        %v3329 = vpop.f32.mrf.mxu0
        %v3330 = vadd.f32 0.0, %v3329
        %v3331 = vpop.f32.mrf.mxu0
        %v3332 = vadd.f32 0.0, %v3331
        %3333 = vmatmul.bf16.gmra.mxu0 %v3248
        %v3334 = vpop.f32.mrf.mxu0
        %v3335 = vadd.f32 0.0, %v3334
        %v3336 = vpop.f32.mrf.mxu0
        %v3337 = vadd.f32 0.0, %v3336
        %3338 = vdwg.mxu0
        %v3339 = vadd.f32 %v3089, %v3260
        %v3340 = vadd.f32 %v3090, %v3262
        %v3341 = vadd.f32 %v3091, %v3265
        %v3342 = vadd.f32 %v3092, %v3267
        %v3343 = vadd.f32 %v3093, %v3270
        %v3344 = vadd.f32 %v3094, %v3272
        %v3345 = vadd.f32 %v3095, %v3275
        %v3346 = vadd.f32 %v3096, %v3277
        %v3347 = vadd.f32 %v3097, %v3280
        %v3348 = vadd.f32 %v3098, %v3282
        %v3349 = vadd.f32 %v3099, %v3285
        %v3350 = vadd.f32 %v3100, %v3287
        %v3351 = vadd.f32 %v3101, %v3290
        %v3352 = vadd.f32 %v3102, %v3292
        %v3353 = vadd.f32 %v3103, %v3295
        %v3354 = vadd.f32 %v3104, %v3297
        %v3355 = vadd.f32 %v3105, %v3300
        %v3356 = vadd.f32 %v3106, %v3302
        %v3357 = vadd.f32 %v3107, %v3305
        %v3358 = vadd.f32 %v3108, %v3307
        %v3359 = vadd.f32 %v3109, %v3310
        %v3360 = vadd.f32 %v3110, %v3312
        %v3361 = vadd.f32 %v3111, %v3315
        %v3362 = vadd.f32 %v3112, %v3317
        %v3363 = vadd.f32 %v3113, %v3320
        %v3364 = vadd.f32 %v3114, %v3322
        %v3365 = vadd.f32 %v3115, %v3325
        %v3366 = vadd.f32 %v3116, %v3327
        %v3367 = vadd.f32 %v3117, %v3330
        %v3368 = vadd.f32 %v3118, %v3332
        %v3369 = vadd.f32 %v3119, %v3335
        %v3370 = vadd.f32 %v3120, %v3337
        %s3371 = scalar_lea.vmem [#allocation2], 48
        %v3372 = vld [vmem:[%s3371] sm:$0xff]
        %v3373 = vld [vmem:[%s3371 + $0x8] sm:$0xff]
        %v3374 = vld [vmem:[%s3371 + $0x18] sm:$0xff]
        %v3375 = vld [vmem:[%s3371 + $0x20] sm:$0xff]
        %v3376 = vld [vmem:[%s3371 + $0x30] sm:$0xff]
        %v3377 = vld [vmem:[%s3371 + $0x38] sm:$0xff]
        %v3378 = vld [vmem:[%s3371 + $0x48] sm:$0xff]
        %v3379 = vld [vmem:[%s3371 + $0x50] sm:$0xff]
        %v3380 = vld [vmem:[%s3371 + $0x60] sm:$0xff]
        %v3381 = vld [vmem:[%s3371 + $0x68] sm:$0xff]
        %v3382 = vld [vmem:[%s3371 + $0x78] sm:$0xff]
        %v3383 = vld [vmem:[%s3371 + $0x80] sm:$0xff]
        %v3384 = vld [vmem:[%s3371 + $0x90] sm:$0xff]
        %v3385 = vld [vmem:[%s3371 + $0x98] sm:$0xff]
        %v3386 = vld [vmem:[%s3371 + $0xa8] sm:$0xff]
        %v3387 = vld [vmem:[%s3371 + $0xb0] sm:$0xff]
        %v3388 = vld [vmem:[%s3371 + $0xc0] sm:$0xff]
        %v3389 = vld [vmem:[%s3371 + $0xc8] sm:$0xff]
        %v3390 = vld [vmem:[%s3371 + $0xd8] sm:$0xff]
        %v3391 = vld [vmem:[%s3371 + $0xe0] sm:$0xff]
        %v3392 = vld [vmem:[%s3371 + $0xf0] sm:$0xff]
        %v3393 = vld [vmem:[%s3371 + $0xf8] sm:$0xff]
        %v3394 = vld [vmem:[%s3371 + $0x108] sm:$0xff]
        %v3395 = vld [vmem:[%s3371 + $0x110] sm:$0xff]
        %v3396 = vld [vmem:[%s3371 + $0x120] sm:$0xff]
        %v3397 = vld [vmem:[%s3371 + $0x128] sm:$0xff]
        %v3398 = vld [vmem:[%s3371 + $0x138] sm:$0xff]
        %v3399 = vld [vmem:[%s3371 + $0x140] sm:$0xff]
        %v3400 = vld [vmem:[%s3371 + $0x150] sm:$0xff]
        %v3401 = vld [vmem:[%s3371 + $0x158] sm:$0xff]
        %v3402 = vld [vmem:[%s3371 + $0x168] sm:$0xff]
        %v3403 = vld [vmem:[%s3371 + $0x170] sm:$0xff]
        %v3404 = vpack.c.bf16 %v3373, %v3372
        %v3405 = vpack.c.bf16 %v3375, %v3374
        %v3406 = vpack.c.bf16 %v3377, %v3376
        %v3407 = vpack.c.bf16 %v3379, %v3378
        %v3408 = vpack.c.bf16 %v3381, %v3380
        %v3409 = vpack.c.bf16 %v3383, %v3382
        %v3410 = vpack.c.bf16 %v3385, %v3384
        %v3411 = vpack.c.bf16 %v3387, %v3386
        %v3412 = vpack.c.bf16 %v3389, %v3388
        %v3413 = vpack.c.bf16 %v3391, %v3390
        %v3414 = vpack.c.bf16 %v3393, %v3392
        %v3415 = vpack.c.bf16 %v3395, %v3394
        %v3416 = vpack.c.bf16 %v3397, %v3396
        %v3417 = vpack.c.bf16 %v3399, %v3398
        %v3418 = vpack.c.bf16 %v3401, %v3400
        %v3419 = vpack.c.bf16 %v3403, %v3402
        %s3420 = scalar_lea.vmem %s4, 192
        %v3421 = vld [vmem:[%s3420] sm:$0xf]
        %v3422 = vld [vmem:[%s3420 + $0x4] sm:$0xf]
        %v3423 = vld [vmem:[%s3420 + $0x8] sm:$0xf]
        %v3424 = vld [vmem:[%s3420 + $0xc] sm:$0xf]
        %v3425 = vld [vmem:[%s3420 + $0x10] sm:$0xf]
        %v3426 = vld [vmem:[%s3420 + $0x14] sm:$0xf]
        %v3427 = vld [vmem:[%s3420 + $0x18] sm:$0xf]
        %v3428 = vld [vmem:[%s3420 + $0x1c] sm:$0xf]
        %v3437 = vunpack.c.l.b16 %v3421
        %v3438 = vunpack.c.l.b16 %v3422
        %v3439 = vunpack.c.l.b16 %v3423
        %v3440 = vunpack.c.l.b16 %v3424
        %v3441 = vunpack.c.l.b16 %v3425
        %v3442 = vunpack.c.l.b16 %v3426
        %v3443 = vunpack.c.l.b16 %v3427
        %v3444 = vunpack.c.l.b16 %v3428
        %v3445 = vpack.c.b16 %v3438, %v3437
        %v3446 = vpack.c.b16 %v3440, %v3439
        %v3447 = vpack.c.b16 %v3442, %v3441
        %v3448 = vpack.c.b16 %v3444, %v3443
        %v3454 = vsel %vm1847, %v3404, 0
        %v3457 = vsel %vm1847, %v3405, 0
        %v3460 = vsel %vm1847, %v3406, 0
        %v3463 = vsel %vm1847, %v3407, 0
        %v3466 = vsel %vm1847, %v3408, 0
        %v3469 = vsel %vm1847, %v3409, 0
        %v3472 = vsel %vm1847, %v3410, 0
        %v3475 = vsel %vm1847, %v3411, 0
        %v3478 = vsel %vm1847, %v3412, 0
        %v3481 = vsel %vm1847, %v3413, 0
        %v3484 = vsel %vm1847, %v3414, 0
        %v3487 = vsel %vm1847, %v3415, 0
        %v3490 = vsel %vm1847, %v3416, 0
        %v3493 = vsel %vm1847, %v3417, 0
        %v3496 = vsel %vm1847, %v3418, 0
        %v3499 = vsel %vm1847, %v3419, 0
        %3501 = vmatpush.bf16.msra.mxu0 0
        %3502 = vmatpush.bf16.msra.mxu0 0
        %3503 = vmatpush.bf16.msra.mxu0 0
        %3504 = vmatpush.bf16.msra.mxu0 0
        %3505 = vmatpush.bf16.msra.mxu0 %v3448
        %3506 = vmatpush.bf16.msra.mxu0 %v3447
        %3507 = vmatpush.bf16.msra.mxu0 %v3446
        %3508 = vmatpush.bf16.msra.mxu0 %v3445
        %3509 = vmatmul.bf16.gmra.mxu0 %v3454
        %v3510 = vpop.f32.mrf.mxu0
        %v3511 = vadd.f32 0.0, %v3510
        %v3512 = vpop.f32.mrf.mxu0
        %v3513 = vadd.f32 0.0, %v3512
        %3514 = vmatmul.bf16.gmra.mxu0 %v3457
        %v3515 = vpop.f32.mrf.mxu0
        %v3516 = vadd.f32 0.0, %v3515
        %v3517 = vpop.f32.mrf.mxu0
        %v3518 = vadd.f32 0.0, %v3517
        %3519 = vmatmul.bf16.gmra.mxu0 %v3460
        %v3520 = vpop.f32.mrf.mxu0
        %v3521 = vadd.f32 0.0, %v3520
        %v3522 = vpop.f32.mrf.mxu0
        %v3523 = vadd.f32 0.0, %v3522
        %3524 = vmatmul.bf16.gmra.mxu0 %v3463
        %v3525 = vpop.f32.mrf.mxu0
        %v3526 = vadd.f32 0.0, %v3525
        %v3527 = vpop.f32.mrf.mxu0
        %v3528 = vadd.f32 0.0, %v3527
        %3529 = vmatmul.bf16.gmra.mxu0 %v3466
        %v3530 = vpop.f32.mrf.mxu0
        %v3531 = vadd.f32 0.0, %v3530
        %v3532 = vpop.f32.mrf.mxu0
        %v3533 = vadd.f32 0.0, %v3532
        %3534 = vmatmul.bf16.gmra.mxu0 %v3469
        %v3535 = vpop.f32.mrf.mxu0
        %v3536 = vadd.f32 0.0, %v3535
        %v3537 = vpop.f32.mrf.mxu0
        %v3538 = vadd.f32 0.0, %v3537
        %3539 = vmatmul.bf16.gmra.mxu0 %v3472
        %v3540 = vpop.f32.mrf.mxu0
        %v3541 = vadd.f32 0.0, %v3540
        %v3542 = vpop.f32.mrf.mxu0
        %v3543 = vadd.f32 0.0, %v3542
        %3544 = vmatmul.bf16.gmra.mxu0 %v3475
        %v3545 = vpop.f32.mrf.mxu0
        %v3546 = vadd.f32 0.0, %v3545
        %v3547 = vpop.f32.mrf.mxu0
        %v3548 = vadd.f32 0.0, %v3547
        %3549 = vmatmul.bf16.gmra.mxu0 %v3478
        %v3550 = vpop.f32.mrf.mxu0
        %v3551 = vadd.f32 0.0, %v3550
        %v3552 = vpop.f32.mrf.mxu0
        %v3553 = vadd.f32 0.0, %v3552
        %3554 = vmatmul.bf16.gmra.mxu0 %v3481
        %v3555 = vpop.f32.mrf.mxu0
        %v3556 = vadd.f32 0.0, %v3555
        %v3557 = vpop.f32.mrf.mxu0
        %v3558 = vadd.f32 0.0, %v3557
        %3559 = vmatmul.bf16.gmra.mxu0 %v3484
        %v3560 = vpop.f32.mrf.mxu0
        %v3561 = vadd.f32 0.0, %v3560
        %v3562 = vpop.f32.mrf.mxu0
        %v3563 = vadd.f32 0.0, %v3562
        %3564 = vmatmul.bf16.gmra.mxu0 %v3487
        %v3565 = vpop.f32.mrf.mxu0
        %v3566 = vadd.f32 0.0, %v3565
        %v3567 = vpop.f32.mrf.mxu0
        %v3568 = vadd.f32 0.0, %v3567
        %3569 = vmatmul.bf16.gmra.mxu0 %v3490
        %v3570 = vpop.f32.mrf.mxu0
        %v3571 = vadd.f32 0.0, %v3570
        %v3572 = vpop.f32.mrf.mxu0
        %v3573 = vadd.f32 0.0, %v3572
        %3574 = vmatmul.bf16.gmra.mxu0 %v3493
        %v3575 = vpop.f32.mrf.mxu0
        %v3576 = vadd.f32 0.0, %v3575
        %v3577 = vpop.f32.mrf.mxu0
        %v3578 = vadd.f32 0.0, %v3577
        %3579 = vmatmul.bf16.gmra.mxu0 %v3496
        %v3580 = vpop.f32.mrf.mxu0
        %v3581 = vadd.f32 0.0, %v3580
        %v3582 = vpop.f32.mrf.mxu0
        %v3583 = vadd.f32 0.0, %v3582
        %3584 = vmatmul.bf16.gmra.mxu0 %v3499
        %v3585 = vpop.f32.mrf.mxu0
        %v3586 = vadd.f32 0.0, %v3585
        %v3587 = vpop.f32.mrf.mxu0
        %v3588 = vadd.f32 0.0, %v3587
        %3589 = vdwg.mxu0
        %v3590 = vadd.f32 %v3339, %v3511
        %v3591 = vadd.f32 %v3340, %v3513
        %v3592 = vadd.f32 %v3341, %v3516
        %v3593 = vadd.f32 %v3342, %v3518
        %v3594 = vadd.f32 %v3343, %v3521
        %v3595 = vadd.f32 %v3344, %v3523
        %v3596 = vadd.f32 %v3345, %v3526
        %v3597 = vadd.f32 %v3346, %v3528
        %v3598 = vadd.f32 %v3347, %v3531
        %v3599 = vadd.f32 %v3348, %v3533
        %v3600 = vadd.f32 %v3349, %v3536
        %v3601 = vadd.f32 %v3350, %v3538
        %v3602 = vadd.f32 %v3351, %v3541
        %v3603 = vadd.f32 %v3352, %v3543
        %v3604 = vadd.f32 %v3353, %v3546
        %v3605 = vadd.f32 %v3354, %v3548
        %v3606 = vadd.f32 %v3355, %v3551
        %v3607 = vadd.f32 %v3356, %v3553
        %v3608 = vadd.f32 %v3357, %v3556
        %v3609 = vadd.f32 %v3358, %v3558
        %v3610 = vadd.f32 %v3359, %v3561
        %v3611 = vadd.f32 %v3360, %v3563
        %v3612 = vadd.f32 %v3361, %v3566
        %v3613 = vadd.f32 %v3362, %v3568
        %v3614 = vadd.f32 %v3363, %v3571
        %v3615 = vadd.f32 %v3364, %v3573
        %v3616 = vadd.f32 %v3365, %v3576
        %v3617 = vadd.f32 %v3366, %v3578
        %v3618 = vadd.f32 %v3367, %v3581
        %v3619 = vadd.f32 %v3368, %v3583
        %v3620 = vadd.f32 %v3369, %v3586
        %v3621 = vadd.f32 %v3370, %v3588
        %v3622 = vld [vmem:[%s3371 + $0x1] sm:$0xff]
        %v3623 = vld [vmem:[%s3371 + $0x9] sm:$0xff]
        %v3624 = vld [vmem:[%s3371 + $0x19] sm:$0xff]
        %v3625 = vld [vmem:[%s3371 + $0x21] sm:$0xff]
        %v3626 = vld [vmem:[%s3371 + $0x31] sm:$0xff]
        %v3627 = vld [vmem:[%s3371 + $0x39] sm:$0xff]
        %v3628 = vld [vmem:[%s3371 + $0x49] sm:$0xff]
        %v3629 = vld [vmem:[%s3371 + $0x51] sm:$0xff]
        %v3630 = vld [vmem:[%s3371 + $0x61] sm:$0xff]
        %v3631 = vld [vmem:[%s3371 + $0x69] sm:$0xff]
        %v3632 = vld [vmem:[%s3371 + $0x79] sm:$0xff]
        %v3633 = vld [vmem:[%s3371 + $0x81] sm:$0xff]
        %v3634 = vld [vmem:[%s3371 + $0x91] sm:$0xff]
        %v3635 = vld [vmem:[%s3371 + $0x99] sm:$0xff]
        %v3636 = vld [vmem:[%s3371 + $0xa9] sm:$0xff]
        %v3637 = vld [vmem:[%s3371 + $0xb1] sm:$0xff]
        %v3638 = vld [vmem:[%s3371 + $0xc1] sm:$0xff]
        %v3639 = vld [vmem:[%s3371 + $0xc9] sm:$0xff]
        %v3640 = vld [vmem:[%s3371 + $0xd9] sm:$0xff]
        %v3641 = vld [vmem:[%s3371 + $0xe1] sm:$0xff]
        %v3642 = vld [vmem:[%s3371 + $0xf1] sm:$0xff]
        %v3643 = vld [vmem:[%s3371 + $0xf9] sm:$0xff]
        %v3644 = vld [vmem:[%s3371 + $0x109] sm:$0xff]
        %v3645 = vld [vmem:[%s3371 + $0x111] sm:$0xff]
        %v3646 = vld [vmem:[%s3371 + $0x121] sm:$0xff]
        %v3647 = vld [vmem:[%s3371 + $0x129] sm:$0xff]
        %v3648 = vld [vmem:[%s3371 + $0x139] sm:$0xff]
        %v3649 = vld [vmem:[%s3371 + $0x141] sm:$0xff]
        %v3650 = vld [vmem:[%s3371 + $0x151] sm:$0xff]
        %v3651 = vld [vmem:[%s3371 + $0x159] sm:$0xff]
        %v3652 = vld [vmem:[%s3371 + $0x169] sm:$0xff]
        %v3653 = vld [vmem:[%s3371 + $0x171] sm:$0xff]
        %v3654 = vpack.c.bf16 %v3623, %v3622
        %v3655 = vpack.c.bf16 %v3625, %v3624
        %v3656 = vpack.c.bf16 %v3627, %v3626
        %v3657 = vpack.c.bf16 %v3629, %v3628
        %v3658 = vpack.c.bf16 %v3631, %v3630
        %v3659 = vpack.c.bf16 %v3633, %v3632
        %v3660 = vpack.c.bf16 %v3635, %v3634
        %v3661 = vpack.c.bf16 %v3637, %v3636
        %v3662 = vpack.c.bf16 %v3639, %v3638
        %v3663 = vpack.c.bf16 %v3641, %v3640
        %v3664 = vpack.c.bf16 %v3643, %v3642
        %v3665 = vpack.c.bf16 %v3645, %v3644
        %v3666 = vpack.c.bf16 %v3647, %v3646
        %v3667 = vpack.c.bf16 %v3649, %v3648
        %v3668 = vpack.c.bf16 %v3651, %v3650
        %v3669 = vpack.c.bf16 %v3653, %v3652
        %s3670 = scalar_lea.vmem %s4, 224
        %v3671 = vld [vmem:[%s3670] sm:$0xf]
        %v3672 = vld [vmem:[%s3670 + $0x4] sm:$0xf]
        %v3673 = vld [vmem:[%s3670 + $0x8] sm:$0xf]
        %v3674 = vld [vmem:[%s3670 + $0xc] sm:$0xf]
        %v3675 = vld [vmem:[%s3670 + $0x10] sm:$0xf]
        %v3676 = vld [vmem:[%s3670 + $0x14] sm:$0xf]
        %v3677 = vld [vmem:[%s3670 + $0x18] sm:$0xf]
        %v3678 = vld [vmem:[%s3670 + $0x1c] sm:$0xf]
        %v3687 = vunpack.c.l.b16 %v3671
        %v3688 = vunpack.c.l.b16 %v3672
        %v3689 = vunpack.c.l.b16 %v3673
        %v3690 = vunpack.c.l.b16 %v3674
        %v3691 = vunpack.c.l.b16 %v3675
        %v3692 = vunpack.c.l.b16 %v3676
        %v3693 = vunpack.c.l.b16 %v3677
        %v3694 = vunpack.c.l.b16 %v3678
        %v3695 = vpack.c.b16 %v3688, %v3687
        %v3696 = vpack.c.b16 %v3690, %v3689
        %v3697 = vpack.c.b16 %v3692, %v3691
        %v3698 = vpack.c.b16 %v3694, %v3693
        %v3704 = vsel %vm1847, %v3654, 0
        %v3707 = vsel %vm1847, %v3655, 0
        %v3710 = vsel %vm1847, %v3656, 0
        %v3713 = vsel %vm1847, %v3657, 0
        %v3716 = vsel %vm1847, %v3658, 0
        %v3719 = vsel %vm1847, %v3659, 0
        %v3722 = vsel %vm1847, %v3660, 0
        %v3725 = vsel %vm1847, %v3661, 0
        %v3728 = vsel %vm1847, %v3662, 0
        %v3731 = vsel %vm1847, %v3663, 0
        %v3734 = vsel %vm1847, %v3664, 0
        %v3737 = vsel %vm1847, %v3665, 0
        %v3740 = vsel %vm1847, %v3666, 0
        %v3743 = vsel %vm1847, %v3667, 0
        %v3746 = vsel %vm1847, %v3668, 0
        %v3749 = vsel %vm1847, %v3669, 0
        %3751 = vmatpush.bf16.msra.mxu0 0
        %3752 = vmatpush.bf16.msra.mxu0 0
        %3753 = vmatpush.bf16.msra.mxu0 0
        %3754 = vmatpush.bf16.msra.mxu0 0
        %3755 = vmatpush.bf16.msra.mxu0 %v3698
        %3756 = vmatpush.bf16.msra.mxu0 %v3697
        %3757 = vmatpush.bf16.msra.mxu0 %v3696
        %3758 = vmatpush.bf16.msra.mxu0 %v3695
        %3759 = vmatmul.bf16.gmra.mxu0 %v3704
        %v3760 = vpop.f32.mrf.mxu0
        %v3761 = vadd.f32 0.0, %v3760
        %v3762 = vpop.f32.mrf.mxu0
        %v3763 = vadd.f32 0.0, %v3762
        %3764 = vmatmul.bf16.gmra.mxu0 %v3707
        %v3765 = vpop.f32.mrf.mxu0
        %v3766 = vadd.f32 0.0, %v3765
        %v3767 = vpop.f32.mrf.mxu0
        %v3768 = vadd.f32 0.0, %v3767
        %3769 = vmatmul.bf16.gmra.mxu0 %v3710
        %v3770 = vpop.f32.mrf.mxu0
        %v3771 = vadd.f32 0.0, %v3770
        %v3772 = vpop.f32.mrf.mxu0
        %v3773 = vadd.f32 0.0, %v3772
        %3774 = vmatmul.bf16.gmra.mxu0 %v3713
        %v3775 = vpop.f32.mrf.mxu0
        %v3776 = vadd.f32 0.0, %v3775
        %v3777 = vpop.f32.mrf.mxu0
        %v3778 = vadd.f32 0.0, %v3777
        %3779 = vmatmul.bf16.gmra.mxu0 %v3716
        %v3780 = vpop.f32.mrf.mxu0
        %v3781 = vadd.f32 0.0, %v3780
        %v3782 = vpop.f32.mrf.mxu0
        %v3783 = vadd.f32 0.0, %v3782
        %3784 = vmatmul.bf16.gmra.mxu0 %v3719
        %v3785 = vpop.f32.mrf.mxu0
        %v3786 = vadd.f32 0.0, %v3785
        %v3787 = vpop.f32.mrf.mxu0
        %v3788 = vadd.f32 0.0, %v3787
        %3789 = vmatmul.bf16.gmra.mxu0 %v3722
        %v3790 = vpop.f32.mrf.mxu0
        %v3791 = vadd.f32 0.0, %v3790
        %v3792 = vpop.f32.mrf.mxu0
        %v3793 = vadd.f32 0.0, %v3792
        %3794 = vmatmul.bf16.gmra.mxu0 %v3725
        %v3795 = vpop.f32.mrf.mxu0
        %v3796 = vadd.f32 0.0, %v3795
        %v3797 = vpop.f32.mrf.mxu0
        %v3798 = vadd.f32 0.0, %v3797
        %3799 = vmatmul.bf16.gmra.mxu0 %v3728
        %v3800 = vpop.f32.mrf.mxu0
        %v3801 = vadd.f32 0.0, %v3800
        %v3802 = vpop.f32.mrf.mxu0
        %v3803 = vadd.f32 0.0, %v3802
        %3804 = vmatmul.bf16.gmra.mxu0 %v3731
        %v3805 = vpop.f32.mrf.mxu0
        %v3806 = vadd.f32 0.0, %v3805
        %v3807 = vpop.f32.mrf.mxu0
        %v3808 = vadd.f32 0.0, %v3807
        %3809 = vmatmul.bf16.gmra.mxu0 %v3734
        %v3810 = vpop.f32.mrf.mxu0
        %v3811 = vadd.f32 0.0, %v3810
        %v3812 = vpop.f32.mrf.mxu0
        %v3813 = vadd.f32 0.0, %v3812
        %3814 = vmatmul.bf16.gmra.mxu0 %v3737
        %v3815 = vpop.f32.mrf.mxu0
        %v3816 = vadd.f32 0.0, %v3815
        %v3817 = vpop.f32.mrf.mxu0
        %v3818 = vadd.f32 0.0, %v3817
        %3819 = vmatmul.bf16.gmra.mxu0 %v3740
        %v3820 = vpop.f32.mrf.mxu0
        %v3821 = vadd.f32 0.0, %v3820
        %v3822 = vpop.f32.mrf.mxu0
        %v3823 = vadd.f32 0.0, %v3822
        %3824 = vmatmul.bf16.gmra.mxu0 %v3743
        %v3825 = vpop.f32.mrf.mxu0
        %v3826 = vadd.f32 0.0, %v3825
        %v3827 = vpop.f32.mrf.mxu0
        %v3828 = vadd.f32 0.0, %v3827
        %3829 = vmatmul.bf16.gmra.mxu0 %v3746
        %v3830 = vpop.f32.mrf.mxu0
        %v3831 = vadd.f32 0.0, %v3830
        %v3832 = vpop.f32.mrf.mxu0
        %v3833 = vadd.f32 0.0, %v3832
        %3834 = vmatmul.bf16.gmra.mxu0 %v3749
        %v3835 = vpop.f32.mrf.mxu0
        %v3836 = vadd.f32 0.0, %v3835
        %v3837 = vpop.f32.mrf.mxu0
        %v3838 = vadd.f32 0.0, %v3837
        %3839 = vdwg.mxu0
        %v3840 = vadd.f32 %v3590, %v3761
        %v3841 = vadd.f32 %v3591, %v3763
        %v3842 = vadd.f32 %v3592, %v3766
        %v3843 = vadd.f32 %v3593, %v3768
        %v3844 = vadd.f32 %v3594, %v3771
        %v3845 = vadd.f32 %v3595, %v3773
        %v3846 = vadd.f32 %v3596, %v3776
        %v3847 = vadd.f32 %v3597, %v3778
        %v3848 = vadd.f32 %v3598, %v3781
        %v3849 = vadd.f32 %v3599, %v3783
        %v3850 = vadd.f32 %v3600, %v3786
        %v3851 = vadd.f32 %v3601, %v3788
        %v3852 = vadd.f32 %v3602, %v3791
        %v3853 = vadd.f32 %v3603, %v3793
        %v3854 = vadd.f32 %v3604, %v3796
        %v3855 = vadd.f32 %v3605, %v3798
        %v3856 = vadd.f32 %v3606, %v3801
        %v3857 = vadd.f32 %v3607, %v3803
        %v3858 = vadd.f32 %v3608, %v3806
        %v3859 = vadd.f32 %v3609, %v3808
        %v3860 = vadd.f32 %v3610, %v3811
        %v3861 = vadd.f32 %v3611, %v3813
        %v3862 = vadd.f32 %v3612, %v3816
        %v3863 = vadd.f32 %v3613, %v3818
        %v3864 = vadd.f32 %v3614, %v3821
        %v3865 = vadd.f32 %v3615, %v3823
        %v3866 = vadd.f32 %v3616, %v3826
        %v3867 = vadd.f32 %v3617, %v3828
        %v3868 = vadd.f32 %v3618, %v3831
        %v3869 = vadd.f32 %v3619, %v3833
        %v3870 = vadd.f32 %v3620, %v3836
        %v3871 = vadd.f32 %v3621, %v3838
        %v3872 = vld [vmem:[%s3371 + $0x2] sm:$0xff]
        %v3873 = vld [vmem:[%s3371 + $0xa] sm:$0xff]
        %v3874 = vld [vmem:[%s3371 + $0x1a] sm:$0xff]
        %v3875 = vld [vmem:[%s3371 + $0x22] sm:$0xff]
        %v3876 = vld [vmem:[%s3371 + $0x32] sm:$0xff]
        %v3877 = vld [vmem:[%s3371 + $0x3a] sm:$0xff]
        %v3878 = vld [vmem:[%s3371 + $0x4a] sm:$0xff]
        %v3879 = vld [vmem:[%s3371 + $0x52] sm:$0xff]
        %v3880 = vld [vmem:[%s3371 + $0x62] sm:$0xff]
        %v3881 = vld [vmem:[%s3371 + $0x6a] sm:$0xff]
        %v3882 = vld [vmem:[%s3371 + $0x7a] sm:$0xff]
        %v3883 = vld [vmem:[%s3371 + $0x82] sm:$0xff]
        %v3884 = vld [vmem:[%s3371 + $0x92] sm:$0xff]
        %v3885 = vld [vmem:[%s3371 + $0x9a] sm:$0xff]
        %v3886 = vld [vmem:[%s3371 + $0xaa] sm:$0xff]
        %v3887 = vld [vmem:[%s3371 + $0xb2] sm:$0xff]
        %v3888 = vld [vmem:[%s3371 + $0xc2] sm:$0xff]
        %v3889 = vld [vmem:[%s3371 + $0xca] sm:$0xff]
        %v3890 = vld [vmem:[%s3371 + $0xda] sm:$0xff]
        %v3891 = vld [vmem:[%s3371 + $0xe2] sm:$0xff]
        %v3892 = vld [vmem:[%s3371 + $0xf2] sm:$0xff]
        %v3893 = vld [vmem:[%s3371 + $0xfa] sm:$0xff]
        %v3894 = vld [vmem:[%s3371 + $0x10a] sm:$0xff]
        %v3895 = vld [vmem:[%s3371 + $0x112] sm:$0xff]
        %v3896 = vld [vmem:[%s3371 + $0x122] sm:$0xff]
        %v3897 = vld [vmem:[%s3371 + $0x12a] sm:$0xff]
        %v3898 = vld [vmem:[%s3371 + $0x13a] sm:$0xff]
        %v3899 = vld [vmem:[%s3371 + $0x142] sm:$0xff]
        %v3900 = vld [vmem:[%s3371 + $0x152] sm:$0xff]
        %v3901 = vld [vmem:[%s3371 + $0x15a] sm:$0xff]
        %v3902 = vld [vmem:[%s3371 + $0x16a] sm:$0xff]
        %v3903 = vld [vmem:[%s3371 + $0x172] sm:$0xff]
        %v3904 = vpack.c.bf16 %v3873, %v3872
        %v3905 = vpack.c.bf16 %v3875, %v3874
        %v3906 = vpack.c.bf16 %v3877, %v3876
        %v3907 = vpack.c.bf16 %v3879, %v3878
        %v3908 = vpack.c.bf16 %v3881, %v3880
        %v3909 = vpack.c.bf16 %v3883, %v3882
        %v3910 = vpack.c.bf16 %v3885, %v3884
        %v3911 = vpack.c.bf16 %v3887, %v3886
        %v3912 = vpack.c.bf16 %v3889, %v3888
        %v3913 = vpack.c.bf16 %v3891, %v3890
        %v3914 = vpack.c.bf16 %v3893, %v3892
        %v3915 = vpack.c.bf16 %v3895, %v3894
        %v3916 = vpack.c.bf16 %v3897, %v3896
        %v3917 = vpack.c.bf16 %v3899, %v3898
        %v3918 = vpack.c.bf16 %v3901, %v3900
        %v3919 = vpack.c.bf16 %v3903, %v3902
        %s3920 = scalar_lea.vmem %s4, 256
        %v3921 = vld [vmem:[%s3920] sm:$0xf]
        %v3922 = vld [vmem:[%s3920 + $0x4] sm:$0xf]
        %v3923 = vld [vmem:[%s3920 + $0x8] sm:$0xf]
        %v3924 = vld [vmem:[%s3920 + $0xc] sm:$0xf]
        %v3925 = vld [vmem:[%s3920 + $0x10] sm:$0xf]
        %v3926 = vld [vmem:[%s3920 + $0x14] sm:$0xf]
        %v3927 = vld [vmem:[%s3920 + $0x18] sm:$0xf]
        %v3928 = vld [vmem:[%s3920 + $0x1c] sm:$0xf]
        %v3937 = vunpack.c.l.b16 %v3921
        %v3938 = vunpack.c.l.b16 %v3922
        %v3939 = vunpack.c.l.b16 %v3923
        %v3940 = vunpack.c.l.b16 %v3924
        %v3941 = vunpack.c.l.b16 %v3925
        %v3942 = vunpack.c.l.b16 %v3926
        %v3943 = vunpack.c.l.b16 %v3927
        %v3944 = vunpack.c.l.b16 %v3928
        %v3945 = vpack.c.b16 %v3938, %v3937
        %v3946 = vpack.c.b16 %v3940, %v3939
        %v3947 = vpack.c.b16 %v3942, %v3941
        %v3948 = vpack.c.b16 %v3944, %v3943
        %v3954 = vsel %vm1847, %v3904, 0
        %v3957 = vsel %vm1847, %v3905, 0
        %v3960 = vsel %vm1847, %v3906, 0
        %v3963 = vsel %vm1847, %v3907, 0
        %v3966 = vsel %vm1847, %v3908, 0
        %v3969 = vsel %vm1847, %v3909, 0
        %v3972 = vsel %vm1847, %v3910, 0
        %v3975 = vsel %vm1847, %v3911, 0
        %v3978 = vsel %vm1847, %v3912, 0
        %v3981 = vsel %vm1847, %v3913, 0
        %v3984 = vsel %vm1847, %v3914, 0
        %v3987 = vsel %vm1847, %v3915, 0
        %v3990 = vsel %vm1847, %v3916, 0
        %v3993 = vsel %vm1847, %v3917, 0
        %v3996 = vsel %vm1847, %v3918, 0
        %v3999 = vsel %vm1847, %v3919, 0
        %4001 = vmatpush.bf16.msra.mxu0 0
        %4002 = vmatpush.bf16.msra.mxu0 0
        %4003 = vmatpush.bf16.msra.mxu0 0
        %4004 = vmatpush.bf16.msra.mxu0 0
        %4005 = vmatpush.bf16.msra.mxu0 %v3948
        %4006 = vmatpush.bf16.msra.mxu0 %v3947
        %4007 = vmatpush.bf16.msra.mxu0 %v3946
        %4008 = vmatpush.bf16.msra.mxu0 %v3945
        %4009 = vmatmul.bf16.gmra.mxu0 %v3954
        %v4010 = vpop.f32.mrf.mxu0
        %v4011 = vadd.f32 0.0, %v4010
        %v4012 = vpop.f32.mrf.mxu0
        %v4013 = vadd.f32 0.0, %v4012
        %4014 = vmatmul.bf16.gmra.mxu0 %v3957
        %v4015 = vpop.f32.mrf.mxu0
        %v4016 = vadd.f32 0.0, %v4015
        %v4017 = vpop.f32.mrf.mxu0
        %v4018 = vadd.f32 0.0, %v4017
        %4019 = vmatmul.bf16.gmra.mxu0 %v3960
        %v4020 = vpop.f32.mrf.mxu0
        %v4021 = vadd.f32 0.0, %v4020
        %v4022 = vpop.f32.mrf.mxu0
        %v4023 = vadd.f32 0.0, %v4022
        %4024 = vmatmul.bf16.gmra.mxu0 %v3963
        %v4025 = vpop.f32.mrf.mxu0
        %v4026 = vadd.f32 0.0, %v4025
        %v4027 = vpop.f32.mrf.mxu0
        %v4028 = vadd.f32 0.0, %v4027
        %4029 = vmatmul.bf16.gmra.mxu0 %v3966
        %v4030 = vpop.f32.mrf.mxu0
        %v4031 = vadd.f32 0.0, %v4030
        %v4032 = vpop.f32.mrf.mxu0
        %v4033 = vadd.f32 0.0, %v4032
        %4034 = vmatmul.bf16.gmra.mxu0 %v3969
        %v4035 = vpop.f32.mrf.mxu0
        %v4036 = vadd.f32 0.0, %v4035
        %v4037 = vpop.f32.mrf.mxu0
        %v4038 = vadd.f32 0.0, %v4037
        %4039 = vmatmul.bf16.gmra.mxu0 %v3972
        %v4040 = vpop.f32.mrf.mxu0
        %v4041 = vadd.f32 0.0, %v4040
        %v4042 = vpop.f32.mrf.mxu0
        %v4043 = vadd.f32 0.0, %v4042
        %4044 = vmatmul.bf16.gmra.mxu0 %v3975
        %v4045 = vpop.f32.mrf.mxu0
        %v4046 = vadd.f32 0.0, %v4045
        %v4047 = vpop.f32.mrf.mxu0
        %v4048 = vadd.f32 0.0, %v4047
        %4049 = vmatmul.bf16.gmra.mxu0 %v3978
        %v4050 = vpop.f32.mrf.mxu0
        %v4051 = vadd.f32 0.0, %v4050
        %v4052 = vpop.f32.mrf.mxu0
        %v4053 = vadd.f32 0.0, %v4052
        %4054 = vmatmul.bf16.gmra.mxu0 %v3981
        %v4055 = vpop.f32.mrf.mxu0
        %v4056 = vadd.f32 0.0, %v4055
        %v4057 = vpop.f32.mrf.mxu0
        %v4058 = vadd.f32 0.0, %v4057
        %4059 = vmatmul.bf16.gmra.mxu0 %v3984
        %v4060 = vpop.f32.mrf.mxu0
        %v4061 = vadd.f32 0.0, %v4060
        %v4062 = vpop.f32.mrf.mxu0
        %v4063 = vadd.f32 0.0, %v4062
        %4064 = vmatmul.bf16.gmra.mxu0 %v3987
        %v4065 = vpop.f32.mrf.mxu0
        %v4066 = vadd.f32 0.0, %v4065
        %v4067 = vpop.f32.mrf.mxu0
        %v4068 = vadd.f32 0.0, %v4067
        %4069 = vmatmul.bf16.gmra.mxu0 %v3990
        %v4070 = vpop.f32.mrf.mxu0
        %v4071 = vadd.f32 0.0, %v4070
        %v4072 = vpop.f32.mrf.mxu0
        %v4073 = vadd.f32 0.0, %v4072
        %4074 = vmatmul.bf16.gmra.mxu0 %v3993
        %v4075 = vpop.f32.mrf.mxu0
        %v4076 = vadd.f32 0.0, %v4075
        %v4077 = vpop.f32.mrf.mxu0
        %v4078 = vadd.f32 0.0, %v4077
        %4079 = vmatmul.bf16.gmra.mxu0 %v3996
        %v4080 = vpop.f32.mrf.mxu0
        %v4081 = vadd.f32 0.0, %v4080
        %v4082 = vpop.f32.mrf.mxu0
        %v4083 = vadd.f32 0.0, %v4082
        %4084 = vmatmul.bf16.gmra.mxu0 %v3999
        %v4085 = vpop.f32.mrf.mxu0
        %v4086 = vadd.f32 0.0, %v4085
        %v4087 = vpop.f32.mrf.mxu0
        %v4088 = vadd.f32 0.0, %v4087
        %4089 = vdwg.mxu0
        %v4090 = vadd.f32 %v3840, %v4011
        %v4091 = vadd.f32 %v3841, %v4013
        %v4092 = vadd.f32 %v3842, %v4016
        %v4093 = vadd.f32 %v3843, %v4018
        %v4094 = vadd.f32 %v3844, %v4021
        %v4095 = vadd.f32 %v3845, %v4023
        %v4096 = vadd.f32 %v3846, %v4026
        %v4097 = vadd.f32 %v3847, %v4028
        %v4098 = vadd.f32 %v3848, %v4031
        %v4099 = vadd.f32 %v3849, %v4033
        %v4100 = vadd.f32 %v3850, %v4036
        %v4101 = vadd.f32 %v3851, %v4038
        %v4102 = vadd.f32 %v3852, %v4041
        %v4103 = vadd.f32 %v3853, %v4043
        %v4104 = vadd.f32 %v3854, %v4046
        %v4105 = vadd.f32 %v3855, %v4048
        %v4106 = vadd.f32 %v3856, %v4051
        %v4107 = vadd.f32 %v3857, %v4053
        %v4108 = vadd.f32 %v3858, %v4056
        %v4109 = vadd.f32 %v3859, %v4058
        %v4110 = vadd.f32 %v3860, %v4061
        %v4111 = vadd.f32 %v3861, %v4063
        %v4112 = vadd.f32 %v3862, %v4066
        %v4113 = vadd.f32 %v3863, %v4068
        %v4114 = vadd.f32 %v3864, %v4071
        %v4115 = vadd.f32 %v3865, %v4073
        %v4116 = vadd.f32 %v3866, %v4076
        %v4117 = vadd.f32 %v3867, %v4078
        %v4118 = vadd.f32 %v3868, %v4081
        %v4119 = vadd.f32 %v3869, %v4083
        %v4120 = vadd.f32 %v3870, %v4086
        %v4121 = vadd.f32 %v3871, %v4088
        %v4122 = vld [vmem:[%s5] sm:$0x1]
        %v4124 = vperm.slane %v4122, 0
        %v4126 = vmul.f32 %v4090, %v4124
        %v4127 = vmul.f32 %v4091, %v4124
        %v4128 = vmul.f32 %v4092, %v4124
        %v4129 = vmul.f32 %v4093, %v4124
        %v4130 = vmul.f32 %v4094, %v4124
        %v4131 = vmul.f32 %v4095, %v4124
        %v4132 = vmul.f32 %v4096, %v4124
        %v4133 = vmul.f32 %v4097, %v4124
        %v4134 = vmul.f32 %v4098, %v4124
        %v4135 = vmul.f32 %v4099, %v4124
        %v4136 = vmul.f32 %v4100, %v4124
        %v4137 = vmul.f32 %v4101, %v4124
        %v4138 = vmul.f32 %v4102, %v4124
        %v4139 = vmul.f32 %v4103, %v4124
        %v4140 = vmul.f32 %v4104, %v4124
        %v4141 = vmul.f32 %v4105, %v4124
        %v4142 = vmul.f32 %v4106, %v4124
        %v4143 = vmul.f32 %v4107, %v4124
        %v4144 = vmul.f32 %v4108, %v4124
        %v4145 = vmul.f32 %v4109, %v4124
        %v4146 = vmul.f32 %v4110, %v4124
        %v4147 = vmul.f32 %v4111, %v4124
        %v4148 = vmul.f32 %v4112, %v4124
        %v4149 = vmul.f32 %v4113, %v4124
        %v4150 = vmul.f32 %v4114, %v4124
        %v4151 = vmul.f32 %v4115, %v4124
        %v4152 = vmul.f32 %v4116, %v4124
        %v4153 = vmul.f32 %v4117, %v4124
        %v4154 = vmul.f32 %v4118, %v4124
        %v4155 = vmul.f32 %v4119, %v4124
        %v4156 = vmul.f32 %v4120, %v4124
        %v4157 = vmul.f32 %v4121, %v4124
        %v4158 = vld [vmem:[%s6] sm:$0x1]
        %v4160 = vperm.slane %v4158, 0
        %v4162 = vadd.f32 %v4126, %v4160
        %v4163 = vadd.f32 %v4127, %v4160
        %v4164 = vadd.f32 %v4128, %v4160
        %v4165 = vadd.f32 %v4129, %v4160
        %v4166 = vadd.f32 %v4130, %v4160
        %v4167 = vadd.f32 %v4131, %v4160
        %v4168 = vadd.f32 %v4132, %v4160
        %v4169 = vadd.f32 %v4133, %v4160
        %v4170 = vadd.f32 %v4134, %v4160
        %v4171 = vadd.f32 %v4135, %v4160
        %v4172 = vadd.f32 %v4136, %v4160
        %v4173 = vadd.f32 %v4137, %v4160
        %v4174 = vadd.f32 %v4138, %v4160
        %v4175 = vadd.f32 %v4139, %v4160
        %v4176 = vadd.f32 %v4140, %v4160
        %v4177 = vadd.f32 %v4141, %v4160
        %v4178 = vadd.f32 %v4142, %v4160
        %v4179 = vadd.f32 %v4143, %v4160
        %v4180 = vadd.f32 %v4144, %v4160
        %v4181 = vadd.f32 %v4145, %v4160
        %v4182 = vadd.f32 %v4146, %v4160
        %v4183 = vadd.f32 %v4147, %v4160
        %v4184 = vadd.f32 %v4148, %v4160
        %v4185 = vadd.f32 %v4149, %v4160
        %v4186 = vadd.f32 %v4150, %v4160
        %v4187 = vadd.f32 %v4151, %v4160
        %v4188 = vadd.f32 %v4152, %v4160
        %v4189 = vadd.f32 %v4153, %v4160
        %v4190 = vadd.f32 %v4154, %v4160
        %v4191 = vadd.f32 %v4155, %v4160
        %v4192 = vadd.f32 %v4156, %v4160
        %v4193 = vadd.f32 %v4157, %v4160
        %4194 = vst [vmem:[%s293] sm:$0xff] %v4162
        %4195 = vst [vmem:[%s293 + $0x8] sm:$0xff] %v4163
        %4196 = vst [vmem:[%s293 + $0x10] sm:$0xff] %v4164
        %4197 = vst [vmem:[%s293 + $0x18] sm:$0xff] %v4165
        %4198 = vst [vmem:[%s293 + $0x20] sm:$0xff] %v4166
        %4199 = vst [vmem:[%s293 + $0x28] sm:$0xff] %v4167
        %4200 = vst [vmem:[%s293 + $0x30] sm:$0xff] %v4168
        %4201 = vst [vmem:[%s293 + $0x38] sm:$0xff] %v4169
        %4202 = vst [vmem:[%s293 + $0x40] sm:$0xff] %v4170
        %4203 = vst [vmem:[%s293 + $0x48] sm:$0xff] %v4171
        %4204 = vst [vmem:[%s293 + $0x50] sm:$0xff] %v4172
        %4205 = vst [vmem:[%s293 + $0x58] sm:$0xff] %v4173
        %4206 = vst [vmem:[%s293 + $0x60] sm:$0xff] %v4174
        %4207 = vst [vmem:[%s293 + $0x68] sm:$0xff] %v4175
        %4208 = vst [vmem:[%s293 + $0x70] sm:$0xff] %v4176
        %4209 = vst [vmem:[%s293 + $0x78] sm:$0xff] %v4177
        %4210 = vst [vmem:[%s293 + $0x80] sm:$0xff] %v4178
        %4211 = vst [vmem:[%s293 + $0x88] sm:$0xff] %v4179
        %4212 = vst [vmem:[%s293 + $0x90] sm:$0xff] %v4180
        %4213 = vst [vmem:[%s293 + $0x98] sm:$0xff] %v4181
        %4214 = vst [vmem:[%s293 + $0xa0] sm:$0xff] %v4182
        %4215 = vst [vmem:[%s293 + $0xa8] sm:$0xff] %v4183
        %4216 = vst [vmem:[%s293 + $0xb0] sm:$0xff] %v4184
        %4217 = vst [vmem:[%s293 + $0xb8] sm:$0xff] %v4185
        %4218 = vst [vmem:[%s293 + $0xc0] sm:$0xff] %v4186
        %4219 = vst [vmem:[%s293 + $0xc8] sm:$0xff] %v4187
        %4220 = vst [vmem:[%s293 + $0xd0] sm:$0xff] %v4188
        %4221 = vst [vmem:[%s293 + $0xd8] sm:$0xff] %v4189
        %4222 = vst [vmem:[%s293 + $0xe0] sm:$0xff] %v4190
        %4223 = vst [vmem:[%s293 + $0xe8] sm:$0xff] %v4191
        %4224 = vst [vmem:[%s293 + $0xf0] sm:$0xff] %v4192
        %4225 = vst [vmem:[%s293 + $0xf8] sm:$0xff] %v4193
        %p4226 = scmp.lt.s32.totalorder %s19, 1
        %s4227 = scalar_select %p4226, %s19, 1
        %s4228 = smul.addr %s4227, 32
        %s4229 = smul.addr %s4228, 8
        %s4230 = scalar_lea.vmem %s7, %s4229
        // Predicated region
        $region53: #{gcmodule_forward_pallas.4} parent=47 // pred_check
          %p4231 = pneg %p189
        $region54: #{gcmodule_forward_pallas.4} parent=47 // pred_check_branch
          %4233 = sbr.rel (%p4231) target = $region56
        $region55: #{gcmodule_forward_pallas.4} parent=47 // pred_region
          _
        $region56: #{gcmodule_forward_pallas.4} parent=47 // pred_fallthru
          _
      $region48: #{gcmodule_forward_pallas.4} parent=5 // pred_fallthru
        _
      %p4234 = scmp.le.s32.totalorder 2, %s14
      // Predicated region
      $region57: #{gcmodule_forward_pallas.4} parent=5 // pred_check
        %p4235 = pneg %p4234
      $region58: #{gcmodule_forward_pallas.4} parent=5 // pred_check_branch
        %4237 = sbr.rel (%p4235) target = $region60
      $region59: #{gcmodule_forward_pallas.4} parent=5 // pred_region
        %s4238 = ssub.s32 %s14, 2
        // Predicated region
        $region61: #{gcmodule_forward_pallas.4} parent=59 // pred_check
          %p4239 = pneg %p195
        $region62: #{gcmodule_forward_pallas.4} parent=59 // pred_check_branch
          %4241 = sbr.rel (%p4239) target = $region64
        $region63: #{gcmodule_forward_pallas.4} parent=59 // pred_region
          %p4242 = scmp.lt.s32.totalorder %s20, 1
          %s4243 = scalar_select %p4242, %s20, 1
          %s4244 = smul.addr %s4243, 32
          %s4245 = smul.addr %s4244, 8
          %s4246 = scalar_lea.vmem %s7, %s4245
        $region64: #{gcmodule_forward_pallas.4} parent=59 // pred_fallthru
          _
      $region60: #{gcmodule_forward_pallas.4} parent=5 // pred_fallthru
        _
    $region6: #{gcmodule_forward_pallas.4} parent=1 // loop_footer
      %s18 = sadd.s32 1, %s14
    $region7: #{gcmodule_forward_pallas.4} parent=1 // loop_footer_branch
      %13 = sbr.rel target = $region3
    $region8: #{gcmodule_forward_pallas.4} parent=1 // loop_exit
      _
    %4247 = vsyncpa [#allocation4], 1
    %s4248 = scalar_lea.sflag [#allocation4], 1
    %4249 = vsyncpa %s4248, 1

// kernel: gcmodule_forward_pallas.5
$region0: #{gcmodule_forward_pallas.5}
  #allocation0 [shape = 'u32[]', space=smem, size = 0x4, offset = 0x4, fixed_abs, tag = 'smem constant byte address 0x4 - core index']
  #allocation1 [shape = 'u32[72,128]{1,0:T(1,128)}', space=vmem, size = 0x9000, scoped, tag = 'internal scratch']
  #allocation2 [shape = 'f32[4,20,20]{2,1,0:T(8,128)}', space=vmem, size = 0xc000, scoped, tag = 'scratch operand']
  %s0 = inlined_call_operand.vmem [shape: f32[2,100,16,16], index: 0, kind: input, shape index: {}]
  %s1 = inlined_call_operand.vmem [shape: f32[2,4,16,16], index: 1, kind: input, shape index: {}]
  %s2 = inlined_call_operand.vmem [shape: f32[2,4,4,16,16], index: 2, kind: output, shape index: {}]
  %s3 = sld [smem:[#allocation0]]
  $region41: #{gcmodule_forward_pallas.5} parent=0
    _
  %s5 = ssub.s32 1, %s3
  %s6 = scalar_select 0, %s5, %s3
  loop: start=0, step=1, limit=4
  $region2: #{gcmodule_forward_pallas.5} parent=0 // loop_pre_header
    _
  $region3: #{gcmodule_forward_pallas.5} parent=0 // loop_header
    %s8 = sphi 0, %s12
    %p9 = scmp.ge.s32.totalorder %s8, 4
    %s18 = sphi 0, %s20
    %s21 = sphi 0, %s18
    %s22 = sphi 0, %s21
    %s38 = sphi 0, %s22
    %s44 = sphi 0, %s46
    %s47 = sphi 0, %s44
    %s48 = sphi 0, %s47
    %s64 = sphi 0, %s48
    %s70 = sphi 0, %s72
    %s73 = sphi 0, %s70
    %s74 = sphi 0, %s73
    %s90 = sphi 0, %s74
  $region4: #{gcmodule_forward_pallas.5} parent=0 // loop_header_branch
    %11 = sbr.rel (%p9) target = $region8
  $region5: #{gcmodule_forward_pallas.5} parent=0 // loop_body
    %s13 = ssub.s32 %s8, 1
    %s14 = ssub.s32 %s8, 2
    %s15 = sadd.s32 %s8, 1
    %s16 = ssub.s32 %s8, %s15
    %p17 = scmp.eq.s32.totalorder %s16, 0
    %s19 = sadd.s32 %s18, 1
    %s20 = scalar_select %p17, %s18, %s19
    %p23 = pneg %p17
    %p24 = scmp.eq.s32.totalorder %s8, 1
    %p25 = por %p23, %p24
    %p26 = scmp.ne.s32.totalorder %s18, %s21
    %p27 = scmp.eq.s32.totalorder %s8, 0
    %p28 = por %p26, %p27
    %p29 = scmp.ne.s32.totalorder %s18, %s21
    %p30 = scmp.eq.s32.totalorder %s13, 1
    %p31 = por %p29, %p30
    %p32 = scmp.ne.s32.totalorder %s21, %s22
    %p33 = scmp.eq.s32.totalorder %s13, 0
    %p34 = por %p32, %p33
    %p35 = scmp.ne.s32.totalorder %s21, %s22
    %p36 = scmp.eq.s32.totalorder %s14, 1
    %p37 = por %p35, %p36
    %p39 = scmp.ne.s32.totalorder %s22, %s38
    %p40 = scmp.eq.s32.totalorder %s14, 0
    %p41 = por %p39, %p40
    %s42 = ssub.s32 %s8, %s15
    %p43 = scmp.eq.s32.totalorder %s42, 0
    %s45 = sadd.s32 %s44, 1
    %s46 = scalar_select %p43, %s44, %s45
    %p49 = pneg %p43
    %p50 = scmp.eq.s32.totalorder %s8, 1
    %p51 = por %p49, %p50
    %p52 = scmp.ne.s32.totalorder %s44, %s47
    %p53 = scmp.eq.s32.totalorder %s8, 0
    %p54 = por %p52, %p53
    %p55 = scmp.ne.s32.totalorder %s44, %s47
    %p56 = scmp.eq.s32.totalorder %s13, 1
    %p57 = por %p55, %p56
    %p58 = scmp.ne.s32.totalorder %s47, %s48
    %p59 = scmp.eq.s32.totalorder %s13, 0
    %p60 = por %p58, %p59
    %p61 = scmp.ne.s32.totalorder %s47, %s48
    %p62 = scmp.eq.s32.totalorder %s14, 1
    %p63 = por %p61, %p62
    %p65 = scmp.ne.s32.totalorder %s48, %s64
    %p66 = scmp.eq.s32.totalorder %s14, 0
    %p67 = por %p65, %p66
    %s68 = ssub.s32 %s8, %s15
    %p69 = scmp.eq.s32.totalorder %s68, 0
    %s71 = sadd.s32 %s70, 1
    %s72 = scalar_select %p69, %s70, %s71
    %p75 = pneg %p69
    %p76 = scmp.eq.s32.totalorder %s8, 1
    %p77 = por %p75, %p76
    %p78 = scmp.ne.s32.totalorder %s70, %s73
    %p79 = scmp.eq.s32.totalorder %s8, 0
    %p80 = por %p78, %p79
    %p81 = scmp.ne.s32.totalorder %s70, %s73
    %p82 = scmp.eq.s32.totalorder %s13, 1
    %p83 = por %p81, %p82
    %p84 = scmp.ne.s32.totalorder %s73, %s74
    %p85 = scmp.eq.s32.totalorder %s13, 0
    %p86 = por %p84, %p85
    %p87 = scmp.ne.s32.totalorder %s73, %s74
    %p88 = scmp.eq.s32.totalorder %s14, 1
    %p89 = por %p87, %p88
    %p91 = scmp.ne.s32.totalorder %s74, %s90
    %p92 = scmp.eq.s32.totalorder %s14, 0
    %p93 = por %p91, %p92
    %p94 = scmp.le.s32.totalorder 1, %s8
    %p95 = scmp.lt.s32.totalorder %s8, 3
    %p96 = pnand %p94, %p95
    %p97 = pneg %p96
    // Predicated region
    $region9: #{gcmodule_forward_pallas.5} parent=5 // pred_check
      _
    $region10: #{gcmodule_forward_pallas.5} parent=5 // pred_check_branch
      %99 = sbr.rel (%p96) target = $region12
    $region11: #{gcmodule_forward_pallas.5} parent=5 // pred_region
      %s100 = ssub.s32 %s8, 1
    $region12: #{gcmodule_forward_pallas.5} parent=5 // pred_fallthru
      _
    %p101 = scmp.lt.s32.totalorder %s8, 2
    // Predicated region
    $region13: #{gcmodule_forward_pallas.5} parent=5 // pred_check
      %p102 = pneg %p101
    $region14: #{gcmodule_forward_pallas.5} parent=5 // pred_check_branch
      %104 = sbr.rel (%p102) target = $region16
    $region15: #{gcmodule_forward_pallas.5} parent=5 // pred_region
      // Predicated region
      $region17: #{gcmodule_forward_pallas.5} parent=15 // pred_check
        %p105 = pneg %p28
      $region18: #{gcmodule_forward_pallas.5} parent=15 // pred_check_branch
        %107 = sbr.rel (%p105) target = $region20
      $region19: #{gcmodule_forward_pallas.5} parent=15 // pred_region
        %p108 = scmp.lt.s32.totalorder %s8, 1
        %s109 = scalar_select %p108, %s8, 1
        %s110 = smul.addr %s109, 200
        %s111 = smul.addr %s110, 8
        %s112 = scalar_lea.vmem %s0, %s111
      $region20: #{gcmodule_forward_pallas.5} parent=15 // pred_fallthru
        _
      // Predicated region
      $region21: #{gcmodule_forward_pallas.5} parent=15 // pred_check
        %p113 = pneg %p54
      $region22: #{gcmodule_forward_pallas.5} parent=15 // pred_check_branch
        %115 = sbr.rel (%p113) target = $region24
      $region23: #{gcmodule_forward_pallas.5} parent=15 // pred_region
        %p116 = scmp.lt.s32.totalorder %s8, 1
        %s117 = scalar_select %p116, %s8, 1
        %s118 = smul.addr %s117, 8
        %s119 = smul.addr %s118, 8
        %s120 = scalar_lea.vmem %s1, %s119
      $region24: #{gcmodule_forward_pallas.5} parent=15 // pred_fallthru
        _
    $region16: #{gcmodule_forward_pallas.5} parent=5 // pred_fallthru
      _
    %p121 = scmp.le.s32.totalorder 1, %s8
    %p122 = scmp.lt.s32.totalorder %s8, 3
    %p123 = pnand %p121, %p122
    %p124 = pneg %p123
    // Predicated region
    $region25: #{gcmodule_forward_pallas.5} parent=5 // pred_check
      _
    $region26: #{gcmodule_forward_pallas.5} parent=5 // pred_check_branch
      %126 = sbr.rel (%p123) target = $region28
    $region27: #{gcmodule_forward_pallas.5} parent=5 // pred_region
      %s127 = ssub.s32 %s8, 1
      %p128 = scmp.lt.s32.totalorder %s13, 1
      %s129 = scalar_select %p128, %s13, 1
      %s130 = smul.addr %s129, 200
      %s131 = smul.addr %s130, 8
      %s132 = scalar_lea.vmem %s0, %s131
      %p133 = pneg %p34
      %p134 = pneg %p31
      %p135 = scmp.lt.s32.totalorder %s13, 1
      %s136 = scalar_select %p135, %s13, 1
      %s137 = smul.addr %s136, 8
      %s138 = smul.addr %s137, 8
      %s139 = scalar_lea.vmem %s1, %s138
      %p140 = pneg %p60
      %p141 = pneg %p57
      %p142 = pneg %p86
      %p143 = pneg %p83
      %p144 = scmp.lt.s32.totalorder %s13, 1
      %s145 = scalar_select %p144, %s13, 1
      %s146 = smul.addr %s145, 32
      %s147 = smul.addr %s146, 8
      %s148 = scalar_lea.vmem %s2, %s147
      %p149 = scmp.lt.s32.totalorder %s13, 1
      %s150 = scalar_select %p149, %s13, 1
      %s151 = smul.addr %s150, 200
      %s152 = smul.addr %s151, 8
      %s153 = scalar_lea.vmem %s0, %s152
      %p154 = scmp.lt.s32.totalorder %s13, 1
      %s155 = scalar_select %p154, %s13, 1
      %s156 = smul.addr %s155, 8
      %s157 = smul.addr %s156, 8
      %s158 = scalar_lea.vmem %s1, %s157
      %p159 = scmp.lt.s32.totalorder %s13, 1
      %s160 = scalar_select %p159, %s13, 1
      %s161 = smul.addr %s160, 32
      %s162 = smul.addr %s161, 8
      %s163 = scalar_lea.vmem %s2, %s162
      %vm164 = vcmask 162816
      %165 = vst.msk [vmem:[#allocation2] sm:$0xff] %vm164, 0.0
      %166 = vst.msk [vmem:[#allocation2 + $0x8] sm:$0xff] %vm164, 0.0
      %vm167 = vcmask 158720
      %168 = vst.msk [vmem:[#allocation2 + $0x10] sm:$0xf] %vm167, 0.0
      %169 = vst.msk [vmem:[#allocation2 + $0x18] sm:$0xff] %vm164, 0.0
      %170 = vst.msk [vmem:[#allocation2 + $0x20] sm:$0xff] %vm164, 0.0
      %171 = vst.msk [vmem:[#allocation2 + $0x28] sm:$0xf] %vm167, 0.0
      %172 = vst.msk [vmem:[#allocation2 + $0x30] sm:$0xff] %vm164, 0.0
      %173 = vst.msk [vmem:[#allocation2 + $0x38] sm:$0xff] %vm164, 0.0
      %174 = vst.msk [vmem:[#allocation2 + $0x40] sm:$0xf] %vm167, 0.0
      %175 = vst.msk [vmem:[#allocation2 + $0x48] sm:$0xff] %vm164, 0.0
      %176 = vst.msk [vmem:[#allocation2 + $0x50] sm:$0xff] %vm164, 0.0
      %177 = vst.msk [vmem:[#allocation2 + $0x58] sm:$0xf] %vm167, 0.0
      %v178 = vld [vmem:[%s158] sm:$0xff]
      %v179 = vld [vmem:[%s158 + $0x8] sm:$0xff]
      %v180 = vld [vmem:[%s158 + $0x10] sm:$0xff]
      %v181 = vld [vmem:[%s158 + $0x18] sm:$0xff]
      %v182 = vld [vmem:[%s158 + $0x20] sm:$0xff]
      %v183 = vld [vmem:[%s158 + $0x28] sm:$0xff]
      %v184 = vld [vmem:[%s158 + $0x30] sm:$0xff]
      %v185 = vld [vmem:[%s158 + $0x38] sm:$0xff]
      %194 = vrot.lane.b32.xlu0 %v178, 2
      %v195 = vpop.permute.xlu0 %194
      %196 = vrot.lane.b32.xlu0 %v179, 2
      %v197 = vpop.permute.xlu0 %196
      %198 = vrot.lane.b32.xlu0 %v180, 2
      %v199 = vpop.permute.xlu0 %198
      %200 = vrot.lane.b32.xlu0 %v181, 2
      %v201 = vpop.permute.xlu0 %200
      %202 = vrot.lane.b32.xlu0 %v182, 2
      %v203 = vpop.permute.xlu0 %202
      %204 = vrot.lane.b32.xlu0 %v183, 2
      %v205 = vpop.permute.xlu0 %204
      %206 = vrot.lane.b32.xlu0 %v184, 2
      %v207 = vpop.permute.xlu0 %206
      %208 = vrot.lane.b32.xlu0 %v185, 2
      %v209 = vpop.permute.xlu0 %208
      %vm218 = vcmask 146448
      %219 = vst.msk [vmem:[#allocation2 + $0x2] sm:$0xff] %vm218, %v195
      %220 = vst.msk [vmem:[#allocation2 + $0xa] sm:$0xff] %vm218, %v197
      %221 = vst.msk [vmem:[#allocation2 + $0x1a] sm:$0xff] %vm218, %v199
      %222 = vst.msk [vmem:[#allocation2 + $0x22] sm:$0xff] %vm218, %v201
      %223 = vst.msk [vmem:[#allocation2 + $0x32] sm:$0xff] %vm218, %v203
      %224 = vst.msk [vmem:[#allocation2 + $0x3a] sm:$0xff] %vm218, %v205
      %225 = vst.msk [vmem:[#allocation2 + $0x4a] sm:$0xff] %vm218, %v207
      %226 = vst.msk [vmem:[#allocation2 + $0x52] sm:$0xff] %vm218, %v209
      %v227 = vld [vmem:[%s153] sm:$0xff]
      %v228 = vld [vmem:[%s153 + $0x8] sm:$0xff]
      %v229 = vld [vmem:[%s153 + $0x10] sm:$0xff]
      %v230 = vld [vmem:[%s153 + $0x18] sm:$0xff]
      %v231 = vld [vmem:[%s153 + $0x20] sm:$0xff]
      %v232 = vld [vmem:[%s153 + $0x28] sm:$0xff]
      %v233 = vld [vmem:[%s153 + $0x30] sm:$0xff]
      %v234 = vld [vmem:[%s153 + $0x38] sm:$0xff]
      %v235 = vld [vmem:[%s153 + $0x40] sm:$0xff]
      %v236 = vld [vmem:[%s153 + $0x48] sm:$0xff]
      %v237 = vld [vmem:[%s153 + $0x50] sm:$0xff]
      %v238 = vld [vmem:[%s153 + $0x58] sm:$0xff]
      %v239 = vld [vmem:[%s153 + $0x60] sm:$0xff]
      %v240 = vld [vmem:[%s153 + $0x68] sm:$0xff]
      %v241 = vld [vmem:[%s153 + $0x70] sm:$0xff]
      %v242 = vld [vmem:[%s153 + $0x78] sm:$0xff]
      %v243 = vld [vmem:[%s153 + $0x80] sm:$0xff]
      %v244 = vld [vmem:[%s153 + $0x88] sm:$0xff]
      %v245 = vld [vmem:[%s153 + $0x90] sm:$0xff]
      %v246 = vld [vmem:[%s153 + $0x98] sm:$0xff]
      %v247 = vld [vmem:[%s153 + $0xa0] sm:$0xff]
      %v248 = vld [vmem:[%s153 + $0xa8] sm:$0xff]
      %v249 = vld [vmem:[%s153 + $0xb0] sm:$0xff]
      %v250 = vld [vmem:[%s153 + $0xb8] sm:$0xff]
      %v251 = vld [vmem:[%s153 + $0xc0] sm:$0xff]
      %v252 = vld [vmem:[%s153 + $0xc8] sm:$0xff]
      %v253 = vld [vmem:[%s153 + $0xd0] sm:$0xff]
      %v254 = vld [vmem:[%s153 + $0xd8] sm:$0xff]
      %v255 = vld [vmem:[%s153 + $0xe0] sm:$0xff]
      %v256 = vld [vmem:[%s153 + $0xe8] sm:$0xff]
      %v257 = vld [vmem:[%s153 + $0xf0] sm:$0xff]
      %v258 = vld [vmem:[%s153 + $0xf8] sm:$0xff]
      %v259 = vld [vmem:[%s153 + $0x100] sm:$0xff]
      %v260 = vld [vmem:[%s153 + $0x108] sm:$0xff]
      %v261 = vld [vmem:[%s153 + $0x110] sm:$0xff]
      %v262 = vld [vmem:[%s153 + $0x118] sm:$0xff]
      %v263 = vld [vmem:[%s153 + $0x120] sm:$0xff]
      %v264 = vld [vmem:[%s153 + $0x128] sm:$0xff]
      %v265 = vld [vmem:[%s153 + $0x130] sm:$0xff]
      %v266 = vld [vmem:[%s153 + $0x138] sm:$0xff]
      %v267 = vld [vmem:[%s153 + $0x140] sm:$0xff]
      %v268 = vld [vmem:[%s153 + $0x148] sm:$0xff]
      %v269 = vld [vmem:[%s153 + $0x150] sm:$0xff]
      %v270 = vld [vmem:[%s153 + $0x158] sm:$0xff]
      %v271 = vld [vmem:[%s153 + $0x160] sm:$0xff]
      %v272 = vld [vmem:[%s153 + $0x168] sm:$0xff]
      %v273 = vld [vmem:[%s153 + $0x170] sm:$0xff]
      %v274 = vld [vmem:[%s153 + $0x178] sm:$0xff]
      %v275 = vld [vmem:[%s153 + $0x180] sm:$0xff]
      %v276 = vld [vmem:[%s153 + $0x188] sm:$0xff]
      %v277 = vld [vmem:[%s153 + $0x190] sm:$0xff]
      %v278 = vld [vmem:[%s153 + $0x198] sm:$0xff]
      %v279 = vld [vmem:[%s153 + $0x1a0] sm:$0xff]
      %v280 = vld [vmem:[%s153 + $0x1a8] sm:$0xff]
      %v281 = vld [vmem:[%s153 + $0x1b0] sm:$0xff]
      %v282 = vld [vmem:[%s153 + $0x1b8] sm:$0xff]
      %v283 = vld [vmem:[%s153 + $0x1c0] sm:$0xff]
      %v284 = vld [vmem:[%s153 + $0x1c8] sm:$0xff]
      %v285 = vld [vmem:[%s153 + $0x1d0] sm:$0xff]
      %v286 = vld [vmem:[%s153 + $0x1d8] sm:$0xff]
      %v287 = vld [vmem:[%s153 + $0x1e0] sm:$0xff]
      %v288 = vld [vmem:[%s153 + $0x1e8] sm:$0xff]
      %v289 = vld [vmem:[%s153 + $0x1f0] sm:$0xff]
      %v290 = vld [vmem:[%s153 + $0x1f8] sm:$0xff]
      %v291 = vld [vmem:[%s153 + $0x200] sm:$0xff]
      %v292 = vld [vmem:[%s153 + $0x208] sm:$0xff]
      %v293 = vld [vmem:[%s153 + $0x210] sm:$0xff]
      %v294 = vld [vmem:[%s153 + $0x218] sm:$0xff]
      %v295 = vld [vmem:[%s153 + $0x220] sm:$0xff]
      %v296 = vld [vmem:[%s153 + $0x228] sm:$0xff]
      %v297 = vld [vmem:[%s153 + $0x230] sm:$0xff]
      %v298 = vld [vmem:[%s153 + $0x238] sm:$0xff]
      %v299 = vld [vmem:[%s153 + $0x240] sm:$0xff]
      %v300 = vld [vmem:[%s153 + $0x248] sm:$0xff]
      %v301 = vld [vmem:[%s153 + $0x250] sm:$0xff]
      %v302 = vld [vmem:[%s153 + $0x258] sm:$0xff]
      %v303 = vld [vmem:[%s153 + $0x260] sm:$0xff]
      %v304 = vld [vmem:[%s153 + $0x268] sm:$0xff]
      %v305 = vld [vmem:[%s153 + $0x270] sm:$0xff]
      %v306 = vld [vmem:[%s153 + $0x278] sm:$0xff]
      %v307 = vld [vmem:[%s153 + $0x280] sm:$0xff]
      %v308 = vld [vmem:[%s153 + $0x288] sm:$0xff]
      %v309 = vld [vmem:[%s153 + $0x290] sm:$0xff]
      %v310 = vld [vmem:[%s153 + $0x298] sm:$0xff]
      %v311 = vld [vmem:[%s153 + $0x2a0] sm:$0xff]
      %v312 = vld [vmem:[%s153 + $0x2a8] sm:$0xff]
      %v313 = vld [vmem:[%s153 + $0x2b0] sm:$0xff]
      %v314 = vld [vmem:[%s153 + $0x2b8] sm:$0xff]
      %v315 = vld [vmem:[%s153 + $0x2c0] sm:$0xff]
      %v316 = vld [vmem:[%s153 + $0x2c8] sm:$0xff]
      %v317 = vld [vmem:[%s153 + $0x2d0] sm:$0xff]
      %v318 = vld [vmem:[%s153 + $0x2d8] sm:$0xff]
      %v319 = vld [vmem:[%s153 + $0x2e0] sm:$0xff]
      %v320 = vld [vmem:[%s153 + $0x2e8] sm:$0xff]
      %v321 = vld [vmem:[%s153 + $0x2f0] sm:$0xff]
      %v322 = vld [vmem:[%s153 + $0x2f8] sm:$0xff]
      %v323 = vld [vmem:[%s153 + $0x300] sm:$0xff]
      %v324 = vld [vmem:[%s153 + $0x308] sm:$0xff]
      %v325 = vld [vmem:[%s153 + $0x310] sm:$0xff]
      %v326 = vld [vmem:[%s153 + $0x318] sm:$0xff]
      %v327 = vld [vmem:[%s153 + $0x320] sm:$0xff]
      %v328 = vld [vmem:[%s153 + $0x328] sm:$0xff]
      %v329 = vld [vmem:[%s153 + $0x330] sm:$0xff]
      %v330 = vld [vmem:[%s153 + $0x338] sm:$0xff]
      %v331 = vld [vmem:[%s153 + $0x340] sm:$0xff]
      %v332 = vld [vmem:[%s153 + $0x348] sm:$0xff]
      %v333 = vld [vmem:[%s153 + $0x350] sm:$0xff]
      %v334 = vld [vmem:[%s153 + $0x358] sm:$0xff]
      %v335 = vld [vmem:[%s153 + $0x360] sm:$0xff]
      %v336 = vld [vmem:[%s153 + $0x368] sm:$0xff]
      %v337 = vld [vmem:[%s153 + $0x370] sm:$0xff]
      %v338 = vld [vmem:[%s153 + $0x378] sm:$0xff]
      %v339 = vld [vmem:[%s153 + $0x380] sm:$0xff]
      %v340 = vld [vmem:[%s153 + $0x388] sm:$0xff]
      %v341 = vld [vmem:[%s153 + $0x390] sm:$0xff]
      %v342 = vld [vmem:[%s153 + $0x398] sm:$0xff]
      %v343 = vld [vmem:[%s153 + $0x3a0] sm:$0xff]
      %v344 = vld [vmem:[%s153 + $0x3a8] sm:$0xff]
      %v345 = vld [vmem:[%s153 + $0x3b0] sm:$0xff]
      %v346 = vld [vmem:[%s153 + $0x3b8] sm:$0xff]
      %v347 = vld [vmem:[%s153 + $0x3c0] sm:$0xff]
      %v348 = vld [vmem:[%s153 + $0x3c8] sm:$0xff]
      %v349 = vld [vmem:[%s153 + $0x3d0] sm:$0xff]
      %v350 = vld [vmem:[%s153 + $0x3d8] sm:$0xff]
      %v351 = vld [vmem:[%s153 + $0x3e0] sm:$0xff]
      %v352 = vld [vmem:[%s153 + $0x3e8] sm:$0xff]
      %v353 = vld [vmem:[%s153 + $0x3f0] sm:$0xff]
      %v354 = vld [vmem:[%s153 + $0x3f8] sm:$0xff]
      %v355 = vld [vmem:[%s153 + $0x400] sm:$0xff]
      %v356 = vld [vmem:[%s153 + $0x408] sm:$0xff]
      %v357 = vld [vmem:[%s153 + $0x410] sm:$0xff]
      %v358 = vld [vmem:[%s153 + $0x418] sm:$0xff]
      %v359 = vld [vmem:[%s153 + $0x420] sm:$0xff]
      %v360 = vld [vmem:[%s153 + $0x428] sm:$0xff]
      %v361 = vld [vmem:[%s153 + $0x430] sm:$0xff]
      %v362 = vld [vmem:[%s153 + $0x438] sm:$0xff]
      %v363 = vld [vmem:[%s153 + $0x440] sm:$0xff]
      %v364 = vld [vmem:[%s153 + $0x448] sm:$0xff]
      %v365 = vld [vmem:[%s153 + $0x450] sm:$0xff]
      %v366 = vld [vmem:[%s153 + $0x458] sm:$0xff]
      %v367 = vld [vmem:[%s153 + $0x460] sm:$0xff]
      %v368 = vld [vmem:[%s153 + $0x468] sm:$0xff]
      %v369 = vld [vmem:[%s153 + $0x470] sm:$0xff]
      %v370 = vld [vmem:[%s153 + $0x478] sm:$0xff]
      %v371 = vld [vmem:[%s153 + $0x480] sm:$0xff]
      %v372 = vld [vmem:[%s153 + $0x488] sm:$0xff]
      %v373 = vld [vmem:[%s153 + $0x490] sm:$0xff]
      %v374 = vld [vmem:[%s153 + $0x498] sm:$0xff]
      %v375 = vld [vmem:[%s153 + $0x4a0] sm:$0xff]
      %v376 = vld [vmem:[%s153 + $0x4a8] sm:$0xff]
      %v377 = vld [vmem:[%s153 + $0x4b0] sm:$0xff]
      %v378 = vld [vmem:[%s153 + $0x4b8] sm:$0xff]
      %v379 = vld [vmem:[%s153 + $0x4c0] sm:$0xff]
      %v380 = vld [vmem:[%s153 + $0x4c8] sm:$0xff]
      %v381 = vld [vmem:[%s153 + $0x4d0] sm:$0xff]
      %v382 = vld [vmem:[%s153 + $0x4d8] sm:$0xff]
      %v383 = vld [vmem:[%s153 + $0x4e0] sm:$0xff]
      %v384 = vld [vmem:[%s153 + $0x4e8] sm:$0xff]
      %v385 = vld [vmem:[%s153 + $0x4f0] sm:$0xff]
      %v386 = vld [vmem:[%s153 + $0x4f8] sm:$0xff]
      %v387 = vld [vmem:[%s153 + $0x500] sm:$0xff]
      %v388 = vld [vmem:[%s153 + $0x508] sm:$0xff]
      %v389 = vld [vmem:[%s153 + $0x510] sm:$0xff]
      %v390 = vld [vmem:[%s153 + $0x518] sm:$0xff]
      %v391 = vld [vmem:[%s153 + $0x520] sm:$0xff]
      %v392 = vld [vmem:[%s153 + $0x528] sm:$0xff]
      %v393 = vld [vmem:[%s153 + $0x530] sm:$0xff]
      %v394 = vld [vmem:[%s153 + $0x538] sm:$0xff]
      %v395 = vld [vmem:[%s153 + $0x540] sm:$0xff]
      %v396 = vld [vmem:[%s153 + $0x548] sm:$0xff]
      %v397 = vld [vmem:[%s153 + $0x550] sm:$0xff]
      %v398 = vld [vmem:[%s153 + $0x558] sm:$0xff]
      %v399 = vld [vmem:[%s153 + $0x560] sm:$0xff]
      %v400 = vld [vmem:[%s153 + $0x568] sm:$0xff]
      %v401 = vld [vmem:[%s153 + $0x570] sm:$0xff]
      %v402 = vld [vmem:[%s153 + $0x578] sm:$0xff]
      %v403 = vld [vmem:[%s153 + $0x580] sm:$0xff]
      %v404 = vld [vmem:[%s153 + $0x588] sm:$0xff]
      %v405 = vld [vmem:[%s153 + $0x590] sm:$0xff]
      %v406 = vld [vmem:[%s153 + $0x598] sm:$0xff]
      %v407 = vld [vmem:[%s153 + $0x5a0] sm:$0xff]
      %v408 = vld [vmem:[%s153 + $0x5a8] sm:$0xff]
      %v409 = vld [vmem:[%s153 + $0x5b0] sm:$0xff]
      %v410 = vld [vmem:[%s153 + $0x5b8] sm:$0xff]
      %v411 = vld [vmem:[%s153 + $0x5c0] sm:$0xff]
      %v412 = vld [vmem:[%s153 + $0x5c8] sm:$0xff]
      %v413 = vld [vmem:[%s153 + $0x5d0] sm:$0xff]
      %v414 = vld [vmem:[%s153 + $0x5d8] sm:$0xff]
      %v415 = vld [vmem:[%s153 + $0x5e0] sm:$0xff]
      %v416 = vld [vmem:[%s153 + $0x5e8] sm:$0xff]
      %v417 = vld [vmem:[%s153 + $0x5f0] sm:$0xff]
      %v418 = vld [vmem:[%s153 + $0x5f8] sm:$0xff]
      %v419 = vld [vmem:[%s153 + $0x600] sm:$0xff]
      %v420 = vld [vmem:[%s153 + $0x608] sm:$0xff]
      %v421 = vld [vmem:[%s153 + $0x610] sm:$0xff]
      %v422 = vld [vmem:[%s153 + $0x618] sm:$0xff]
      %v423 = vld [vmem:[%s153 + $0x620] sm:$0xff]
      %v424 = vld [vmem:[%s153 + $0x628] sm:$0xff]
      %v425 = vld [vmem:[%s153 + $0x630] sm:$0xff]
      %v426 = vld [vmem:[%s153 + $0x638] sm:$0xff]
      %vm427 = vcmask 130048
      %v428 = vsel %vm427, %v227, -inf
      %v429 = vsel %vm427, %v235, -inf
      %v430 = vmax.f32 %v428, %v429
      %v431 = vsel %vm427, %v243, -inf
      %v432 = vmax.f32 %v430, %v431
      %v433 = vsel %vm427, %v251, -inf
      %v434 = vmax.f32 %v432, %v433
      %v435 = vsel %vm427, %v259, -inf
      %v436 = vmax.f32 %v434, %v435
      %v437 = vsel %vm427, %v267, -inf
      %v438 = vmax.f32 %v436, %v437
      %v439 = vsel %vm427, %v275, -inf
      %v440 = vmax.f32 %v438, %v439
      %v441 = vsel %vm427, %v283, -inf
      %v442 = vmax.f32 %v440, %v441
      %v443 = vsel %vm427, %v291, -inf
      %v444 = vmax.f32 %v442, %v443
      %v445 = vsel %vm427, %v299, -inf
      %v446 = vmax.f32 %v444, %v445
      %v447 = vsel %vm427, %v307, -inf
      %v448 = vmax.f32 %v446, %v447
      %v449 = vsel %vm427, %v315, -inf
      %v450 = vmax.f32 %v448, %v449
      %v451 = vsel %vm427, %v323, -inf
      %v452 = vmax.f32 %v450, %v451
      %v453 = vsel %vm427, %v331, -inf
      %v454 = vmax.f32 %v452, %v453
      %v455 = vsel %vm427, %v339, -inf
      %v456 = vmax.f32 %v454, %v455
      %v457 = vsel %vm427, %v347, -inf
      %v458 = vmax.f32 %v456, %v457
      %v459 = vsel %vm427, %v355, -inf
      %v460 = vmax.f32 %v458, %v459
      %v461 = vsel %vm427, %v363, -inf
      %v462 = vmax.f32 %v460, %v461
      %v463 = vsel %vm427, %v371, -inf
      %v464 = vmax.f32 %v462, %v463
      %v465 = vsel %vm427, %v379, -inf
      %v466 = vmax.f32 %v464, %v465
      %v467 = vsel %vm427, %v387, -inf
      %v468 = vmax.f32 %v466, %v467
      %v469 = vsel %vm427, %v395, -inf
      %v470 = vmax.f32 %v468, %v469
      %v471 = vsel %vm427, %v403, -inf
      %v472 = vmax.f32 %v470, %v471
      %v473 = vsel %vm427, %v411, -inf
      %v474 = vmax.f32 %v472, %v473
      %v475 = vsel %vm427, %v419, -inf
      %v476 = vmax.f32 %v474, %v475
      %v477 = vsel %vm427, %v228, -inf
      %v478 = vsel %vm427, %v236, -inf
      %v479 = vmax.f32 %v477, %v478
      %v480 = vsel %vm427, %v244, -inf
      %v481 = vmax.f32 %v479, %v480
      %v482 = vsel %vm427, %v252, -inf
      %v483 = vmax.f32 %v481, %v482
      %v484 = vsel %vm427, %v260, -inf
      %v485 = vmax.f32 %v483, %v484
      %v486 = vsel %vm427, %v268, -inf
      %v487 = vmax.f32 %v485, %v486
      %v488 = vsel %vm427, %v276, -inf
      %v489 = vmax.f32 %v487, %v488
      %v490 = vsel %vm427, %v284, -inf
      %v491 = vmax.f32 %v489, %v490
      %v492 = vsel %vm427, %v292, -inf
      %v493 = vmax.f32 %v491, %v492
      %v494 = vsel %vm427, %v300, -inf
      %v495 = vmax.f32 %v493, %v494
      %v496 = vsel %vm427, %v308, -inf
      %v497 = vmax.f32 %v495, %v496
      %v498 = vsel %vm427, %v316, -inf
      %v499 = vmax.f32 %v497, %v498
      %v500 = vsel %vm427, %v324, -inf
      %v501 = vmax.f32 %v499, %v500
      %v502 = vsel %vm427, %v332, -inf
      %v503 = vmax.f32 %v501, %v502
      %v504 = vsel %vm427, %v340, -inf
      %v505 = vmax.f32 %v503, %v504
      %v506 = vsel %vm427, %v348, -inf
      %v507 = vmax.f32 %v505, %v506
      %v508 = vsel %vm427, %v356, -inf
      %v509 = vmax.f32 %v507, %v508
      %v510 = vsel %vm427, %v364, -inf
      %v511 = vmax.f32 %v509, %v510
      %v512 = vsel %vm427, %v372, -inf
      %v513 = vmax.f32 %v511, %v512
      %v514 = vsel %vm427, %v380, -inf
      %v515 = vmax.f32 %v513, %v514
      %v516 = vsel %vm427, %v388, -inf
      %v517 = vmax.f32 %v515, %v516
      %v518 = vsel %vm427, %v396, -inf
      %v519 = vmax.f32 %v517, %v518
      %v520 = vsel %vm427, %v404, -inf
      %v521 = vmax.f32 %v519, %v520
      %v522 = vsel %vm427, %v412, -inf
      %v523 = vmax.f32 %v521, %v522
      %v524 = vsel %vm427, %v420, -inf
      %v525 = vmax.f32 %v523, %v524
      %v526 = vsel %vm427, %v229, -inf
      %v527 = vsel %vm427, %v237, -inf
      %v528 = vmax.f32 %v526, %v527
      %v529 = vsel %vm427, %v245, -inf
      %v530 = vmax.f32 %v528, %v529
      %v531 = vsel %vm427, %v253, -inf
      %v532 = vmax.f32 %v530, %v531
      %v533 = vsel %vm427, %v261, -inf
      %v534 = vmax.f32 %v532, %v533
      %v535 = vsel %vm427, %v269, -inf
      %v536 = vmax.f32 %v534, %v535
      %v537 = vsel %vm427, %v277, -inf
      %v538 = vmax.f32 %v536, %v537
      %v539 = vsel %vm427, %v285, -inf
      %v540 = vmax.f32 %v538, %v539
      %v541 = vsel %vm427, %v293, -inf
      %v542 = vmax.f32 %v540, %v541
      %v543 = vsel %vm427, %v301, -inf
      %v544 = vmax.f32 %v542, %v543
      %v545 = vsel %vm427, %v309, -inf
      %v546 = vmax.f32 %v544, %v545
      %v547 = vsel %vm427, %v317, -inf
      %v548 = vmax.f32 %v546, %v547
      %v549 = vsel %vm427, %v325, -inf
      %v550 = vmax.f32 %v548, %v549
      %v551 = vsel %vm427, %v333, -inf
      %v552 = vmax.f32 %v550, %v551
      %v553 = vsel %vm427, %v341, -inf
      %v554 = vmax.f32 %v552, %v553
      %v555 = vsel %vm427, %v349, -inf
      %v556 = vmax.f32 %v554, %v555
      %v557 = vsel %vm427, %v357, -inf
      %v558 = vmax.f32 %v556, %v557
      %v559 = vsel %vm427, %v365, -inf
      %v560 = vmax.f32 %v558, %v559
      %v561 = vsel %vm427, %v373, -inf
      %v562 = vmax.f32 %v560, %v561
      %v563 = vsel %vm427, %v381, -inf
      %v564 = vmax.f32 %v562, %v563
      %v565 = vsel %vm427, %v389, -inf
      %v566 = vmax.f32 %v564, %v565
      %v567 = vsel %vm427, %v397, -inf
      %v568 = vmax.f32 %v566, %v567
      %v569 = vsel %vm427, %v405, -inf
      %v570 = vmax.f32 %v568, %v569
      %v571 = vsel %vm427, %v413, -inf
      %v572 = vmax.f32 %v570, %v571
      %v573 = vsel %vm427, %v421, -inf
      %v574 = vmax.f32 %v572, %v573
      %v575 = vsel %vm427, %v230, -inf
      %v576 = vsel %vm427, %v238, -inf
      %v577 = vmax.f32 %v575, %v576
      %v578 = vsel %vm427, %v246, -inf
      %v579 = vmax.f32 %v577, %v578
      %v580 = vsel %vm427, %v254, -inf
      %v581 = vmax.f32 %v579, %v580
      %v582 = vsel %vm427, %v262, -inf
      %v583 = vmax.f32 %v581, %v582
      %v584 = vsel %vm427, %v270, -inf
      %v585 = vmax.f32 %v583, %v584
      %v586 = vsel %vm427, %v278, -inf
      %v587 = vmax.f32 %v585, %v586
      %v588 = vsel %vm427, %v286, -inf
      %v589 = vmax.f32 %v587, %v588
      %v590 = vsel %vm427, %v294, -inf
      %v591 = vmax.f32 %v589, %v590
      %v592 = vsel %vm427, %v302, -inf
      %v593 = vmax.f32 %v591, %v592
      %v594 = vsel %vm427, %v310, -inf
      %v595 = vmax.f32 %v593, %v594
      %v596 = vsel %vm427, %v318, -inf
      %v597 = vmax.f32 %v595, %v596
      %v598 = vsel %vm427, %v326, -inf
      %v599 = vmax.f32 %v597, %v598
      %v600 = vsel %vm427, %v334, -inf
      %v601 = vmax.f32 %v599, %v600
      %v602 = vsel %vm427, %v342, -inf
      %v603 = vmax.f32 %v601, %v602
      %v604 = vsel %vm427, %v350, -inf
      %v605 = vmax.f32 %v603, %v604
      %v606 = vsel %vm427, %v358, -inf
      %v607 = vmax.f32 %v605, %v606
      %v608 = vsel %vm427, %v366, -inf
      %v609 = vmax.f32 %v607, %v608
      %v610 = vsel %vm427, %v374, -inf
      %v611 = vmax.f32 %v609, %v610
      %v612 = vsel %vm427, %v382, -inf
      %v613 = vmax.f32 %v611, %v612
      %v614 = vsel %vm427, %v390, -inf
      %v615 = vmax.f32 %v613, %v614
      %v616 = vsel %vm427, %v398, -inf
      %v617 = vmax.f32 %v615, %v616
      %v618 = vsel %vm427, %v406, -inf
      %v619 = vmax.f32 %v617, %v618
      %v620 = vsel %vm427, %v414, -inf
      %v621 = vmax.f32 %v619, %v620
      %v622 = vsel %vm427, %v422, -inf
      %v623 = vmax.f32 %v621, %v622
      %v624 = vsel %vm427, %v231, -inf
      %v625 = vsel %vm427, %v239, -inf
      %v626 = vmax.f32 %v624, %v625
      %v627 = vsel %vm427, %v247, -inf
      %v628 = vmax.f32 %v626, %v627
      %v629 = vsel %vm427, %v255, -inf
      %v630 = vmax.f32 %v628, %v629
      %v631 = vsel %vm427, %v263, -inf
      %v632 = vmax.f32 %v630, %v631
      %v633 = vsel %vm427, %v271, -inf
      %v634 = vmax.f32 %v632, %v633
      %v635 = vsel %vm427, %v279, -inf
      %v636 = vmax.f32 %v634, %v635
      %v637 = vsel %vm427, %v287, -inf
      %v638 = vmax.f32 %v636, %v637
      %v639 = vsel %vm427, %v295, -inf
      %v640 = vmax.f32 %v638, %v639
      %v641 = vsel %vm427, %v303, -inf
      %v642 = vmax.f32 %v640, %v641
      %v643 = vsel %vm427, %v311, -inf
      %v644 = vmax.f32 %v642, %v643
      %v645 = vsel %vm427, %v319, -inf
      %v646 = vmax.f32 %v644, %v645
      %v647 = vsel %vm427, %v327, -inf
      %v648 = vmax.f32 %v646, %v647
      %v649 = vsel %vm427, %v335, -inf
      %v650 = vmax.f32 %v648, %v649
      %v651 = vsel %vm427, %v343, -inf
      %v652 = vmax.f32 %v650, %v651
      %v653 = vsel %vm427, %v351, -inf
      %v654 = vmax.f32 %v652, %v653
      %v655 = vsel %vm427, %v359, -inf
      %v656 = vmax.f32 %v654, %v655
      %v657 = vsel %vm427, %v367, -inf
      %v658 = vmax.f32 %v656, %v657
      %v659 = vsel %vm427, %v375, -inf
      %v660 = vmax.f32 %v658, %v659
      %v661 = vsel %vm427, %v383, -inf
      %v662 = vmax.f32 %v660, %v661
      %v663 = vsel %vm427, %v391, -inf
      %v664 = vmax.f32 %v662, %v663
      %v665 = vsel %vm427, %v399, -inf
      %v666 = vmax.f32 %v664, %v665
      %v667 = vsel %vm427, %v407, -inf
      %v668 = vmax.f32 %v666, %v667
      %v669 = vsel %vm427, %v415, -inf
      %v670 = vmax.f32 %v668, %v669
      %v671 = vsel %vm427, %v423, -inf
      %v672 = vmax.f32 %v670, %v671
      %v673 = vsel %vm427, %v232, -inf
      %v674 = vsel %vm427, %v240, -inf
      %v675 = vmax.f32 %v673, %v674
      %v676 = vsel %vm427, %v248, -inf
      %v677 = vmax.f32 %v675, %v676
      %v678 = vsel %vm427, %v256, -inf
      %v679 = vmax.f32 %v677, %v678
      %v680 = vsel %vm427, %v264, -inf
      %v681 = vmax.f32 %v679, %v680
      %v682 = vsel %vm427, %v272, -inf
      %v683 = vmax.f32 %v681, %v682
      %v684 = vsel %vm427, %v280, -inf
      %v685 = vmax.f32 %v683, %v684
      %v686 = vsel %vm427, %v288, -inf
      %v687 = vmax.f32 %v685, %v686
      %v688 = vsel %vm427, %v296, -inf
      %v689 = vmax.f32 %v687, %v688
      %v690 = vsel %vm427, %v304, -inf
      %v691 = vmax.f32 %v689, %v690
      %v692 = vsel %vm427, %v312, -inf
      %v693 = vmax.f32 %v691, %v692
      %v694 = vsel %vm427, %v320, -inf
      %v695 = vmax.f32 %v693, %v694
      %v696 = vsel %vm427, %v328, -inf
      %v697 = vmax.f32 %v695, %v696
      %v698 = vsel %vm427, %v336, -inf
      %v699 = vmax.f32 %v697, %v698
      %v700 = vsel %vm427, %v344, -inf
      %v701 = vmax.f32 %v699, %v700
      %v702 = vsel %vm427, %v352, -inf
      %v703 = vmax.f32 %v701, %v702
      %v704 = vsel %vm427, %v360, -inf
      %v705 = vmax.f32 %v703, %v704
      %v706 = vsel %vm427, %v368, -inf
      %v707 = vmax.f32 %v705, %v706
      %v708 = vsel %vm427, %v376, -inf
      %v709 = vmax.f32 %v707, %v708
      %v710 = vsel %vm427, %v384, -inf
      %v711 = vmax.f32 %v709, %v710
      %v712 = vsel %vm427, %v392, -inf
      %v713 = vmax.f32 %v711, %v712
      %v714 = vsel %vm427, %v400, -inf
      %v715 = vmax.f32 %v713, %v714
      %v716 = vsel %vm427, %v408, -inf
      %v717 = vmax.f32 %v715, %v716
      %v718 = vsel %vm427, %v416, -inf
      %v719 = vmax.f32 %v717, %v718
      %v720 = vsel %vm427, %v424, -inf
      %v721 = vmax.f32 %v719, %v720
      %v722 = vsel %vm427, %v233, -inf
      %v723 = vsel %vm427, %v241, -inf
      %v724 = vmax.f32 %v722, %v723
      %v725 = vsel %vm427, %v249, -inf
      %v726 = vmax.f32 %v724, %v725
      %v727 = vsel %vm427, %v257, -inf
      %v728 = vmax.f32 %v726, %v727
      %v729 = vsel %vm427, %v265, -inf
      %v730 = vmax.f32 %v728, %v729
      %v731 = vsel %vm427, %v273, -inf
      %v732 = vmax.f32 %v730, %v731
      %v733 = vsel %vm427, %v281, -inf
      %v734 = vmax.f32 %v732, %v733
      %v735 = vsel %vm427, %v289, -inf
      %v736 = vmax.f32 %v734, %v735
      %v737 = vsel %vm427, %v297, -inf
      %v738 = vmax.f32 %v736, %v737
      %v739 = vsel %vm427, %v305, -inf
      %v740 = vmax.f32 %v738, %v739
      %v741 = vsel %vm427, %v313, -inf
      %v742 = vmax.f32 %v740, %v741
      %v743 = vsel %vm427, %v321, -inf
      %v744 = vmax.f32 %v742, %v743
      %v745 = vsel %vm427, %v329, -inf
      %v746 = vmax.f32 %v744, %v745
      %v747 = vsel %vm427, %v337, -inf
      %v748 = vmax.f32 %v746, %v747
      %v749 = vsel %vm427, %v345, -inf
      %v750 = vmax.f32 %v748, %v749
      %v751 = vsel %vm427, %v353, -inf
      %v752 = vmax.f32 %v750, %v751
      %v753 = vsel %vm427, %v361, -inf
      %v754 = vmax.f32 %v752, %v753
      %v755 = vsel %vm427, %v369, -inf
      %v756 = vmax.f32 %v754, %v755
      %v757 = vsel %vm427, %v377, -inf
      %v758 = vmax.f32 %v756, %v757
      %v759 = vsel %vm427, %v385, -inf
      %v760 = vmax.f32 %v758, %v759
      %v761 = vsel %vm427, %v393, -inf
      %v762 = vmax.f32 %v760, %v761
      %v763 = vsel %vm427, %v401, -inf
      %v764 = vmax.f32 %v762, %v763
      %v765 = vsel %vm427, %v409, -inf
      %v766 = vmax.f32 %v764, %v765
      %v767 = vsel %vm427, %v417, -inf
      %v768 = vmax.f32 %v766, %v767
      %v769 = vsel %vm427, %v425, -inf
      %v770 = vmax.f32 %v768, %v769
      %v771 = vsel %vm427, %v234, -inf
      %v772 = vsel %vm427, %v242, -inf
      %v773 = vmax.f32 %v771, %v772
      %v774 = vsel %vm427, %v250, -inf
      %v775 = vmax.f32 %v773, %v774
      %v776 = vsel %vm427, %v258, -inf
      %v777 = vmax.f32 %v775, %v776
      %v778 = vsel %vm427, %v266, -inf
      %v779 = vmax.f32 %v777, %v778
      %v780 = vsel %vm427, %v274, -inf
      %v781 = vmax.f32 %v779, %v780
      %v782 = vsel %vm427, %v282, -inf
      %v783 = vmax.f32 %v781, %v782
      %v784 = vsel %vm427, %v290, -inf
      %v785 = vmax.f32 %v783, %v784
      %v786 = vsel %vm427, %v298, -inf
      %v787 = vmax.f32 %v785, %v786
      %v788 = vsel %vm427, %v306, -inf
      %v789 = vmax.f32 %v787, %v788
      %v790 = vsel %vm427, %v314, -inf
      %v791 = vmax.f32 %v789, %v790
      %v792 = vsel %vm427, %v322, -inf
      %v793 = vmax.f32 %v791, %v792
      %v794 = vsel %vm427, %v330, -inf
      %v795 = vmax.f32 %v793, %v794
      %v796 = vsel %vm427, %v338, -inf
      %v797 = vmax.f32 %v795, %v796
      %v798 = vsel %vm427, %v346, -inf
      %v799 = vmax.f32 %v797, %v798
      %v800 = vsel %vm427, %v354, -inf
      %v801 = vmax.f32 %v799, %v800
      %v802 = vsel %vm427, %v362, -inf
      %v803 = vmax.f32 %v801, %v802
      %v804 = vsel %vm427, %v370, -inf
      %v805 = vmax.f32 %v803, %v804
      %v806 = vsel %vm427, %v378, -inf
      %v807 = vmax.f32 %v805, %v806
      %v808 = vsel %vm427, %v386, -inf
      %v809 = vmax.f32 %v807, %v808
      %v810 = vsel %vm427, %v394, -inf
      %v811 = vmax.f32 %v809, %v810
      %v812 = vsel %vm427, %v402, -inf
      %v813 = vmax.f32 %v811, %v812
      %v814 = vsel %vm427, %v410, -inf
      %v815 = vmax.f32 %v813, %v814
      %v816 = vsel %vm427, %v418, -inf
      %v817 = vmax.f32 %v815, %v816
      %v818 = vsel %vm427, %v426, -inf
      %v819 = vmax.f32 %v817, %v818
      %v820 = vsub.f32 %v227, %v476
      %v821 = vsub.f32 %v228, %v525
      %v822 = vsub.f32 %v229, %v574
      %v823 = vsub.f32 %v230, %v623
      %v824 = vsub.f32 %v231, %v672
      %v825 = vsub.f32 %v232, %v721
      %v826 = vsub.f32 %v233, %v770
      %v827 = vsub.f32 %v234, %v819
      %v828 = vsub.f32 %v235, %v476
      %v829 = vsub.f32 %v236, %v525
      %v830 = vsub.f32 %v237, %v574
      %v831 = vsub.f32 %v238, %v623
      %v832 = vsub.f32 %v239, %v672
      %v833 = vsub.f32 %v240, %v721
      %v834 = vsub.f32 %v241, %v770
      %v835 = vsub.f32 %v242, %v819
      %v836 = vsub.f32 %v243, %v476
      %v837 = vsub.f32 %v244, %v525
      %v838 = vsub.f32 %v245, %v574
      %v839 = vsub.f32 %v246, %v623
      %v840 = vsub.f32 %v247, %v672
      %v841 = vsub.f32 %v248, %v721
      %v842 = vsub.f32 %v249, %v770
      %v843 = vsub.f32 %v250, %v819
      %v844 = vsub.f32 %v251, %v476
      %v845 = vsub.f32 %v252, %v525
      %v846 = vsub.f32 %v253, %v574
      %v847 = vsub.f32 %v254, %v623
      %v848 = vsub.f32 %v255, %v672
      %v849 = vsub.f32 %v256, %v721
      %v850 = vsub.f32 %v257, %v770
      %v851 = vsub.f32 %v258, %v819
      %v852 = vsub.f32 %v259, %v476
      %v853 = vsub.f32 %v260, %v525
      %v854 = vsub.f32 %v261, %v574
      %v855 = vsub.f32 %v262, %v623
      %v856 = vsub.f32 %v263, %v672
      %v857 = vsub.f32 %v264, %v721
      %v858 = vsub.f32 %v265, %v770
      %v859 = vsub.f32 %v266, %v819
      %v860 = vsub.f32 %v267, %v476
      %v861 = vsub.f32 %v268, %v525
      %v862 = vsub.f32 %v269, %v574
      %v863 = vsub.f32 %v270, %v623
      %v864 = vsub.f32 %v271, %v672
      %v865 = vsub.f32 %v272, %v721
      %v866 = vsub.f32 %v273, %v770
      %v867 = vsub.f32 %v274, %v819
      %v868 = vsub.f32 %v275, %v476
      %v869 = vsub.f32 %v276, %v525
      %v870 = vsub.f32 %v277, %v574
      %v871 = vsub.f32 %v278, %v623
      %v872 = vsub.f32 %v279, %v672
      %v873 = vsub.f32 %v280, %v721
      %v874 = vsub.f32 %v281, %v770
      %v875 = vsub.f32 %v282, %v819
      %v876 = vsub.f32 %v283, %v476
      %v877 = vsub.f32 %v284, %v525
      %v878 = vsub.f32 %v285, %v574
      %v879 = vsub.f32 %v286, %v623
      %v880 = vsub.f32 %v287, %v672
      %v881 = vsub.f32 %v288, %v721
      %v882 = vsub.f32 %v289, %v770
      %v883 = vsub.f32 %v290, %v819
      %v884 = vsub.f32 %v291, %v476
      %v885 = vsub.f32 %v292, %v525
      %v886 = vsub.f32 %v293, %v574
      %v887 = vsub.f32 %v294, %v623
      %v888 = vsub.f32 %v295, %v672
      %v889 = vsub.f32 %v296, %v721
      %v890 = vsub.f32 %v297, %v770
      %v891 = vsub.f32 %v298, %v819
      %v892 = vsub.f32 %v299, %v476
      %v893 = vsub.f32 %v300, %v525
      %v894 = vsub.f32 %v301, %v574
      %v895 = vsub.f32 %v302, %v623
      %v896 = vsub.f32 %v303, %v672
      %v897 = vsub.f32 %v304, %v721
      %v898 = vsub.f32 %v305, %v770
      %v899 = vsub.f32 %v306, %v819
      %v900 = vsub.f32 %v307, %v476
      %v901 = vsub.f32 %v308, %v525
      %v902 = vsub.f32 %v309, %v574
      %v903 = vsub.f32 %v310, %v623
      %v904 = vsub.f32 %v311, %v672
      %v905 = vsub.f32 %v312, %v721
      %v906 = vsub.f32 %v313, %v770
      %v907 = vsub.f32 %v314, %v819
      %v908 = vsub.f32 %v315, %v476
      %v909 = vsub.f32 %v316, %v525
      %v910 = vsub.f32 %v317, %v574
      %v911 = vsub.f32 %v318, %v623
      %v912 = vsub.f32 %v319, %v672
      %v913 = vsub.f32 %v320, %v721
      %v914 = vsub.f32 %v321, %v770
      %v915 = vsub.f32 %v322, %v819
      %v916 = vsub.f32 %v323, %v476
      %v917 = vsub.f32 %v324, %v525
      %v918 = vsub.f32 %v325, %v574
      %v919 = vsub.f32 %v326, %v623
      %v920 = vsub.f32 %v327, %v672
      %v921 = vsub.f32 %v328, %v721
      %v922 = vsub.f32 %v329, %v770
      %v923 = vsub.f32 %v330, %v819
      %v924 = vsub.f32 %v331, %v476
      %v925 = vsub.f32 %v332, %v525
      %v926 = vsub.f32 %v333, %v574
      %v927 = vsub.f32 %v334, %v623
      %v928 = vsub.f32 %v335, %v672
      %v929 = vsub.f32 %v336, %v721
      %v930 = vsub.f32 %v337, %v770
      %v931 = vsub.f32 %v338, %v819
      %v932 = vsub.f32 %v339, %v476
      %v933 = vsub.f32 %v340, %v525
      %v934 = vsub.f32 %v341, %v574
      %v935 = vsub.f32 %v342, %v623
      %v936 = vsub.f32 %v343, %v672
      %v937 = vsub.f32 %v344, %v721
      %v938 = vsub.f32 %v345, %v770
      %v939 = vsub.f32 %v346, %v819
      %v940 = vsub.f32 %v347, %v476
      %v941 = vsub.f32 %v348, %v525
      %v942 = vsub.f32 %v349, %v574
      %v943 = vsub.f32 %v350, %v623
      %v944 = vsub.f32 %v351, %v672
      %v945 = vsub.f32 %v352, %v721
      %v946 = vsub.f32 %v353, %v770
      %v947 = vsub.f32 %v354, %v819
      %v948 = vsub.f32 %v355, %v476
      %v949 = vsub.f32 %v356, %v525
      %v950 = vsub.f32 %v357, %v574
      %v951 = vsub.f32 %v358, %v623
      %v952 = vsub.f32 %v359, %v672
      %v953 = vsub.f32 %v360, %v721
      %v954 = vsub.f32 %v361, %v770
      %v955 = vsub.f32 %v362, %v819
      %v956 = vsub.f32 %v363, %v476
      %v957 = vsub.f32 %v364, %v525
      %v958 = vsub.f32 %v365, %v574
      %v959 = vsub.f32 %v366, %v623
      %v960 = vsub.f32 %v367, %v672
      %v961 = vsub.f32 %v368, %v721
      %v962 = vsub.f32 %v369, %v770
      %v963 = vsub.f32 %v370, %v819
      %v964 = vsub.f32 %v371, %v476
      %v965 = vsub.f32 %v372, %v525
      %v966 = vsub.f32 %v373, %v574
      %v967 = vsub.f32 %v374, %v623
      %v968 = vsub.f32 %v375, %v672
      %v969 = vsub.f32 %v376, %v721
      %v970 = vsub.f32 %v377, %v770
      %v971 = vsub.f32 %v378, %v819
      %v972 = vsub.f32 %v379, %v476
      %v973 = vsub.f32 %v380, %v525
      %v974 = vsub.f32 %v381, %v574
      %v975 = vsub.f32 %v382, %v623
      %v976 = vsub.f32 %v383, %v672
      %v977 = vsub.f32 %v384, %v721
      %v978 = vsub.f32 %v385, %v770
      %v979 = vsub.f32 %v386, %v819
      %v980 = vsub.f32 %v387, %v476
      %v981 = vsub.f32 %v388, %v525
      %v982 = vsub.f32 %v389, %v574
      %v983 = vsub.f32 %v390, %v623
      %v984 = vsub.f32 %v391, %v672
      %v985 = vsub.f32 %v392, %v721
      %v986 = vsub.f32 %v393, %v770
      %v987 = vsub.f32 %v394, %v819
      %v988 = vsub.f32 %v395, %v476
      %v989 = vsub.f32 %v396, %v525
      %v990 = vsub.f32 %v397, %v574
      %v991 = vsub.f32 %v398, %v623
      %v992 = vsub.f32 %v399, %v672
      %v993 = vsub.f32 %v400, %v721
      %v994 = vsub.f32 %v401, %v770
      %v995 = vsub.f32 %v402, %v819
      %v996 = vsub.f32 %v403, %v476
      %v997 = vsub.f32 %v404, %v525
      %v998 = vsub.f32 %v405, %v574
      %v999 = vsub.f32 %v406, %v623
      %v1000 = vsub.f32 %v407, %v672
      %v1001 = vsub.f32 %v408, %v721
      %v1002 = vsub.f32 %v409, %v770
      %v1003 = vsub.f32 %v410, %v819
      %v1004 = vsub.f32 %v411, %v476
      %v1005 = vsub.f32 %v412, %v525
      %v1006 = vsub.f32 %v413, %v574
      %v1007 = vsub.f32 %v414, %v623
      %v1008 = vsub.f32 %v415, %v672
      %v1009 = vsub.f32 %v416, %v721
      %v1010 = vsub.f32 %v417, %v770
      %v1011 = vsub.f32 %v418, %v819
      %v1012 = vsub.f32 %v419, %v476
      %v1013 = vsub.f32 %v420, %v525
      %v1014 = vsub.f32 %v421, %v574
      %v1015 = vsub.f32 %v422, %v623
      %v1016 = vsub.f32 %v423, %v672
      %v1017 = vsub.f32 %v424, %v721
      %v1018 = vsub.f32 %v425, %v770
      %v1019 = vsub.f32 %v426, %v819
      %v1020 = vmul.f32 %v820, 1.442695
      %v1021 = vpow.pop %v1020
      %v1022 = vmul.f32 %v821, 1.442695
      %v1023 = vpow.pop %v1022
      %v1024 = vmul.f32 %v822, 1.442695
      %v1025 = vpow.pop %v1024
      %v1026 = vmul.f32 %v823, 1.442695
      %v1027 = vpow.pop %v1026
      %v1028 = vmul.f32 %v824, 1.442695
      %v1029 = vpow.pop %v1028
      %v1030 = vmul.f32 %v825, 1.442695
      %v1031 = vpow.pop %v1030
      %v1032 = vmul.f32 %v826, 1.442695
      %v1033 = vpow.pop %v1032
      %v1034 = vmul.f32 %v827, 1.442695
      %v1035 = vpow.pop %v1034
      %v1036 = vmul.f32 %v828, 1.442695
      %v1037 = vpow.pop %v1036
      %v1038 = vmul.f32 %v829, 1.442695
      %v1039 = vpow.pop %v1038
      %v1040 = vmul.f32 %v830, 1.442695
      %v1041 = vpow.pop %v1040
      %v1042 = vmul.f32 %v831, 1.442695
      %v1043 = vpow.pop %v1042
      %v1044 = vmul.f32 %v832, 1.442695
      %v1045 = vpow.pop %v1044
      %v1046 = vmul.f32 %v833, 1.442695
      %v1047 = vpow.pop %v1046
      %v1048 = vmul.f32 %v834, 1.442695
      %v1049 = vpow.pop %v1048
      %v1050 = vmul.f32 %v835, 1.442695
      %v1051 = vpow.pop %v1050
      %v1052 = vmul.f32 %v836, 1.442695
      %v1053 = vpow.pop %v1052
      %v1054 = vmul.f32 %v837, 1.442695
      %v1055 = vpow.pop %v1054
      %v1056 = vmul.f32 %v838, 1.442695
      %v1057 = vpow.pop %v1056
      %v1058 = vmul.f32 %v839, 1.442695
      %v1059 = vpow.pop %v1058
      %v1060 = vmul.f32 %v840, 1.442695
      %v1061 = vpow.pop %v1060
      %v1062 = vmul.f32 %v841, 1.442695
      %v1063 = vpow.pop %v1062
      %v1064 = vmul.f32 %v842, 1.442695
      %v1065 = vpow.pop %v1064
      %v1066 = vmul.f32 %v843, 1.442695
      %v1067 = vpow.pop %v1066
      %v1068 = vmul.f32 %v844, 1.442695
      %v1069 = vpow.pop %v1068
      %v1070 = vmul.f32 %v845, 1.442695
      %v1071 = vpow.pop %v1070
      %v1072 = vmul.f32 %v846, 1.442695
      %v1073 = vpow.pop %v1072
      %v1074 = vmul.f32 %v847, 1.442695
      %v1075 = vpow.pop %v1074
      %v1076 = vmul.f32 %v848, 1.442695
      %v1077 = vpow.pop %v1076
      %v1078 = vmul.f32 %v849, 1.442695
      %v1079 = vpow.pop %v1078
      %v1080 = vmul.f32 %v850, 1.442695
      %v1081 = vpow.pop %v1080
      %v1082 = vmul.f32 %v851, 1.442695
      %v1083 = vpow.pop %v1082
      %v1084 = vmul.f32 %v852, 1.442695
      %v1085 = vpow.pop %v1084
      %v1086 = vmul.f32 %v853, 1.442695
      %v1087 = vpow.pop %v1086
      %v1088 = vmul.f32 %v854, 1.442695
      %v1089 = vpow.pop %v1088
      %v1090 = vmul.f32 %v855, 1.442695
      %v1091 = vpow.pop %v1090
      %v1092 = vmul.f32 %v856, 1.442695
      %v1093 = vpow.pop %v1092
      %v1094 = vmul.f32 %v857, 1.442695
      %v1095 = vpow.pop %v1094
      %v1096 = vmul.f32 %v858, 1.442695
      %v1097 = vpow.pop %v1096
      %v1098 = vmul.f32 %v859, 1.442695
      %v1099 = vpow.pop %v1098
      %v1100 = vmul.f32 %v860, 1.442695
      %v1101 = vpow.pop %v1100
      %v1102 = vmul.f32 %v861, 1.442695
      %v1103 = vpow.pop %v1102
      %v1104 = vmul.f32 %v862, 1.442695
      %v1105 = vpow.pop %v1104
      %v1106 = vmul.f32 %v863, 1.442695
      %v1107 = vpow.pop %v1106
      %v1108 = vmul.f32 %v864, 1.442695
      %v1109 = vpow.pop %v1108
      %v1110 = vmul.f32 %v865, 1.442695
      %v1111 = vpow.pop %v1110
      %v1112 = vmul.f32 %v866, 1.442695
      %v1113 = vpow.pop %v1112
      %v1114 = vmul.f32 %v867, 1.442695
      %v1115 = vpow.pop %v1114
      %v1116 = vmul.f32 %v868, 1.442695
      %v1117 = vpow.pop %v1116
      %v1118 = vmul.f32 %v869, 1.442695
      %v1119 = vpow.pop %v1118
      %v1120 = vmul.f32 %v870, 1.442695
      %v1121 = vpow.pop %v1120
      %v1122 = vmul.f32 %v871, 1.442695
      %v1123 = vpow.pop %v1122
      %v1124 = vmul.f32 %v872, 1.442695
      %v1125 = vpow.pop %v1124
      %v1126 = vmul.f32 %v873, 1.442695
      %v1127 = vpow.pop %v1126
      %v1128 = vmul.f32 %v874, 1.442695
      %v1129 = vpow.pop %v1128
      %v1130 = vmul.f32 %v875, 1.442695
      %v1131 = vpow.pop %v1130
      %v1132 = vmul.f32 %v876, 1.442695
      %v1133 = vpow.pop %v1132
      %v1134 = vmul.f32 %v877, 1.442695
      %v1135 = vpow.pop %v1134
      %v1136 = vmul.f32 %v878, 1.442695
      %v1137 = vpow.pop %v1136
      %v1138 = vmul.f32 %v879, 1.442695
      %v1139 = vpow.pop %v1138
      %v1140 = vmul.f32 %v880, 1.442695
      %v1141 = vpow.pop %v1140
      %v1142 = vmul.f32 %v881, 1.442695
      %v1143 = vpow.pop %v1142
      %v1144 = vmul.f32 %v882, 1.442695
      %v1145 = vpow.pop %v1144
      %v1146 = vmul.f32 %v883, 1.442695
      %v1147 = vpow.pop %v1146
      %v1148 = vmul.f32 %v884, 1.442695
      %v1149 = vpow.pop %v1148
      %v1150 = vmul.f32 %v885, 1.442695
      %v1151 = vpow.pop %v1150
      %v1152 = vmul.f32 %v886, 1.442695
      %v1153 = vpow.pop %v1152
      %v1154 = vmul.f32 %v887, 1.442695
      %v1155 = vpow.pop %v1154
      %v1156 = vmul.f32 %v888, 1.442695
      %v1157 = vpow.pop %v1156
      %v1158 = vmul.f32 %v889, 1.442695
      %v1159 = vpow.pop %v1158
      %v1160 = vmul.f32 %v890, 1.442695
      %v1161 = vpow.pop %v1160
      %v1162 = vmul.f32 %v891, 1.442695
      %v1163 = vpow.pop %v1162
      %v1164 = vmul.f32 %v892, 1.442695
      %v1165 = vpow.pop %v1164
      %v1166 = vmul.f32 %v893, 1.442695
      %v1167 = vpow.pop %v1166
      %v1168 = vmul.f32 %v894, 1.442695
      %v1169 = vpow.pop %v1168
      %v1170 = vmul.f32 %v895, 1.442695
      %v1171 = vpow.pop %v1170
      %v1172 = vmul.f32 %v896, 1.442695
      %v1173 = vpow.pop %v1172
      %v1174 = vmul.f32 %v897, 1.442695
      %v1175 = vpow.pop %v1174
      %v1176 = vmul.f32 %v898, 1.442695
      %v1177 = vpow.pop %v1176
      %v1178 = vmul.f32 %v899, 1.442695
      %v1179 = vpow.pop %v1178
      %v1180 = vmul.f32 %v900, 1.442695
      %v1181 = vpow.pop %v1180
      %v1182 = vmul.f32 %v901, 1.442695
      %v1183 = vpow.pop %v1182
      %v1184 = vmul.f32 %v902, 1.442695
      %v1185 = vpow.pop %v1184
      %v1186 = vmul.f32 %v903, 1.442695
      %v1187 = vpow.pop %v1186
      %v1188 = vmul.f32 %v904, 1.442695
      %v1189 = vpow.pop %v1188
      %v1190 = vmul.f32 %v905, 1.442695
      %v1191 = vpow.pop %v1190
      %v1192 = vmul.f32 %v906, 1.442695
      %v1193 = vpow.pop %v1192
      %v1194 = vmul.f32 %v907, 1.442695
      %v1195 = vpow.pop %v1194
      %v1196 = vmul.f32 %v908, 1.442695
      %v1197 = vpow.pop %v1196
      %v1198 = vmul.f32 %v909, 1.442695
      %v1199 = vpow.pop %v1198
      %v1200 = vmul.f32 %v910, 1.442695
      %v1201 = vpow.pop %v1200
      %v1202 = vmul.f32 %v911, 1.442695
      %v1203 = vpow.pop %v1202
      %v1204 = vmul.f32 %v912, 1.442695
      %v1205 = vpow.pop %v1204
      %v1206 = vmul.f32 %v913, 1.442695
      %v1207 = vpow.pop %v1206
      %v1208 = vmul.f32 %v914, 1.442695
      %v1209 = vpow.pop %v1208
      %v1210 = vmul.f32 %v915, 1.442695
      %v1211 = vpow.pop %v1210
      %v1212 = vmul.f32 %v916, 1.442695
      %v1213 = vpow.pop %v1212
      %v1214 = vmul.f32 %v917, 1.442695
      %v1215 = vpow.pop %v1214
      %v1216 = vmul.f32 %v918, 1.442695
      %v1217 = vpow.pop %v1216
      %v1218 = vmul.f32 %v919, 1.442695
      %v1219 = vpow.pop %v1218
      %v1220 = vmul.f32 %v920, 1.442695
      %v1221 = vpow.pop %v1220
      %v1222 = vmul.f32 %v921, 1.442695
      %v1223 = vpow.pop %v1222
      %v1224 = vmul.f32 %v922, 1.442695
      %v1225 = vpow.pop %v1224
      %v1226 = vmul.f32 %v923, 1.442695
      %v1227 = vpow.pop %v1226
      %v1228 = vmul.f32 %v924, 1.442695
      %v1229 = vpow.pop %v1228
      %v1230 = vmul.f32 %v925, 1.442695
      %v1231 = vpow.pop %v1230
      %v1232 = vmul.f32 %v926, 1.442695
      %v1233 = vpow.pop %v1232
      %v1234 = vmul.f32 %v927, 1.442695
      %v1235 = vpow.pop %v1234
      %v1236 = vmul.f32 %v928, 1.442695
      %v1237 = vpow.pop %v1236
      %v1238 = vmul.f32 %v929, 1.442695
      %v1239 = vpow.pop %v1238
      %v1240 = vmul.f32 %v930, 1.442695
      %v1241 = vpow.pop %v1240
      %v1242 = vmul.f32 %v931, 1.442695
      %v1243 = vpow.pop %v1242
      %v1244 = vmul.f32 %v932, 1.442695
      %v1245 = vpow.pop %v1244
      %v1246 = vmul.f32 %v933, 1.442695
      %v1247 = vpow.pop %v1246
      %v1248 = vmul.f32 %v934, 1.442695
      %v1249 = vpow.pop %v1248
      %v1250 = vmul.f32 %v935, 1.442695
      %v1251 = vpow.pop %v1250
      %v1252 = vmul.f32 %v936, 1.442695
      %v1253 = vpow.pop %v1252
      %v1254 = vmul.f32 %v937, 1.442695
      %v1255 = vpow.pop %v1254
      %v1256 = vmul.f32 %v938, 1.442695
      %v1257 = vpow.pop %v1256
      %v1258 = vmul.f32 %v939, 1.442695
      %v1259 = vpow.pop %v1258
      %v1260 = vmul.f32 %v940, 1.442695
      %v1261 = vpow.pop %v1260
      %v1262 = vmul.f32 %v941, 1.442695
      %v1263 = vpow.pop %v1262
      %v1264 = vmul.f32 %v942, 1.442695
      %v1265 = vpow.pop %v1264
      %v1266 = vmul.f32 %v943, 1.442695
      %v1267 = vpow.pop %v1266
      %v1268 = vmul.f32 %v944, 1.442695
      %v1269 = vpow.pop %v1268
      %v1270 = vmul.f32 %v945, 1.442695
      %v1271 = vpow.pop %v1270
      %v1272 = vmul.f32 %v946, 1.442695
      %v1273 = vpow.pop %v1272
      %v1274 = vmul.f32 %v947, 1.442695
      %v1275 = vpow.pop %v1274
      %v1276 = vmul.f32 %v948, 1.442695
      %v1277 = vpow.pop %v1276
      %v1278 = vmul.f32 %v949, 1.442695
      %v1279 = vpow.pop %v1278
      %v1280 = vmul.f32 %v950, 1.442695
      %v1281 = vpow.pop %v1280
      %v1282 = vmul.f32 %v951, 1.442695
      %v1283 = vpow.pop %v1282
      %v1284 = vmul.f32 %v952, 1.442695
      %v1285 = vpow.pop %v1284
      %v1286 = vmul.f32 %v953, 1.442695
      %v1287 = vpow.pop %v1286
      %v1288 = vmul.f32 %v954, 1.442695
      %v1289 = vpow.pop %v1288
      %v1290 = vmul.f32 %v955, 1.442695
      %v1291 = vpow.pop %v1290
      %v1292 = vmul.f32 %v956, 1.442695
      %v1293 = vpow.pop %v1292
      %v1294 = vmul.f32 %v957, 1.442695
      %v1295 = vpow.pop %v1294
      %v1296 = vmul.f32 %v958, 1.442695
      %v1297 = vpow.pop %v1296
      %v1298 = vmul.f32 %v959, 1.442695
      %v1299 = vpow.pop %v1298
      %v1300 = vmul.f32 %v960, 1.442695
      %v1301 = vpow.pop %v1300
      %v1302 = vmul.f32 %v961, 1.442695
      %v1303 = vpow.pop %v1302
      %v1304 = vmul.f32 %v962, 1.442695
      %v1305 = vpow.pop %v1304
      %v1306 = vmul.f32 %v963, 1.442695
      %v1307 = vpow.pop %v1306
      %v1308 = vmul.f32 %v964, 1.442695
      %v1309 = vpow.pop %v1308
      %v1310 = vmul.f32 %v965, 1.442695
      %v1311 = vpow.pop %v1310
      %v1312 = vmul.f32 %v966, 1.442695
      %v1313 = vpow.pop %v1312
      %v1314 = vmul.f32 %v967, 1.442695
      %v1315 = vpow.pop %v1314
      %v1316 = vmul.f32 %v968, 1.442695
      %v1317 = vpow.pop %v1316
      %v1318 = vmul.f32 %v969, 1.442695
      %v1319 = vpow.pop %v1318
      %v1320 = vmul.f32 %v970, 1.442695
      %v1321 = vpow.pop %v1320
      %v1322 = vmul.f32 %v971, 1.442695
      %v1323 = vpow.pop %v1322
      %v1324 = vmul.f32 %v972, 1.442695
      %v1325 = vpow.pop %v1324
      %v1326 = vmul.f32 %v973, 1.442695
      %v1327 = vpow.pop %v1326
      %v1328 = vmul.f32 %v974, 1.442695
      %v1329 = vpow.pop %v1328
      %v1330 = vmul.f32 %v975, 1.442695
      %v1331 = vpow.pop %v1330
      %v1332 = vmul.f32 %v976, 1.442695
      %v1333 = vpow.pop %v1332
      %v1334 = vmul.f32 %v977, 1.442695
      %v1335 = vpow.pop %v1334
      %v1336 = vmul.f32 %v978, 1.442695
      %v1337 = vpow.pop %v1336
      %v1338 = vmul.f32 %v979, 1.442695
      %v1339 = vpow.pop %v1338
      %v1340 = vmul.f32 %v980, 1.442695
      %v1341 = vpow.pop %v1340
      %v1342 = vmul.f32 %v981, 1.442695
      %v1343 = vpow.pop %v1342
      %v1344 = vmul.f32 %v982, 1.442695
      %v1345 = vpow.pop %v1344
      %v1346 = vmul.f32 %v983, 1.442695
      %v1347 = vpow.pop %v1346
      %v1348 = vmul.f32 %v984, 1.442695
      %v1349 = vpow.pop %v1348
      %v1350 = vmul.f32 %v985, 1.442695
      %v1351 = vpow.pop %v1350
      %v1352 = vmul.f32 %v986, 1.442695
      %v1353 = vpow.pop %v1352
      %v1354 = vmul.f32 %v987, 1.442695
      %v1355 = vpow.pop %v1354
      %v1356 = vmul.f32 %v988, 1.442695
      %v1357 = vpow.pop %v1356
      %v1358 = vmul.f32 %v989, 1.442695
      %v1359 = vpow.pop %v1358
      %v1360 = vmul.f32 %v990, 1.442695
      %v1361 = vpow.pop %v1360
      %v1362 = vmul.f32 %v991, 1.442695
      %v1363 = vpow.pop %v1362
      %v1364 = vmul.f32 %v992, 1.442695
      %v1365 = vpow.pop %v1364
      %v1366 = vmul.f32 %v993, 1.442695
      %v1367 = vpow.pop %v1366
      %v1368 = vmul.f32 %v994, 1.442695
      %v1369 = vpow.pop %v1368
      %v1370 = vmul.f32 %v995, 1.442695
      %v1371 = vpow.pop %v1370
      %v1372 = vmul.f32 %v996, 1.442695
      %v1373 = vpow.pop %v1372
      %v1374 = vmul.f32 %v997, 1.442695
      %v1375 = vpow.pop %v1374
      %v1376 = vmul.f32 %v998, 1.442695
      %v1377 = vpow.pop %v1376
      %v1378 = vmul.f32 %v999, 1.442695
      %v1379 = vpow.pop %v1378
      %v1380 = vmul.f32 %v1000, 1.442695
      %v1381 = vpow.pop %v1380
      %v1382 = vmul.f32 %v1001, 1.442695
      %v1383 = vpow.pop %v1382
      %v1384 = vmul.f32 %v1002, 1.442695
      %v1385 = vpow.pop %v1384
      %v1386 = vmul.f32 %v1003, 1.442695
      %v1387 = vpow.pop %v1386
      %v1388 = vmul.f32 %v1004, 1.442695
      %v1389 = vpow.pop %v1388
      %v1390 = vmul.f32 %v1005, 1.442695
      %v1391 = vpow.pop %v1390
      %v1392 = vmul.f32 %v1006, 1.442695
      %v1393 = vpow.pop %v1392
      %v1394 = vmul.f32 %v1007, 1.442695
      %v1395 = vpow.pop %v1394
      %v1396 = vmul.f32 %v1008, 1.442695
      %v1397 = vpow.pop %v1396
      %v1398 = vmul.f32 %v1009, 1.442695
      %v1399 = vpow.pop %v1398
      %v1400 = vmul.f32 %v1010, 1.442695
      %v1401 = vpow.pop %v1400
      %v1402 = vmul.f32 %v1011, 1.442695
      %v1403 = vpow.pop %v1402
      %v1404 = vmul.f32 %v1012, 1.442695
      %v1405 = vpow.pop %v1404
      %v1406 = vmul.f32 %v1013, 1.442695
      %v1407 = vpow.pop %v1406
      %v1408 = vmul.f32 %v1014, 1.442695
      %v1409 = vpow.pop %v1408
      %v1410 = vmul.f32 %v1015, 1.442695
      %v1411 = vpow.pop %v1410
      %v1412 = vmul.f32 %v1016, 1.442695
      %v1413 = vpow.pop %v1412
      %v1414 = vmul.f32 %v1017, 1.442695
      %v1415 = vpow.pop %v1414
      %v1416 = vmul.f32 %v1018, 1.442695
      %v1417 = vpow.pop %v1416
      %v1418 = vmul.f32 %v1019, 1.442695
      %v1419 = vpow.pop %v1418
      %v1420 = vsel %vm427, %v1021, 0.0
      %v1421 = vsel %vm427, %v1037, 0.0
      %v1422 = vadd.f32 %v1420, %v1421
      %v1423 = vsel %vm427, %v1053, 0.0
      %v1424 = vadd.f32 %v1422, %v1423
      %v1425 = vsel %vm427, %v1069, 0.0
      %v1426 = vadd.f32 %v1424, %v1425
      %v1427 = vsel %vm427, %v1085, 0.0
      %v1428 = vadd.f32 %v1426, %v1427
      %v1429 = vsel %vm427, %v1101, 0.0
      %v1430 = vadd.f32 %v1428, %v1429
      %v1431 = vsel %vm427, %v1117, 0.0
      %v1432 = vadd.f32 %v1430, %v1431
      %v1433 = vsel %vm427, %v1133, 0.0
      %v1434 = vadd.f32 %v1432, %v1433
      %v1435 = vsel %vm427, %v1149, 0.0
      %v1436 = vadd.f32 %v1434, %v1435
      %v1437 = vsel %vm427, %v1165, 0.0
      %v1438 = vadd.f32 %v1436, %v1437
      %v1439 = vsel %vm427, %v1181, 0.0
      %v1440 = vadd.f32 %v1438, %v1439
      %v1441 = vsel %vm427, %v1197, 0.0
      %v1442 = vadd.f32 %v1440, %v1441
      %v1443 = vsel %vm427, %v1213, 0.0
      %v1444 = vadd.f32 %v1442, %v1443
      %v1445 = vsel %vm427, %v1229, 0.0
      %v1446 = vadd.f32 %v1444, %v1445
      %v1447 = vsel %vm427, %v1245, 0.0
      %v1448 = vadd.f32 %v1446, %v1447
      %v1449 = vsel %vm427, %v1261, 0.0
      %v1450 = vadd.f32 %v1448, %v1449
      %v1451 = vsel %vm427, %v1277, 0.0
      %v1452 = vadd.f32 %v1450, %v1451
      %v1453 = vsel %vm427, %v1293, 0.0
      %v1454 = vadd.f32 %v1452, %v1453
      %v1455 = vsel %vm427, %v1309, 0.0
      %v1456 = vadd.f32 %v1454, %v1455
      %v1457 = vsel %vm427, %v1325, 0.0
      %v1458 = vadd.f32 %v1456, %v1457
      %v1459 = vsel %vm427, %v1341, 0.0
      %v1460 = vadd.f32 %v1458, %v1459
      %v1461 = vsel %vm427, %v1357, 0.0
      %v1462 = vadd.f32 %v1460, %v1461
      %v1463 = vsel %vm427, %v1373, 0.0
      %v1464 = vadd.f32 %v1462, %v1463
      %v1465 = vsel %vm427, %v1389, 0.0
      %v1466 = vadd.f32 %v1464, %v1465
      %v1467 = vsel %vm427, %v1405, 0.0
      %v1468 = vadd.f32 %v1466, %v1467
      %v1469 = vsel %vm427, %v1023, 0.0
      %v1470 = vsel %vm427, %v1039, 0.0
      %v1471 = vadd.f32 %v1469, %v1470
      %v1472 = vsel %vm427, %v1055, 0.0
      %v1473 = vadd.f32 %v1471, %v1472
      %v1474 = vsel %vm427, %v1071, 0.0
      %v1475 = vadd.f32 %v1473, %v1474
      %v1476 = vsel %vm427, %v1087, 0.0
      %v1477 = vadd.f32 %v1475, %v1476
      %v1478 = vsel %vm427, %v1103, 0.0
      %v1479 = vadd.f32 %v1477, %v1478
      %v1480 = vsel %vm427, %v1119, 0.0
      %v1481 = vadd.f32 %v1479, %v1480
      %v1482 = vsel %vm427, %v1135, 0.0
      %v1483 = vadd.f32 %v1481, %v1482
      %v1484 = vsel %vm427, %v1151, 0.0
      %v1485 = vadd.f32 %v1483, %v1484
      %v1486 = vsel %vm427, %v1167, 0.0
      %v1487 = vadd.f32 %v1485, %v1486
      %v1488 = vsel %vm427, %v1183, 0.0
      %v1489 = vadd.f32 %v1487, %v1488
      %v1490 = vsel %vm427, %v1199, 0.0
      %v1491 = vadd.f32 %v1489, %v1490
      %v1492 = vsel %vm427, %v1215, 0.0
      %v1493 = vadd.f32 %v1491, %v1492
      %v1494 = vsel %vm427, %v1231, 0.0
      %v1495 = vadd.f32 %v1493, %v1494
      %v1496 = vsel %vm427, %v1247, 0.0
      %v1497 = vadd.f32 %v1495, %v1496
      %v1498 = vsel %vm427, %v1263, 0.0
      %v1499 = vadd.f32 %v1497, %v1498
      %v1500 = vsel %vm427, %v1279, 0.0
      %v1501 = vadd.f32 %v1499, %v1500
      %v1502 = vsel %vm427, %v1295, 0.0
      %v1503 = vadd.f32 %v1501, %v1502
      %v1504 = vsel %vm427, %v1311, 0.0
      %v1505 = vadd.f32 %v1503, %v1504
      %v1506 = vsel %vm427, %v1327, 0.0
      %v1507 = vadd.f32 %v1505, %v1506
      %v1508 = vsel %vm427, %v1343, 0.0
      %v1509 = vadd.f32 %v1507, %v1508
      %v1510 = vsel %vm427, %v1359, 0.0
      %v1511 = vadd.f32 %v1509, %v1510
      %v1512 = vsel %vm427, %v1375, 0.0
      %v1513 = vadd.f32 %v1511, %v1512
      %v1514 = vsel %vm427, %v1391, 0.0
      %v1515 = vadd.f32 %v1513, %v1514
      %v1516 = vsel %vm427, %v1407, 0.0
      %v1517 = vadd.f32 %v1515, %v1516
      %v1518 = vsel %vm427, %v1025, 0.0
      %v1519 = vsel %vm427, %v1041, 0.0
      %v1520 = vadd.f32 %v1518, %v1519
      %v1521 = vsel %vm427, %v1057, 0.0
      %v1522 = vadd.f32 %v1520, %v1521
      %v1523 = vsel %vm427, %v1073, 0.0
      %v1524 = vadd.f32 %v1522, %v1523
      %v1525 = vsel %vm427, %v1089, 0.0
      %v1526 = vadd.f32 %v1524, %v1525
      %v1527 = vsel %vm427, %v1105, 0.0
      %v1528 = vadd.f32 %v1526, %v1527
      %v1529 = vsel %vm427, %v1121, 0.0
      %v1530 = vadd.f32 %v1528, %v1529
      %v1531 = vsel %vm427, %v1137, 0.0
      %v1532 = vadd.f32 %v1530, %v1531
      %v1533 = vsel %vm427, %v1153, 0.0
      %v1534 = vadd.f32 %v1532, %v1533
      %v1535 = vsel %vm427, %v1169, 0.0
      %v1536 = vadd.f32 %v1534, %v1535
      %v1537 = vsel %vm427, %v1185, 0.0
      %v1538 = vadd.f32 %v1536, %v1537
      %v1539 = vsel %vm427, %v1201, 0.0
      %v1540 = vadd.f32 %v1538, %v1539
      %v1541 = vsel %vm427, %v1217, 0.0
      %v1542 = vadd.f32 %v1540, %v1541
      %v1543 = vsel %vm427, %v1233, 0.0
      %v1544 = vadd.f32 %v1542, %v1543
      %v1545 = vsel %vm427, %v1249, 0.0
      %v1546 = vadd.f32 %v1544, %v1545
      %v1547 = vsel %vm427, %v1265, 0.0
      %v1548 = vadd.f32 %v1546, %v1547
      %v1549 = vsel %vm427, %v1281, 0.0
      %v1550 = vadd.f32 %v1548, %v1549
      %v1551 = vsel %vm427, %v1297, 0.0
      %v1552 = vadd.f32 %v1550, %v1551
      %v1553 = vsel %vm427, %v1313, 0.0
      %v1554 = vadd.f32 %v1552, %v1553
      %v1555 = vsel %vm427, %v1329, 0.0
      %v1556 = vadd.f32 %v1554, %v1555
      %v1557 = vsel %vm427, %v1345, 0.0
      %v1558 = vadd.f32 %v1556, %v1557
      %v1559 = vsel %vm427, %v1361, 0.0
      %v1560 = vadd.f32 %v1558, %v1559
      %v1561 = vsel %vm427, %v1377, 0.0
      %v1562 = vadd.f32 %v1560, %v1561
      %v1563 = vsel %vm427, %v1393, 0.0
      %v1564 = vadd.f32 %v1562, %v1563
      %v1565 = vsel %vm427, %v1409, 0.0
      %v1566 = vadd.f32 %v1564, %v1565
      %v1567 = vsel %vm427, %v1027, 0.0
      %v1568 = vsel %vm427, %v1043, 0.0
      %v1569 = vadd.f32 %v1567, %v1568
      %v1570 = vsel %vm427, %v1059, 0.0
      %v1571 = vadd.f32 %v1569, %v1570
      %v1572 = vsel %vm427, %v1075, 0.0
      %v1573 = vadd.f32 %v1571, %v1572
      %v1574 = vsel %vm427, %v1091, 0.0
      %v1575 = vadd.f32 %v1573, %v1574
      %v1576 = vsel %vm427, %v1107, 0.0
      %v1577 = vadd.f32 %v1575, %v1576
      %v1578 = vsel %vm427, %v1123, 0.0
      %v1579 = vadd.f32 %v1577, %v1578
      %v1580 = vsel %vm427, %v1139, 0.0
      %v1581 = vadd.f32 %v1579, %v1580
      %v1582 = vsel %vm427, %v1155, 0.0
      %v1583 = vadd.f32 %v1581, %v1582
      %v1584 = vsel %vm427, %v1171, 0.0
      %v1585 = vadd.f32 %v1583, %v1584
      %v1586 = vsel %vm427, %v1187, 0.0
      %v1587 = vadd.f32 %v1585, %v1586
      %v1588 = vsel %vm427, %v1203, 0.0
      %v1589 = vadd.f32 %v1587, %v1588
      %v1590 = vsel %vm427, %v1219, 0.0
      %v1591 = vadd.f32 %v1589, %v1590
      %v1592 = vsel %vm427, %v1235, 0.0
      %v1593 = vadd.f32 %v1591, %v1592
      %v1594 = vsel %vm427, %v1251, 0.0
      %v1595 = vadd.f32 %v1593, %v1594
      %v1596 = vsel %vm427, %v1267, 0.0
      %v1597 = vadd.f32 %v1595, %v1596
      %v1598 = vsel %vm427, %v1283, 0.0
      %v1599 = vadd.f32 %v1597, %v1598
      %v1600 = vsel %vm427, %v1299, 0.0
      %v1601 = vadd.f32 %v1599, %v1600
      %v1602 = vsel %vm427, %v1315, 0.0
      %v1603 = vadd.f32 %v1601, %v1602
      %v1604 = vsel %vm427, %v1331, 0.0
      %v1605 = vadd.f32 %v1603, %v1604
      %v1606 = vsel %vm427, %v1347, 0.0
      %v1607 = vadd.f32 %v1605, %v1606
      %v1608 = vsel %vm427, %v1363, 0.0
      %v1609 = vadd.f32 %v1607, %v1608
      %v1610 = vsel %vm427, %v1379, 0.0
      %v1611 = vadd.f32 %v1609, %v1610
      %v1612 = vsel %vm427, %v1395, 0.0
      %v1613 = vadd.f32 %v1611, %v1612
      %v1614 = vsel %vm427, %v1411, 0.0
      %v1615 = vadd.f32 %v1613, %v1614
      %v1616 = vsel %vm427, %v1029, 0.0
      %v1617 = vsel %vm427, %v1045, 0.0
      %v1618 = vadd.f32 %v1616, %v1617
      %v1619 = vsel %vm427, %v1061, 0.0
      %v1620 = vadd.f32 %v1618, %v1619
      %v1621 = vsel %vm427, %v1077, 0.0
      %v1622 = vadd.f32 %v1620, %v1621
      %v1623 = vsel %vm427, %v1093, 0.0
      %v1624 = vadd.f32 %v1622, %v1623
      %v1625 = vsel %vm427, %v1109, 0.0
      %v1626 = vadd.f32 %v1624, %v1625
      %v1627 = vsel %vm427, %v1125, 0.0
      %v1628 = vadd.f32 %v1626, %v1627
      %v1629 = vsel %vm427, %v1141, 0.0
      %v1630 = vadd.f32 %v1628, %v1629
      %v1631 = vsel %vm427, %v1157, 0.0
      %v1632 = vadd.f32 %v1630, %v1631
      %v1633 = vsel %vm427, %v1173, 0.0
      %v1634 = vadd.f32 %v1632, %v1633
      %v1635 = vsel %vm427, %v1189, 0.0
      %v1636 = vadd.f32 %v1634, %v1635
      %v1637 = vsel %vm427, %v1205, 0.0
      %v1638 = vadd.f32 %v1636, %v1637
      %v1639 = vsel %vm427, %v1221, 0.0
      %v1640 = vadd.f32 %v1638, %v1639
      %v1641 = vsel %vm427, %v1237, 0.0
      %v1642 = vadd.f32 %v1640, %v1641
      %v1643 = vsel %vm427, %v1253, 0.0
      %v1644 = vadd.f32 %v1642, %v1643
      %v1645 = vsel %vm427, %v1269, 0.0
      %v1646 = vadd.f32 %v1644, %v1645
      %v1647 = vsel %vm427, %v1285, 0.0
      %v1648 = vadd.f32 %v1646, %v1647
      %v1649 = vsel %vm427, %v1301, 0.0
      %v1650 = vadd.f32 %v1648, %v1649
      %v1651 = vsel %vm427, %v1317, 0.0
      %v1652 = vadd.f32 %v1650, %v1651
      %v1653 = vsel %vm427, %v1333, 0.0
      %v1654 = vadd.f32 %v1652, %v1653
      %v1655 = vsel %vm427, %v1349, 0.0
      %v1656 = vadd.f32 %v1654, %v1655
      %v1657 = vsel %vm427, %v1365, 0.0
      %v1658 = vadd.f32 %v1656, %v1657
      %v1659 = vsel %vm427, %v1381, 0.0
      %v1660 = vadd.f32 %v1658, %v1659
      %v1661 = vsel %vm427, %v1397, 0.0
      %v1662 = vadd.f32 %v1660, %v1661
      %v1663 = vsel %vm427, %v1413, 0.0
      %v1664 = vadd.f32 %v1662, %v1663
      %v1665 = vsel %vm427, %v1031, 0.0
      %v1666 = vsel %vm427, %v1047, 0.0
      %v1667 = vadd.f32 %v1665, %v1666
      %v1668 = vsel %vm427, %v1063, 0.0
      %v1669 = vadd.f32 %v1667, %v1668
      %v1670 = vsel %vm427, %v1079, 0.0
      %v1671 = vadd.f32 %v1669, %v1670
      %v1672 = vsel %vm427, %v1095, 0.0
      %v1673 = vadd.f32 %v1671, %v1672
      %v1674 = vsel %vm427, %v1111, 0.0
      %v1675 = vadd.f32 %v1673, %v1674
      %v1676 = vsel %vm427, %v1127, 0.0
      %v1677 = vadd.f32 %v1675, %v1676
      %v1678 = vsel %vm427, %v1143, 0.0
      %v1679 = vadd.f32 %v1677, %v1678
      %v1680 = vsel %vm427, %v1159, 0.0
      %v1681 = vadd.f32 %v1679, %v1680
      %v1682 = vsel %vm427, %v1175, 0.0
      %v1683 = vadd.f32 %v1681, %v1682
      %v1684 = vsel %vm427, %v1191, 0.0
      %v1685 = vadd.f32 %v1683, %v1684
      %v1686 = vsel %vm427, %v1207, 0.0
      %v1687 = vadd.f32 %v1685, %v1686
      %v1688 = vsel %vm427, %v1223, 0.0
      %v1689 = vadd.f32 %v1687, %v1688
      %v1690 = vsel %vm427, %v1239, 0.0
      %v1691 = vadd.f32 %v1689, %v1690
      %v1692 = vsel %vm427, %v1255, 0.0
      %v1693 = vadd.f32 %v1691, %v1692
      %v1694 = vsel %vm427, %v1271, 0.0
      %v1695 = vadd.f32 %v1693, %v1694
      %v1696 = vsel %vm427, %v1287, 0.0
      %v1697 = vadd.f32 %v1695, %v1696
      %v1698 = vsel %vm427, %v1303, 0.0
      %v1699 = vadd.f32 %v1697, %v1698
      %v1700 = vsel %vm427, %v1319, 0.0
      %v1701 = vadd.f32 %v1699, %v1700
      %v1702 = vsel %vm427, %v1335, 0.0
      %v1703 = vadd.f32 %v1701, %v1702
      %v1704 = vsel %vm427, %v1351, 0.0
      %v1705 = vadd.f32 %v1703, %v1704
      %v1706 = vsel %vm427, %v1367, 0.0
      %v1707 = vadd.f32 %v1705, %v1706
      %v1708 = vsel %vm427, %v1383, 0.0
      %v1709 = vadd.f32 %v1707, %v1708
      %v1710 = vsel %vm427, %v1399, 0.0
      %v1711 = vadd.f32 %v1709, %v1710
      %v1712 = vsel %vm427, %v1415, 0.0
      %v1713 = vadd.f32 %v1711, %v1712
      %v1714 = vsel %vm427, %v1033, 0.0
      %v1715 = vsel %vm427, %v1049, 0.0
      %v1716 = vadd.f32 %v1714, %v1715
      %v1717 = vsel %vm427, %v1065, 0.0
      %v1718 = vadd.f32 %v1716, %v1717
      %v1719 = vsel %vm427, %v1081, 0.0
      %v1720 = vadd.f32 %v1718, %v1719
      %v1721 = vsel %vm427, %v1097, 0.0
      %v1722 = vadd.f32 %v1720, %v1721
      %v1723 = vsel %vm427, %v1113, 0.0
      %v1724 = vadd.f32 %v1722, %v1723
      %v1725 = vsel %vm427, %v1129, 0.0
      %v1726 = vadd.f32 %v1724, %v1725
      %v1727 = vsel %vm427, %v1145, 0.0
      %v1728 = vadd.f32 %v1726, %v1727
      %v1729 = vsel %vm427, %v1161, 0.0
      %v1730 = vadd.f32 %v1728, %v1729
      %v1731 = vsel %vm427, %v1177, 0.0
      %v1732 = vadd.f32 %v1730, %v1731
      %v1733 = vsel %vm427, %v1193, 0.0
      %v1734 = vadd.f32 %v1732, %v1733
      %v1735 = vsel %vm427, %v1209, 0.0
      %v1736 = vadd.f32 %v1734, %v1735
      %v1737 = vsel %vm427, %v1225, 0.0
      %v1738 = vadd.f32 %v1736, %v1737
      %v1739 = vsel %vm427, %v1241, 0.0
      %v1740 = vadd.f32 %v1738, %v1739
      %v1741 = vsel %vm427, %v1257, 0.0
      %v1742 = vadd.f32 %v1740, %v1741
      %v1743 = vsel %vm427, %v1273, 0.0
      %v1744 = vadd.f32 %v1742, %v1743
      %v1745 = vsel %vm427, %v1289, 0.0
      %v1746 = vadd.f32 %v1744, %v1745
      %v1747 = vsel %vm427, %v1305, 0.0
      %v1748 = vadd.f32 %v1746, %v1747
      %v1749 = vsel %vm427, %v1321, 0.0
      %v1750 = vadd.f32 %v1748, %v1749
      %v1751 = vsel %vm427, %v1337, 0.0
      %v1752 = vadd.f32 %v1750, %v1751
      %v1753 = vsel %vm427, %v1353, 0.0
      %v1754 = vadd.f32 %v1752, %v1753
      %v1755 = vsel %vm427, %v1369, 0.0
      %v1756 = vadd.f32 %v1754, %v1755
      %v1757 = vsel %vm427, %v1385, 0.0
      %v1758 = vadd.f32 %v1756, %v1757
      %v1759 = vsel %vm427, %v1401, 0.0
      %v1760 = vadd.f32 %v1758, %v1759
      %v1761 = vsel %vm427, %v1417, 0.0
      %v1762 = vadd.f32 %v1760, %v1761
      %v1763 = vsel %vm427, %v1035, 0.0
      %v1764 = vsel %vm427, %v1051, 0.0
      %v1765 = vadd.f32 %v1763, %v1764
      %v1766 = vsel %vm427, %v1067, 0.0
      %v1767 = vadd.f32 %v1765, %v1766
      %v1768 = vsel %vm427, %v1083, 0.0
      %v1769 = vadd.f32 %v1767, %v1768
      %v1770 = vsel %vm427, %v1099, 0.0
      %v1771 = vadd.f32 %v1769, %v1770
      %v1772 = vsel %vm427, %v1115, 0.0
      %v1773 = vadd.f32 %v1771, %v1772
      %v1774 = vsel %vm427, %v1131, 0.0
      %v1775 = vadd.f32 %v1773, %v1774
      %v1776 = vsel %vm427, %v1147, 0.0
      %v1777 = vadd.f32 %v1775, %v1776
      %v1778 = vsel %vm427, %v1163, 0.0
      %v1779 = vadd.f32 %v1777, %v1778
      %v1780 = vsel %vm427, %v1179, 0.0
      %v1781 = vadd.f32 %v1779, %v1780
      %v1782 = vsel %vm427, %v1195, 0.0
      %v1783 = vadd.f32 %v1781, %v1782
      %v1784 = vsel %vm427, %v1211, 0.0
      %v1785 = vadd.f32 %v1783, %v1784
      %v1786 = vsel %vm427, %v1227, 0.0
      %v1787 = vadd.f32 %v1785, %v1786
      %v1788 = vsel %vm427, %v1243, 0.0
      %v1789 = vadd.f32 %v1787, %v1788
      %v1790 = vsel %vm427, %v1259, 0.0
      %v1791 = vadd.f32 %v1789, %v1790
      %v1792 = vsel %vm427, %v1275, 0.0
      %v1793 = vadd.f32 %v1791, %v1792
      %v1794 = vsel %vm427, %v1291, 0.0
      %v1795 = vadd.f32 %v1793, %v1794
      %v1796 = vsel %vm427, %v1307, 0.0
      %v1797 = vadd.f32 %v1795, %v1796
      %v1798 = vsel %vm427, %v1323, 0.0
      %v1799 = vadd.f32 %v1797, %v1798
      %v1800 = vsel %vm427, %v1339, 0.0
      %v1801 = vadd.f32 %v1799, %v1800
      %v1802 = vsel %vm427, %v1355, 0.0
      %v1803 = vadd.f32 %v1801, %v1802
      %v1804 = vsel %vm427, %v1371, 0.0
      %v1805 = vadd.f32 %v1803, %v1804
      %v1806 = vsel %vm427, %v1387, 0.0
      %v1807 = vadd.f32 %v1805, %v1806
      %v1808 = vsel %vm427, %v1403, 0.0
      %v1809 = vadd.f32 %v1807, %v1808
      %v1810 = vsel %vm427, %v1419, 0.0
      %v1811 = vadd.f32 %v1809, %v1810
      %v1812 = vrcp.pop %v1468
      %v1813 = vrcp.pop %v1517
      %v1814 = vrcp.pop %v1566
      %v1815 = vrcp.pop %v1615
      %v1816 = vrcp.pop %v1664
      %v1817 = vrcp.pop %v1713
      %v1818 = vrcp.pop %v1762
      %v1819 = vrcp.pop %v1811
      %v1820 = vmul.f32 %v1021, %v1812
      %v1821 = vmul.f32 %v1023, %v1813
      %v1822 = vmul.f32 %v1025, %v1814
      %v1823 = vmul.f32 %v1027, %v1815
      %v1824 = vmul.f32 %v1029, %v1816
      %v1825 = vmul.f32 %v1031, %v1817
      %v1826 = vmul.f32 %v1033, %v1818
      %v1827 = vmul.f32 %v1035, %v1819
      %v1828 = vmul.f32 %v1037, %v1812
      %v1829 = vmul.f32 %v1039, %v1813
      %v1830 = vmul.f32 %v1041, %v1814
      %v1831 = vmul.f32 %v1043, %v1815
      %v1832 = vmul.f32 %v1045, %v1816
      %v1833 = vmul.f32 %v1047, %v1817
      %v1834 = vmul.f32 %v1049, %v1818
      %v1835 = vmul.f32 %v1051, %v1819
      %v1836 = vmul.f32 %v1053, %v1812
      %v1837 = vmul.f32 %v1055, %v1813
      %v1838 = vmul.f32 %v1057, %v1814
      %v1839 = vmul.f32 %v1059, %v1815
      %v1840 = vmul.f32 %v1061, %v1816
      %v1841 = vmul.f32 %v1063, %v1817
      %v1842 = vmul.f32 %v1065, %v1818
      %v1843 = vmul.f32 %v1067, %v1819
      %v1844 = vmul.f32 %v1069, %v1812
      %v1845 = vmul.f32 %v1071, %v1813
      %v1846 = vmul.f32 %v1073, %v1814
      %v1847 = vmul.f32 %v1075, %v1815
      %v1848 = vmul.f32 %v1077, %v1816
      %v1849 = vmul.f32 %v1079, %v1817
      %v1850 = vmul.f32 %v1081, %v1818
      %v1851 = vmul.f32 %v1083, %v1819
      %v1852 = vmul.f32 %v1085, %v1812
      %v1853 = vmul.f32 %v1087, %v1813
      %v1854 = vmul.f32 %v1089, %v1814
      %v1855 = vmul.f32 %v1091, %v1815
      %v1856 = vmul.f32 %v1093, %v1816
      %v1857 = vmul.f32 %v1095, %v1817
      %v1858 = vmul.f32 %v1097, %v1818
      %v1859 = vmul.f32 %v1099, %v1819
      %v1860 = vmul.f32 %v1101, %v1812
      %v1861 = vmul.f32 %v1103, %v1813
      %v1862 = vmul.f32 %v1105, %v1814
      %v1863 = vmul.f32 %v1107, %v1815
      %v1864 = vmul.f32 %v1109, %v1816
      %v1865 = vmul.f32 %v1111, %v1817
      %v1866 = vmul.f32 %v1113, %v1818
      %v1867 = vmul.f32 %v1115, %v1819
      %v1868 = vmul.f32 %v1117, %v1812
      %v1869 = vmul.f32 %v1119, %v1813
      %v1870 = vmul.f32 %v1121, %v1814
      %v1871 = vmul.f32 %v1123, %v1815
      %v1872 = vmul.f32 %v1125, %v1816
      %v1873 = vmul.f32 %v1127, %v1817
      %v1874 = vmul.f32 %v1129, %v1818
      %v1875 = vmul.f32 %v1131, %v1819
      %v1876 = vmul.f32 %v1133, %v1812
      %v1877 = vmul.f32 %v1135, %v1813
      %v1878 = vmul.f32 %v1137, %v1814
      %v1879 = vmul.f32 %v1139, %v1815
      %v1880 = vmul.f32 %v1141, %v1816
      %v1881 = vmul.f32 %v1143, %v1817
      %v1882 = vmul.f32 %v1145, %v1818
      %v1883 = vmul.f32 %v1147, %v1819
      %v1884 = vmul.f32 %v1149, %v1812
      %v1885 = vmul.f32 %v1151, %v1813
      %v1886 = vmul.f32 %v1153, %v1814
      %v1887 = vmul.f32 %v1155, %v1815
      %v1888 = vmul.f32 %v1157, %v1816
      %v1889 = vmul.f32 %v1159, %v1817
      %v1890 = vmul.f32 %v1161, %v1818
      %v1891 = vmul.f32 %v1163, %v1819
      %v1892 = vmul.f32 %v1165, %v1812
      %v1893 = vmul.f32 %v1167, %v1813
      %v1894 = vmul.f32 %v1169, %v1814
      %v1895 = vmul.f32 %v1171, %v1815
      %v1896 = vmul.f32 %v1173, %v1816
      %v1897 = vmul.f32 %v1175, %v1817
      %v1898 = vmul.f32 %v1177, %v1818
      %v1899 = vmul.f32 %v1179, %v1819
      %v1900 = vmul.f32 %v1181, %v1812
      %v1901 = vmul.f32 %v1183, %v1813
      %v1902 = vmul.f32 %v1185, %v1814
      %v1903 = vmul.f32 %v1187, %v1815
      %v1904 = vmul.f32 %v1189, %v1816
      %v1905 = vmul.f32 %v1191, %v1817
      %v1906 = vmul.f32 %v1193, %v1818
      %v1907 = vmul.f32 %v1195, %v1819
      %v1908 = vmul.f32 %v1197, %v1812
      %v1909 = vmul.f32 %v1199, %v1813
      %v1910 = vmul.f32 %v1201, %v1814
      %v1911 = vmul.f32 %v1203, %v1815
      %v1912 = vmul.f32 %v1205, %v1816
      %v1913 = vmul.f32 %v1207, %v1817
      %v1914 = vmul.f32 %v1209, %v1818
      %v1915 = vmul.f32 %v1211, %v1819
      %v1916 = vmul.f32 %v1213, %v1812
      %v1917 = vmul.f32 %v1215, %v1813
      %v1918 = vmul.f32 %v1217, %v1814
      %v1919 = vmul.f32 %v1219, %v1815
      %v1920 = vmul.f32 %v1221, %v1816
      %v1921 = vmul.f32 %v1223, %v1817
      %v1922 = vmul.f32 %v1225, %v1818
      %v1923 = vmul.f32 %v1227, %v1819
      %v1924 = vmul.f32 %v1229, %v1812
      %v1925 = vmul.f32 %v1231, %v1813
      %v1926 = vmul.f32 %v1233, %v1814
      %v1927 = vmul.f32 %v1235, %v1815
      %v1928 = vmul.f32 %v1237, %v1816
      %v1929 = vmul.f32 %v1239, %v1817
      %v1930 = vmul.f32 %v1241, %v1818
      %v1931 = vmul.f32 %v1243, %v1819
      %v1932 = vmul.f32 %v1245, %v1812
      %v1933 = vmul.f32 %v1247, %v1813
      %v1934 = vmul.f32 %v1249, %v1814
      %v1935 = vmul.f32 %v1251, %v1815
      %v1936 = vmul.f32 %v1253, %v1816
      %v1937 = vmul.f32 %v1255, %v1817
      %v1938 = vmul.f32 %v1257, %v1818
      %v1939 = vmul.f32 %v1259, %v1819
      %v1940 = vmul.f32 %v1261, %v1812
      %v1941 = vmul.f32 %v1263, %v1813
      %v1942 = vmul.f32 %v1265, %v1814
      %v1943 = vmul.f32 %v1267, %v1815
      %v1944 = vmul.f32 %v1269, %v1816
      %v1945 = vmul.f32 %v1271, %v1817
      %v1946 = vmul.f32 %v1273, %v1818
      %v1947 = vmul.f32 %v1275, %v1819
      %v1948 = vmul.f32 %v1277, %v1812
      %v1949 = vmul.f32 %v1279, %v1813
      %v1950 = vmul.f32 %v1281, %v1814
      %v1951 = vmul.f32 %v1283, %v1815
      %v1952 = vmul.f32 %v1285, %v1816
      %v1953 = vmul.f32 %v1287, %v1817
      %v1954 = vmul.f32 %v1289, %v1818
      %v1955 = vmul.f32 %v1291, %v1819
      %v1956 = vmul.f32 %v1293, %v1812
      %v1957 = vmul.f32 %v1295, %v1813
      %v1958 = vmul.f32 %v1297, %v1814
      %v1959 = vmul.f32 %v1299, %v1815
      %v1960 = vmul.f32 %v1301, %v1816
      %v1961 = vmul.f32 %v1303, %v1817
      %v1962 = vmul.f32 %v1305, %v1818
      %v1963 = vmul.f32 %v1307, %v1819
      %v1964 = vmul.f32 %v1309, %v1812
      %v1965 = vmul.f32 %v1311, %v1813
      %v1966 = vmul.f32 %v1313, %v1814
      %v1967 = vmul.f32 %v1315, %v1815
      %v1968 = vmul.f32 %v1317, %v1816
      %v1969 = vmul.f32 %v1319, %v1817
      %v1970 = vmul.f32 %v1321, %v1818
      %v1971 = vmul.f32 %v1323, %v1819
      %v1972 = vmul.f32 %v1325, %v1812
      %v1973 = vmul.f32 %v1327, %v1813
      %v1974 = vmul.f32 %v1329, %v1814
      %v1975 = vmul.f32 %v1331, %v1815
      %v1976 = vmul.f32 %v1333, %v1816
      %v1977 = vmul.f32 %v1335, %v1817
      %v1978 = vmul.f32 %v1337, %v1818
      %v1979 = vmul.f32 %v1339, %v1819
      %v1980 = vmul.f32 %v1341, %v1812
      %v1981 = vmul.f32 %v1343, %v1813
      %v1982 = vmul.f32 %v1345, %v1814
      %v1983 = vmul.f32 %v1347, %v1815
      %v1984 = vmul.f32 %v1349, %v1816
      %v1985 = vmul.f32 %v1351, %v1817
      %v1986 = vmul.f32 %v1353, %v1818
      %v1987 = vmul.f32 %v1355, %v1819
      %v1988 = vmul.f32 %v1357, %v1812
      %v1989 = vmul.f32 %v1359, %v1813
      %v1990 = vmul.f32 %v1361, %v1814
      %v1991 = vmul.f32 %v1363, %v1815
      %v1992 = vmul.f32 %v1365, %v1816
      %v1993 = vmul.f32 %v1367, %v1817
      %v1994 = vmul.f32 %v1369, %v1818
      %v1995 = vmul.f32 %v1371, %v1819
      %v1996 = vmul.f32 %v1373, %v1812
      %v1997 = vmul.f32 %v1375, %v1813
      %v1998 = vmul.f32 %v1377, %v1814
      %v1999 = vmul.f32 %v1379, %v1815
      %v2000 = vmul.f32 %v1381, %v1816
      %v2001 = vmul.f32 %v1383, %v1817
      %v2002 = vmul.f32 %v1385, %v1818
      %v2003 = vmul.f32 %v1387, %v1819
      %v2004 = vmul.f32 %v1389, %v1812
      %v2005 = vmul.f32 %v1391, %v1813
      %v2006 = vmul.f32 %v1393, %v1814
      %v2007 = vmul.f32 %v1395, %v1815
      %v2008 = vmul.f32 %v1397, %v1816
      %v2009 = vmul.f32 %v1399, %v1817
      %v2010 = vmul.f32 %v1401, %v1818
      %v2011 = vmul.f32 %v1403, %v1819
      %v2012 = vmul.f32 %v1405, %v1812
      %v2013 = vmul.f32 %v1407, %v1813
      %v2014 = vmul.f32 %v1409, %v1814
      %v2015 = vmul.f32 %v1411, %v1815
      %v2016 = vmul.f32 %v1413, %v1816
      %v2017 = vmul.f32 %v1415, %v1817
      %v2018 = vmul.f32 %v1417, %v1818
      %v2019 = vmul.f32 %v1419, %v1819
      %v2020 = vld [vmem:[#allocation2] sm:$0xff]
      %v2021 = vld [vmem:[#allocation2 + $0x8] sm:$0xff]
      %v2022 = vld [vmem:[#allocation2 + $0x18] sm:$0xff]
      %v2023 = vld [vmem:[#allocation2 + $0x20] sm:$0xff]
      %v2024 = vld [vmem:[#allocation2 + $0x30] sm:$0xff]
      %v2025 = vld [vmem:[#allocation2 + $0x38] sm:$0xff]
      %v2026 = vld [vmem:[#allocation2 + $0x48] sm:$0xff]
      %v2027 = vld [vmem:[#allocation2 + $0x50] sm:$0xff]
      %v2028 = vmul.f32 %v1820, %v2020
      %v2029 = vmul.f32 %v1821, %v2021
      %v2030 = vmul.f32 %v1820, %v2022
      %v2031 = vmul.f32 %v1821, %v2023
      %v2032 = vmul.f32 %v1820, %v2024
      %v2033 = vmul.f32 %v1821, %v2025
      %v2034 = vmul.f32 %v1820, %v2026
      %v2035 = vmul.f32 %v1821, %v2027
      %v2036 = vmul.f32 %v1822, %v2020
      %v2037 = vmul.f32 %v1823, %v2021
      %v2038 = vmul.f32 %v1822, %v2022
      %v2039 = vmul.f32 %v1823, %v2023
      %v2040 = vmul.f32 %v1822, %v2024
      %v2041 = vmul.f32 %v1823, %v2025
      %v2042 = vmul.f32 %v1822, %v2026
      %v2043 = vmul.f32 %v1823, %v2027
      %v2044 = vmul.f32 %v1824, %v2020
      %v2045 = vmul.f32 %v1825, %v2021
      %v2046 = vmul.f32 %v1824, %v2022
      %v2047 = vmul.f32 %v1825, %v2023
      %v2048 = vmul.f32 %v1824, %v2024
      %v2049 = vmul.f32 %v1825, %v2025
      %v2050 = vmul.f32 %v1824, %v2026
      %v2051 = vmul.f32 %v1825, %v2027
      %v2052 = vmul.f32 %v1826, %v2020
      %v2053 = vmul.f32 %v1827, %v2021
      %v2054 = vmul.f32 %v1826, %v2022
      %v2055 = vmul.f32 %v1827, %v2023
      %v2056 = vmul.f32 %v1826, %v2024
      %v2057 = vmul.f32 %v1827, %v2025
      %v2058 = vmul.f32 %v1826, %v2026
      %v2059 = vmul.f32 %v1827, %v2027
      %v2060 = vadd.f32 %v2028, 0.0
      %v2061 = vadd.f32 %v2029, 0.0
      %v2062 = vadd.f32 %v2030, 0.0
      %v2063 = vadd.f32 %v2031, 0.0
      %v2064 = vadd.f32 %v2032, 0.0
      %v2065 = vadd.f32 %v2033, 0.0
      %v2066 = vadd.f32 %v2034, 0.0
      %v2067 = vadd.f32 %v2035, 0.0
      %v2068 = vadd.f32 %v2036, 0.0
      %v2069 = vadd.f32 %v2037, 0.0
      %v2070 = vadd.f32 %v2038, 0.0
      %v2071 = vadd.f32 %v2039, 0.0
      %v2072 = vadd.f32 %v2040, 0.0
      %v2073 = vadd.f32 %v2041, 0.0
      %v2074 = vadd.f32 %v2042, 0.0
      %v2075 = vadd.f32 %v2043, 0.0
      %v2076 = vadd.f32 %v2044, 0.0
      %v2077 = vadd.f32 %v2045, 0.0
      %v2078 = vadd.f32 %v2046, 0.0
      %v2079 = vadd.f32 %v2047, 0.0
      %v2080 = vadd.f32 %v2048, 0.0
      %v2081 = vadd.f32 %v2049, 0.0
      %v2082 = vadd.f32 %v2050, 0.0
      %v2083 = vadd.f32 %v2051, 0.0
      %v2084 = vadd.f32 %v2052, 0.0
      %v2085 = vadd.f32 %v2053, 0.0
      %v2086 = vadd.f32 %v2054, 0.0
      %v2087 = vadd.f32 %v2055, 0.0
      %v2088 = vadd.f32 %v2056, 0.0
      %v2089 = vadd.f32 %v2057, 0.0
      %v2090 = vadd.f32 %v2058, 0.0
      %v2091 = vadd.f32 %v2059, 0.0
      %2100 = vrot.lane.b32.xlu0 %v2020, 127
      %v2101 = vpop.permute.xlu0 %2100
      %2102 = vrot.lane.b32.xlu0 %v2021, 127
      %v2103 = vpop.permute.xlu0 %2102
      %2104 = vrot.lane.b32.xlu0 %v2022, 127
      %v2105 = vpop.permute.xlu0 %2104
      %2106 = vrot.lane.b32.xlu0 %v2023, 127
      %v2107 = vpop.permute.xlu0 %2106
      %2108 = vrot.lane.b32.xlu0 %v2024, 127
      %v2109 = vpop.permute.xlu0 %2108
      %2110 = vrot.lane.b32.xlu0 %v2025, 127
      %v2111 = vpop.permute.xlu0 %2110
      %2112 = vrot.lane.b32.xlu0 %v2026, 127
      %v2113 = vpop.permute.xlu0 %2112
      %2114 = vrot.lane.b32.xlu0 %v2027, 127
      %v2115 = vpop.permute.xlu0 %2114
      %v2124 = vmul.f32 %v1828, %v2101
      %v2125 = vmul.f32 %v1829, %v2103
      %v2126 = vmul.f32 %v1828, %v2105
      %v2127 = vmul.f32 %v1829, %v2107
      %v2128 = vmul.f32 %v1828, %v2109
      %v2129 = vmul.f32 %v1829, %v2111
      %v2130 = vmul.f32 %v1828, %v2113
      %v2131 = vmul.f32 %v1829, %v2115
      %v2132 = vmul.f32 %v1830, %v2101
      %v2133 = vmul.f32 %v1831, %v2103
      %v2134 = vmul.f32 %v1830, %v2105
      %v2135 = vmul.f32 %v1831, %v2107
      %v2136 = vmul.f32 %v1830, %v2109
      %v2137 = vmul.f32 %v1831, %v2111
      %v2138 = vmul.f32 %v1830, %v2113
      %v2139 = vmul.f32 %v1831, %v2115
      %v2140 = vmul.f32 %v1832, %v2101
      %v2141 = vmul.f32 %v1833, %v2103
      %v2142 = vmul.f32 %v1832, %v2105
      %v2143 = vmul.f32 %v1833, %v2107
      %v2144 = vmul.f32 %v1832, %v2109
      %v2145 = vmul.f32 %v1833, %v2111
      %v2146 = vmul.f32 %v1832, %v2113
      %v2147 = vmul.f32 %v1833, %v2115
      %v2148 = vmul.f32 %v1834, %v2101
      %v2149 = vmul.f32 %v1835, %v2103
      %v2150 = vmul.f32 %v1834, %v2105
      %v2151 = vmul.f32 %v1835, %v2107
      %v2152 = vmul.f32 %v1834, %v2109
      %v2153 = vmul.f32 %v1835, %v2111
      %v2154 = vmul.f32 %v1834, %v2113
      %v2155 = vmul.f32 %v1835, %v2115
      %v2156 = vadd.f32 %v2060, %v2124
      %v2157 = vadd.f32 %v2061, %v2125
      %v2158 = vadd.f32 %v2062, %v2126
      %v2159 = vadd.f32 %v2063, %v2127
      %v2160 = vadd.f32 %v2064, %v2128
      %v2161 = vadd.f32 %v2065, %v2129
      %v2162 = vadd.f32 %v2066, %v2130
      %v2163 = vadd.f32 %v2067, %v2131
      %v2164 = vadd.f32 %v2068, %v2132
      %v2165 = vadd.f32 %v2069, %v2133
      %v2166 = vadd.f32 %v2070, %v2134
      %v2167 = vadd.f32 %v2071, %v2135
      %v2168 = vadd.f32 %v2072, %v2136
      %v2169 = vadd.f32 %v2073, %v2137
      %v2170 = vadd.f32 %v2074, %v2138
      %v2171 = vadd.f32 %v2075, %v2139
      %v2172 = vadd.f32 %v2076, %v2140
      %v2173 = vadd.f32 %v2077, %v2141
      %v2174 = vadd.f32 %v2078, %v2142
      %v2175 = vadd.f32 %v2079, %v2143
      %v2176 = vadd.f32 %v2080, %v2144
      %v2177 = vadd.f32 %v2081, %v2145
      %v2178 = vadd.f32 %v2082, %v2146
      %v2179 = vadd.f32 %v2083, %v2147
      %v2180 = vadd.f32 %v2084, %v2148
      %v2181 = vadd.f32 %v2085, %v2149
      %v2182 = vadd.f32 %v2086, %v2150
      %v2183 = vadd.f32 %v2087, %v2151
      %v2184 = vadd.f32 %v2088, %v2152
      %v2185 = vadd.f32 %v2089, %v2153
      %v2186 = vadd.f32 %v2090, %v2154
      %v2187 = vadd.f32 %v2091, %v2155
      %2188 = vrot.lane.b32.xlu0 %v2020, 126
      %v2189 = vpop.permute.xlu0 %2188
      %2190 = vrot.lane.b32.xlu0 %v2021, 126
      %v2191 = vpop.permute.xlu0 %2190
      %2192 = vrot.lane.b32.xlu0 %v2022, 126
      %v2193 = vpop.permute.xlu0 %2192
      %2194 = vrot.lane.b32.xlu0 %v2023, 126
      %v2195 = vpop.permute.xlu0 %2194
      %2196 = vrot.lane.b32.xlu0 %v2024, 126
      %v2197 = vpop.permute.xlu0 %2196
      %2198 = vrot.lane.b32.xlu0 %v2025, 126
      %v2199 = vpop.permute.xlu0 %2198
      %2200 = vrot.lane.b32.xlu0 %v2026, 126
      %v2201 = vpop.permute.xlu0 %2200
      %2202 = vrot.lane.b32.xlu0 %v2027, 126
      %v2203 = vpop.permute.xlu0 %2202
      %v2212 = vmul.f32 %v1836, %v2189
      %v2213 = vmul.f32 %v1837, %v2191
      %v2214 = vmul.f32 %v1836, %v2193
      %v2215 = vmul.f32 %v1837, %v2195
      %v2216 = vmul.f32 %v1836, %v2197
      %v2217 = vmul.f32 %v1837, %v2199
      %v2218 = vmul.f32 %v1836, %v2201
      %v2219 = vmul.f32 %v1837, %v2203
      %v2220 = vmul.f32 %v1838, %v2189
      %v2221 = vmul.f32 %v1839, %v2191
      %v2222 = vmul.f32 %v1838, %v2193
      %v2223 = vmul.f32 %v1839, %v2195
      %v2224 = vmul.f32 %v1838, %v2197
      %v2225 = vmul.f32 %v1839, %v2199
      %v2226 = vmul.f32 %v1838, %v2201
      %v2227 = vmul.f32 %v1839, %v2203
      %v2228 = vmul.f32 %v1840, %v2189
      %v2229 = vmul.f32 %v1841, %v2191
      %v2230 = vmul.f32 %v1840, %v2193
      %v2231 = vmul.f32 %v1841, %v2195
      %v2232 = vmul.f32 %v1840, %v2197
      %v2233 = vmul.f32 %v1841, %v2199
      %v2234 = vmul.f32 %v1840, %v2201
      %v2235 = vmul.f32 %v1841, %v2203
      %v2236 = vmul.f32 %v1842, %v2189
      %v2237 = vmul.f32 %v1843, %v2191
      %v2238 = vmul.f32 %v1842, %v2193
      %v2239 = vmul.f32 %v1843, %v2195
      %v2240 = vmul.f32 %v1842, %v2197
      %v2241 = vmul.f32 %v1843, %v2199
      %v2242 = vmul.f32 %v1842, %v2201
      %v2243 = vmul.f32 %v1843, %v2203
      %v2244 = vadd.f32 %v2156, %v2212
      %v2245 = vadd.f32 %v2157, %v2213
      %v2246 = vadd.f32 %v2158, %v2214
      %v2247 = vadd.f32 %v2159, %v2215
      %v2248 = vadd.f32 %v2160, %v2216
      %v2249 = vadd.f32 %v2161, %v2217
      %v2250 = vadd.f32 %v2162, %v2218
      %v2251 = vadd.f32 %v2163, %v2219
      %v2252 = vadd.f32 %v2164, %v2220
      %v2253 = vadd.f32 %v2165, %v2221
      %v2254 = vadd.f32 %v2166, %v2222
      %v2255 = vadd.f32 %v2167, %v2223
      %v2256 = vadd.f32 %v2168, %v2224
      %v2257 = vadd.f32 %v2169, %v2225
      %v2258 = vadd.f32 %v2170, %v2226
      %v2259 = vadd.f32 %v2171, %v2227
      %v2260 = vadd.f32 %v2172, %v2228
      %v2261 = vadd.f32 %v2173, %v2229
      %v2262 = vadd.f32 %v2174, %v2230
      %v2263 = vadd.f32 %v2175, %v2231
      %v2264 = vadd.f32 %v2176, %v2232
      %v2265 = vadd.f32 %v2177, %v2233
      %v2266 = vadd.f32 %v2178, %v2234
      %v2267 = vadd.f32 %v2179, %v2235
      %v2268 = vadd.f32 %v2180, %v2236
      %v2269 = vadd.f32 %v2181, %v2237
      %v2270 = vadd.f32 %v2182, %v2238
      %v2271 = vadd.f32 %v2183, %v2239
      %v2272 = vadd.f32 %v2184, %v2240
      %v2273 = vadd.f32 %v2185, %v2241
      %v2274 = vadd.f32 %v2186, %v2242
      %v2275 = vadd.f32 %v2187, %v2243
      %2276 = vrot.lane.b32.xlu0 %v2020, 125
      %v2277 = vpop.permute.xlu0 %2276
      %2278 = vrot.lane.b32.xlu0 %v2021, 125
      %v2279 = vpop.permute.xlu0 %2278
      %2280 = vrot.lane.b32.xlu0 %v2022, 125
      %v2281 = vpop.permute.xlu0 %2280
      %2282 = vrot.lane.b32.xlu0 %v2023, 125
      %v2283 = vpop.permute.xlu0 %2282
      %2284 = vrot.lane.b32.xlu0 %v2024, 125
      %v2285 = vpop.permute.xlu0 %2284
      %2286 = vrot.lane.b32.xlu0 %v2025, 125
      %v2287 = vpop.permute.xlu0 %2286
      %2288 = vrot.lane.b32.xlu0 %v2026, 125
      %v2289 = vpop.permute.xlu0 %2288
      %2290 = vrot.lane.b32.xlu0 %v2027, 125
      %v2291 = vpop.permute.xlu0 %2290
      %v2300 = vmul.f32 %v1844, %v2277
      %v2301 = vmul.f32 %v1845, %v2279
      %v2302 = vmul.f32 %v1844, %v2281
      %v2303 = vmul.f32 %v1845, %v2283
      %v2304 = vmul.f32 %v1844, %v2285
      %v2305 = vmul.f32 %v1845, %v2287
      %v2306 = vmul.f32 %v1844, %v2289
      %v2307 = vmul.f32 %v1845, %v2291
      %v2308 = vmul.f32 %v1846, %v2277
      %v2309 = vmul.f32 %v1847, %v2279
      %v2310 = vmul.f32 %v1846, %v2281
      %v2311 = vmul.f32 %v1847, %v2283
      %v2312 = vmul.f32 %v1846, %v2285
      %v2313 = vmul.f32 %v1847, %v2287
      %v2314 = vmul.f32 %v1846, %v2289
      %v2315 = vmul.f32 %v1847, %v2291
      %v2316 = vmul.f32 %v1848, %v2277
      %v2317 = vmul.f32 %v1849, %v2279
      %v2318 = vmul.f32 %v1848, %v2281
      %v2319 = vmul.f32 %v1849, %v2283
      %v2320 = vmul.f32 %v1848, %v2285
      %v2321 = vmul.f32 %v1849, %v2287
      %v2322 = vmul.f32 %v1848, %v2289
      %v2323 = vmul.f32 %v1849, %v2291
      %v2324 = vmul.f32 %v1850, %v2277
      %v2325 = vmul.f32 %v1851, %v2279
      %v2326 = vmul.f32 %v1850, %v2281
      %v2327 = vmul.f32 %v1851, %v2283
      %v2328 = vmul.f32 %v1850, %v2285
      %v2329 = vmul.f32 %v1851, %v2287
      %v2330 = vmul.f32 %v1850, %v2289
      %v2331 = vmul.f32 %v1851, %v2291
      %v2332 = vadd.f32 %v2244, %v2300
      %v2333 = vadd.f32 %v2245, %v2301
      %v2334 = vadd.f32 %v2246, %v2302
      %v2335 = vadd.f32 %v2247, %v2303
      %v2336 = vadd.f32 %v2248, %v2304
      %v2337 = vadd.f32 %v2249, %v2305
      %v2338 = vadd.f32 %v2250, %v2306
      %v2339 = vadd.f32 %v2251, %v2307
      %v2340 = vadd.f32 %v2252, %v2308
      %v2341 = vadd.f32 %v2253, %v2309
      %v2342 = vadd.f32 %v2254, %v2310
      %v2343 = vadd.f32 %v2255, %v2311
      %v2344 = vadd.f32 %v2256, %v2312
      %v2345 = vadd.f32 %v2257, %v2313
      %v2346 = vadd.f32 %v2258, %v2314
      %v2347 = vadd.f32 %v2259, %v2315
      %v2348 = vadd.f32 %v2260, %v2316
      %v2349 = vadd.f32 %v2261, %v2317
      %v2350 = vadd.f32 %v2262, %v2318
      %v2351 = vadd.f32 %v2263, %v2319
      %v2352 = vadd.f32 %v2264, %v2320
      %v2353 = vadd.f32 %v2265, %v2321
      %v2354 = vadd.f32 %v2266, %v2322
      %v2355 = vadd.f32 %v2267, %v2323
      %v2356 = vadd.f32 %v2268, %v2324
      %v2357 = vadd.f32 %v2269, %v2325
      %v2358 = vadd.f32 %v2270, %v2326
      %v2359 = vadd.f32 %v2271, %v2327
      %v2360 = vadd.f32 %v2272, %v2328
      %v2361 = vadd.f32 %v2273, %v2329
      %v2362 = vadd.f32 %v2274, %v2330
      %v2363 = vadd.f32 %v2275, %v2331
      %2364 = vrot.lane.b32.xlu0 %v2020, 124
      %v2365 = vpop.permute.xlu0 %2364
      %2366 = vrot.lane.b32.xlu0 %v2021, 124
      %v2367 = vpop.permute.xlu0 %2366
      %2368 = vrot.lane.b32.xlu0 %v2022, 124
      %v2369 = vpop.permute.xlu0 %2368
      %2370 = vrot.lane.b32.xlu0 %v2023, 124
      %v2371 = vpop.permute.xlu0 %2370
      %2372 = vrot.lane.b32.xlu0 %v2024, 124
      %v2373 = vpop.permute.xlu0 %2372
      %2374 = vrot.lane.b32.xlu0 %v2025, 124
      %v2375 = vpop.permute.xlu0 %2374
      %2376 = vrot.lane.b32.xlu0 %v2026, 124
      %v2377 = vpop.permute.xlu0 %2376
      %2378 = vrot.lane.b32.xlu0 %v2027, 124
      %v2379 = vpop.permute.xlu0 %2378
      %v2388 = vmul.f32 %v1852, %v2365
      %v2389 = vmul.f32 %v1853, %v2367
      %v2390 = vmul.f32 %v1852, %v2369
      %v2391 = vmul.f32 %v1853, %v2371
      %v2392 = vmul.f32 %v1852, %v2373
      %v2393 = vmul.f32 %v1853, %v2375
      %v2394 = vmul.f32 %v1852, %v2377
      %v2395 = vmul.f32 %v1853, %v2379
      %v2396 = vmul.f32 %v1854, %v2365
      %v2397 = vmul.f32 %v1855, %v2367
      %v2398 = vmul.f32 %v1854, %v2369
      %v2399 = vmul.f32 %v1855, %v2371
      %v2400 = vmul.f32 %v1854, %v2373
      %v2401 = vmul.f32 %v1855, %v2375
      %v2402 = vmul.f32 %v1854, %v2377
      %v2403 = vmul.f32 %v1855, %v2379
      %v2404 = vmul.f32 %v1856, %v2365
      %v2405 = vmul.f32 %v1857, %v2367
      %v2406 = vmul.f32 %v1856, %v2369
      %v2407 = vmul.f32 %v1857, %v2371
      %v2408 = vmul.f32 %v1856, %v2373
      %v2409 = vmul.f32 %v1857, %v2375
      %v2410 = vmul.f32 %v1856, %v2377
      %v2411 = vmul.f32 %v1857, %v2379
      %v2412 = vmul.f32 %v1858, %v2365
      %v2413 = vmul.f32 %v1859, %v2367
      %v2414 = vmul.f32 %v1858, %v2369
      %v2415 = vmul.f32 %v1859, %v2371
      %v2416 = vmul.f32 %v1858, %v2373
      %v2417 = vmul.f32 %v1859, %v2375
      %v2418 = vmul.f32 %v1858, %v2377
      %v2419 = vmul.f32 %v1859, %v2379
      %v2420 = vadd.f32 %v2332, %v2388
      %v2421 = vadd.f32 %v2333, %v2389
      %v2422 = vadd.f32 %v2334, %v2390
      %v2423 = vadd.f32 %v2335, %v2391
      %v2424 = vadd.f32 %v2336, %v2392
      %v2425 = vadd.f32 %v2337, %v2393
      %v2426 = vadd.f32 %v2338, %v2394
      %v2427 = vadd.f32 %v2339, %v2395
      %v2428 = vadd.f32 %v2340, %v2396
      %v2429 = vadd.f32 %v2341, %v2397
      %v2430 = vadd.f32 %v2342, %v2398
      %v2431 = vadd.f32 %v2343, %v2399
      %v2432 = vadd.f32 %v2344, %v2400
      %v2433 = vadd.f32 %v2345, %v2401
      %v2434 = vadd.f32 %v2346, %v2402
      %v2435 = vadd.f32 %v2347, %v2403
      %v2436 = vadd.f32 %v2348, %v2404
      %v2437 = vadd.f32 %v2349, %v2405
      %v2438 = vadd.f32 %v2350, %v2406
      %v2439 = vadd.f32 %v2351, %v2407
      %v2440 = vadd.f32 %v2352, %v2408
      %v2441 = vadd.f32 %v2353, %v2409
      %v2442 = vadd.f32 %v2354, %v2410
      %v2443 = vadd.f32 %v2355, %v2411
      %v2444 = vadd.f32 %v2356, %v2412
      %v2445 = vadd.f32 %v2357, %v2413
      %v2446 = vadd.f32 %v2358, %v2414
      %v2447 = vadd.f32 %v2359, %v2415
      %v2448 = vadd.f32 %v2360, %v2416
      %v2449 = vadd.f32 %v2361, %v2417
      %v2450 = vadd.f32 %v2362, %v2418
      %v2451 = vadd.f32 %v2363, %v2419
      %v2452 = vld [vmem:[#allocation2 + $0x1] sm:$0xff]
      %v2453 = vld [vmem:[#allocation2 + $0x9] sm:$0xff]
      %v2454 = vld [vmem:[#allocation2 + $0x19] sm:$0xff]
      %v2455 = vld [vmem:[#allocation2 + $0x21] sm:$0xff]
      %v2456 = vld [vmem:[#allocation2 + $0x31] sm:$0xff]
      %v2457 = vld [vmem:[#allocation2 + $0x39] sm:$0xff]
      %v2458 = vld [vmem:[#allocation2 + $0x49] sm:$0xff]
      %v2459 = vld [vmem:[#allocation2 + $0x51] sm:$0xff]
      %v2460 = vmul.f32 %v1860, %v2452
      %v2461 = vmul.f32 %v1861, %v2453
      %v2462 = vmul.f32 %v1860, %v2454
      %v2463 = vmul.f32 %v1861, %v2455
      %v2464 = vmul.f32 %v1860, %v2456
      %v2465 = vmul.f32 %v1861, %v2457
      %v2466 = vmul.f32 %v1860, %v2458
      %v2467 = vmul.f32 %v1861, %v2459
      %v2468 = vmul.f32 %v1862, %v2452
      %v2469 = vmul.f32 %v1863, %v2453
      %v2470 = vmul.f32 %v1862, %v2454
      %v2471 = vmul.f32 %v1863, %v2455
      %v2472 = vmul.f32 %v1862, %v2456
      %v2473 = vmul.f32 %v1863, %v2457
      %v2474 = vmul.f32 %v1862, %v2458
      %v2475 = vmul.f32 %v1863, %v2459
      %v2476 = vmul.f32 %v1864, %v2452
      %v2477 = vmul.f32 %v1865, %v2453
      %v2478 = vmul.f32 %v1864, %v2454
      %v2479 = vmul.f32 %v1865, %v2455
      %v2480 = vmul.f32 %v1864, %v2456
      %v2481 = vmul.f32 %v1865, %v2457
      %v2482 = vmul.f32 %v1864, %v2458
      %v2483 = vmul.f32 %v1865, %v2459
      %v2484 = vmul.f32 %v1866, %v2452
      %v2485 = vmul.f32 %v1867, %v2453
      %v2486 = vmul.f32 %v1866, %v2454
      %v2487 = vmul.f32 %v1867, %v2455
      %v2488 = vmul.f32 %v1866, %v2456
      %v2489 = vmul.f32 %v1867, %v2457
      %v2490 = vmul.f32 %v1866, %v2458
      %v2491 = vmul.f32 %v1867, %v2459
      %v2492 = vadd.f32 %v2420, %v2460
      %v2493 = vadd.f32 %v2421, %v2461
      %v2494 = vadd.f32 %v2422, %v2462
      %v2495 = vadd.f32 %v2423, %v2463
      %v2496 = vadd.f32 %v2424, %v2464
      %v2497 = vadd.f32 %v2425, %v2465
      %v2498 = vadd.f32 %v2426, %v2466
      %v2499 = vadd.f32 %v2427, %v2467
      %v2500 = vadd.f32 %v2428, %v2468
      %v2501 = vadd.f32 %v2429, %v2469
      %v2502 = vadd.f32 %v2430, %v2470
      %v2503 = vadd.f32 %v2431, %v2471
      %v2504 = vadd.f32 %v2432, %v2472
      %v2505 = vadd.f32 %v2433, %v2473
      %v2506 = vadd.f32 %v2434, %v2474
      %v2507 = vadd.f32 %v2435, %v2475
      %v2508 = vadd.f32 %v2436, %v2476
      %v2509 = vadd.f32 %v2437, %v2477
      %v2510 = vadd.f32 %v2438, %v2478
      %v2511 = vadd.f32 %v2439, %v2479
      %v2512 = vadd.f32 %v2440, %v2480
      %v2513 = vadd.f32 %v2441, %v2481
      %v2514 = vadd.f32 %v2442, %v2482
      %v2515 = vadd.f32 %v2443, %v2483
      %v2516 = vadd.f32 %v2444, %v2484
      %v2517 = vadd.f32 %v2445, %v2485
      %v2518 = vadd.f32 %v2446, %v2486
      %v2519 = vadd.f32 %v2447, %v2487
      %v2520 = vadd.f32 %v2448, %v2488
      %v2521 = vadd.f32 %v2449, %v2489
      %v2522 = vadd.f32 %v2450, %v2490
      %v2523 = vadd.f32 %v2451, %v2491
      %2532 = vrot.lane.b32.xlu0 %v2452, 127
      %v2533 = vpop.permute.xlu0 %2532
      %2534 = vrot.lane.b32.xlu0 %v2453, 127
      %v2535 = vpop.permute.xlu0 %2534
      %2536 = vrot.lane.b32.xlu0 %v2454, 127
      %v2537 = vpop.permute.xlu0 %2536
      %2538 = vrot.lane.b32.xlu0 %v2455, 127
      %v2539 = vpop.permute.xlu0 %2538
      %2540 = vrot.lane.b32.xlu0 %v2456, 127
      %v2541 = vpop.permute.xlu0 %2540
      %2542 = vrot.lane.b32.xlu0 %v2457, 127
      %v2543 = vpop.permute.xlu0 %2542
      %2544 = vrot.lane.b32.xlu0 %v2458, 127
      %v2545 = vpop.permute.xlu0 %2544
      %2546 = vrot.lane.b32.xlu0 %v2459, 127
      %v2547 = vpop.permute.xlu0 %2546
      %v2556 = vmul.f32 %v1868, %v2533
      %v2557 = vmul.f32 %v1869, %v2535
      %v2558 = vmul.f32 %v1868, %v2537
      %v2559 = vmul.f32 %v1869, %v2539
      %v2560 = vmul.f32 %v1868, %v2541
      %v2561 = vmul.f32 %v1869, %v2543
      %v2562 = vmul.f32 %v1868, %v2545
      %v2563 = vmul.f32 %v1869, %v2547
      %v2564 = vmul.f32 %v1870, %v2533
      %v2565 = vmul.f32 %v1871, %v2535
      %v2566 = vmul.f32 %v1870, %v2537
      %v2567 = vmul.f32 %v1871, %v2539
      %v2568 = vmul.f32 %v1870, %v2541
      %v2569 = vmul.f32 %v1871, %v2543
      %v2570 = vmul.f32 %v1870, %v2545
      %v2571 = vmul.f32 %v1871, %v2547
      %v2572 = vmul.f32 %v1872, %v2533
      %v2573 = vmul.f32 %v1873, %v2535
      %v2574 = vmul.f32 %v1872, %v2537
      %v2575 = vmul.f32 %v1873, %v2539
      %v2576 = vmul.f32 %v1872, %v2541
      %v2577 = vmul.f32 %v1873, %v2543
      %v2578 = vmul.f32 %v1872, %v2545
      %v2579 = vmul.f32 %v1873, %v2547
      %v2580 = vmul.f32 %v1874, %v2533
      %v2581 = vmul.f32 %v1875, %v2535
      %v2582 = vmul.f32 %v1874, %v2537
      %v2583 = vmul.f32 %v1875, %v2539
      %v2584 = vmul.f32 %v1874, %v2541
      %v2585 = vmul.f32 %v1875, %v2543
      %v2586 = vmul.f32 %v1874, %v2545
      %v2587 = vmul.f32 %v1875, %v2547
      %v2588 = vadd.f32 %v2492, %v2556
      %v2589 = vadd.f32 %v2493, %v2557
      %v2590 = vadd.f32 %v2494, %v2558
      %v2591 = vadd.f32 %v2495, %v2559
      %v2592 = vadd.f32 %v2496, %v2560
      %v2593 = vadd.f32 %v2497, %v2561
      %v2594 = vadd.f32 %v2498, %v2562
      %v2595 = vadd.f32 %v2499, %v2563
      %v2596 = vadd.f32 %v2500, %v2564
      %v2597 = vadd.f32 %v2501, %v2565
      %v2598 = vadd.f32 %v2502, %v2566
      %v2599 = vadd.f32 %v2503, %v2567
      %v2600 = vadd.f32 %v2504, %v2568
      %v2601 = vadd.f32 %v2505, %v2569
      %v2602 = vadd.f32 %v2506, %v2570
      %v2603 = vadd.f32 %v2507, %v2571
      %v2604 = vadd.f32 %v2508, %v2572
      %v2605 = vadd.f32 %v2509, %v2573
      %v2606 = vadd.f32 %v2510, %v2574
      %v2607 = vadd.f32 %v2511, %v2575
      %v2608 = vadd.f32 %v2512, %v2576
      %v2609 = vadd.f32 %v2513, %v2577
      %v2610 = vadd.f32 %v2514, %v2578
      %v2611 = vadd.f32 %v2515, %v2579
      %v2612 = vadd.f32 %v2516, %v2580
      %v2613 = vadd.f32 %v2517, %v2581
      %v2614 = vadd.f32 %v2518, %v2582
      %v2615 = vadd.f32 %v2519, %v2583
      %v2616 = vadd.f32 %v2520, %v2584
      %v2617 = vadd.f32 %v2521, %v2585
      %v2618 = vadd.f32 %v2522, %v2586
      %v2619 = vadd.f32 %v2523, %v2587
      %2620 = vrot.lane.b32.xlu0 %v2452, 126
      %v2621 = vpop.permute.xlu0 %2620
      %2622 = vrot.lane.b32.xlu0 %v2453, 126
      %v2623 = vpop.permute.xlu0 %2622
      %2624 = vrot.lane.b32.xlu0 %v2454, 126
      %v2625 = vpop.permute.xlu0 %2624
      %2626 = vrot.lane.b32.xlu0 %v2455, 126
      %v2627 = vpop.permute.xlu0 %2626
      %2628 = vrot.lane.b32.xlu0 %v2456, 126
      %v2629 = vpop.permute.xlu0 %2628
      %2630 = vrot.lane.b32.xlu0 %v2457, 126
      %v2631 = vpop.permute.xlu0 %2630
      %2632 = vrot.lane.b32.xlu0 %v2458, 126
      %v2633 = vpop.permute.xlu0 %2632
      %2634 = vrot.lane.b32.xlu0 %v2459, 126
      %v2635 = vpop.permute.xlu0 %2634
      %v2644 = vmul.f32 %v1876, %v2621
      %v2645 = vmul.f32 %v1877, %v2623
      %v2646 = vmul.f32 %v1876, %v2625
      %v2647 = vmul.f32 %v1877, %v2627
      %v2648 = vmul.f32 %v1876, %v2629
      %v2649 = vmul.f32 %v1877, %v2631
      %v2650 = vmul.f32 %v1876, %v2633
      %v2651 = vmul.f32 %v1877, %v2635
      %v2652 = vmul.f32 %v1878, %v2621
      %v2653 = vmul.f32 %v1879, %v2623
      %v2654 = vmul.f32 %v1878, %v2625
      %v2655 = vmul.f32 %v1879, %v2627
      %v2656 = vmul.f32 %v1878, %v2629
      %v2657 = vmul.f32 %v1879, %v2631
      %v2658 = vmul.f32 %v1878, %v2633
      %v2659 = vmul.f32 %v1879, %v2635
      %v2660 = vmul.f32 %v1880, %v2621
      %v2661 = vmul.f32 %v1881, %v2623
      %v2662 = vmul.f32 %v1880, %v2625
      %v2663 = vmul.f32 %v1881, %v2627
      %v2664 = vmul.f32 %v1880, %v2629
      %v2665 = vmul.f32 %v1881, %v2631
      %v2666 = vmul.f32 %v1880, %v2633
      %v2667 = vmul.f32 %v1881, %v2635
      %v2668 = vmul.f32 %v1882, %v2621
      %v2669 = vmul.f32 %v1883, %v2623
      %v2670 = vmul.f32 %v1882, %v2625
      %v2671 = vmul.f32 %v1883, %v2627
      %v2672 = vmul.f32 %v1882, %v2629
      %v2673 = vmul.f32 %v1883, %v2631
      %v2674 = vmul.f32 %v1882, %v2633
      %v2675 = vmul.f32 %v1883, %v2635
      %v2676 = vadd.f32 %v2588, %v2644
      %v2677 = vadd.f32 %v2589, %v2645
      %v2678 = vadd.f32 %v2590, %v2646
      %v2679 = vadd.f32 %v2591, %v2647
      %v2680 = vadd.f32 %v2592, %v2648
      %v2681 = vadd.f32 %v2593, %v2649
      %v2682 = vadd.f32 %v2594, %v2650
      %v2683 = vadd.f32 %v2595, %v2651
      %v2684 = vadd.f32 %v2596, %v2652
      %v2685 = vadd.f32 %v2597, %v2653
      %v2686 = vadd.f32 %v2598, %v2654
      %v2687 = vadd.f32 %v2599, %v2655
      %v2688 = vadd.f32 %v2600, %v2656
      %v2689 = vadd.f32 %v2601, %v2657
      %v2690 = vadd.f32 %v2602, %v2658
      %v2691 = vadd.f32 %v2603, %v2659
      %v2692 = vadd.f32 %v2604, %v2660
      %v2693 = vadd.f32 %v2605, %v2661
      %v2694 = vadd.f32 %v2606, %v2662
      %v2695 = vadd.f32 %v2607, %v2663
      %v2696 = vadd.f32 %v2608, %v2664
      %v2697 = vadd.f32 %v2609, %v2665
      %v2698 = vadd.f32 %v2610, %v2666
      %v2699 = vadd.f32 %v2611, %v2667
      %v2700 = vadd.f32 %v2612, %v2668
      %v2701 = vadd.f32 %v2613, %v2669
      %v2702 = vadd.f32 %v2614, %v2670
      %v2703 = vadd.f32 %v2615, %v2671
      %v2704 = vadd.f32 %v2616, %v2672
      %v2705 = vadd.f32 %v2617, %v2673
      %v2706 = vadd.f32 %v2618, %v2674
      %v2707 = vadd.f32 %v2619, %v2675
      %2708 = vrot.lane.b32.xlu0 %v2452, 125
      %v2709 = vpop.permute.xlu0 %2708
      %2710 = vrot.lane.b32.xlu0 %v2453, 125
      %v2711 = vpop.permute.xlu0 %2710
      %2712 = vrot.lane.b32.xlu0 %v2454, 125
      %v2713 = vpop.permute.xlu0 %2712
      %2714 = vrot.lane.b32.xlu0 %v2455, 125
      %v2715 = vpop.permute.xlu0 %2714
      %2716 = vrot.lane.b32.xlu0 %v2456, 125
      %v2717 = vpop.permute.xlu0 %2716
      %2718 = vrot.lane.b32.xlu0 %v2457, 125
      %v2719 = vpop.permute.xlu0 %2718
      %2720 = vrot.lane.b32.xlu0 %v2458, 125
      %v2721 = vpop.permute.xlu0 %2720
      %2722 = vrot.lane.b32.xlu0 %v2459, 125
      %v2723 = vpop.permute.xlu0 %2722
      %v2732 = vmul.f32 %v1884, %v2709
      %v2733 = vmul.f32 %v1885, %v2711
      %v2734 = vmul.f32 %v1884, %v2713
      %v2735 = vmul.f32 %v1885, %v2715
      %v2736 = vmul.f32 %v1884, %v2717
      %v2737 = vmul.f32 %v1885, %v2719
      %v2738 = vmul.f32 %v1884, %v2721
      %v2739 = vmul.f32 %v1885, %v2723
      %v2740 = vmul.f32 %v1886, %v2709
      %v2741 = vmul.f32 %v1887, %v2711
      %v2742 = vmul.f32 %v1886, %v2713
      %v2743 = vmul.f32 %v1887, %v2715
      %v2744 = vmul.f32 %v1886, %v2717
      %v2745 = vmul.f32 %v1887, %v2719
      %v2746 = vmul.f32 %v1886, %v2721
      %v2747 = vmul.f32 %v1887, %v2723
      %v2748 = vmul.f32 %v1888, %v2709
      %v2749 = vmul.f32 %v1889, %v2711
      %v2750 = vmul.f32 %v1888, %v2713
      %v2751 = vmul.f32 %v1889, %v2715
      %v2752 = vmul.f32 %v1888, %v2717
      %v2753 = vmul.f32 %v1889, %v2719
      %v2754 = vmul.f32 %v1888, %v2721
      %v2755 = vmul.f32 %v1889, %v2723
      %v2756 = vmul.f32 %v1890, %v2709
      %v2757 = vmul.f32 %v1891, %v2711
      %v2758 = vmul.f32 %v1890, %v2713
      %v2759 = vmul.f32 %v1891, %v2715
      %v2760 = vmul.f32 %v1890, %v2717
      %v2761 = vmul.f32 %v1891, %v2719
      %v2762 = vmul.f32 %v1890, %v2721
      %v2763 = vmul.f32 %v1891, %v2723
      %v2764 = vadd.f32 %v2676, %v2732
      %v2765 = vadd.f32 %v2677, %v2733
      %v2766 = vadd.f32 %v2678, %v2734
      %v2767 = vadd.f32 %v2679, %v2735
      %v2768 = vadd.f32 %v2680, %v2736
      %v2769 = vadd.f32 %v2681, %v2737
      %v2770 = vadd.f32 %v2682, %v2738
      %v2771 = vadd.f32 %v2683, %v2739
      %v2772 = vadd.f32 %v2684, %v2740
      %v2773 = vadd.f32 %v2685, %v2741
      %v2774 = vadd.f32 %v2686, %v2742
      %v2775 = vadd.f32 %v2687, %v2743
      %v2776 = vadd.f32 %v2688, %v2744
      %v2777 = vadd.f32 %v2689, %v2745
      %v2778 = vadd.f32 %v2690, %v2746
      %v2779 = vadd.f32 %v2691, %v2747
      %v2780 = vadd.f32 %v2692, %v2748
      %v2781 = vadd.f32 %v2693, %v2749
      %v2782 = vadd.f32 %v2694, %v2750
      %v2783 = vadd.f32 %v2695, %v2751
      %v2784 = vadd.f32 %v2696, %v2752
      %v2785 = vadd.f32 %v2697, %v2753
      %v2786 = vadd.f32 %v2698, %v2754
      %v2787 = vadd.f32 %v2699, %v2755
      %v2788 = vadd.f32 %v2700, %v2756
      %v2789 = vadd.f32 %v2701, %v2757
      %v2790 = vadd.f32 %v2702, %v2758
      %v2791 = vadd.f32 %v2703, %v2759
      %v2792 = vadd.f32 %v2704, %v2760
      %v2793 = vadd.f32 %v2705, %v2761
      %v2794 = vadd.f32 %v2706, %v2762
      %v2795 = vadd.f32 %v2707, %v2763
      %2796 = vrot.lane.b32.xlu0 %v2452, 124
      %v2797 = vpop.permute.xlu0 %2796
      %2798 = vrot.lane.b32.xlu0 %v2453, 124
      %v2799 = vpop.permute.xlu0 %2798
      %2800 = vrot.lane.b32.xlu0 %v2454, 124
      %v2801 = vpop.permute.xlu0 %2800
      %2802 = vrot.lane.b32.xlu0 %v2455, 124
      %v2803 = vpop.permute.xlu0 %2802
      %2804 = vrot.lane.b32.xlu0 %v2456, 124
      %v2805 = vpop.permute.xlu0 %2804
      %2806 = vrot.lane.b32.xlu0 %v2457, 124
      %v2807 = vpop.permute.xlu0 %2806
      %2808 = vrot.lane.b32.xlu0 %v2458, 124
      %v2809 = vpop.permute.xlu0 %2808
      %2810 = vrot.lane.b32.xlu0 %v2459, 124
      %v2811 = vpop.permute.xlu0 %2810
      %v2820 = vmul.f32 %v1892, %v2797
      %v2821 = vmul.f32 %v1893, %v2799
      %v2822 = vmul.f32 %v1892, %v2801
      %v2823 = vmul.f32 %v1893, %v2803
      %v2824 = vmul.f32 %v1892, %v2805
      %v2825 = vmul.f32 %v1893, %v2807
      %v2826 = vmul.f32 %v1892, %v2809
      %v2827 = vmul.f32 %v1893, %v2811
      %v2828 = vmul.f32 %v1894, %v2797
      %v2829 = vmul.f32 %v1895, %v2799
      %v2830 = vmul.f32 %v1894, %v2801
      %v2831 = vmul.f32 %v1895, %v2803
      %v2832 = vmul.f32 %v1894, %v2805
      %v2833 = vmul.f32 %v1895, %v2807
      %v2834 = vmul.f32 %v1894, %v2809
      %v2835 = vmul.f32 %v1895, %v2811
      %v2836 = vmul.f32 %v1896, %v2797
      %v2837 = vmul.f32 %v1897, %v2799
      %v2838 = vmul.f32 %v1896, %v2801
      %v2839 = vmul.f32 %v1897, %v2803
      %v2840 = vmul.f32 %v1896, %v2805
      %v2841 = vmul.f32 %v1897, %v2807
      %v2842 = vmul.f32 %v1896, %v2809
      %v2843 = vmul.f32 %v1897, %v2811
      %v2844 = vmul.f32 %v1898, %v2797
      %v2845 = vmul.f32 %v1899, %v2799
      %v2846 = vmul.f32 %v1898, %v2801
      %v2847 = vmul.f32 %v1899, %v2803
      %v2848 = vmul.f32 %v1898, %v2805
      %v2849 = vmul.f32 %v1899, %v2807
      %v2850 = vmul.f32 %v1898, %v2809
      %v2851 = vmul.f32 %v1899, %v2811
      %v2852 = vadd.f32 %v2764, %v2820
      %v2853 = vadd.f32 %v2765, %v2821
      %v2854 = vadd.f32 %v2766, %v2822
      %v2855 = vadd.f32 %v2767, %v2823
      %v2856 = vadd.f32 %v2768, %v2824
      %v2857 = vadd.f32 %v2769, %v2825
      %v2858 = vadd.f32 %v2770, %v2826
      %v2859 = vadd.f32 %v2771, %v2827
      %v2860 = vadd.f32 %v2772, %v2828
      %v2861 = vadd.f32 %v2773, %v2829
      %v2862 = vadd.f32 %v2774, %v2830
      %v2863 = vadd.f32 %v2775, %v2831
      %v2864 = vadd.f32 %v2776, %v2832
      %v2865 = vadd.f32 %v2777, %v2833
      %v2866 = vadd.f32 %v2778, %v2834
      %v2867 = vadd.f32 %v2779, %v2835
      %v2868 = vadd.f32 %v2780, %v2836
      %v2869 = vadd.f32 %v2781, %v2837
      %v2870 = vadd.f32 %v2782, %v2838
      %v2871 = vadd.f32 %v2783, %v2839
      %v2872 = vadd.f32 %v2784, %v2840
      %v2873 = vadd.f32 %v2785, %v2841
      %v2874 = vadd.f32 %v2786, %v2842
      %v2875 = vadd.f32 %v2787, %v2843
      %v2876 = vadd.f32 %v2788, %v2844
      %v2877 = vadd.f32 %v2789, %v2845
      %v2878 = vadd.f32 %v2790, %v2846
      %v2879 = vadd.f32 %v2791, %v2847
      %v2880 = vadd.f32 %v2792, %v2848
      %v2881 = vadd.f32 %v2793, %v2849
      %v2882 = vadd.f32 %v2794, %v2850
      %v2883 = vadd.f32 %v2795, %v2851
      %v2884 = vld [vmem:[#allocation2 + $0x2] sm:$0xff]
      %v2885 = vld [vmem:[#allocation2 + $0xa] sm:$0xff]
      %v2886 = vld [vmem:[#allocation2 + $0x1a] sm:$0xff]
      %v2887 = vld [vmem:[#allocation2 + $0x22] sm:$0xff]
      %v2888 = vld [vmem:[#allocation2 + $0x32] sm:$0xff]
      %v2889 = vld [vmem:[#allocation2 + $0x3a] sm:$0xff]
      %v2890 = vld [vmem:[#allocation2 + $0x4a] sm:$0xff]
      %v2891 = vld [vmem:[#allocation2 + $0x52] sm:$0xff]
      %v2892 = vmul.f32 %v1900, %v2884
      %v2893 = vmul.f32 %v1901, %v2885
      %v2894 = vmul.f32 %v1900, %v2886
      %v2895 = vmul.f32 %v1901, %v2887
      %v2896 = vmul.f32 %v1900, %v2888
      %v2897 = vmul.f32 %v1901, %v2889
      %v2898 = vmul.f32 %v1900, %v2890
      %v2899 = vmul.f32 %v1901, %v2891
      %v2900 = vmul.f32 %v1902, %v2884
      %v2901 = vmul.f32 %v1903, %v2885
      %v2902 = vmul.f32 %v1902, %v2886
      %v2903 = vmul.f32 %v1903, %v2887
      %v2904 = vmul.f32 %v1902, %v2888
      %v2905 = vmul.f32 %v1903, %v2889
      %v2906 = vmul.f32 %v1902, %v2890
      %v2907 = vmul.f32 %v1903, %v2891
      %v2908 = vmul.f32 %v1904, %v2884
      %v2909 = vmul.f32 %v1905, %v2885
      %v2910 = vmul.f32 %v1904, %v2886
      %v2911 = vmul.f32 %v1905, %v2887
      %v2912 = vmul.f32 %v1904, %v2888
      %v2913 = vmul.f32 %v1905, %v2889
      %v2914 = vmul.f32 %v1904, %v2890
      %v2915 = vmul.f32 %v1905, %v2891
      %v2916 = vmul.f32 %v1906, %v2884
      %v2917 = vmul.f32 %v1907, %v2885
      %v2918 = vmul.f32 %v1906, %v2886
      %v2919 = vmul.f32 %v1907, %v2887
      %v2920 = vmul.f32 %v1906, %v2888
      %v2921 = vmul.f32 %v1907, %v2889
      %v2922 = vmul.f32 %v1906, %v2890
      %v2923 = vmul.f32 %v1907, %v2891
      %v2924 = vadd.f32 %v2852, %v2892
      %v2925 = vadd.f32 %v2853, %v2893
      %v2926 = vadd.f32 %v2854, %v2894
      %v2927 = vadd.f32 %v2855, %v2895
      %v2928 = vadd.f32 %v2856, %v2896
      %v2929 = vadd.f32 %v2857, %v2897
      %v2930 = vadd.f32 %v2858, %v2898
      %v2931 = vadd.f32 %v2859, %v2899
      %v2932 = vadd.f32 %v2860, %v2900
      %v2933 = vadd.f32 %v2861, %v2901
      %v2934 = vadd.f32 %v2862, %v2902
      %v2935 = vadd.f32 %v2863, %v2903
      %v2936 = vadd.f32 %v2864, %v2904
      %v2937 = vadd.f32 %v2865, %v2905
      %v2938 = vadd.f32 %v2866, %v2906
      %v2939 = vadd.f32 %v2867, %v2907
      %v2940 = vadd.f32 %v2868, %v2908
      %v2941 = vadd.f32 %v2869, %v2909
      %v2942 = vadd.f32 %v2870, %v2910
      %v2943 = vadd.f32 %v2871, %v2911
      %v2944 = vadd.f32 %v2872, %v2912
      %v2945 = vadd.f32 %v2873, %v2913
      %v2946 = vadd.f32 %v2874, %v2914
      %v2947 = vadd.f32 %v2875, %v2915
      %v2948 = vadd.f32 %v2876, %v2916
      %v2949 = vadd.f32 %v2877, %v2917
      %v2950 = vadd.f32 %v2878, %v2918
      %v2951 = vadd.f32 %v2879, %v2919
      %v2952 = vadd.f32 %v2880, %v2920
      %v2953 = vadd.f32 %v2881, %v2921
      %v2954 = vadd.f32 %v2882, %v2922
      %v2955 = vadd.f32 %v2883, %v2923
      %2964 = vrot.lane.b32.xlu0 %v2884, 127
      %v2965 = vpop.permute.xlu0 %2964
      %2966 = vrot.lane.b32.xlu0 %v2885, 127
      %v2967 = vpop.permute.xlu0 %2966
      %2968 = vrot.lane.b32.xlu0 %v2886, 127
      %v2969 = vpop.permute.xlu0 %2968
      %2970 = vrot.lane.b32.xlu0 %v2887, 127
      %v2971 = vpop.permute.xlu0 %2970
      %2972 = vrot.lane.b32.xlu0 %v2888, 127
      %v2973 = vpop.permute.xlu0 %2972
      %2974 = vrot.lane.b32.xlu0 %v2889, 127
      %v2975 = vpop.permute.xlu0 %2974
      %2976 = vrot.lane.b32.xlu0 %v2890, 127
      %v2977 = vpop.permute.xlu0 %2976
      %2978 = vrot.lane.b32.xlu0 %v2891, 127
      %v2979 = vpop.permute.xlu0 %2978
      %v2988 = vmul.f32 %v1908, %v2965
      %v2989 = vmul.f32 %v1909, %v2967
      %v2990 = vmul.f32 %v1908, %v2969
      %v2991 = vmul.f32 %v1909, %v2971
      %v2992 = vmul.f32 %v1908, %v2973
      %v2993 = vmul.f32 %v1909, %v2975
      %v2994 = vmul.f32 %v1908, %v2977
      %v2995 = vmul.f32 %v1909, %v2979
      %v2996 = vmul.f32 %v1910, %v2965
      %v2997 = vmul.f32 %v1911, %v2967
      %v2998 = vmul.f32 %v1910, %v2969
      %v2999 = vmul.f32 %v1911, %v2971
      %v3000 = vmul.f32 %v1910, %v2973
      %v3001 = vmul.f32 %v1911, %v2975
      %v3002 = vmul.f32 %v1910, %v2977
      %v3003 = vmul.f32 %v1911, %v2979
      %v3004 = vmul.f32 %v1912, %v2965
      %v3005 = vmul.f32 %v1913, %v2967
      %v3006 = vmul.f32 %v1912, %v2969
      %v3007 = vmul.f32 %v1913, %v2971
      %v3008 = vmul.f32 %v1912, %v2973
      %v3009 = vmul.f32 %v1913, %v2975
      %v3010 = vmul.f32 %v1912, %v2977
      %v3011 = vmul.f32 %v1913, %v2979
      %v3012 = vmul.f32 %v1914, %v2965
      %v3013 = vmul.f32 %v1915, %v2967
      %v3014 = vmul.f32 %v1914, %v2969
      %v3015 = vmul.f32 %v1915, %v2971
      %v3016 = vmul.f32 %v1914, %v2973
      %v3017 = vmul.f32 %v1915, %v2975
      %v3018 = vmul.f32 %v1914, %v2977
      %v3019 = vmul.f32 %v1915, %v2979
      %v3020 = vadd.f32 %v2924, %v2988
      %v3021 = vadd.f32 %v2925, %v2989
      %v3022 = vadd.f32 %v2926, %v2990
      %v3023 = vadd.f32 %v2927, %v2991
      %v3024 = vadd.f32 %v2928, %v2992
      %v3025 = vadd.f32 %v2929, %v2993
      %v3026 = vadd.f32 %v2930, %v2994
      %v3027 = vadd.f32 %v2931, %v2995
      %v3028 = vadd.f32 %v2932, %v2996
      %v3029 = vadd.f32 %v2933, %v2997
      %v3030 = vadd.f32 %v2934, %v2998
      %v3031 = vadd.f32 %v2935, %v2999
      %v3032 = vadd.f32 %v2936, %v3000
      %v3033 = vadd.f32 %v2937, %v3001
      %v3034 = vadd.f32 %v2938, %v3002
      %v3035 = vadd.f32 %v2939, %v3003
      %v3036 = vadd.f32 %v2940, %v3004
      %v3037 = vadd.f32 %v2941, %v3005
      %v3038 = vadd.f32 %v2942, %v3006
      %v3039 = vadd.f32 %v2943, %v3007
      %v3040 = vadd.f32 %v2944, %v3008
      %v3041 = vadd.f32 %v2945, %v3009
      %v3042 = vadd.f32 %v2946, %v3010
      %v3043 = vadd.f32 %v2947, %v3011
      %v3044 = vadd.f32 %v2948, %v3012
      %v3045 = vadd.f32 %v2949, %v3013
      %v3046 = vadd.f32 %v2950, %v3014
      %v3047 = vadd.f32 %v2951, %v3015
      %v3048 = vadd.f32 %v2952, %v3016
      %v3049 = vadd.f32 %v2953, %v3017
      %v3050 = vadd.f32 %v2954, %v3018
      %v3051 = vadd.f32 %v2955, %v3019
      %3052 = vrot.lane.b32.xlu0 %v2884, 126
      %v3053 = vpop.permute.xlu0 %3052
      %3054 = vrot.lane.b32.xlu0 %v2885, 126
      %v3055 = vpop.permute.xlu0 %3054
      %3056 = vrot.lane.b32.xlu0 %v2886, 126
      %v3057 = vpop.permute.xlu0 %3056
      %3058 = vrot.lane.b32.xlu0 %v2887, 126
      %v3059 = vpop.permute.xlu0 %3058
      %3060 = vrot.lane.b32.xlu0 %v2888, 126
      %v3061 = vpop.permute.xlu0 %3060
      %3062 = vrot.lane.b32.xlu0 %v2889, 126
      %v3063 = vpop.permute.xlu0 %3062
      %3064 = vrot.lane.b32.xlu0 %v2890, 126
      %v3065 = vpop.permute.xlu0 %3064
      %3066 = vrot.lane.b32.xlu0 %v2891, 126
      %v3067 = vpop.permute.xlu0 %3066
      %v3076 = vmul.f32 %v1916, %v3053
      %v3077 = vmul.f32 %v1917, %v3055
      %v3078 = vmul.f32 %v1916, %v3057
      %v3079 = vmul.f32 %v1917, %v3059
      %v3080 = vmul.f32 %v1916, %v3061
      %v3081 = vmul.f32 %v1917, %v3063
      %v3082 = vmul.f32 %v1916, %v3065
      %v3083 = vmul.f32 %v1917, %v3067
      %v3084 = vmul.f32 %v1918, %v3053
      %v3085 = vmul.f32 %v1919, %v3055
      %v3086 = vmul.f32 %v1918, %v3057
      %v3087 = vmul.f32 %v1919, %v3059
      %v3088 = vmul.f32 %v1918, %v3061
      %v3089 = vmul.f32 %v1919, %v3063
      %v3090 = vmul.f32 %v1918, %v3065
      %v3091 = vmul.f32 %v1919, %v3067
      %v3092 = vmul.f32 %v1920, %v3053
      %v3093 = vmul.f32 %v1921, %v3055
      %v3094 = vmul.f32 %v1920, %v3057
      %v3095 = vmul.f32 %v1921, %v3059
      %v3096 = vmul.f32 %v1920, %v3061
      %v3097 = vmul.f32 %v1921, %v3063
      %v3098 = vmul.f32 %v1920, %v3065
      %v3099 = vmul.f32 %v1921, %v3067
      %v3100 = vmul.f32 %v1922, %v3053
      %v3101 = vmul.f32 %v1923, %v3055
      %v3102 = vmul.f32 %v1922, %v3057
      %v3103 = vmul.f32 %v1923, %v3059
      %v3104 = vmul.f32 %v1922, %v3061
      %v3105 = vmul.f32 %v1923, %v3063
      %v3106 = vmul.f32 %v1922, %v3065
      %v3107 = vmul.f32 %v1923, %v3067
      %v3108 = vadd.f32 %v3020, %v3076
      %v3109 = vadd.f32 %v3021, %v3077
      %v3110 = vadd.f32 %v3022, %v3078
      %v3111 = vadd.f32 %v3023, %v3079
      %v3112 = vadd.f32 %v3024, %v3080
      %v3113 = vadd.f32 %v3025, %v3081
      %v3114 = vadd.f32 %v3026, %v3082
      %v3115 = vadd.f32 %v3027, %v3083
      %v3116 = vadd.f32 %v3028, %v3084
      %v3117 = vadd.f32 %v3029, %v3085
      %v3118 = vadd.f32 %v3030, %v3086
      %v3119 = vadd.f32 %v3031, %v3087
      %v3120 = vadd.f32 %v3032, %v3088
      %v3121 = vadd.f32 %v3033, %v3089
      %v3122 = vadd.f32 %v3034, %v3090
      %v3123 = vadd.f32 %v3035, %v3091
      %v3124 = vadd.f32 %v3036, %v3092
      %v3125 = vadd.f32 %v3037, %v3093
      %v3126 = vadd.f32 %v3038, %v3094
      %v3127 = vadd.f32 %v3039, %v3095
      %v3128 = vadd.f32 %v3040, %v3096
      %v3129 = vadd.f32 %v3041, %v3097
      %v3130 = vadd.f32 %v3042, %v3098
      %v3131 = vadd.f32 %v3043, %v3099
      %v3132 = vadd.f32 %v3044, %v3100
      %v3133 = vadd.f32 %v3045, %v3101
      %v3134 = vadd.f32 %v3046, %v3102
      %v3135 = vadd.f32 %v3047, %v3103
      %v3136 = vadd.f32 %v3048, %v3104
      %v3137 = vadd.f32 %v3049, %v3105
      %v3138 = vadd.f32 %v3050, %v3106
      %v3139 = vadd.f32 %v3051, %v3107
      %3140 = vrot.lane.b32.xlu0 %v2884, 125
      %v3141 = vpop.permute.xlu0 %3140
      %3142 = vrot.lane.b32.xlu0 %v2885, 125
      %v3143 = vpop.permute.xlu0 %3142
      %3144 = vrot.lane.b32.xlu0 %v2886, 125
      %v3145 = vpop.permute.xlu0 %3144
      %3146 = vrot.lane.b32.xlu0 %v2887, 125
      %v3147 = vpop.permute.xlu0 %3146
      %3148 = vrot.lane.b32.xlu0 %v2888, 125
      %v3149 = vpop.permute.xlu0 %3148
      %3150 = vrot.lane.b32.xlu0 %v2889, 125
      %v3151 = vpop.permute.xlu0 %3150
      %3152 = vrot.lane.b32.xlu0 %v2890, 125
      %v3153 = vpop.permute.xlu0 %3152
      %3154 = vrot.lane.b32.xlu0 %v2891, 125
      %v3155 = vpop.permute.xlu0 %3154
      %v3164 = vmul.f32 %v1924, %v3141
      %v3165 = vmul.f32 %v1925, %v3143
      %v3166 = vmul.f32 %v1924, %v3145
      %v3167 = vmul.f32 %v1925, %v3147
      %v3168 = vmul.f32 %v1924, %v3149
      %v3169 = vmul.f32 %v1925, %v3151
      %v3170 = vmul.f32 %v1924, %v3153
      %v3171 = vmul.f32 %v1925, %v3155
      %v3172 = vmul.f32 %v1926, %v3141
      %v3173 = vmul.f32 %v1927, %v3143
      %v3174 = vmul.f32 %v1926, %v3145
      %v3175 = vmul.f32 %v1927, %v3147
      %v3176 = vmul.f32 %v1926, %v3149
      %v3177 = vmul.f32 %v1927, %v3151
      %v3178 = vmul.f32 %v1926, %v3153
      %v3179 = vmul.f32 %v1927, %v3155
      %v3180 = vmul.f32 %v1928, %v3141
      %v3181 = vmul.f32 %v1929, %v3143
      %v3182 = vmul.f32 %v1928, %v3145
      %v3183 = vmul.f32 %v1929, %v3147
      %v3184 = vmul.f32 %v1928, %v3149
      %v3185 = vmul.f32 %v1929, %v3151
      %v3186 = vmul.f32 %v1928, %v3153
      %v3187 = vmul.f32 %v1929, %v3155
      %v3188 = vmul.f32 %v1930, %v3141
      %v3189 = vmul.f32 %v1931, %v3143
      %v3190 = vmul.f32 %v1930, %v3145
      %v3191 = vmul.f32 %v1931, %v3147
      %v3192 = vmul.f32 %v1930, %v3149
      %v3193 = vmul.f32 %v1931, %v3151
      %v3194 = vmul.f32 %v1930, %v3153
      %v3195 = vmul.f32 %v1931, %v3155
      %v3196 = vadd.f32 %v3108, %v3164
      %v3197 = vadd.f32 %v3109, %v3165
      %v3198 = vadd.f32 %v3110, %v3166
      %v3199 = vadd.f32 %v3111, %v3167
      %v3200 = vadd.f32 %v3112, %v3168
      %v3201 = vadd.f32 %v3113, %v3169
      %v3202 = vadd.f32 %v3114, %v3170
      %v3203 = vadd.f32 %v3115, %v3171
      %v3204 = vadd.f32 %v3116, %v3172
      %v3205 = vadd.f32 %v3117, %v3173
      %v3206 = vadd.f32 %v3118, %v3174
      %v3207 = vadd.f32 %v3119, %v3175
      %v3208 = vadd.f32 %v3120, %v3176
      %v3209 = vadd.f32 %v3121, %v3177
      %v3210 = vadd.f32 %v3122, %v3178
      %v3211 = vadd.f32 %v3123, %v3179
      %v3212 = vadd.f32 %v3124, %v3180
      %v3213 = vadd.f32 %v3125, %v3181
      %v3214 = vadd.f32 %v3126, %v3182
      %v3215 = vadd.f32 %v3127, %v3183
      %v3216 = vadd.f32 %v3128, %v3184
      %v3217 = vadd.f32 %v3129, %v3185
      %v3218 = vadd.f32 %v3130, %v3186
      %v3219 = vadd.f32 %v3131, %v3187
      %v3220 = vadd.f32 %v3132, %v3188
      %v3221 = vadd.f32 %v3133, %v3189
      %v3222 = vadd.f32 %v3134, %v3190
      %v3223 = vadd.f32 %v3135, %v3191
      %v3224 = vadd.f32 %v3136, %v3192
      %v3225 = vadd.f32 %v3137, %v3193
      %v3226 = vadd.f32 %v3138, %v3194
      %v3227 = vadd.f32 %v3139, %v3195
      %3228 = vrot.lane.b32.xlu0 %v2884, 124
      %v3229 = vpop.permute.xlu0 %3228
      %3230 = vrot.lane.b32.xlu0 %v2885, 124
      %v3231 = vpop.permute.xlu0 %3230
      %3232 = vrot.lane.b32.xlu0 %v2886, 124
      %v3233 = vpop.permute.xlu0 %3232
      %3234 = vrot.lane.b32.xlu0 %v2887, 124
      %v3235 = vpop.permute.xlu0 %3234
      %3236 = vrot.lane.b32.xlu0 %v2888, 124
      %v3237 = vpop.permute.xlu0 %3236
      %3238 = vrot.lane.b32.xlu0 %v2889, 124
      %v3239 = vpop.permute.xlu0 %3238
      %3240 = vrot.lane.b32.xlu0 %v2890, 124
      %v3241 = vpop.permute.xlu0 %3240
      %3242 = vrot.lane.b32.xlu0 %v2891, 124
      %v3243 = vpop.permute.xlu0 %3242
      %v3252 = vmul.f32 %v1932, %v3229
      %v3253 = vmul.f32 %v1933, %v3231
      %v3254 = vmul.f32 %v1932, %v3233
      %v3255 = vmul.f32 %v1933, %v3235
      %v3256 = vmul.f32 %v1932, %v3237
      %v3257 = vmul.f32 %v1933, %v3239
      %v3258 = vmul.f32 %v1932, %v3241
      %v3259 = vmul.f32 %v1933, %v3243
      %v3260 = vmul.f32 %v1934, %v3229
      %v3261 = vmul.f32 %v1935, %v3231
      %v3262 = vmul.f32 %v1934, %v3233
      %v3263 = vmul.f32 %v1935, %v3235
      %v3264 = vmul.f32 %v1934, %v3237
      %v3265 = vmul.f32 %v1935, %v3239
      %v3266 = vmul.f32 %v1934, %v3241
      %v3267 = vmul.f32 %v1935, %v3243
      %v3268 = vmul.f32 %v1936, %v3229
      %v3269 = vmul.f32 %v1937, %v3231
      %v3270 = vmul.f32 %v1936, %v3233
      %v3271 = vmul.f32 %v1937, %v3235
      %v3272 = vmul.f32 %v1936, %v3237
      %v3273 = vmul.f32 %v1937, %v3239
      %v3274 = vmul.f32 %v1936, %v3241
      %v3275 = vmul.f32 %v1937, %v3243
      %v3276 = vmul.f32 %v1938, %v3229
      %v3277 = vmul.f32 %v1939, %v3231
      %v3278 = vmul.f32 %v1938, %v3233
      %v3279 = vmul.f32 %v1939, %v3235
      %v3280 = vmul.f32 %v1938, %v3237
      %v3281 = vmul.f32 %v1939, %v3239
      %v3282 = vmul.f32 %v1938, %v3241
      %v3283 = vmul.f32 %v1939, %v3243
      %v3284 = vadd.f32 %v3196, %v3252
      %v3285 = vadd.f32 %v3197, %v3253
      %v3286 = vadd.f32 %v3198, %v3254
      %v3287 = vadd.f32 %v3199, %v3255
      %v3288 = vadd.f32 %v3200, %v3256
      %v3289 = vadd.f32 %v3201, %v3257
      %v3290 = vadd.f32 %v3202, %v3258
      %v3291 = vadd.f32 %v3203, %v3259
      %v3292 = vadd.f32 %v3204, %v3260
      %v3293 = vadd.f32 %v3205, %v3261
      %v3294 = vadd.f32 %v3206, %v3262
      %v3295 = vadd.f32 %v3207, %v3263
      %v3296 = vadd.f32 %v3208, %v3264
      %v3297 = vadd.f32 %v3209, %v3265
      %v3298 = vadd.f32 %v3210, %v3266
      %v3299 = vadd.f32 %v3211, %v3267
      %v3300 = vadd.f32 %v3212, %v3268
      %v3301 = vadd.f32 %v3213, %v3269
      %v3302 = vadd.f32 %v3214, %v3270
      %v3303 = vadd.f32 %v3215, %v3271
      %v3304 = vadd.f32 %v3216, %v3272
      %v3305 = vadd.f32 %v3217, %v3273
      %v3306 = vadd.f32 %v3218, %v3274
      %v3307 = vadd.f32 %v3219, %v3275
      %v3308 = vadd.f32 %v3220, %v3276
      %v3309 = vadd.f32 %v3221, %v3277
      %v3310 = vadd.f32 %v3222, %v3278
      %v3311 = vadd.f32 %v3223, %v3279
      %v3312 = vadd.f32 %v3224, %v3280
      %v3313 = vadd.f32 %v3225, %v3281
      %v3314 = vadd.f32 %v3226, %v3282
      %v3315 = vadd.f32 %v3227, %v3283
      %v3316 = vld [vmem:[#allocation2 + $0x3] sm:$0xff]
      %v3317 = vld [vmem:[#allocation2 + $0xb] sm:$0xff]
      %v3318 = vld [vmem:[#allocation2 + $0x1b] sm:$0xff]
      %v3319 = vld [vmem:[#allocation2 + $0x23] sm:$0xff]
      %v3320 = vld [vmem:[#allocation2 + $0x33] sm:$0xff]
      %v3321 = vld [vmem:[#allocation2 + $0x3b] sm:$0xff]
      %v3322 = vld [vmem:[#allocation2 + $0x4b] sm:$0xff]
      %v3323 = vld [vmem:[#allocation2 + $0x53] sm:$0xff]
      %v3324 = vmul.f32 %v1940, %v3316
      %v3325 = vmul.f32 %v1941, %v3317
      %v3326 = vmul.f32 %v1940, %v3318
      %v3327 = vmul.f32 %v1941, %v3319
      %v3328 = vmul.f32 %v1940, %v3320
      %v3329 = vmul.f32 %v1941, %v3321
      %v3330 = vmul.f32 %v1940, %v3322
      %v3331 = vmul.f32 %v1941, %v3323
      %v3332 = vmul.f32 %v1942, %v3316
      %v3333 = vmul.f32 %v1943, %v3317
      %v3334 = vmul.f32 %v1942, %v3318
      %v3335 = vmul.f32 %v1943, %v3319
      %v3336 = vmul.f32 %v1942, %v3320
      %v3337 = vmul.f32 %v1943, %v3321
      %v3338 = vmul.f32 %v1942, %v3322
      %v3339 = vmul.f32 %v1943, %v3323
      %v3340 = vmul.f32 %v1944, %v3316
      %v3341 = vmul.f32 %v1945, %v3317
      %v3342 = vmul.f32 %v1944, %v3318
      %v3343 = vmul.f32 %v1945, %v3319
      %v3344 = vmul.f32 %v1944, %v3320
      %v3345 = vmul.f32 %v1945, %v3321
      %v3346 = vmul.f32 %v1944, %v3322
      %v3347 = vmul.f32 %v1945, %v3323
      %v3348 = vmul.f32 %v1946, %v3316
      %v3349 = vmul.f32 %v1947, %v3317
      %v3350 = vmul.f32 %v1946, %v3318
      %v3351 = vmul.f32 %v1947, %v3319
      %v3352 = vmul.f32 %v1946, %v3320
      %v3353 = vmul.f32 %v1947, %v3321
      %v3354 = vmul.f32 %v1946, %v3322
      %v3355 = vmul.f32 %v1947, %v3323
      %v3356 = vadd.f32 %v3284, %v3324
      %v3357 = vadd.f32 %v3285, %v3325
      %v3358 = vadd.f32 %v3286, %v3326
      %v3359 = vadd.f32 %v3287, %v3327
      %v3360 = vadd.f32 %v3288, %v3328
      %v3361 = vadd.f32 %v3289, %v3329
      %v3362 = vadd.f32 %v3290, %v3330
      %v3363 = vadd.f32 %v3291, %v3331
      %v3364 = vadd.f32 %v3292, %v3332
      %v3365 = vadd.f32 %v3293, %v3333
      %v3366 = vadd.f32 %v3294, %v3334
      %v3367 = vadd.f32 %v3295, %v3335
      %v3368 = vadd.f32 %v3296, %v3336
      %v3369 = vadd.f32 %v3297, %v3337
      %v3370 = vadd.f32 %v3298, %v3338
      %v3371 = vadd.f32 %v3299, %v3339
      %v3372 = vadd.f32 %v3300, %v3340
      %v3373 = vadd.f32 %v3301, %v3341
      %v3374 = vadd.f32 %v3302, %v3342
      %v3375 = vadd.f32 %v3303, %v3343
      %v3376 = vadd.f32 %v3304, %v3344
      %v3377 = vadd.f32 %v3305, %v3345
      %v3378 = vadd.f32 %v3306, %v3346
      %v3379 = vadd.f32 %v3307, %v3347
      %v3380 = vadd.f32 %v3308, %v3348
      %v3381 = vadd.f32 %v3309, %v3349
      %v3382 = vadd.f32 %v3310, %v3350
      %v3383 = vadd.f32 %v3311, %v3351
      %v3384 = vadd.f32 %v3312, %v3352
      %v3385 = vadd.f32 %v3313, %v3353
      %v3386 = vadd.f32 %v3314, %v3354
      %v3387 = vadd.f32 %v3315, %v3355
      %3396 = vrot.lane.b32.xlu0 %v3316, 127
      %v3397 = vpop.permute.xlu0 %3396
      %3398 = vrot.lane.b32.xlu0 %v3317, 127
      %v3399 = vpop.permute.xlu0 %3398
      %3400 = vrot.lane.b32.xlu0 %v3318, 127
      %v3401 = vpop.permute.xlu0 %3400
      %3402 = vrot.lane.b32.xlu0 %v3319, 127
      %v3403 = vpop.permute.xlu0 %3402
      %3404 = vrot.lane.b32.xlu0 %v3320, 127
      %v3405 = vpop.permute.xlu0 %3404
      %3406 = vrot.lane.b32.xlu0 %v3321, 127
      %v3407 = vpop.permute.xlu0 %3406
      %3408 = vrot.lane.b32.xlu0 %v3322, 127
      %v3409 = vpop.permute.xlu0 %3408
      %3410 = vrot.lane.b32.xlu0 %v3323, 127
      %v3411 = vpop.permute.xlu0 %3410
      %v3420 = vmul.f32 %v1948, %v3397
      %v3421 = vmul.f32 %v1949, %v3399
      %v3422 = vmul.f32 %v1948, %v3401
      %v3423 = vmul.f32 %v1949, %v3403
      %v3424 = vmul.f32 %v1948, %v3405
      %v3425 = vmul.f32 %v1949, %v3407
      %v3426 = vmul.f32 %v1948, %v3409
      %v3427 = vmul.f32 %v1949, %v3411
      %v3428 = vmul.f32 %v1950, %v3397
      %v3429 = vmul.f32 %v1951, %v3399
      %v3430 = vmul.f32 %v1950, %v3401
      %v3431 = vmul.f32 %v1951, %v3403
      %v3432 = vmul.f32 %v1950, %v3405
      %v3433 = vmul.f32 %v1951, %v3407
      %v3434 = vmul.f32 %v1950, %v3409
      %v3435 = vmul.f32 %v1951, %v3411
      %v3436 = vmul.f32 %v1952, %v3397
      %v3437 = vmul.f32 %v1953, %v3399
      %v3438 = vmul.f32 %v1952, %v3401
      %v3439 = vmul.f32 %v1953, %v3403
      %v3440 = vmul.f32 %v1952, %v3405
      %v3441 = vmul.f32 %v1953, %v3407
      %v3442 = vmul.f32 %v1952, %v3409
      %v3443 = vmul.f32 %v1953, %v3411
      %v3444 = vmul.f32 %v1954, %v3397
      %v3445 = vmul.f32 %v1955, %v3399
      %v3446 = vmul.f32 %v1954, %v3401
      %v3447 = vmul.f32 %v1955, %v3403
      %v3448 = vmul.f32 %v1954, %v3405
      %v3449 = vmul.f32 %v1955, %v3407
      %v3450 = vmul.f32 %v1954, %v3409
      %v3451 = vmul.f32 %v1955, %v3411
      %v3452 = vadd.f32 %v3356, %v3420
      %v3453 = vadd.f32 %v3357, %v3421
      %v3454 = vadd.f32 %v3358, %v3422
      %v3455 = vadd.f32 %v3359, %v3423
      %v3456 = vadd.f32 %v3360, %v3424
      %v3457 = vadd.f32 %v3361, %v3425
      %v3458 = vadd.f32 %v3362, %v3426
      %v3459 = vadd.f32 %v3363, %v3427
      %v3460 = vadd.f32 %v3364, %v3428
      %v3461 = vadd.f32 %v3365, %v3429
      %v3462 = vadd.f32 %v3366, %v3430
      %v3463 = vadd.f32 %v3367, %v3431
      %v3464 = vadd.f32 %v3368, %v3432
      %v3465 = vadd.f32 %v3369, %v3433
      %v3466 = vadd.f32 %v3370, %v3434
      %v3467 = vadd.f32 %v3371, %v3435
      %v3468 = vadd.f32 %v3372, %v3436
      %v3469 = vadd.f32 %v3373, %v3437
      %v3470 = vadd.f32 %v3374, %v3438
      %v3471 = vadd.f32 %v3375, %v3439
      %v3472 = vadd.f32 %v3376, %v3440
      %v3473 = vadd.f32 %v3377, %v3441
      %v3474 = vadd.f32 %v3378, %v3442
      %v3475 = vadd.f32 %v3379, %v3443
      %v3476 = vadd.f32 %v3380, %v3444
      %v3477 = vadd.f32 %v3381, %v3445
      %v3478 = vadd.f32 %v3382, %v3446
      %v3479 = vadd.f32 %v3383, %v3447
      %v3480 = vadd.f32 %v3384, %v3448
      %v3481 = vadd.f32 %v3385, %v3449
      %v3482 = vadd.f32 %v3386, %v3450
      %v3483 = vadd.f32 %v3387, %v3451
      %3484 = vrot.lane.b32.xlu0 %v3316, 126
      %v3485 = vpop.permute.xlu0 %3484
      %3486 = vrot.lane.b32.xlu0 %v3317, 126
      %v3487 = vpop.permute.xlu0 %3486
      %3488 = vrot.lane.b32.xlu0 %v3318, 126
      %v3489 = vpop.permute.xlu0 %3488
      %3490 = vrot.lane.b32.xlu0 %v3319, 126
      %v3491 = vpop.permute.xlu0 %3490
      %3492 = vrot.lane.b32.xlu0 %v3320, 126
      %v3493 = vpop.permute.xlu0 %3492
      %3494 = vrot.lane.b32.xlu0 %v3321, 126
      %v3495 = vpop.permute.xlu0 %3494
      %3496 = vrot.lane.b32.xlu0 %v3322, 126
      %v3497 = vpop.permute.xlu0 %3496
      %3498 = vrot.lane.b32.xlu0 %v3323, 126
      %v3499 = vpop.permute.xlu0 %3498
      %v3508 = vmul.f32 %v1956, %v3485
      %v3509 = vmul.f32 %v1957, %v3487
      %v3510 = vmul.f32 %v1956, %v3489
      %v3511 = vmul.f32 %v1957, %v3491
      %v3512 = vmul.f32 %v1956, %v3493
      %v3513 = vmul.f32 %v1957, %v3495
      %v3514 = vmul.f32 %v1956, %v3497
      %v3515 = vmul.f32 %v1957, %v3499
      %v3516 = vmul.f32 %v1958, %v3485
      %v3517 = vmul.f32 %v1959, %v3487
      %v3518 = vmul.f32 %v1958, %v3489
      %v3519 = vmul.f32 %v1959, %v3491
      %v3520 = vmul.f32 %v1958, %v3493
      %v3521 = vmul.f32 %v1959, %v3495
      %v3522 = vmul.f32 %v1958, %v3497
      %v3523 = vmul.f32 %v1959, %v3499
      %v3524 = vmul.f32 %v1960, %v3485
      %v3525 = vmul.f32 %v1961, %v3487
      %v3526 = vmul.f32 %v1960, %v3489
      %v3527 = vmul.f32 %v1961, %v3491
      %v3528 = vmul.f32 %v1960, %v3493
      %v3529 = vmul.f32 %v1961, %v3495
      %v3530 = vmul.f32 %v1960, %v3497
      %v3531 = vmul.f32 %v1961, %v3499
      %v3532 = vmul.f32 %v1962, %v3485
      %v3533 = vmul.f32 %v1963, %v3487
      %v3534 = vmul.f32 %v1962, %v3489
      %v3535 = vmul.f32 %v1963, %v3491
      %v3536 = vmul.f32 %v1962, %v3493
      %v3537 = vmul.f32 %v1963, %v3495
      %v3538 = vmul.f32 %v1962, %v3497
      %v3539 = vmul.f32 %v1963, %v3499
      %v3540 = vadd.f32 %v3452, %v3508
      %v3541 = vadd.f32 %v3453, %v3509
      %v3542 = vadd.f32 %v3454, %v3510
      %v3543 = vadd.f32 %v3455, %v3511
      %v3544 = vadd.f32 %v3456, %v3512
      %v3545 = vadd.f32 %v3457, %v3513
      %v3546 = vadd.f32 %v3458, %v3514
      %v3547 = vadd.f32 %v3459, %v3515
      %v3548 = vadd.f32 %v3460, %v3516
      %v3549 = vadd.f32 %v3461, %v3517
      %v3550 = vadd.f32 %v3462, %v3518
      %v3551 = vadd.f32 %v3463, %v3519
      %v3552 = vadd.f32 %v3464, %v3520
      %v3553 = vadd.f32 %v3465, %v3521
      %v3554 = vadd.f32 %v3466, %v3522
      %v3555 = vadd.f32 %v3467, %v3523
      %v3556 = vadd.f32 %v3468, %v3524
      %v3557 = vadd.f32 %v3469, %v3525
      %v3558 = vadd.f32 %v3470, %v3526
      %v3559 = vadd.f32 %v3471, %v3527
      %v3560 = vadd.f32 %v3472, %v3528
      %v3561 = vadd.f32 %v3473, %v3529
      %v3562 = vadd.f32 %v3474, %v3530
      %v3563 = vadd.f32 %v3475, %v3531
      %v3564 = vadd.f32 %v3476, %v3532
      %v3565 = vadd.f32 %v3477, %v3533
      %v3566 = vadd.f32 %v3478, %v3534
      %v3567 = vadd.f32 %v3479, %v3535
      %v3568 = vadd.f32 %v3480, %v3536
      %v3569 = vadd.f32 %v3481, %v3537
      %v3570 = vadd.f32 %v3482, %v3538
      %v3571 = vadd.f32 %v3483, %v3539
      %3572 = vrot.lane.b32.xlu0 %v3316, 125
      %v3573 = vpop.permute.xlu0 %3572
      %3574 = vrot.lane.b32.xlu0 %v3317, 125
      %v3575 = vpop.permute.xlu0 %3574
      %3576 = vrot.lane.b32.xlu0 %v3318, 125
      %v3577 = vpop.permute.xlu0 %3576
      %3578 = vrot.lane.b32.xlu0 %v3319, 125
      %v3579 = vpop.permute.xlu0 %3578
      %3580 = vrot.lane.b32.xlu0 %v3320, 125
      %v3581 = vpop.permute.xlu0 %3580
      %3582 = vrot.lane.b32.xlu0 %v3321, 125
      %v3583 = vpop.permute.xlu0 %3582
      %3584 = vrot.lane.b32.xlu0 %v3322, 125
      %v3585 = vpop.permute.xlu0 %3584
      %3586 = vrot.lane.b32.xlu0 %v3323, 125
      %v3587 = vpop.permute.xlu0 %3586
      %v3596 = vmul.f32 %v1964, %v3573
      %v3597 = vmul.f32 %v1965, %v3575
      %v3598 = vmul.f32 %v1964, %v3577
      %v3599 = vmul.f32 %v1965, %v3579
      %v3600 = vmul.f32 %v1964, %v3581
      %v3601 = vmul.f32 %v1965, %v3583
      %v3602 = vmul.f32 %v1964, %v3585
      %v3603 = vmul.f32 %v1965, %v3587
      %v3604 = vmul.f32 %v1966, %v3573
      %v3605 = vmul.f32 %v1967, %v3575
      %v3606 = vmul.f32 %v1966, %v3577
      %v3607 = vmul.f32 %v1967, %v3579
      %v3608 = vmul.f32 %v1966, %v3581
      %v3609 = vmul.f32 %v1967, %v3583
      %v3610 = vmul.f32 %v1966, %v3585
      %v3611 = vmul.f32 %v1967, %v3587
      %v3612 = vmul.f32 %v1968, %v3573
      %v3613 = vmul.f32 %v1969, %v3575
      %v3614 = vmul.f32 %v1968, %v3577
      %v3615 = vmul.f32 %v1969, %v3579
      %v3616 = vmul.f32 %v1968, %v3581
      %v3617 = vmul.f32 %v1969, %v3583
      %v3618 = vmul.f32 %v1968, %v3585
      %v3619 = vmul.f32 %v1969, %v3587
      %v3620 = vmul.f32 %v1970, %v3573
      %v3621 = vmul.f32 %v1971, %v3575
      %v3622 = vmul.f32 %v1970, %v3577
      %v3623 = vmul.f32 %v1971, %v3579
      %v3624 = vmul.f32 %v1970, %v3581
      %v3625 = vmul.f32 %v1971, %v3583
      %v3626 = vmul.f32 %v1970, %v3585
      %v3627 = vmul.f32 %v1971, %v3587
      %v3628 = vadd.f32 %v3540, %v3596
      %v3629 = vadd.f32 %v3541, %v3597
      %v3630 = vadd.f32 %v3542, %v3598
      %v3631 = vadd.f32 %v3543, %v3599
      %v3632 = vadd.f32 %v3544, %v3600
      %v3633 = vadd.f32 %v3545, %v3601
      %v3634 = vadd.f32 %v3546, %v3602
      %v3635 = vadd.f32 %v3547, %v3603
      %v3636 = vadd.f32 %v3548, %v3604
      %v3637 = vadd.f32 %v3549, %v3605
      %v3638 = vadd.f32 %v3550, %v3606
      %v3639 = vadd.f32 %v3551, %v3607
      %v3640 = vadd.f32 %v3552, %v3608
      %v3641 = vadd.f32 %v3553, %v3609
      %v3642 = vadd.f32 %v3554, %v3610
      %v3643 = vadd.f32 %v3555, %v3611
      %v3644 = vadd.f32 %v3556, %v3612
      %v3645 = vadd.f32 %v3557, %v3613
      %v3646 = vadd.f32 %v3558, %v3614
      %v3647 = vadd.f32 %v3559, %v3615
      %v3648 = vadd.f32 %v3560, %v3616
      %v3649 = vadd.f32 %v3561, %v3617
      %v3650 = vadd.f32 %v3562, %v3618
      %v3651 = vadd.f32 %v3563, %v3619
      %v3652 = vadd.f32 %v3564, %v3620
      %v3653 = vadd.f32 %v3565, %v3621
      %v3654 = vadd.f32 %v3566, %v3622
      %v3655 = vadd.f32 %v3567, %v3623
      %v3656 = vadd.f32 %v3568, %v3624
      %v3657 = vadd.f32 %v3569, %v3625
      %v3658 = vadd.f32 %v3570, %v3626
      %v3659 = vadd.f32 %v3571, %v3627
      %3660 = vrot.lane.b32.xlu0 %v3316, 124
      %v3661 = vpop.permute.xlu0 %3660
      %3662 = vrot.lane.b32.xlu0 %v3317, 124
      %v3663 = vpop.permute.xlu0 %3662
      %3664 = vrot.lane.b32.xlu0 %v3318, 124
      %v3665 = vpop.permute.xlu0 %3664
      %3666 = vrot.lane.b32.xlu0 %v3319, 124
      %v3667 = vpop.permute.xlu0 %3666
      %3668 = vrot.lane.b32.xlu0 %v3320, 124
      %v3669 = vpop.permute.xlu0 %3668
      %3670 = vrot.lane.b32.xlu0 %v3321, 124
      %v3671 = vpop.permute.xlu0 %3670
      %3672 = vrot.lane.b32.xlu0 %v3322, 124
      %v3673 = vpop.permute.xlu0 %3672
      %3674 = vrot.lane.b32.xlu0 %v3323, 124
      %v3675 = vpop.permute.xlu0 %3674
      %v3684 = vmul.f32 %v1972, %v3661
      %v3685 = vmul.f32 %v1973, %v3663
      %v3686 = vmul.f32 %v1972, %v3665
      %v3687 = vmul.f32 %v1973, %v3667
      %v3688 = vmul.f32 %v1972, %v3669
      %v3689 = vmul.f32 %v1973, %v3671
      %v3690 = vmul.f32 %v1972, %v3673
      %v3691 = vmul.f32 %v1973, %v3675
      %v3692 = vmul.f32 %v1974, %v3661
      %v3693 = vmul.f32 %v1975, %v3663
      %v3694 = vmul.f32 %v1974, %v3665
      %v3695 = vmul.f32 %v1975, %v3667
      %v3696 = vmul.f32 %v1974, %v3669
      %v3697 = vmul.f32 %v1975, %v3671
      %v3698 = vmul.f32 %v1974, %v3673
      %v3699 = vmul.f32 %v1975, %v3675
      %v3700 = vmul.f32 %v1976, %v3661
      %v3701 = vmul.f32 %v1977, %v3663
      %v3702 = vmul.f32 %v1976, %v3665
      %v3703 = vmul.f32 %v1977, %v3667
      %v3704 = vmul.f32 %v1976, %v3669
      %v3705 = vmul.f32 %v1977, %v3671
      %v3706 = vmul.f32 %v1976, %v3673
      %v3707 = vmul.f32 %v1977, %v3675
      %v3708 = vmul.f32 %v1978, %v3661
      %v3709 = vmul.f32 %v1979, %v3663
      %v3710 = vmul.f32 %v1978, %v3665
      %v3711 = vmul.f32 %v1979, %v3667
      %v3712 = vmul.f32 %v1978, %v3669
      %v3713 = vmul.f32 %v1979, %v3671
      %v3714 = vmul.f32 %v1978, %v3673
      %v3715 = vmul.f32 %v1979, %v3675
      %v3716 = vadd.f32 %v3628, %v3684
      %v3717 = vadd.f32 %v3629, %v3685
      %v3718 = vadd.f32 %v3630, %v3686
      %v3719 = vadd.f32 %v3631, %v3687
      %v3720 = vadd.f32 %v3632, %v3688
      %v3721 = vadd.f32 %v3633, %v3689
      %v3722 = vadd.f32 %v3634, %v3690
      %v3723 = vadd.f32 %v3635, %v3691
      %v3724 = vadd.f32 %v3636, %v3692
      %v3725 = vadd.f32 %v3637, %v3693
      %v3726 = vadd.f32 %v3638, %v3694
      %v3727 = vadd.f32 %v3639, %v3695
      %v3728 = vadd.f32 %v3640, %v3696
      %v3729 = vadd.f32 %v3641, %v3697
      %v3730 = vadd.f32 %v3642, %v3698
      %v3731 = vadd.f32 %v3643, %v3699
      %v3732 = vadd.f32 %v3644, %v3700
      %v3733 = vadd.f32 %v3645, %v3701
      %v3734 = vadd.f32 %v3646, %v3702
      %v3735 = vadd.f32 %v3647, %v3703
      %v3736 = vadd.f32 %v3648, %v3704
      %v3737 = vadd.f32 %v3649, %v3705
      %v3738 = vadd.f32 %v3650, %v3706
      %v3739 = vadd.f32 %v3651, %v3707
      %v3740 = vadd.f32 %v3652, %v3708
      %v3741 = vadd.f32 %v3653, %v3709
      %v3742 = vadd.f32 %v3654, %v3710
      %v3743 = vadd.f32 %v3655, %v3711
      %v3744 = vadd.f32 %v3656, %v3712
      %v3745 = vadd.f32 %v3657, %v3713
      %v3746 = vadd.f32 %v3658, %v3714
      %v3747 = vadd.f32 %v3659, %v3715
      %v3748 = vld [vmem:[#allocation2 + $0x4] sm:$0xff]
      %v3749 = vld [vmem:[#allocation2 + $0xc] sm:$0xff]
      %v3750 = vld [vmem:[#allocation2 + $0x1c] sm:$0xff]
      %v3751 = vld [vmem:[#allocation2 + $0x24] sm:$0xff]
      %v3752 = vld [vmem:[#allocation2 + $0x34] sm:$0xff]
      %v3753 = vld [vmem:[#allocation2 + $0x3c] sm:$0xff]
      %v3754 = vld [vmem:[#allocation2 + $0x4c] sm:$0xff]
      %v3755 = vld [vmem:[#allocation2 + $0x54] sm:$0xff]
      %v3756 = vmul.f32 %v1980, %v3748
      %v3757 = vmul.f32 %v1981, %v3749
      %v3758 = vmul.f32 %v1980, %v3750
      %v3759 = vmul.f32 %v1981, %v3751
      %v3760 = vmul.f32 %v1980, %v3752
      %v3761 = vmul.f32 %v1981, %v3753
      %v3762 = vmul.f32 %v1980, %v3754
      %v3763 = vmul.f32 %v1981, %v3755
      %v3764 = vmul.f32 %v1982, %v3748
      %v3765 = vmul.f32 %v1983, %v3749
      %v3766 = vmul.f32 %v1982, %v3750
      %v3767 = vmul.f32 %v1983, %v3751
      %v3768 = vmul.f32 %v1982, %v3752
      %v3769 = vmul.f32 %v1983, %v3753
      %v3770 = vmul.f32 %v1982, %v3754
      %v3771 = vmul.f32 %v1983, %v3755
      %v3772 = vmul.f32 %v1984, %v3748
      %v3773 = vmul.f32 %v1985, %v3749
      %v3774 = vmul.f32 %v1984, %v3750
      %v3775 = vmul.f32 %v1985, %v3751
      %v3776 = vmul.f32 %v1984, %v3752
      %v3777 = vmul.f32 %v1985, %v3753
      %v3778 = vmul.f32 %v1984, %v3754
      %v3779 = vmul.f32 %v1985, %v3755
      %v3780 = vmul.f32 %v1986, %v3748
      %v3781 = vmul.f32 %v1987, %v3749
      %v3782 = vmul.f32 %v1986, %v3750
      %v3783 = vmul.f32 %v1987, %v3751
      %v3784 = vmul.f32 %v1986, %v3752
      %v3785 = vmul.f32 %v1987, %v3753
      %v3786 = vmul.f32 %v1986, %v3754
      %v3787 = vmul.f32 %v1987, %v3755
      %v3788 = vadd.f32 %v3716, %v3756
      %v3789 = vadd.f32 %v3717, %v3757
      %v3790 = vadd.f32 %v3718, %v3758
      %v3791 = vadd.f32 %v3719, %v3759
      %v3792 = vadd.f32 %v3720, %v3760
      %v3793 = vadd.f32 %v3721, %v3761
      %v3794 = vadd.f32 %v3722, %v3762
      %v3795 = vadd.f32 %v3723, %v3763
      %v3796 = vadd.f32 %v3724, %v3764
      %v3797 = vadd.f32 %v3725, %v3765
      %v3798 = vadd.f32 %v3726, %v3766
      %v3799 = vadd.f32 %v3727, %v3767
      %v3800 = vadd.f32 %v3728, %v3768
      %v3801 = vadd.f32 %v3729, %v3769
      %v3802 = vadd.f32 %v3730, %v3770
      %v3803 = vadd.f32 %v3731, %v3771
      %v3804 = vadd.f32 %v3732, %v3772
      %v3805 = vadd.f32 %v3733, %v3773
      %v3806 = vadd.f32 %v3734, %v3774
      %v3807 = vadd.f32 %v3735, %v3775
      %v3808 = vadd.f32 %v3736, %v3776
      %v3809 = vadd.f32 %v3737, %v3777
      %v3810 = vadd.f32 %v3738, %v3778
      %v3811 = vadd.f32 %v3739, %v3779
      %v3812 = vadd.f32 %v3740, %v3780
      %v3813 = vadd.f32 %v3741, %v3781
      %v3814 = vadd.f32 %v3742, %v3782
      %v3815 = vadd.f32 %v3743, %v3783
      %v3816 = vadd.f32 %v3744, %v3784
      %v3817 = vadd.f32 %v3745, %v3785
      %v3818 = vadd.f32 %v3746, %v3786
      %v3819 = vadd.f32 %v3747, %v3787
      %3828 = vrot.lane.b32.xlu0 %v3748, 127
      %v3829 = vpop.permute.xlu0 %3828
      %3830 = vrot.lane.b32.xlu0 %v3749, 127
      %v3831 = vpop.permute.xlu0 %3830
      %3832 = vrot.lane.b32.xlu0 %v3750, 127
      %v3833 = vpop.permute.xlu0 %3832
      %3834 = vrot.lane.b32.xlu0 %v3751, 127
      %v3835 = vpop.permute.xlu0 %3834
      %3836 = vrot.lane.b32.xlu0 %v3752, 127
      %v3837 = vpop.permute.xlu0 %3836
      %3838 = vrot.lane.b32.xlu0 %v3753, 127
      %v3839 = vpop.permute.xlu0 %3838
      %3840 = vrot.lane.b32.xlu0 %v3754, 127
      %v3841 = vpop.permute.xlu0 %3840
      %3842 = vrot.lane.b32.xlu0 %v3755, 127
      %v3843 = vpop.permute.xlu0 %3842
      %v3852 = vmul.f32 %v1988, %v3829
      %v3853 = vmul.f32 %v1989, %v3831
      %v3854 = vmul.f32 %v1988, %v3833
      %v3855 = vmul.f32 %v1989, %v3835
      %v3856 = vmul.f32 %v1988, %v3837
      %v3857 = vmul.f32 %v1989, %v3839
      %v3858 = vmul.f32 %v1988, %v3841
      %v3859 = vmul.f32 %v1989, %v3843
      %v3860 = vmul.f32 %v1990, %v3829
      %v3861 = vmul.f32 %v1991, %v3831
      %v3862 = vmul.f32 %v1990, %v3833
      %v3863 = vmul.f32 %v1991, %v3835
      %v3864 = vmul.f32 %v1990, %v3837
      %v3865 = vmul.f32 %v1991, %v3839
      %v3866 = vmul.f32 %v1990, %v3841
      %v3867 = vmul.f32 %v1991, %v3843
      %v3868 = vmul.f32 %v1992, %v3829
      %v3869 = vmul.f32 %v1993, %v3831
      %v3870 = vmul.f32 %v1992, %v3833
      %v3871 = vmul.f32 %v1993, %v3835
      %v3872 = vmul.f32 %v1992, %v3837
      %v3873 = vmul.f32 %v1993, %v3839
      %v3874 = vmul.f32 %v1992, %v3841
      %v3875 = vmul.f32 %v1993, %v3843
      %v3876 = vmul.f32 %v1994, %v3829
      %v3877 = vmul.f32 %v1995, %v3831
      %v3878 = vmul.f32 %v1994, %v3833
      %v3879 = vmul.f32 %v1995, %v3835
      %v3880 = vmul.f32 %v1994, %v3837
      %v3881 = vmul.f32 %v1995, %v3839
      %v3882 = vmul.f32 %v1994, %v3841
      %v3883 = vmul.f32 %v1995, %v3843
      %v3884 = vadd.f32 %v3788, %v3852
      %v3885 = vadd.f32 %v3789, %v3853
      %v3886 = vadd.f32 %v3790, %v3854
      %v3887 = vadd.f32 %v3791, %v3855
      %v3888 = vadd.f32 %v3792, %v3856
      %v3889 = vadd.f32 %v3793, %v3857
      %v3890 = vadd.f32 %v3794, %v3858
      %v3891 = vadd.f32 %v3795, %v3859
      %v3892 = vadd.f32 %v3796, %v3860
      %v3893 = vadd.f32 %v3797, %v3861
      %v3894 = vadd.f32 %v3798, %v3862
      %v3895 = vadd.f32 %v3799, %v3863
      %v3896 = vadd.f32 %v3800, %v3864
      %v3897 = vadd.f32 %v3801, %v3865
      %v3898 = vadd.f32 %v3802, %v3866
      %v3899 = vadd.f32 %v3803, %v3867
      %v3900 = vadd.f32 %v3804, %v3868
      %v3901 = vadd.f32 %v3805, %v3869
      %v3902 = vadd.f32 %v3806, %v3870
      %v3903 = vadd.f32 %v3807, %v3871
      %v3904 = vadd.f32 %v3808, %v3872
      %v3905 = vadd.f32 %v3809, %v3873
      %v3906 = vadd.f32 %v3810, %v3874
      %v3907 = vadd.f32 %v3811, %v3875
      %v3908 = vadd.f32 %v3812, %v3876
      %v3909 = vadd.f32 %v3813, %v3877
      %v3910 = vadd.f32 %v3814, %v3878
      %v3911 = vadd.f32 %v3815, %v3879
      %v3912 = vadd.f32 %v3816, %v3880
      %v3913 = vadd.f32 %v3817, %v3881
      %v3914 = vadd.f32 %v3818, %v3882
      %v3915 = vadd.f32 %v3819, %v3883
      %3916 = vrot.lane.b32.xlu0 %v3748, 126
      %v3917 = vpop.permute.xlu0 %3916
      %3918 = vrot.lane.b32.xlu0 %v3749, 126
      %v3919 = vpop.permute.xlu0 %3918
      %3920 = vrot.lane.b32.xlu0 %v3750, 126
      %v3921 = vpop.permute.xlu0 %3920
      %3922 = vrot.lane.b32.xlu0 %v3751, 126
      %v3923 = vpop.permute.xlu0 %3922
      %3924 = vrot.lane.b32.xlu0 %v3752, 126
      %v3925 = vpop.permute.xlu0 %3924
      %3926 = vrot.lane.b32.xlu0 %v3753, 126
      %v3927 = vpop.permute.xlu0 %3926
      %3928 = vrot.lane.b32.xlu0 %v3754, 126
      %v3929 = vpop.permute.xlu0 %3928
      %3930 = vrot.lane.b32.xlu0 %v3755, 126
      %v3931 = vpop.permute.xlu0 %3930
      %v3940 = vmul.f32 %v1996, %v3917
      %v3941 = vmul.f32 %v1997, %v3919
      %v3942 = vmul.f32 %v1996, %v3921
      %v3943 = vmul.f32 %v1997, %v3923
      %v3944 = vmul.f32 %v1996, %v3925
      %v3945 = vmul.f32 %v1997, %v3927
      %v3946 = vmul.f32 %v1996, %v3929
      %v3947 = vmul.f32 %v1997, %v3931
      %v3948 = vmul.f32 %v1998, %v3917
      %v3949 = vmul.f32 %v1999, %v3919
      %v3950 = vmul.f32 %v1998, %v3921
      %v3951 = vmul.f32 %v1999, %v3923
      %v3952 = vmul.f32 %v1998, %v3925
      %v3953 = vmul.f32 %v1999, %v3927
      %v3954 = vmul.f32 %v1998, %v3929
      %v3955 = vmul.f32 %v1999, %v3931
      %v3956 = vmul.f32 %v2000, %v3917
      %v3957 = vmul.f32 %v2001, %v3919
      %v3958 = vmul.f32 %v2000, %v3921
      %v3959 = vmul.f32 %v2001, %v3923
      %v3960 = vmul.f32 %v2000, %v3925
      %v3961 = vmul.f32 %v2001, %v3927
      %v3962 = vmul.f32 %v2000, %v3929
      %v3963 = vmul.f32 %v2001, %v3931
      %v3964 = vmul.f32 %v2002, %v3917
      %v3965 = vmul.f32 %v2003, %v3919
      %v3966 = vmul.f32 %v2002, %v3921
      %v3967 = vmul.f32 %v2003, %v3923
      %v3968 = vmul.f32 %v2002, %v3925
      %v3969 = vmul.f32 %v2003, %v3927
      %v3970 = vmul.f32 %v2002, %v3929
      %v3971 = vmul.f32 %v2003, %v3931
      %v3972 = vadd.f32 %v3884, %v3940
      %v3973 = vadd.f32 %v3885, %v3941
      %v3974 = vadd.f32 %v3886, %v3942
      %v3975 = vadd.f32 %v3887, %v3943
      %v3976 = vadd.f32 %v3888, %v3944
      %v3977 = vadd.f32 %v3889, %v3945
      %v3978 = vadd.f32 %v3890, %v3946
      %v3979 = vadd.f32 %v3891, %v3947
      %v3980 = vadd.f32 %v3892, %v3948
      %v3981 = vadd.f32 %v3893, %v3949
      %v3982 = vadd.f32 %v3894, %v3950
      %v3983 = vadd.f32 %v3895, %v3951
      %v3984 = vadd.f32 %v3896, %v3952
      %v3985 = vadd.f32 %v3897, %v3953
      %v3986 = vadd.f32 %v3898, %v3954
      %v3987 = vadd.f32 %v3899, %v3955
      %v3988 = vadd.f32 %v3900, %v3956
      %v3989 = vadd.f32 %v3901, %v3957
      %v3990 = vadd.f32 %v3902, %v3958
      %v3991 = vadd.f32 %v3903, %v3959
      %v3992 = vadd.f32 %v3904, %v3960
      %v3993 = vadd.f32 %v3905, %v3961
      %v3994 = vadd.f32 %v3906, %v3962
      %v3995 = vadd.f32 %v3907, %v3963
      %v3996 = vadd.f32 %v3908, %v3964
      %v3997 = vadd.f32 %v3909, %v3965
      %v3998 = vadd.f32 %v3910, %v3966
      %v3999 = vadd.f32 %v3911, %v3967
      %v4000 = vadd.f32 %v3912, %v3968
      %v4001 = vadd.f32 %v3913, %v3969
      %v4002 = vadd.f32 %v3914, %v3970
      %v4003 = vadd.f32 %v3915, %v3971
      %4004 = vrot.lane.b32.xlu0 %v3748, 125
      %v4005 = vpop.permute.xlu0 %4004
      %4006 = vrot.lane.b32.xlu0 %v3749, 125
      %v4007 = vpop.permute.xlu0 %4006
      %4008 = vrot.lane.b32.xlu0 %v3750, 125
      %v4009 = vpop.permute.xlu0 %4008
      %4010 = vrot.lane.b32.xlu0 %v3751, 125
      %v4011 = vpop.permute.xlu0 %4010
      %4012 = vrot.lane.b32.xlu0 %v3752, 125
      %v4013 = vpop.permute.xlu0 %4012
      %4014 = vrot.lane.b32.xlu0 %v3753, 125
      %v4015 = vpop.permute.xlu0 %4014
      %4016 = vrot.lane.b32.xlu0 %v3754, 125
      %v4017 = vpop.permute.xlu0 %4016
      %4018 = vrot.lane.b32.xlu0 %v3755, 125
      %v4019 = vpop.permute.xlu0 %4018
      %v4028 = vmul.f32 %v2004, %v4005
      %v4029 = vmul.f32 %v2005, %v4007
      %v4030 = vmul.f32 %v2004, %v4009
      %v4031 = vmul.f32 %v2005, %v4011
      %v4032 = vmul.f32 %v2004, %v4013
      %v4033 = vmul.f32 %v2005, %v4015
      %v4034 = vmul.f32 %v2004, %v4017
      %v4035 = vmul.f32 %v2005, %v4019
      %v4036 = vmul.f32 %v2006, %v4005
      %v4037 = vmul.f32 %v2007, %v4007
      %v4038 = vmul.f32 %v2006, %v4009
      %v4039 = vmul.f32 %v2007, %v4011
      %v4040 = vmul.f32 %v2006, %v4013
      %v4041 = vmul.f32 %v2007, %v4015
      %v4042 = vmul.f32 %v2006, %v4017
      %v4043 = vmul.f32 %v2007, %v4019
      %v4044 = vmul.f32 %v2008, %v4005
      %v4045 = vmul.f32 %v2009, %v4007
      %v4046 = vmul.f32 %v2008, %v4009
      %v4047 = vmul.f32 %v2009, %v4011
      %v4048 = vmul.f32 %v2008, %v4013
      %v4049 = vmul.f32 %v2009, %v4015
      %v4050 = vmul.f32 %v2008, %v4017
      %v4051 = vmul.f32 %v2009, %v4019
      %v4052 = vmul.f32 %v2010, %v4005
      %v4053 = vmul.f32 %v2011, %v4007
      %v4054 = vmul.f32 %v2010, %v4009
      %v4055 = vmul.f32 %v2011, %v4011
      %v4056 = vmul.f32 %v2010, %v4013
      %v4057 = vmul.f32 %v2011, %v4015
      %v4058 = vmul.f32 %v2010, %v4017
      %v4059 = vmul.f32 %v2011, %v4019
      %v4060 = vadd.f32 %v3972, %v4028
      %v4061 = vadd.f32 %v3973, %v4029
      %v4062 = vadd.f32 %v3974, %v4030
      %v4063 = vadd.f32 %v3975, %v4031
      %v4064 = vadd.f32 %v3976, %v4032
      %v4065 = vadd.f32 %v3977, %v4033
      %v4066 = vadd.f32 %v3978, %v4034
      %v4067 = vadd.f32 %v3979, %v4035
      %v4068 = vadd.f32 %v3980, %v4036
      %v4069 = vadd.f32 %v3981, %v4037
      %v4070 = vadd.f32 %v3982, %v4038
      %v4071 = vadd.f32 %v3983, %v4039
      %v4072 = vadd.f32 %v3984, %v4040
      %v4073 = vadd.f32 %v3985, %v4041
      %v4074 = vadd.f32 %v3986, %v4042
      %v4075 = vadd.f32 %v3987, %v4043
      %v4076 = vadd.f32 %v3988, %v4044
      %v4077 = vadd.f32 %v3989, %v4045
      %v4078 = vadd.f32 %v3990, %v4046
      %v4079 = vadd.f32 %v3991, %v4047
      %v4080 = vadd.f32 %v3992, %v4048
      %v4081 = vadd.f32 %v3993, %v4049
      %v4082 = vadd.f32 %v3994, %v4050
      %v4083 = vadd.f32 %v3995, %v4051
      %v4084 = vadd.f32 %v3996, %v4052
      %v4085 = vadd.f32 %v3997, %v4053
      %v4086 = vadd.f32 %v3998, %v4054
      %v4087 = vadd.f32 %v3999, %v4055
      %v4088 = vadd.f32 %v4000, %v4056
      %v4089 = vadd.f32 %v4001, %v4057
      %v4090 = vadd.f32 %v4002, %v4058
      %v4091 = vadd.f32 %v4003, %v4059
      %4092 = vrot.lane.b32.xlu0 %v3748, 124
      %v4093 = vpop.permute.xlu0 %4092
      %4094 = vrot.lane.b32.xlu0 %v3749, 124
      %v4095 = vpop.permute.xlu0 %4094
      %4096 = vrot.lane.b32.xlu0 %v3750, 124
      %v4097 = vpop.permute.xlu0 %4096
      %4098 = vrot.lane.b32.xlu0 %v3751, 124
      %v4099 = vpop.permute.xlu0 %4098
      %4100 = vrot.lane.b32.xlu0 %v3752, 124
      %v4101 = vpop.permute.xlu0 %4100
      %4102 = vrot.lane.b32.xlu0 %v3753, 124
      %v4103 = vpop.permute.xlu0 %4102
      %4104 = vrot.lane.b32.xlu0 %v3754, 124
      %v4105 = vpop.permute.xlu0 %4104
      %4106 = vrot.lane.b32.xlu0 %v3755, 124
      %v4107 = vpop.permute.xlu0 %4106
      %v4116 = vmul.f32 %v2012, %v4093
      %v4117 = vmul.f32 %v2013, %v4095
      %v4118 = vmul.f32 %v2012, %v4097
      %v4119 = vmul.f32 %v2013, %v4099
      %v4120 = vmul.f32 %v2012, %v4101
      %v4121 = vmul.f32 %v2013, %v4103
      %v4122 = vmul.f32 %v2012, %v4105
      %v4123 = vmul.f32 %v2013, %v4107
      %v4124 = vmul.f32 %v2014, %v4093
      %v4125 = vmul.f32 %v2015, %v4095
      %v4126 = vmul.f32 %v2014, %v4097
      %v4127 = vmul.f32 %v2015, %v4099
      %v4128 = vmul.f32 %v2014, %v4101
      %v4129 = vmul.f32 %v2015, %v4103
      %v4130 = vmul.f32 %v2014, %v4105
      %v4131 = vmul.f32 %v2015, %v4107
      %v4132 = vmul.f32 %v2016, %v4093
      %v4133 = vmul.f32 %v2017, %v4095
      %v4134 = vmul.f32 %v2016, %v4097
      %v4135 = vmul.f32 %v2017, %v4099
      %v4136 = vmul.f32 %v2016, %v4101
      %v4137 = vmul.f32 %v2017, %v4103
      %v4138 = vmul.f32 %v2016, %v4105
      %v4139 = vmul.f32 %v2017, %v4107
      %v4140 = vmul.f32 %v2018, %v4093
      %v4141 = vmul.f32 %v2019, %v4095
      %v4142 = vmul.f32 %v2018, %v4097
      %v4143 = vmul.f32 %v2019, %v4099
      %v4144 = vmul.f32 %v2018, %v4101
      %v4145 = vmul.f32 %v2019, %v4103
      %v4146 = vmul.f32 %v2018, %v4105
      %v4147 = vmul.f32 %v2019, %v4107
      %v4148 = vadd.f32 %v4060, %v4116
      %v4149 = vadd.f32 %v4061, %v4117
      %v4150 = vadd.f32 %v4062, %v4118
      %v4151 = vadd.f32 %v4063, %v4119
      %v4152 = vadd.f32 %v4064, %v4120
      %v4153 = vadd.f32 %v4065, %v4121
      %v4154 = vadd.f32 %v4066, %v4122
      %v4155 = vadd.f32 %v4067, %v4123
      %v4156 = vadd.f32 %v4068, %v4124
      %v4157 = vadd.f32 %v4069, %v4125
      %v4158 = vadd.f32 %v4070, %v4126
      %v4159 = vadd.f32 %v4071, %v4127
      %v4160 = vadd.f32 %v4072, %v4128
      %v4161 = vadd.f32 %v4073, %v4129
      %v4162 = vadd.f32 %v4074, %v4130
      %v4163 = vadd.f32 %v4075, %v4131
      %v4164 = vadd.f32 %v4076, %v4132
      %v4165 = vadd.f32 %v4077, %v4133
      %v4166 = vadd.f32 %v4078, %v4134
      %v4167 = vadd.f32 %v4079, %v4135
      %v4168 = vadd.f32 %v4080, %v4136
      %v4169 = vadd.f32 %v4081, %v4137
      %v4170 = vadd.f32 %v4082, %v4138
      %v4171 = vadd.f32 %v4083, %v4139
      %v4172 = vadd.f32 %v4084, %v4140
      %v4173 = vadd.f32 %v4085, %v4141
      %v4174 = vadd.f32 %v4086, %v4142
      %v4175 = vadd.f32 %v4087, %v4143
      %v4176 = vadd.f32 %v4088, %v4144
      %v4177 = vadd.f32 %v4089, %v4145
      %v4178 = vadd.f32 %v4090, %v4146
      %v4179 = vadd.f32 %v4091, %v4147
      %4180 = vst.msk [vmem:[%s163] sm:$0xff] %vm427, %v4148
      %4181 = vst.msk [vmem:[%s163 + $0x8] sm:$0xff] %vm427, %v4149
      %4182 = vst.msk [vmem:[%s163 + $0x10] sm:$0xff] %vm427, %v4150
      %4183 = vst.msk [vmem:[%s163 + $0x18] sm:$0xff] %vm427, %v4151
      %4184 = vst.msk [vmem:[%s163 + $0x20] sm:$0xff] %vm427, %v4152
      %4185 = vst.msk [vmem:[%s163 + $0x28] sm:$0xff] %vm427, %v4153
      %4186 = vst.msk [vmem:[%s163 + $0x30] sm:$0xff] %vm427, %v4154
      %4187 = vst.msk [vmem:[%s163 + $0x38] sm:$0xff] %vm427, %v4155
      %4188 = vst.msk [vmem:[%s163 + $0x40] sm:$0xff] %vm427, %v4156
      %4189 = vst.msk [vmem:[%s163 + $0x48] sm:$0xff] %vm427, %v4157
      %4190 = vst.msk [vmem:[%s163 + $0x50] sm:$0xff] %vm427, %v4158
      %4191 = vst.msk [vmem:[%s163 + $0x58] sm:$0xff] %vm427, %v4159
      %4192 = vst.msk [vmem:[%s163 + $0x60] sm:$0xff] %vm427, %v4160
      %4193 = vst.msk [vmem:[%s163 + $0x68] sm:$0xff] %vm427, %v4161
      %4194 = vst.msk [vmem:[%s163 + $0x70] sm:$0xff] %vm427, %v4162
      %4195 = vst.msk [vmem:[%s163 + $0x78] sm:$0xff] %vm427, %v4163
      %4196 = vst.msk [vmem:[%s163 + $0x80] sm:$0xff] %vm427, %v4164
      %4197 = vst.msk [vmem:[%s163 + $0x88] sm:$0xff] %vm427, %v4165
      %4198 = vst.msk [vmem:[%s163 + $0x90] sm:$0xff] %vm427, %v4166
      %4199 = vst.msk [vmem:[%s163 + $0x98] sm:$0xff] %vm427, %v4167
      %4200 = vst.msk [vmem:[%s163 + $0xa0] sm:$0xff] %vm427, %v4168
      %4201 = vst.msk [vmem:[%s163 + $0xa8] sm:$0xff] %vm427, %v4169
      %4202 = vst.msk [vmem:[%s163 + $0xb0] sm:$0xff] %vm427, %v4170
      %4203 = vst.msk [vmem:[%s163 + $0xb8] sm:$0xff] %vm427, %v4171
      %4204 = vst.msk [vmem:[%s163 + $0xc0] sm:$0xff] %vm427, %v4172
      %4205 = vst.msk [vmem:[%s163 + $0xc8] sm:$0xff] %vm427, %v4173
      %4206 = vst.msk [vmem:[%s163 + $0xd0] sm:$0xff] %vm427, %v4174
      %4207 = vst.msk [vmem:[%s163 + $0xd8] sm:$0xff] %vm427, %v4175
      %4208 = vst.msk [vmem:[%s163 + $0xe0] sm:$0xff] %vm427, %v4176
      %4209 = vst.msk [vmem:[%s163 + $0xe8] sm:$0xff] %vm427, %v4177
      %4210 = vst.msk [vmem:[%s163 + $0xf0] sm:$0xff] %vm427, %v4178
      %4211 = vst.msk [vmem:[%s163 + $0xf8] sm:$0xff] %vm427, %v4179
      %p4212 = scmp.lt.s32.totalorder %s13, 1
      %s4213 = scalar_select %p4212, %s13, 1
      %s4214 = smul.addr %s4213, 32
      %s4215 = smul.addr %s4214, 8
      %s4216 = scalar_lea.vmem %s2, %s4215
      // Predicated region
      $region29: #{gcmodule_forward_pallas.5} parent=27 // pred_check
        %p4217 = pneg %p83
      $region30: #{gcmodule_forward_pallas.5} parent=27 // pred_check_branch
        %4219 = sbr.rel (%p4217) target = $region32
      $region31: #{gcmodule_forward_pallas.5} parent=27 // pred_region
        _
      $region32: #{gcmodule_forward_pallas.5} parent=27 // pred_fallthru
        _
    $region28: #{gcmodule_forward_pallas.5} parent=5 // pred_fallthru
      _
    %p4220 = scmp.le.s32.totalorder 2, %s8
    // Predicated region
    $region33: #{gcmodule_forward_pallas.5} parent=5 // pred_check
      %p4221 = pneg %p4220
    $region34: #{gcmodule_forward_pallas.5} parent=5 // pred_check_branch
      %4223 = sbr.rel (%p4221) target = $region36
    $region35: #{gcmodule_forward_pallas.5} parent=5 // pred_region
      %s4224 = ssub.s32 %s8, 2
      // Predicated region
      $region37: #{gcmodule_forward_pallas.5} parent=35 // pred_check
        %p4225 = pneg %p89
      $region38: #{gcmodule_forward_pallas.5} parent=35 // pred_check_branch
        %4227 = sbr.rel (%p4225) target = $region40
      $region39: #{gcmodule_forward_pallas.5} parent=35 // pred_region
        %p4228 = scmp.lt.s32.totalorder %s14, 1
        %s4229 = scalar_select %p4228, %s14, 1
        %s4230 = smul.addr %s4229, 32
        %s4231 = smul.addr %s4230, 8
        %s4232 = scalar_lea.vmem %s2, %s4231
      $region40: #{gcmodule_forward_pallas.5} parent=35 // pred_fallthru
        _
    $region36: #{gcmodule_forward_pallas.5} parent=5 // pred_fallthru
      _
  $region6: #{gcmodule_forward_pallas.5} parent=0 // loop_footer
    %s12 = sadd.s32 1, %s8
  $region7: #{gcmodule_forward_pallas.5} parent=0 // loop_footer_branch
    %7 = sbr.rel target = $region3
  $region8: #{gcmodule_forward_pallas.5} parent=0 // loop_exit
    _

</llo_original>
